<compile_context>
chip_gen: v7x
topology: tpu7x:2x2x1
jax: 0.10.0
libtpu: 0.0.40
codegen_flags: <defaults>
</compile_context>

<pallas_src>
import numpy as np
import jax
import jax.numpy as jnp
from jax import lax
from jax.experimental import pallas as pl
from jax.experimental.pallas import tpu as pltpu

F32 = jnp.float32
BF16 = jnp.bfloat16
C_MAX = 128     # widest conv input (conv5) -> channel depth of the halo buffer


# ----------------------------------------------------------------------------
# constant resampling matrices (act on the row-major flattened H*W axis)
# ----------------------------------------------------------------------------

def _upsample1d_matrix(n):
    """(2n, n) matrix for 2x bilinear upsampling, align_corners=False."""
    u = np.zeros((2 * n, n), np.float32)
    for i in range(n):
        u[2 * i, max(i - 1, 0)] += 0.25
        u[2 * i, i] += 0.75
        u[2 * i + 1, i] += 0.75
        u[2 * i + 1, min(i + 1, n - 1)] += 0.25
    return u


def _upsample2d_matrix(h, w):
    """(4*h*w, h*w) separable 2x bilinear upsample on the flattened map.
    NOTE: O((HW)^2) memory; fine for small maps, switch to a separable
    two-matmul form for large resolutions (v7x VMEM)."""
    return np.kron(_upsample1d_matrix(h), _upsample1d_matrix(w))


def _maxpool_select_matrix(h, w):
    """(4*(h/2)*(w/2), h*w): four stacked 0/1 selection matrices, one per
    position inside the 2x2 pooling window."""
    hp, wp = h // 2, w // 2
    n = hp * wp
    m = np.zeros((4 * n, h * w), np.float32)
    for di in range(2):
        for dj in range(2):
            blk = di * 2 + dj
            for i in range(hp):
                for j in range(wp):
                    m[blk * n + i * wp + j, (2 * i + di) * w + (2 * j + dj)] = 1.0
    return m


# ----------------------------------------------------------------------------
# parameters
# ----------------------------------------------------------------------------

def init_params(key):
    """Logical parameters (kernel-friendly layouts of the torch module)."""
    def conv_w(k, cin, cout, ksz):
        fan_in = cin * ksz * ksz
        std = (2.0 / fan_in) ** 0.5        # kaiming_normal_(nonlinearity='relu')
        return std * jax.random.normal(k, (ksz, ksz, cin, cout), F32)

    ks = jax.random.split(key, 10)
    p = {}
    p['c1_w'] = conv_w(ks[0], 2, 16, 3);    p['c1_b'] = jnp.zeros((16,), F32)
    p['c2_w'] = conv_w(ks[1], 16, 32, 3);   p['c2_b'] = jnp.zeros((32,), F32)
    p['c3_w'] = conv_w(ks[2], 32, 64, 3);   p['c3_b'] = jnp.zeros((64,), F32)
    # SelfAttention(in_dim=64): 1x1 convs stored as (Cin, Cout) matrices
    p['wq'] = conv_w(ks[3], 64, 8, 1)[0, 0];  p['bq'] = jnp.zeros((8,), F32)
    p['wk'] = conv_w(ks[4], 64, 8, 1)[0, 0];  p['bk'] = jnp.zeros((8,), F32)
    p['wv'] = conv_w(ks[5], 64, 64, 1)[0, 0]; p['bv'] = jnp.zeros((64,), F32)
    p['gamma'] = jnp.zeros((1, 1), F32)       # torch init: gamma = 0
    p['c4_w'] = conv_w(ks[6], 64, 128, 3);  p['c4_b'] = jnp.zeros((128,), F32)
    p['c5_w'] = conv_w(ks[7], 128, 64, 3);  p['c5_b'] = jnp.zeros((64,), F32)
    p['c6_w'] = conv_w(ks[8], 64, 32, 3);   p['c6_b'] = jnp.zeros((32,), F32)
    p['out_w'] = conv_w(ks[9], 32, 2, 1)[0, 0]
    p['out_b'] = jnp.zeros((2,), F32)
    return p


def _flatten_conv_weight(w):
    """(3,3,cin,cout) -> (9*cin, cout) bf16; row (dy*3+dx)*cin + ci matches the
    im2col patch layout (tap t occupies lanes [t*cin, (t+1)*cin))."""
    kh, kw, cin, cout = w.shape
    return w.reshape(kh * kw * cin, cout).astype(BF16)


def pack_params(p, H, W):
    """Kernel-ready operands: bf16 flattened conv weights, fused QKV weight,
    bf16 head logit-difference row, and the constant pool/upsample matrices."""
    g = {}
    g['w1'] = _flatten_conv_weight(p['c1_w']); g['b1'] = p['c1_b'].reshape(1, -1)
    g['w2'] = _flatten_conv_weight(p['c2_w']); g['b2'] = p['c2_b'].reshape(1, -1)
    g['w3'] = _flatten_conv_weight(p['c3_w']); g['b3'] = p['c3_b'].reshape(1, -1)
    g['w4'] = _flatten_conv_weight(p['c4_w']); g['b4'] = p['c4_b'].reshape(1, -1)
    g['w5'] = _flatten_conv_weight(p['c5_w']); g['b5'] = p['c5_b'].reshape(1, -1)
    g['w6'] = _flatten_conv_weight(p['c6_w']); g['b6'] = p['c6_b'].reshape(1, -1)
    g['wqkv'] = jnp.concatenate([p['wq'], p['wk'], p['wv']], axis=1).astype(BF16)
    g['bqkv'] = jnp.concatenate([p['bq'], p['bk'], p['bv']]).reshape(1, -1)
    g['gamma'] = p['gamma']                                                # (1,1) f32
    # channel softmax over 2 logits == sigmoid(l0 - l1); fold the 1x1 conv into
    # a single logit-difference row vector (bf16 for the MXU head matmul).
    g['wd'] = (p['out_w'][:, 0] - p['out_w'][:, 1]).reshape(1, -1).astype(BF16)
    g['bd'] = (p['out_b'][0] - p['out_b'][1]).reshape(1, 1)                # (1,1) f32
    g['pool1'] = jnp.asarray(_maxpool_select_matrix(H, W), BF16)
    g['pool2'] = jnp.asarray(_maxpool_select_matrix(H // 2, W // 2), BF16)
    g['up1'] = jnp.asarray(_upsample2d_matrix(H // 4, W // 4), BF16)
    g['up2'] = jnp.asarray(_upsample2d_matrix(H // 2, W // 2), BF16)
    return g


# ----------------------------------------------------------------------------
# fused Pallas kernel
# ----------------------------------------------------------------------------

def _build_kernel(H, W):
    H2, W2, H4, W4 = H // 2, W // 2, H // 4, W // 4
    N1, N2, N4 = H * W, H2 * W2, H4 * W4

    def kernel(x_ref,
               w1_ref, b1_ref, pool1_ref,
               w2_ref, b2_ref, pool2_ref,
               w3_ref, b3_ref,
               wqkv_ref, bqkv_ref, gamma_ref,
               w4_ref, b4_ref, up1_ref,
               w5_ref, b5_ref, up2_ref,
               w6_ref, b6_ref,
               wd_ref, bd_ref,
               o_ref,
               pad_ref, patch_ref):

        # ---- helpers ---------------------------------------------------------
        def zero_halo(h, w, c):
            # Only the 1-pixel border ring needs zeroing: the interior is fully
            # overwritten and the conv dot never reads past channel c, so no
            # full-buffer zero fill and no step-0-gated init are needed.
            pad_ref[0:1, 0:w + 2, 0:c] = jnp.zeros((1, w + 2, c), F32)
            pad_ref[h + 1:h + 2, 0:w + 2, 0:c] = jnp.zeros((1, w + 2, c), F32)
            pad_ref[1:h + 1, 0:1, 0:c] = jnp.zeros((h, 1, c), F32)
            pad_ref[1:h + 1, w + 1:w + 2, 0:c] = jnp.zeros((h, 1, c), F32)

        def write_padded(y, h, w, c):
            """Write a flat (h*w, c) activation into the halo buffer with one
            block store (replaces the old per-row masked stores)."""
            zero_halo(h, w, c)
            pad_ref[1:h + 1, 1:w + 1, 0:c] = y.reshape(h, w, c)

        def conv3x3(w_ref, b_ref, h, w, cin):
            """im2col 3x3 conv + bias + ReLU.  Taps are packed at stride cin
            (K = 9*cin, no zero-padded MXU passes); patch + weight are bf16,
            accumulation is f32."""
            for dy in range(3):
                for dx in range(3):
                    t = dy * 3 + dx
                    tap = pad_ref[dy:dy + h, dx:dx + w, 0:cin]
                    patch_ref[0:h * w, t * cin:(t + 1) * cin] = (
                        tap.reshape(h * w, cin).astype(BF16))
            y = jnp.dot(patch_ref[0:h * w, 0:9 * cin], w_ref[...],
                        preferred_element_type=F32) + b_ref[0]
            return jnp.maximum(y, 0.0)

        def maxpool(pool_ref, y, n_out):
            """2x2/stride-2 max-pool via 0/1 selection matmul + elementwise max."""
            sel = jnp.dot(pool_ref[...], y.astype(BF16),
                          preferred_element_type=F32)
            return jnp.maximum(
                jnp.maximum(sel[0:n_out], sel[n_out:2 * n_out]),
                jnp.maximum(sel[2 * n_out:3 * n_out], sel[3 * n_out:4 * n_out]))

        # ---- conv1 (2 -> 16) on HxW, fused 2x2 max-pool ----------------------
        zero_halo(H, W, 2)
        pad_ref[1:H + 1, 1:W + 1, 0:2] = x_ref[0]        # ch0=depth, ch1=semantic
        y = conv3x3(w1_ref, b1_ref, H, W, 2)             # (N1, 16)
        y = maxpool(pool1_ref, y, N2)                    # (N2, 16)

        # ---- conv2 (16 -> 32) on H/2 x W/2, fused max-pool --------------------
        write_padded(y, H2, W2, 16)
        y = conv3x3(w2_ref, b2_ref, H2, W2, 16)          # (N2, 32)
        y = maxpool(pool2_ref, y, N4)                    # (N4, 32)

        # ---- conv3 (32 -> 64) on H/4 x W/4 ------------------------------------
        write_padded(y, H4, W4, 32)
        y = conv3x3(w3_ref, b3_ref, H4, W4, 32)          # (N4, 64)

        # ---- self-attention (fused QKV projection, exact softmax) -------------
        qkv = jnp.dot(y.astype(BF16), wqkv_ref[...],
                      preferred_element_type=F32) + bqkv_ref[0]
        q, k, v = qkv[:, 0:8], qkv[:, 8:16], qkv[:, 16:80]
        energy = lax.dot_general(q.astype(BF16), k.astype(BF16),
                                 (((1,), (1,)), ((), ())),
                                 preferred_element_type=F32)      # (N4, N4)
        energy = energy - jnp.max(energy, axis=-1, keepdims=True)
        pexp = jnp.exp(energy)
        attn = pexp / jnp.sum(pexp, axis=-1, keepdims=True)       # exact softmax
        y = gamma_ref[0, 0] * jnp.dot(attn.astype(BF16), v.astype(BF16),
                                      preferred_element_type=F32) + y

        # ---- conv4 (64 -> 128) on H/4 x W/4 -----------------------------------
        write_padded(y, H4, W4, 64)
        y = conv3x3(w4_ref, b4_ref, H4, W4, 64)          # (N4, 128)

        # ---- 2x bilinear upsample (constant matrix on the MXU) ----------------
        y = jnp.dot(up1_ref[...], y.astype(BF16), preferred_element_type=F32)

        # ---- conv5 (128 -> 64) on H/2 x W/2 -----------------------------------
        write_padded(y, H2, W2, 128)
        y = conv3x3(w5_ref, b5_ref, H2, W2, 128)         # (N2, 64)

        # ---- 2x bilinear upsample to H x W ------------------------------------
        y = jnp.dot(up2_ref[...], y.astype(BF16), preferred_element_type=F32)

        # ---- conv6 (64 -> 32) on H x W ----------------------------------------
        write_padded(y, H, W, 64)
        y = conv3x3(w6_ref, b6_ref, H, W, 64)            # (N1, 32)

        # ---- head: 1x1 conv (2ch) + channel softmax, lane-dense output --------
        # softmax([l0, l1])[0] = sigmoid(l0 - l1); computed as a (1, N1) row via
        # an MXU matmul (no cross-lane reduce), stored lane-dense.
        dlog = lax.dot_general(wd_ref[...], y.astype(BF16),
                               (((1,), (1,)), ((), ())),
                               preferred_element_type=F32) + bd_ref[0]   # (1, N1)
        t = jnp.exp(-jnp.abs(dlog))
        o_ref[0] = jnp.where(dlog >= 0.0, 1.0 / (1.0 + t), t / (1.0 + t))

    return kernel


def _const_spec(arr):
    zeros = (0,) * arr.ndim
    return pl.BlockSpec(arr.shape, lambda b: zeros)


def weight_predictor_forward(packed, depth_map, semantic_map):
    B, H, W = depth_map.shape
    assert H % 4 == 0 and W % 4 == 0, "medium net needs H, W divisible by 4"
    kernel = _build_kernel(H, W)
    N1 = H * W

    # torch.stack([depth, semantic], dim=1): channel 0 = depth, 1 = semantic
    x = jnp.stack([depth_map, semantic_map], axis=-1)               # (B, H, W, 2)

    operands = [x,
                packed['w1'], packed['b1'], packed['pool1'],
                packed['w2'], packed['b2'], packed['pool2'],
                packed['w3'], packed['b3'],
                packed['wqkv'], packed['bqkv'], packed['gamma'],
                packed['w4'], packed['b4'], packed['up1'],
                packed['w5'], packed['b5'], packed['up2'],
                packed['w6'], packed['b6'],
                packed['wd'], packed['bd']]

    in_specs = ([pl.BlockSpec((1, H, W, 2), lambda b: (b, 0, 0, 0))]
                + [_const_spec(a) for a in operands[1:]])

    # Lane-dense output: one (1, 1, N1) row per image (N1 multiple of 128);
    # w2 = 1 - w1 is computed in the wrapper (drops the redundant second map).
    w1_flat = pl.pallas_call(
        kernel,
        grid=(B,),
        in_specs=in_specs,
        out_specs=pl.BlockSpec((1, 1, N1), lambda b: (b, 0, 0)),
        out_shape=jax.ShapeDtypeStruct((B, 1, N1), F32),
        scratch_shapes=[
            pltpu.VMEM((H + 2, W + 2, C_MAX), F32),   # halo-padded activation
            pltpu.VMEM((N1, 9 * C_MAX), BF16),        # im2col patch (bf16)
        ],
        compiler_params=pltpu.CompilerParams(
            dimension_semantics=("parallel",),        # 2 TCs on v7x when B >= 2
            vmem_limit_bytes=48 * 1024 * 1024),
    )(*operands)

    w1 = w1_flat.reshape(B, H, W)
    return w1, 1.0 - w1


# ----------------------------------------------------------------------------
# pure-JAX reference (for validation only)
# ----------------------------------------------------------------------------

def reference_forward(p, depth_map, semantic_map):
    x = jnp.stack([depth_map, semantic_map], axis=-1)                  # NHWC

    def conv(x, w, b):
        y = lax.conv_general_dilated(x, w, (1, 1), ((1, 1), (1, 1)),
                                     dimension_numbers=('NHWC', 'HWIO', 'NHWC'))
        return jax.nn.relu(y + b)

    def pool(x):
        return lax.reduce_window(x, -jnp.inf, lax.max,
                                 (1, 2, 2, 1), (1, 2, 2, 1), 'VALID')

    def up(x):
        B, h, w, c = x.shape
        return jax.image.resize(x, (B, 2 * h, 2 * w, c), 'bilinear',
                                antialias=False)

    x = pool(conv(x, p['c1_w'], p['c1_b']))
    x = pool(conv(x, p['c2_w'], p['c2_b']))
    x = conv(x, p['c3_w'], p['c3_b'])
    B, h, w, C = x.shape
    xf = x.reshape(B, h * w, C)
    q = xf @ p['wq'] + p['bq']
    k = xf @ p['wk'] + p['bk']
    v = xf @ p['wv'] + p['bv']
    attn = jax.nn.softmax(jnp.einsum('bnc,bmc->bnm', q, k), axis=-1)
    xf = p['gamma'][0, 0] * jnp.einsum('bnm,bmc->bnc', attn, v) + xf
    x = xf.reshape(B, h, w, C)
    x = conv(x, p['c4_w'], p['c4_b'])
    x = conv(up(x), p['c5_w'], p['c5_b'])
    x = conv(up(x), p['c6_w'], p['c6_b'])
    logits = x @ p['out_w'] + p['out_b']
    wm = jax.nn.softmax(logits, axis=-1)
    return wm[..., 0], wm[..., 1]


# ----------------------------------------------------------------------------

if __name__ == "__main__":
    B, H, W = 2, 16, 16
    key = jax.random.PRNGKey(0)
    kd, ks, kp = jax.random.split(key, 3)
    depth_map = jax.random.normal(kd, (B, H, W), F32)
    semantic_map = jax.random.normal(ks, (B, H, W), F32)

    base_params = init_params(kp)
    fwd = jax.jit(weight_predictor_forward)

    # gamma=0.0 matches a freshly initialised torch module (attention is a
    # no-op); gamma=0.3 exercises the attention path numerically.
    for gamma in (0.0, 0.3):
        params = dict(base_params)
        params['gamma'] = jnp.full((1, 1), gamma, F32)
        packed = pack_params(params, H, W)

        w1, w2 = fwd(packed, depth_map, semantic_map)
        jax.block_until_ready((w1, w2))

        assert w1.shape == (B, H, W) and w2.shape == (B, H, W)
        assert bool(jnp.all(jnp.isfinite(w1))) and bool(jnp.all(jnp.isfinite(w2)))
        # channel softmax -> the two weight maps sum to 1
        assert bool(jnp.allclose(w1 + w2, 1.0, atol=1e-5))

        # validate against the pure-f32 JAX reference (kernel uses bf16 MXU
        # operands with f32 accumulation, hence the loose tolerance)
        r1, r2 = reference_forward(params, depth_map, semantic_map)
        err = float(jnp.maximum(jnp.max(jnp.abs(w1 - r1)),
                                jnp.max(jnp.abs(w2 - r2))))
        assert err < 1e-1, f"kernel/reference mismatch (gamma={gamma}): {err}"

    print("KERNEL_OK")
</pallas_src>

<mosaic_0001>
module attributes {stable_mosaic.version = 11 : i64} {
  func.func @kernel(%arg0: i32, %arg1: memref<1x16x16x2xf32, #tpu.memory_space<vmem>>, %arg2: memref<18x16xbf16, #tpu.memory_space<vmem>>, %arg3: memref<1x16xf32, #tpu.memory_space<vmem>>, %arg4: memref<256x256xbf16, #tpu.memory_space<vmem>>, %arg5: memref<144x32xbf16, #tpu.memory_space<vmem>>, %arg6: memref<1x32xf32, #tpu.memory_space<vmem>>, %arg7: memref<64x64xbf16, #tpu.memory_space<vmem>>, %arg8: memref<288x64xbf16, #tpu.memory_space<vmem>>, %arg9: memref<1x64xf32, #tpu.memory_space<vmem>>, %arg10: memref<64x80xbf16, #tpu.memory_space<vmem>>, %arg11: memref<1x80xf32, #tpu.memory_space<vmem>>, %arg12: memref<1x1xf32, #tpu.memory_space<vmem>>, %arg13: memref<576x128xbf16, #tpu.memory_space<vmem>>, %arg14: memref<1x128xf32, #tpu.memory_space<vmem>>, %arg15: memref<64x16xbf16, #tpu.memory_space<vmem>>, %arg16: memref<1152x64xbf16, #tpu.memory_space<vmem>>, %arg17: memref<1x64xf32, #tpu.memory_space<vmem>>, %arg18: memref<256x64xbf16, #tpu.memory_space<vmem>>, %arg19: memref<576x32xbf16, #tpu.memory_space<vmem>>, %arg20: memref<1x32xf32, #tpu.memory_space<vmem>>, %arg21: memref<1x32xbf16, #tpu.memory_space<vmem>>, %arg22: memref<1x1xf32, #tpu.memory_space<vmem>>, %arg23: memref<1x1x256xf32, #tpu.memory_space<vmem>>, %arg24: memref<18x18x128xf32, #tpu.memory_space<vmem>>, %arg25: memref<256x1152xbf16, #tpu.memory_space<vmem>>) attributes {dimension_semantics = [#tpu.dimension_semantics<parallel>], iteration_bounds = array<i64: 2>, scalar_prefetch = 0 : i64, scratch_operands = 2 : i64, tpu.core_type = #tpu.core_type<tc>, window_params = [{transform_indices = @transform_0, window_bounds = array<i64: 1, 16, 16, 2>}, {pipeline_mode = #tpu.pipeline_mode<synchronous>, transform_indices = @transform_1, window_bounds = array<i64: 18, 16>}, {pipeline_mode = #tpu.pipeline_mode<synchronous>, transform_indices = @transform_2, window_bounds = array<i64: 1, 16>}, {pipeline_mode = #tpu.pipeline_mode<synchronous>, transform_indices = @transform_3, window_bounds = array<i64: 256, 256>}, {pipeline_mode = #tpu.pipeline_mode<synchronous>, transform_indices = @transform_4, window_bounds = array<i64: 144, 32>}, {pipeline_mode = #tpu.pipeline_mode<synchronous>, transform_indices = @transform_5, window_bounds = array<i64: 1, 32>}, {pipeline_mode = #tpu.pipeline_mode<synchronous>, transform_indices = @transform_6, window_bounds = array<i64: 64, 64>}, {pipeline_mode = #tpu.pipeline_mode<synchronous>, transform_indices = @transform_7, window_bounds = array<i64: 288, 64>}, {pipeline_mode = #tpu.pipeline_mode<synchronous>, transform_indices = @transform_8, window_bounds = array<i64: 1, 64>}, {pipeline_mode = #tpu.pipeline_mode<synchronous>, transform_indices = @transform_9, window_bounds = array<i64: 64, 80>}, {pipeline_mode = #tpu.pipeline_mode<synchronous>, transform_indices = @transform_10, window_bounds = array<i64: 1, 80>}, {pipeline_mode = #tpu.pipeline_mode<synchronous>, transform_indices = @transform_11, window_bounds = array<i64: 1, 1>}, {pipeline_mode = #tpu.pipeline_mode<synchronous>, transform_indices = @transform_12, window_bounds = array<i64: 576, 128>}, {pipeline_mode = #tpu.pipeline_mode<synchronous>, transform_indices = @transform_13, window_bounds = array<i64: 1, 128>}, {pipeline_mode = #tpu.pipeline_mode<synchronous>, transform_indices = @transform_14, window_bounds = array<i64: 64, 16>}, {pipeline_mode = #tpu.pipeline_mode<synchronous>, transform_indices = @transform_15, window_bounds = array<i64: 1152, 64>}, {pipeline_mode = #tpu.pipeline_mode<synchronous>, transform_indices = @transform_16, window_bounds = array<i64: 1, 64>}, {pipeline_mode = #tpu.pipeline_mode<synchronous>, transform_indices = @transform_17, window_bounds = array<i64: 256, 64>}, {pipeline_mode = #tpu.pipeline_mode<synchronous>, transform_indices = @transform_18, window_bounds = array<i64: 576, 32>}, {pipeline_mode = #tpu.pipeline_mode<synchronous>, transform_indices = @transform_19, window_bounds = array<i64: 1, 32>}, {pipeline_mode = #tpu.pipeline_mode<synchronous>, transform_indices = @transform_20, window_bounds = array<i64: 1, 32>}, {pipeline_mode = #tpu.pipeline_mode<synchronous>, transform_indices = @transform_21, window_bounds = array<i64: 1, 1>}, {transform_indices = @transform_22, window_bounds = array<i64: 1, 1, 256>}]} {
    %cst = arith.constant 0.000000e+00 : f32
    %0 = vector.broadcast %cst : f32 to vector<1x18x2xf32>
    %c0 = arith.constant 0 : index
    %c0_0 = arith.constant 0 : index
    %c0_1 = arith.constant 0 : index
    %1 = vector.load %arg24[%c0, %c0_0, %c0_1] : memref<18x18x128xf32, #tpu.memory_space<vmem>>, vector<1x18x2xf32>
    tpu.vector_store %arg24[%c0, %c0_0, %c0_1], %0 {strides = array<i32>} : memref<18x18x128xf32, #tpu.memory_space<vmem>>, vector<1x18x2xf32>,
    %cst_2 = arith.constant 0.000000e+00 : f32
    %2 = vector.broadcast %cst_2 : f32 to vector<1x18x2xf32>
    %c17 = arith.constant 17 : index
    %c0_3 = arith.constant 0 : index
    %c0_4 = arith.constant 0 : index
    %3 = vector.load %arg24[%c17, %c0_3, %c0_4] : memref<18x18x128xf32, #tpu.memory_space<vmem>>, vector<1x18x2xf32>
    tpu.vector_store %arg24[%c17, %c0_3, %c0_4], %2 {strides = array<i32>} : memref<18x18x128xf32, #tpu.memory_space<vmem>>, vector<1x18x2xf32>,
    %cst_5 = arith.constant 0.000000e+00 : f32
    %4 = vector.broadcast %cst_5 : f32 to vector<16x1x2xf32>
    %c1 = arith.constant 1 : index
    %c0_6 = arith.constant 0 : index
    %c0_7 = arith.constant 0 : index
    %5 = vector.load %arg24[%c1, %c0_6, %c0_7] : memref<18x18x128xf32, #tpu.memory_space<vmem>>, vector<16x1x2xf32>
    tpu.vector_store %arg24[%c1, %c0_6, %c0_7], %4 {strides = array<i32>} : memref<18x18x128xf32, #tpu.memory_space<vmem>>, vector<16x1x2xf32>,
    %cst_8 = arith.constant 0.000000e+00 : f32
    %6 = vector.broadcast %cst_8 : f32 to vector<16x1x2xf32>
    %c1_9 = arith.constant 1 : index
    %c17_10 = arith.constant 17 : index
    %c0_11 = arith.constant 0 : index
    %7 = vector.load %arg24[%c1_9, %c17_10, %c0_11] : memref<18x18x128xf32, #tpu.memory_space<vmem>>, vector<16x1x2xf32>
    tpu.vector_store %arg24[%c1_9, %c17_10, %c0_11], %6 {strides = array<i32>} : memref<18x18x128xf32, #tpu.memory_space<vmem>>, vector<16x1x2xf32>,
    %c0_12 = arith.constant 0 : index
    %c0_13 = arith.constant 0 : index
    %c0_14 = arith.constant 0 : index
    %c0_15 = arith.constant 0 : index
    %8 = vector.load %arg1[%c0_12, %c0_13, %c0_14, %c0_15] : memref<1x16x16x2xf32, #tpu.memory_space<vmem>>, vector<1x16x16x2xf32>
    %9 = vector.shape_cast %8 : vector<1x16x16x2xf32> to vector<16x16x2xf32>
    %c1_16 = arith.constant 1 : index
    %c1_17 = arith.constant 1 : index
    %c0_18 = arith.constant 0 : index
    %10 = vector.load %arg24[%c1_16, %c1_17, %c0_18] : memref<18x18x128xf32, #tpu.memory_space<vmem>>, vector<16x16x2xf32>
    tpu.vector_store %arg24[%c1_16, %c1_17, %c0_18], %9 {strides = array<i32>} : memref<18x18x128xf32, #tpu.memory_space<vmem>>, vector<16x16x2xf32>,
    %c0_19 = arith.constant 0 : index
    %c0_20 = arith.constant 0 : index
    %c0_21 = arith.constant 0 : index
    %11 = vector.load %arg24[%c0_19, %c0_20, %c0_21] : memref<18x18x128xf32, #tpu.memory_space<vmem>>, vector<16x16x2xf32>
    %12 = vector.shape_cast %11 : vector<16x16x2xf32> to vector<256x2xf32>
    %13 = arith.truncf %12 : vector<256x2xf32> to vector<256x2xbf16>
    %c0_22 = arith.constant 0 : index
    %c0_23 = arith.constant 0 : index
    %14 = vector.load %arg25[%c0_22, %c0_23] : memref<256x1152xbf16, #tpu.memory_space<vmem>>, vector<256x2xbf16>
    tpu.vector_store %arg25[%c0_22, %c0_23], %13 {strides = array<i32>} : memref<256x1152xbf16, #tpu.memory_space<vmem>>, vector<256x2xbf16>,
    %c0_24 = arith.constant 0 : index
    %c1_25 = arith.constant 1 : index
    %c0_26 = arith.constant 0 : index
    %15 = vector.load %arg24[%c0_24, %c1_25, %c0_26] : memref<18x18x128xf32, #tpu.memory_space<vmem>>, vector<16x16x2xf32>
    %16 = vector.shape_cast %15 : vector<16x16x2xf32> to vector<256x2xf32>
    %17 = arith.truncf %16 : vector<256x2xf32> to vector<256x2xbf16>
    %c0_27 = arith.constant 0 : index
    %c2 = arith.constant 2 : index
    %18 = vector.load %arg25[%c0_27, %c2] : memref<256x1152xbf16, #tpu.memory_space<vmem>>, vector<256x2xbf16>
    tpu.vector_store %arg25[%c0_27, %c2], %17 {strides = array<i32>} : memref<256x1152xbf16, #tpu.memory_space<vmem>>, vector<256x2xbf16>,
    %c0_28 = arith.constant 0 : index
    %c2_29 = arith.constant 2 : index
    %c0_30 = arith.constant 0 : index
    %19 = vector.load %arg24[%c0_28, %c2_29, %c0_30] : memref<18x18x128xf32, #tpu.memory_space<vmem>>, vector<16x16x2xf32>
    %20 = vector.shape_cast %19 : vector<16x16x2xf32> to vector<256x2xf32>
    %21 = arith.truncf %20 : vector<256x2xf32> to vector<256x2xbf16>
    %c0_31 = arith.constant 0 : index
    %c4 = arith.constant 4 : index
    %22 = vector.load %arg25[%c0_31, %c4] : memref<256x1152xbf16, #tpu.memory_space<vmem>>, vector<256x2xbf16>
    tpu.vector_store %arg25[%c0_31, %c4], %21 {strides = array<i32>} : memref<256x1152xbf16, #tpu.memory_space<vmem>>, vector<256x2xbf16>,
    %c1_32 = arith.constant 1 : index
    %c0_33 = arith.constant 0 : index
    %c0_34 = arith.constant 0 : index
    %23 = vector.load %arg24[%c1_32, %c0_33, %c0_34] : memref<18x18x128xf32, #tpu.memory_space<vmem>>, vector<16x16x2xf32>
    %24 = vector.shape_cast %23 : vector<16x16x2xf32> to vector<256x2xf32>
    %25 = arith.truncf %24 : vector<256x2xf32> to vector<256x2xbf16>
    %c0_35 = arith.constant 0 : index
    %c6 = arith.constant 6 : index
    %26 = vector.load %arg25[%c0_35, %c6] : memref<256x1152xbf16, #tpu.memory_space<vmem>>, vector<256x2xbf16>
    tpu.vector_store %arg25[%c0_35, %c6], %25 {strides = array<i32>} : memref<256x1152xbf16, #tpu.memory_space<vmem>>, vector<256x2xbf16>,
    %c1_36 = arith.constant 1 : index
    %c1_37 = arith.constant 1 : index
    %c0_38 = arith.constant 0 : index
    %27 = vector.load %arg24[%c1_36, %c1_37, %c0_38] : memref<18x18x128xf32, #tpu.memory_space<vmem>>, vector<16x16x2xf32>
    %28 = vector.shape_cast %27 : vector<16x16x2xf32> to vector<256x2xf32>
    %29 = arith.truncf %28 : vector<256x2xf32> to vector<256x2xbf16>
    %c0_39 = arith.constant 0 : index
    %c8 = arith.constant 8 : index
    %30 = vector.load %arg25[%c0_39, %c8] : memref<256x1152xbf16, #tpu.memory_space<vmem>>, vector<256x2xbf16>
    tpu.vector_store %arg25[%c0_39, %c8], %29 {strides = array<i32>} : memref<256x1152xbf16, #tpu.memory_space<vmem>>, vector<256x2xbf16>,
    %c1_40 = arith.constant 1 : index
    %c2_41 = arith.constant 2 : index
    %c0_42 = arith.constant 0 : index
    %31 = vector.load %arg24[%c1_40, %c2_41, %c0_42] : memref<18x18x128xf32, #tpu.memory_space<vmem>>, vector<16x16x2xf32>
    %32 = vector.shape_cast %31 : vector<16x16x2xf32> to vector<256x2xf32>
    %33 = arith.truncf %32 : vector<256x2xf32> to vector<256x2xbf16>
    %c0_43 = arith.constant 0 : index
    %c10 = arith.constant 10 : index
    %34 = vector.load %arg25[%c0_43, %c10] : memref<256x1152xbf16, #tpu.memory_space<vmem>>, vector<256x2xbf16>
    tpu.vector_store %arg25[%c0_43, %c10], %33 {strides = array<i32>} : memref<256x1152xbf16, #tpu.memory_space<vmem>>, vector<256x2xbf16>,
    %c2_44 = arith.constant 2 : index
    %c0_45 = arith.constant 0 : index
    %c0_46 = arith.constant 0 : index
    %35 = vector.load %arg24[%c2_44, %c0_45, %c0_46] : memref<18x18x128xf32, #tpu.memory_space<vmem>>, vector<16x16x2xf32>
    %36 = vector.shape_cast %35 : vector<16x16x2xf32> to vector<256x2xf32>
    %37 = arith.truncf %36 : vector<256x2xf32> to vector<256x2xbf16>
    %c0_47 = arith.constant 0 : index
    %c12 = arith.constant 12 : index
    %38 = vector.load %arg25[%c0_47, %c12] : memref<256x1152xbf16, #tpu.memory_space<vmem>>, vector<256x2xbf16>
    tpu.vector_store %arg25[%c0_47, %c12], %37 {strides = array<i32>} : memref<256x1152xbf16, #tpu.memory_space<vmem>>, vector<256x2xbf16>,
    %c2_48 = arith.constant 2 : index
    %c1_49 = arith.constant 1 : index
    %c0_50 = arith.constant 0 : index
    %39 = vector.load %arg24[%c2_48, %c1_49, %c0_50] : memref<18x18x128xf32, #tpu.memory_space<vmem>>, vector<16x16x2xf32>
    %40 = vector.shape_cast %39 : vector<16x16x2xf32> to vector<256x2xf32>
    %41 = arith.truncf %40 : vector<256x2xf32> to vector<256x2xbf16>
    %c0_51 = arith.constant 0 : index
    %c14 = arith.constant 14 : index
    %42 = vector.load %arg25[%c0_51, %c14] : memref<256x1152xbf16, #tpu.memory_space<vmem>>, vector<256x2xbf16>
    tpu.vector_store %arg25[%c0_51, %c14], %41 {strides = array<i32>} : memref<256x1152xbf16, #tpu.memory_space<vmem>>, vector<256x2xbf16>,
    %c2_52 = arith.constant 2 : index
    %c2_53 = arith.constant 2 : index
    %c0_54 = arith.constant 0 : index
    %43 = vector.load %arg24[%c2_52, %c2_53, %c0_54] : memref<18x18x128xf32, #tpu.memory_space<vmem>>, vector<16x16x2xf32>
    %44 = vector.shape_cast %43 : vector<16x16x2xf32> to vector<256x2xf32>
    %45 = arith.truncf %44 : vector<256x2xf32> to vector<256x2xbf16>
    %c0_55 = arith.constant 0 : index
    %c16 = arith.constant 16 : index
    %46 = vector.load %arg25[%c0_55, %c16] : memref<256x1152xbf16, #tpu.memory_space<vmem>>, vector<256x2xbf16>
    tpu.vector_store %arg25[%c0_55, %c16], %45 {strides = array<i32>} : memref<256x1152xbf16, #tpu.memory_space<vmem>>, vector<256x2xbf16>,
    %c0_56 = arith.constant 0 : index
    %c0_57 = arith.constant 0 : index
    %47 = vector.load %arg25[%c0_56, %c0_57] : memref<256x1152xbf16, #tpu.memory_space<vmem>>, vector<256x18xbf16>
    %c0_58 = arith.constant 0 : index
    %c0_59 = arith.constant 0 : index
    %48 = vector.load %arg2[%c0_58, %c0_59] : memref<18x16xbf16, #tpu.memory_space<vmem>>, vector<18x16xbf16>
    %cst_60 = arith.constant dense<0.000000e+00> : vector<256x16xf32>
    %49 = tpu.matmul %47, %48, %cst_60 {dimension_numbers = #tpu.dot_dimension_numbers<[1], [0], [0], [1], [0, 0, 1, 1], [], []>} : vector<256x18xbf16>, vector<18x16xbf16>, vector<256x16xf32> -> vector<256x16xf32>
    %c0_61 = arith.constant 0 : index
    %c0_62 = arith.constant 0 : index
    %50 = vector.load %arg3[%c0_61, %c0_62] : memref<1x16xf32, #tpu.memory_space<vmem>>, vector<1x16xf32>
    %51 = vector.shape_cast %50 : vector<1x16xf32> to vector<16xf32>
    %52 = vector.shape_cast %51 : vector<16xf32> to vector<1x16xf32>
    %53 = vector.broadcast %52 : vector<1x16xf32> to vector<256x16xf32>
    %54 = arith.addf %49, %53 : vector<256x16xf32>
    %cst_63 = arith.constant 0.000000e+00 : f32
    %55 = vector.broadcast %cst_63 : f32 to vector<256x16xf32>
    %56 = arith.maximumf %54, %55 : vector<256x16xf32>
    %c0_64 = arith.constant 0 : index
    %c0_65 = arith.constant 0 : index
    %57 = vector.load %arg4[%c0_64, %c0_65] : memref<256x256xbf16, #tpu.memory_space<vmem>>, vector<256x256xbf16>
    %58 = arith.truncf %56 : vector<256x16xf32> to vector<256x16xbf16>
    %cst_66 = arith.constant dense<0.000000e+00> : vector<256x16xf32>
    %59 = tpu.matmul %57, %58, %cst_66 {dimension_numbers = #tpu.dot_dimension_numbers<[1], [0], [0], [1], [0, 0, 1, 1], [], []>} : vector<256x256xbf16>, vector<256x16xbf16>, vector<256x16xf32> -> vector<256x16xf32>
    %60 = vector.extract_strided_slice %59 {offsets = [0, 0], sizes = [64, 16], strides = [1, 1]} : vector<256x16xf32> to vector<64x16xf32>
    %61 = vector.extract_strided_slice %59 {offsets = [64, 0], sizes = [64, 16], strides = [1, 1]} : vector<256x16xf32> to vector<64x16xf32>
    %62 = arith.maximumf %60, %61 : vector<64x16xf32>
    %63 = vector.extract_strided_slice %59 {offsets = [128, 0], sizes = [64, 16], strides = [1, 1]} : vector<256x16xf32> to vector<64x16xf32>
    %64 = vector.extract_strided_slice %59 {offsets = [192, 0], sizes = [64, 16], strides = [1, 1]} : vector<256x16xf32> to vector<64x16xf32>
    %65 = arith.maximumf %63, %64 : vector<64x16xf32>
    %66 = arith.maximumf %62, %65 : vector<64x16xf32>
    %cst_67 = arith.constant 0.000000e+00 : f32
    %67 = vector.broadcast %cst_67 : f32 to vector<1x10x16xf32>
    %c0_68 = arith.constant 0 : index
    %c0_69 = arith.constant 0 : index
    %c0_70 = arith.constant 0 : index
    %68 = vector.load %arg24[%c0_68, %c0_69, %c0_70] : memref<18x18x128xf32, #tpu.memory_space<vmem>>, vector<1x10x16xf32>
    tpu.vector_store %arg24[%c0_68, %c0_69, %c0_70], %67 {strides = array<i32>} : memref<18x18x128xf32, #tpu.memory_space<vmem>>, vector<1x10x16xf32>,
    %cst_71 = arith.constant 0.000000e+00 : f32
    %69 = vector.broadcast %cst_71 : f32 to vector<1x10x16xf32>
    %c9 = arith.constant 9 : index
    %c0_72 = arith.constant 0 : index
    %c0_73 = arith.constant 0 : index
    %70 = vector.load %arg24[%c9, %c0_72, %c0_73] : memref<18x18x128xf32, #tpu.memory_space<vmem>>, vector<1x10x16xf32>
    tpu.vector_store %arg24[%c9, %c0_72, %c0_73], %69 {strides = array<i32>} : memref<18x18x128xf32, #tpu.memory_space<vmem>>, vector<1x10x16xf32>,
    %cst_74 = arith.constant 0.000000e+00 : f32
    %71 = vector.broadcast %cst_74 : f32 to vector<8x1x16xf32>
    %c1_75 = arith.constant 1 : index
    %c0_76 = arith.constant 0 : index
    %c0_77 = arith.constant 0 : index
    %72 = vector.load %arg24[%c1_75, %c0_76, %c0_77] : memref<18x18x128xf32, #tpu.memory_space<vmem>>, vector<8x1x16xf32>
    tpu.vector_store %arg24[%c1_75, %c0_76, %c0_77], %71 {strides = array<i32>} : memref<18x18x128xf32, #tpu.memory_space<vmem>>, vector<8x1x16xf32>,
    %cst_78 = arith.constant 0.000000e+00 : f32
    %73 = vector.broadcast %cst_78 : f32 to vector<8x1x16xf32>
    %c1_79 = arith.constant 1 : index
    %c9_80 = arith.constant 9 : index
    %c0_81 = arith.constant 0 : index
    %74 = vector.load %arg24[%c1_79, %c9_80, %c0_81] : memref<18x18x128xf32, #tpu.memory_space<vmem>>, vector<8x1x16xf32>
    tpu.vector_store %arg24[%c1_79, %c9_80, %c0_81], %73 {strides = array<i32>} : memref<18x18x128xf32, #tpu.memory_space<vmem>>, vector<8x1x16xf32>,
    %75 = vector.shape_cast %66 : vector<64x16xf32> to vector<8x8x16xf32>
    %c1_82 = arith.constant 1 : index
    %c1_83 = arith.constant 1 : index
    %c0_84 = arith.constant 0 : index
    %76 = vector.load %arg24[%c1_82, %c1_83, %c0_84] : memref<18x18x128xf32, #tpu.memory_space<vmem>>, vector<8x8x16xf32>
    tpu.vector_store %arg24[%c1_82, %c1_83, %c0_84], %75 {strides = array<i32>} : memref<18x18x128xf32, #tpu.memory_space<vmem>>, vector<8x8x16xf32>,
    %c0_85 = arith.constant 0 : index
    %c0_86 = arith.constant 0 : index
    %c0_87 = arith.constant 0 : index
    %77 = vector.load %arg24[%c0_85, %c0_86, %c0_87] : memref<18x18x128xf32, #tpu.memory_space<vmem>>, vector<8x8x16xf32>
    %78 = vector.shape_cast %77 : vector<8x8x16xf32> to vector<64x16xf32>
    %79 = arith.truncf %78 : vector<64x16xf32> to vector<64x16xbf16>
    %c0_88 = arith.constant 0 : index
    %c0_89 = arith.constant 0 : index
    %80 = vector.load %arg25[%c0_88, %c0_89] : memref<256x1152xbf16, #tpu.memory_space<vmem>>, vector<64x16xbf16>
    tpu.vector_store %arg25[%c0_88, %c0_89], %79 {strides = array<i32>} : memref<256x1152xbf16, #tpu.memory_space<vmem>>, vector<64x16xbf16>,
    %c0_90 = arith.constant 0 : index
    %c1_91 = arith.constant 1 : index
    %c0_92 = arith.constant 0 : index
    %81 = vector.load %arg24[%c0_90, %c1_91, %c0_92] : memref<18x18x128xf32, #tpu.memory_space<vmem>>, vector<8x8x16xf32>
    %82 = vector.shape_cast %81 : vector<8x8x16xf32> to vector<64x16xf32>
    %83 = arith.truncf %82 : vector<64x16xf32> to vector<64x16xbf16>
    %c0_93 = arith.constant 0 : index
    %c16_94 = arith.constant 16 : index
    %84 = vector.load %arg25[%c0_93, %c16_94] : memref<256x1152xbf16, #tpu.memory_space<vmem>>, vector<64x16xbf16>
    tpu.vector_store %arg25[%c0_93, %c16_94], %83 {strides = array<i32>} : memref<256x1152xbf16, #tpu.memory_space<vmem>>, vector<64x16xbf16>,
    %c0_95 = arith.constant 0 : index
    %c2_96 = arith.constant 2 : index
    %c0_97 = arith.constant 0 : index
    %85 = vector.load %arg24[%c0_95, %c2_96, %c0_97] : memref<18x18x128xf32, #tpu.memory_space<vmem>>, vector<8x8x16xf32>
    %86 = vector.shape_cast %85 : vector<8x8x16xf32> to vector<64x16xf32>
    %87 = arith.truncf %86 : vector<64x16xf32> to vector<64x16xbf16>
    %c0_98 = arith.constant 0 : index
    %c32 = arith.constant 32 : index
    %88 = vector.load %arg25[%c0_98, %c32] : memref<256x1152xbf16, #tpu.memory_space<vmem>>, vector<64x16xbf16>
    tpu.vector_store %arg25[%c0_98, %c32], %87 {strides = array<i32>} : memref<256x1152xbf16, #tpu.memory_space<vmem>>, vector<64x16xbf16>,
    %c1_99 = arith.constant 1 : index
    %c0_100 = arith.constant 0 : index
    %c0_101 = arith.constant 0 : index
    %89 = vector.load %arg24[%c1_99, %c0_100, %c0_101] : memref<18x18x128xf32, #tpu.memory_space<vmem>>, vector<8x8x16xf32>
    %90 = vector.shape_cast %89 : vector<8x8x16xf32> to vector<64x16xf32>
    %91 = arith.truncf %90 : vector<64x16xf32> to vector<64x16xbf16>
    %c0_102 = arith.constant 0 : index
    %c48 = arith.constant 48 : index
    %92 = vector.load %arg25[%c0_102, %c48] : memref<256x1152xbf16, #tpu.memory_space<vmem>>, vector<64x16xbf16>
    tpu.vector_store %arg25[%c0_102, %c48], %91 {strides = array<i32>} : memref<256x1152xbf16, #tpu.memory_space<vmem>>, vector<64x16xbf16>,
    %c1_103 = arith.constant 1 : index
    %c1_104 = arith.constant 1 : index
    %c0_105 = arith.constant 0 : index
    %93 = vector.load %arg24[%c1_103, %c1_104, %c0_105] : memref<18x18x128xf32, #tpu.memory_space<vmem>>, vector<8x8x16xf32>
    %94 = vector.shape_cast %93 : vector<8x8x16xf32> to vector<64x16xf32>
    %95 = arith.truncf %94 : vector<64x16xf32> to vector<64x16xbf16>
    %c0_106 = arith.constant 0 : index
    %c64 = arith.constant 64 : index
    %96 = vector.load %arg25[%c0_106, %c64] : memref<256x1152xbf16, #tpu.memory_space<vmem>>, vector<64x16xbf16>
    tpu.vector_store %arg25[%c0_106, %c64], %95 {strides = array<i32>} : memref<256x1152xbf16, #tpu.memory_space<vmem>>, vector<64x16xbf16>,
    %c1_107 = arith.constant 1 : index
    %c2_108 = arith.constant 2 : index
    %c0_109 = arith.constant 0 : index
    %97 = vector.load %arg24[%c1_107, %c2_108, %c0_109] : memref<18x18x128xf32, #tpu.memory_space<vmem>>, vector<8x8x16xf32>
    %98 = vector.shape_cast %97 : vector<8x8x16xf32> to vector<64x16xf32>
    %99 = arith.truncf %98 : vector<64x16xf32> to vector<64x16xbf16>
    %c0_110 = arith.constant 0 : index
    %c80 = arith.constant 80 : index
    %100 = vector.load %arg25[%c0_110, %c80] : memref<256x1152xbf16, #tpu.memory_space<vmem>>, vector<64x16xbf16>
    tpu.vector_store %arg25[%c0_110, %c80], %99 {strides = array<i32>} : memref<256x1152xbf16, #tpu.memory_space<vmem>>, vector<64x16xbf16>,
    %c2_111 = arith.constant 2 : index
    %c0_112 = arith.constant 0 : index
    %c0_113 = arith.constant 0 : index
    %101 = vector.load %arg24[%c2_111, %c0_112, %c0_113] : memref<18x18x128xf32, #tpu.memory_space<vmem>>, vector<8x8x16xf32>
    %102 = vector.shape_cast %101 : vector<8x8x16xf32> to vector<64x16xf32>
    %103 = arith.truncf %102 : vector<64x16xf32> to vector<64x16xbf16>
    %c0_114 = arith.constant 0 : index
    %c96 = arith.constant 96 : index
    %104 = vector.load %arg25[%c0_114, %c96] : memref<256x1152xbf16, #tpu.memory_space<vmem>>, vector<64x16xbf16>
    tpu.vector_store %arg25[%c0_114, %c96], %103 {strides = array<i32>} : memref<256x1152xbf16, #tpu.memory_space<vmem>>, vector<64x16xbf16>,
    %c2_115 = arith.constant 2 : index
    %c1_116 = arith.constant 1 : index
    %c0_117 = arith.constant 0 : index
    %105 = vector.load %arg24[%c2_115, %c1_116, %c0_117] : memref<18x18x128xf32, #tpu.memory_space<vmem>>, vector<8x8x16xf32>
    %106 = vector.shape_cast %105 : vector<8x8x16xf32> to vector<64x16xf32>
    %107 = arith.truncf %106 : vector<64x16xf32> to vector<64x16xbf16>
    %c0_118 = arith.constant 0 : index
    %c112 = arith.constant 112 : index
    %108 = vector.load %arg25[%c0_118, %c112] : memref<256x1152xbf16, #tpu.memory_space<vmem>>, vector<64x16xbf16>
    tpu.vector_store %arg25[%c0_118, %c112], %107 {strides = array<i32>} : memref<256x1152xbf16, #tpu.memory_space<vmem>>, vector<64x16xbf16>,
    %c2_119 = arith.constant 2 : index
    %c2_120 = arith.constant 2 : index
    %c0_121 = arith.constant 0 : index
    %109 = vector.load %arg24[%c2_119, %c2_120, %c0_121] : memref<18x18x128xf32, #tpu.memory_space<vmem>>, vector<8x8x16xf32>
    %110 = vector.shape_cast %109 : vector<8x8x16xf32> to vector<64x16xf32>
    %111 = arith.truncf %110 : vector<64x16xf32> to vector<64x16xbf16>
    %c0_122 = arith.constant 0 : index
    %c128 = arith.constant 128 : index
    %112 = vector.load %arg25[%c0_122, %c128] : memref<256x1152xbf16, #tpu.memory_space<vmem>>, vector<64x16xbf16>
    tpu.vector_store %arg25[%c0_122, %c128], %111 {strides = array<i32>} : memref<256x1152xbf16, #tpu.memory_space<vmem>>, vector<64x16xbf16>,
    %c0_123 = arith.constant 0 : index
    %c0_124 = arith.constant 0 : index
    %113 = vector.load %arg25[%c0_123, %c0_124] : memref<256x1152xbf16, #tpu.memory_space<vmem>>, vector<64x144xbf16>
    %c0_125 = arith.constant 0 : index
    %c0_126 = arith.constant 0 : index
    %114 = vector.load %arg5[%c0_125, %c0_126] : memref<144x32xbf16, #tpu.memory_space<vmem>>, vector<144x32xbf16>
    %cst_127 = arith.constant dense<0.000000e+00> : vector<64x32xf32>
    %115 = tpu.matmul %113, %114, %cst_127 {dimension_numbers = #tpu.dot_dimension_numbers<[1], [0], [0], [1], [0, 0, 1, 1], [], []>} : vector<64x144xbf16>, vector<144x32xbf16>, vector<64x32xf32> -> vector<64x32xf32>
    %c0_128 = arith.constant 0 : index
    %c0_129 = arith.constant 0 : index
    %116 = vector.load %arg6[%c0_128, %c0_129] : memref<1x32xf32, #tpu.memory_space<vmem>>, vector<1x32xf32>
    %117 = vector.shape_cast %116 : vector<1x32xf32> to vector<32xf32>
    %118 = vector.shape_cast %117 : vector<32xf32> to vector<1x32xf32>
    %119 = vector.broadcast %118 : vector<1x32xf32> to vector<64x32xf32>
    %120 = arith.addf %115, %119 : vector<64x32xf32>
    %cst_130 = arith.constant 0.000000e+00 : f32
    %121 = vector.broadcast %cst_130 : f32 to vector<64x32xf32>
    %122 = arith.maximumf %120, %121 : vector<64x32xf32>
    %c0_131 = arith.constant 0 : index
    %c0_132 = arith.constant 0 : index
    %123 = vector.load %arg7[%c0_131, %c0_132] : memref<64x64xbf16, #tpu.memory_space<vmem>>, vector<64x64xbf16>
    %124 = arith.truncf %122 : vector<64x32xf32> to vector<64x32xbf16>
    %cst_133 = arith.constant dense<0.000000e+00> : vector<64x32xf32>
    %125 = tpu.matmul %123, %124, %cst_133 {dimension_numbers = #tpu.dot_dimension_numbers<[1], [0], [0], [1], [0, 0, 1, 1], [], []>} : vector<64x64xbf16>, vector<64x32xbf16>, vector<64x32xf32> -> vector<64x32xf32>
    %126 = vector.extract_strided_slice %125 {offsets = [0, 0], sizes = [16, 32], strides = [1, 1]} : vector<64x32xf32> to vector<16x32xf32>
    %127 = vector.extract_strided_slice %125 {offsets = [16, 0], sizes = [16, 32], strides = [1, 1]} : vector<64x32xf32> to vector<16x32xf32>
    %128 = arith.maximumf %126, %127 : vector<16x32xf32>
    %129 = vector.extract_strided_slice %125 {offsets = [32, 0], sizes = [16, 32], strides = [1, 1]} : vector<64x32xf32> to vector<16x32xf32>
    %130 = vector.extract_strided_slice %125 {offsets = [48, 0], sizes = [16, 32], strides = [1, 1]} : vector<64x32xf32> to vector<16x32xf32>
    %131 = arith.maximumf %129, %130 : vector<16x32xf32>
    %132 = arith.maximumf %128, %131 : vector<16x32xf32>
    %cst_134 = arith.constant 0.000000e+00 : f32
    %133 = vector.broadcast %cst_134 : f32 to vector<1x6x32xf32>
    %c0_135 = arith.constant 0 : index
    %c0_136 = arith.constant 0 : index
    %c0_137 = arith.constant 0 : index
    %134 = vector.load %arg24[%c0_135, %c0_136, %c0_137] : memref<18x18x128xf32, #tpu.memory_space<vmem>>, vector<1x6x32xf32>
    tpu.vector_store %arg24[%c0_135, %c0_136, %c0_137], %133 {strides = array<i32>} : memref<18x18x128xf32, #tpu.memory_space<vmem>>, vector<1x6x32xf32>,
    %cst_138 = arith.constant 0.000000e+00 : f32
    %135 = vector.broadcast %cst_138 : f32 to vector<1x6x32xf32>
    %c5 = arith.constant 5 : index
    %c0_139 = arith.constant 0 : index
    %c0_140 = arith.constant 0 : index
    %136 = vector.load %arg24[%c5, %c0_139, %c0_140] : memref<18x18x128xf32, #tpu.memory_space<vmem>>, vector<1x6x32xf32>
    tpu.vector_store %arg24[%c5, %c0_139, %c0_140], %135 {strides = array<i32>} : memref<18x18x128xf32, #tpu.memory_space<vmem>>, vector<1x6x32xf32>,
    %cst_141 = arith.constant 0.000000e+00 : f32
    %137 = vector.broadcast %cst_141 : f32 to vector<4x1x32xf32>
    %c1_142 = arith.constant 1 : index
    %c0_143 = arith.constant 0 : index
    %c0_144 = arith.constant 0 : index
    %138 = vector.load %arg24[%c1_142, %c0_143, %c0_144] : memref<18x18x128xf32, #tpu.memory_space<vmem>>, vector<4x1x32xf32>
    tpu.vector_store %arg24[%c1_142, %c0_143, %c0_144], %137 {strides = array<i32>} : memref<18x18x128xf32, #tpu.memory_space<vmem>>, vector<4x1x32xf32>,
    %cst_145 = arith.constant 0.000000e+00 : f32
    %139 = vector.broadcast %cst_145 : f32 to vector<4x1x32xf32>
    %c1_146 = arith.constant 1 : index
    %c5_147 = arith.constant 5 : index
    %c0_148 = arith.constant 0 : index
    %140 = vector.load %arg24[%c1_146, %c5_147, %c0_148] : memref<18x18x128xf32, #tpu.memory_space<vmem>>, vector<4x1x32xf32>
    tpu.vector_store %arg24[%c1_146, %c5_147, %c0_148], %139 {strides = array<i32>} : memref<18x18x128xf32, #tpu.memory_space<vmem>>, vector<4x1x32xf32>,
    %141 = vector.shape_cast %132 : vector<16x32xf32> to vector<4x4x32xf32>
    %c1_149 = arith.constant 1 : index
    %c1_150 = arith.constant 1 : index
    %c0_151 = arith.constant 0 : index
    %142 = vector.load %arg24[%c1_149, %c1_150, %c0_151] : memref<18x18x128xf32, #tpu.memory_space<vmem>>, vector<4x4x32xf32>
    tpu.vector_store %arg24[%c1_149, %c1_150, %c0_151], %141 {strides = array<i32>} : memref<18x18x128xf32, #tpu.memory_space<vmem>>, vector<4x4x32xf32>,
    %c0_152 = arith.constant 0 : index
    %c0_153 = arith.constant 0 : index
    %c0_154 = arith.constant 0 : index
    %143 = vector.load %arg24[%c0_152, %c0_153, %c0_154] : memref<18x18x128xf32, #tpu.memory_space<vmem>>, vector<4x4x32xf32>
    %144 = vector.shape_cast %143 : vector<4x4x32xf32> to vector<16x32xf32>
    %145 = arith.truncf %144 : vector<16x32xf32> to vector<16x32xbf16>
    %c0_155 = arith.constant 0 : index
    %c0_156 = arith.constant 0 : index
    %146 = vector.load %arg25[%c0_155, %c0_156] : memref<256x1152xbf16, #tpu.memory_space<vmem>>, vector<16x32xbf16>
    tpu.vector_store %arg25[%c0_155, %c0_156], %145 {strides = array<i32>} : memref<256x1152xbf16, #tpu.memory_space<vmem>>, vector<16x32xbf16>,
    %c0_157 = arith.constant 0 : index
    %c1_158 = arith.constant 1 : index
    %c0_159 = arith.constant 0 : index
    %147 = vector.load %arg24[%c0_157, %c1_158, %c0_159] : memref<18x18x128xf32, #tpu.memory_space<vmem>>, vector<4x4x32xf32>
    %148 = vector.shape_cast %147 : vector<4x4x32xf32> to vector<16x32xf32>
    %149 = arith.truncf %148 : vector<16x32xf32> to vector<16x32xbf16>
    %c0_160 = arith.constant 0 : index
    %c32_161 = arith.constant 32 : index
    %150 = vector.load %arg25[%c0_160, %c32_161] : memref<256x1152xbf16, #tpu.memory_space<vmem>>, vector<16x32xbf16>
    tpu.vector_store %arg25[%c0_160, %c32_161], %149 {strides = array<i32>} : memref<256x1152xbf16, #tpu.memory_space<vmem>>, vector<16x32xbf16>,
    %c0_162 = arith.constant 0 : index
    %c2_163 = arith.constant 2 : index
    %c0_164 = arith.constant 0 : index
    %151 = vector.load %arg24[%c0_162, %c2_163, %c0_164] : memref<18x18x128xf32, #tpu.memory_space<vmem>>, vector<4x4x32xf32>
    %152 = vector.shape_cast %151 : vector<4x4x32xf32> to vector<16x32xf32>
    %153 = arith.truncf %152 : vector<16x32xf32> to vector<16x32xbf16>
    %c0_165 = arith.constant 0 : index
    %c64_166 = arith.constant 64 : index
    %154 = vector.load %arg25[%c0_165, %c64_166] : memref<256x1152xbf16, #tpu.memory_space<vmem>>, vector<16x32xbf16>
    tpu.vector_store %arg25[%c0_165, %c64_166], %153 {strides = array<i32>} : memref<256x1152xbf16, #tpu.memory_space<vmem>>, vector<16x32xbf16>,
    %c1_167 = arith.constant 1 : index
    %c0_168 = arith.constant 0 : index
    %c0_169 = arith.constant 0 : index
    %155 = vector.load %arg24[%c1_167, %c0_168, %c0_169] : memref<18x18x128xf32, #tpu.memory_space<vmem>>, vector<4x4x32xf32>
    %156 = vector.shape_cast %155 : vector<4x4x32xf32> to vector<16x32xf32>
    %157 = arith.truncf %156 : vector<16x32xf32> to vector<16x32xbf16>
    %c0_170 = arith.constant 0 : index
    %c96_171 = arith.constant 96 : index
    %158 = vector.load %arg25[%c0_170, %c96_171] : memref<256x1152xbf16, #tpu.memory_space<vmem>>, vector<16x32xbf16>
    tpu.vector_store %arg25[%c0_170, %c96_171], %157 {strides = array<i32>} : memref<256x1152xbf16, #tpu.memory_space<vmem>>, vector<16x32xbf16>,
    %c1_172 = arith.constant 1 : index
    %c1_173 = arith.constant 1 : index
    %c0_174 = arith.constant 0 : index
    %159 = vector.load %arg24[%c1_172, %c1_173, %c0_174] : memref<18x18x128xf32, #tpu.memory_space<vmem>>, vector<4x4x32xf32>
    %160 = vector.shape_cast %159 : vector<4x4x32xf32> to vector<16x32xf32>
    %161 = arith.truncf %160 : vector<16x32xf32> to vector<16x32xbf16>
    %c0_175 = arith.constant 0 : index
    %c128_176 = arith.constant 128 : index
    %162 = vector.load %arg25[%c0_175, %c128_176] : memref<256x1152xbf16, #tpu.memory_space<vmem>>, vector<16x32xbf16>
    tpu.vector_store %arg25[%c0_175, %c128_176], %161 {strides = array<i32>} : memref<256x1152xbf16, #tpu.memory_space<vmem>>, vector<16x32xbf16>,
    %c1_177 = arith.constant 1 : index
    %c2_178 = arith.constant 2 : index
    %c0_179 = arith.constant 0 : index
    %163 = vector.load %arg24[%c1_177, %c2_178, %c0_179] : memref<18x18x128xf32, #tpu.memory_space<vmem>>, vector<4x4x32xf32>
    %164 = vector.shape_cast %163 : vector<4x4x32xf32> to vector<16x32xf32>
    %165 = arith.truncf %164 : vector<16x32xf32> to vector<16x32xbf16>
    %c0_180 = arith.constant 0 : index
    %c160 = arith.constant 160 : index
    %166 = vector.load %arg25[%c0_180, %c160] : memref<256x1152xbf16, #tpu.memory_space<vmem>>, vector<16x32xbf16>
    tpu.vector_store %arg25[%c0_180, %c160], %165 {strides = array<i32>} : memref<256x1152xbf16, #tpu.memory_space<vmem>>, vector<16x32xbf16>,
    %c2_181 = arith.constant 2 : index
    %c0_182 = arith.constant 0 : index
    %c0_183 = arith.constant 0 : index
    %167 = vector.load %arg24[%c2_181, %c0_182, %c0_183] : memref<18x18x128xf32, #tpu.memory_space<vmem>>, vector<4x4x32xf32>
    %168 = vector.shape_cast %167 : vector<4x4x32xf32> to vector<16x32xf32>
    %169 = arith.truncf %168 : vector<16x32xf32> to vector<16x32xbf16>
    %c0_184 = arith.constant 0 : index
    %c192 = arith.constant 192 : index
    %170 = vector.load %arg25[%c0_184, %c192] : memref<256x1152xbf16, #tpu.memory_space<vmem>>, vector<16x32xbf16>
    tpu.vector_store %arg25[%c0_184, %c192], %169 {strides = array<i32>} : memref<256x1152xbf16, #tpu.memory_space<vmem>>, vector<16x32xbf16>,
    %c2_185 = arith.constant 2 : index
    %c1_186 = arith.constant 1 : index
    %c0_187 = arith.constant 0 : index
    %171 = vector.load %arg24[%c2_185, %c1_186, %c0_187] : memref<18x18x128xf32, #tpu.memory_space<vmem>>, vector<4x4x32xf32>
    %172 = vector.shape_cast %171 : vector<4x4x32xf32> to vector<16x32xf32>
    %173 = arith.truncf %172 : vector<16x32xf32> to vector<16x32xbf16>
    %c0_188 = arith.constant 0 : index
    %c224 = arith.constant 224 : index
    %174 = vector.load %arg25[%c0_188, %c224] : memref<256x1152xbf16, #tpu.memory_space<vmem>>, vector<16x32xbf16>
    tpu.vector_store %arg25[%c0_188, %c224], %173 {strides = array<i32>} : memref<256x1152xbf16, #tpu.memory_space<vmem>>, vector<16x32xbf16>,
    %c2_189 = arith.constant 2 : index
    %c2_190 = arith.constant 2 : index
    %c0_191 = arith.constant 0 : index
    %175 = vector.load %arg24[%c2_189, %c2_190, %c0_191] : memref<18x18x128xf32, #tpu.memory_space<vmem>>, vector<4x4x32xf32>
    %176 = vector.shape_cast %175 : vector<4x4x32xf32> to vector<16x32xf32>
    %177 = arith.truncf %176 : vector<16x32xf32> to vector<16x32xbf16>
    %c0_192 = arith.constant 0 : index
    %c256 = arith.constant 256 : index
    %178 = vector.load %arg25[%c0_192, %c256] : memref<256x1152xbf16, #tpu.memory_space<vmem>>, vector<16x32xbf16>
    tpu.vector_store %arg25[%c0_192, %c256], %177 {strides = array<i32>} : memref<256x1152xbf16, #tpu.memory_space<vmem>>, vector<16x32xbf16>,
    %c0_193 = arith.constant 0 : index
    %c0_194 = arith.constant 0 : index
    %179 = vector.load %arg25[%c0_193, %c0_194] : memref<256x1152xbf16, #tpu.memory_space<vmem>>, vector<16x288xbf16>
    %c0_195 = arith.constant 0 : index
    %c0_196 = arith.constant 0 : index
    %180 = vector.load %arg8[%c0_195, %c0_196] : memref<288x64xbf16, #tpu.memory_space<vmem>>, vector<288x64xbf16>
    %cst_197 = arith.constant dense<0.000000e+00> : vector<16x64xf32>
    %181 = tpu.matmul %179, %180, %cst_197 {dimension_numbers = #tpu.dot_dimension_numbers<[1], [0], [0], [1], [0, 0, 1, 1], [], []>} : vector<16x288xbf16>, vector<288x64xbf16>, vector<16x64xf32> -> vector<16x64xf32>
    %c0_198 = arith.constant 0 : index
    %c0_199 = arith.constant 0 : index
    %182 = vector.load %arg9[%c0_198, %c0_199] : memref<1x64xf32, #tpu.memory_space<vmem>>, vector<1x64xf32>
    %183 = vector.shape_cast %182 : vector<1x64xf32> to vector<64xf32>
    %184 = vector.shape_cast %183 : vector<64xf32> to vector<1x64xf32>
    %185 = vector.broadcast %184 : vector<1x64xf32> to vector<16x64xf32>
    %186 = arith.addf %181, %185 : vector<16x64xf32>
    %cst_200 = arith.constant 0.000000e+00 : f32
    %187 = vector.broadcast %cst_200 : f32 to vector<16x64xf32>
    %188 = arith.maximumf %186, %187 : vector<16x64xf32>
    %189 = arith.truncf %188 : vector<16x64xf32> to vector<16x64xbf16>
    %c0_201 = arith.constant 0 : index
    %c0_202 = arith.constant 0 : index
    %190 = vector.load %arg10[%c0_201, %c0_202] : memref<64x80xbf16, #tpu.memory_space<vmem>>, vector<64x80xbf16>
    %cst_203 = arith.constant dense<0.000000e+00> : vector<16x80xf32>
    %191 = tpu.matmul %189, %190, %cst_203 {dimension_numbers = #tpu.dot_dimension_numbers<[1], [0], [0], [1], [0, 0, 1, 1], [], []>} : vector<16x64xbf16>, vector<64x80xbf16>, vector<16x80xf32> -> vector<16x80xf32>
    %c0_204 = arith.constant 0 : index
    %c0_205 = arith.constant 0 : index
    %192 = vector.load %arg11[%c0_204, %c0_205] : memref<1x80xf32, #tpu.memory_space<vmem>>, vector<1x80xf32>
    %193 = vector.shape_cast %192 : vector<1x80xf32> to vector<80xf32>
    %194 = vector.shape_cast %193 : vector<80xf32> to vector<1x80xf32>
    %195 = vector.broadcast %194 : vector<1x80xf32> to vector<16x80xf32>
    %196 = arith.addf %191, %195 : vector<16x80xf32>
    %197 = vector.extract_strided_slice %196 {offsets = [0, 0], sizes = [16, 8], strides = [1, 1]} : vector<16x80xf32> to vector<16x8xf32>
    %198 = vector.extract_strided_slice %196 {offsets = [0, 8], sizes = [16, 8], strides = [1, 1]} : vector<16x80xf32> to vector<16x8xf32>
    %199 = vector.extract_strided_slice %196 {offsets = [0, 16], sizes = [16, 64], strides = [1, 1]} : vector<16x80xf32> to vector<16x64xf32>
    %200 = arith.truncf %197 : vector<16x8xf32> to vector<16x8xbf16>
    %201 = arith.truncf %198 : vector<16x8xf32> to vector<16x8xbf16>
    %cst_206 = arith.constant dense<0.000000e+00> : vector<16x16xf32>
    %202 = tpu.matmul %200, %201, %cst_206 {dimension_numbers = #tpu.dot_dimension_numbers<[1], [1], [0], [0], [0, 0, 1, 0], [], []>} : vector<16x8xbf16>, vector<16x8xbf16>, vector<16x16xf32> -> vector<16x16xf32>
    %cst_207 = arith.constant dense<0xFF800000> : vector<16xf32>
    %203 = vector.multi_reduction <maximumf>, %202, %cst_207 [1] : vector<16x16xf32> to vector<16xf32>
    %204 = vector.shape_cast %203 : vector<16xf32> to vector<16x1xf32>
    %205 = vector.broadcast %204 : vector<16x1xf32> to vector<16x16xf32>
    %206 = arith.subf %202, %205 : vector<16x16xf32>
    %207 = math.exp %206 : vector<16x16xf32>
    %cst_208 = arith.constant dense<0.000000e+00> : vector<16xf32>
    %208 = vector.multi_reduction <add>, %207, %cst_208 [1] : vector<16x16xf32> to vector<16xf32>
    %209 = vector.shape_cast %208 : vector<16xf32> to vector<16x1xf32>
    %210 = vector.broadcast %209 : vector<16x1xf32> to vector<16x16xf32>
    %211 = arith.divf %207, %210 : vector<16x16xf32>
    %c0_209 = arith.constant 0 : index
    %c0_210 = arith.constant 0 : index
    %212 = vector.load %arg12[%c0_209, %c0_210] : memref<1x1xf32, #tpu.memory_space<vmem>>, vector<1x1xf32>
    %213 = vector.extract %212[0, 0] : f32 from vector<1x1xf32>
    %214 = arith.truncf %211 : vector<16x16xf32> to vector<16x16xbf16>
    %215 = arith.truncf %199 : vector<16x64xf32> to vector<16x64xbf16>
    %cst_211 = arith.constant dense<0.000000e+00> : vector<16x64xf32>
    %216 = tpu.matmul %214, %215, %cst_211 {dimension_numbers = #tpu.dot_dimension_numbers<[1], [0], [0], [1], [0, 0, 1, 1], [], []>} : vector<16x16xbf16>, vector<16x64xbf16>, vector<16x64xf32> -> vector<16x64xf32>
    %217 = vector.broadcast %213 : f32 to vector<16x64xf32>
    %218 = arith.mulf %217, %216 : vector<16x64xf32>
    %219 = arith.addf %218, %188 : vector<16x64xf32>
    %cst_212 = arith.constant 0.000000e+00 : f32
    %220 = vector.broadcast %cst_212 : f32 to vector<1x6x64xf32>
    %c0_213 = arith.constant 0 : index
    %c0_214 = arith.constant 0 : index
    %c0_215 = arith.constant 0 : index
    %221 = vector.load %arg24[%c0_213, %c0_214, %c0_215] : memref<18x18x128xf32, #tpu.memory_space<vmem>>, vector<1x6x64xf32>
    tpu.vector_store %arg24[%c0_213, %c0_214, %c0_215], %220 {strides = array<i32>} : memref<18x18x128xf32, #tpu.memory_space<vmem>>, vector<1x6x64xf32>,
    %cst_216 = arith.constant 0.000000e+00 : f32
    %222 = vector.broadcast %cst_216 : f32 to vector<1x6x64xf32>
    %c5_217 = arith.constant 5 : index
    %c0_218 = arith.constant 0 : index
    %c0_219 = arith.constant 0 : index
    %223 = vector.load %arg24[%c5_217, %c0_218, %c0_219] : memref<18x18x128xf32, #tpu.memory_space<vmem>>, vector<1x6x64xf32>
    tpu.vector_store %arg24[%c5_217, %c0_218, %c0_219], %222 {strides = array<i32>} : memref<18x18x128xf32, #tpu.memory_space<vmem>>, vector<1x6x64xf32>,
    %cst_220 = arith.constant 0.000000e+00 : f32
    %224 = vector.broadcast %cst_220 : f32 to vector<4x1x64xf32>
    %c1_221 = arith.constant 1 : index
    %c0_222 = arith.constant 0 : index
    %c0_223 = arith.constant 0 : index
    %225 = vector.load %arg24[%c1_221, %c0_222, %c0_223] : memref<18x18x128xf32, #tpu.memory_space<vmem>>, vector<4x1x64xf32>
    tpu.vector_store %arg24[%c1_221, %c0_222, %c0_223], %224 {strides = array<i32>} : memref<18x18x128xf32, #tpu.memory_space<vmem>>, vector<4x1x64xf32>,
    %cst_224 = arith.constant 0.000000e+00 : f32
    %226 = vector.broadcast %cst_224 : f32 to vector<4x1x64xf32>
    %c1_225 = arith.constant 1 : index
    %c5_226 = arith.constant 5 : index
    %c0_227 = arith.constant 0 : index
    %227 = vector.load %arg24[%c1_225, %c5_226, %c0_227] : memref<18x18x128xf32, #tpu.memory_space<vmem>>, vector<4x1x64xf32>
    tpu.vector_store %arg24[%c1_225, %c5_226, %c0_227], %226 {strides = array<i32>} : memref<18x18x128xf32, #tpu.memory_space<vmem>>, vector<4x1x64xf32>,
    %228 = vector.shape_cast %219 : vector<16x64xf32> to vector<4x4x64xf32>
    %c1_228 = arith.constant 1 : index
    %c1_229 = arith.constant 1 : index
    %c0_230 = arith.constant 0 : index
    %229 = vector.load %arg24[%c1_228, %c1_229, %c0_230] : memref<18x18x128xf32, #tpu.memory_space<vmem>>, vector<4x4x64xf32>
    tpu.vector_store %arg24[%c1_228, %c1_229, %c0_230], %228 {strides = array<i32>} : memref<18x18x128xf32, #tpu.memory_space<vmem>>, vector<4x4x64xf32>,
    %c0_231 = arith.constant 0 : index
    %c0_232 = arith.constant 0 : index
    %c0_233 = arith.constant 0 : index
    %230 = vector.load %arg24[%c0_231, %c0_232, %c0_233] : memref<18x18x128xf32, #tpu.memory_space<vmem>>, vector<4x4x64xf32>
    %231 = vector.shape_cast %230 : vector<4x4x64xf32> to vector<16x64xf32>
    %232 = arith.truncf %231 : vector<16x64xf32> to vector<16x64xbf16>
    %c0_234 = arith.constant 0 : index
    %c0_235 = arith.constant 0 : index
    %233 = vector.load %arg25[%c0_234, %c0_235] : memref<256x1152xbf16, #tpu.memory_space<vmem>>, vector<16x64xbf16>
    tpu.vector_store %arg25[%c0_234, %c0_235], %232 {strides = array<i32>} : memref<256x1152xbf16, #tpu.memory_space<vmem>>, vector<16x64xbf16>,
    %c0_236 = arith.constant 0 : index
    %c1_237 = arith.constant 1 : index
    %c0_238 = arith.constant 0 : index
    %234 = vector.load %arg24[%c0_236, %c1_237, %c0_238] : memref<18x18x128xf32, #tpu.memory_space<vmem>>, vector<4x4x64xf32>
    %235 = vector.shape_cast %234 : vector<4x4x64xf32> to vector<16x64xf32>
    %236 = arith.truncf %235 : vector<16x64xf32> to vector<16x64xbf16>
    %c0_239 = arith.constant 0 : index
    %c64_240 = arith.constant 64 : index
    %237 = vector.load %arg25[%c0_239, %c64_240] : memref<256x1152xbf16, #tpu.memory_space<vmem>>, vector<16x64xbf16>
    tpu.vector_store %arg25[%c0_239, %c64_240], %236 {strides = array<i32>} : memref<256x1152xbf16, #tpu.memory_space<vmem>>, vector<16x64xbf16>,
    %c0_241 = arith.constant 0 : index
    %c2_242 = arith.constant 2 : index
    %c0_243 = arith.constant 0 : index
    %238 = vector.load %arg24[%c0_241, %c2_242, %c0_243] : memref<18x18x128xf32, #tpu.memory_space<vmem>>, vector<4x4x64xf32>
    %239 = vector.shape_cast %238 : vector<4x4x64xf32> to vector<16x64xf32>
    %240 = arith.truncf %239 : vector<16x64xf32> to vector<16x64xbf16>
    %c0_244 = arith.constant 0 : index
    %c128_245 = arith.constant 128 : index
    %241 = vector.load %arg25[%c0_244, %c128_245] : memref<256x1152xbf16, #tpu.memory_space<vmem>>, vector<16x64xbf16>
    tpu.vector_store %arg25[%c0_244, %c128_245], %240 {strides = array<i32>} : memref<256x1152xbf16, #tpu.memory_space<vmem>>, vector<16x64xbf16>,
    %c1_246 = arith.constant 1 : index
    %c0_247 = arith.constant 0 : index
    %c0_248 = arith.constant 0 : index
    %242 = vector.load %arg24[%c1_246, %c0_247, %c0_248] : memref<18x18x128xf32, #tpu.memory_space<vmem>>, vector<4x4x64xf32>
    %243 = vector.shape_cast %242 : vector<4x4x64xf32> to vector<16x64xf32>
    %244 = arith.truncf %243 : vector<16x64xf32> to vector<16x64xbf16>
    %c0_249 = arith.constant 0 : index
    %c192_250 = arith.constant 192 : index
    %245 = vector.load %arg25[%c0_249, %c192_250] : memref<256x1152xbf16, #tpu.memory_space<vmem>>, vector<16x64xbf16>
    tpu.vector_store %arg25[%c0_249, %c192_250], %244 {strides = array<i32>} : memref<256x1152xbf16, #tpu.memory_space<vmem>>, vector<16x64xbf16>,
    %c1_251 = arith.constant 1 : index
    %c1_252 = arith.constant 1 : index
    %c0_253 = arith.constant 0 : index
    %246 = vector.load %arg24[%c1_251, %c1_252, %c0_253] : memref<18x18x128xf32, #tpu.memory_space<vmem>>, vector<4x4x64xf32>
    %247 = vector.shape_cast %246 : vector<4x4x64xf32> to vector<16x64xf32>
    %248 = arith.truncf %247 : vector<16x64xf32> to vector<16x64xbf16>
    %c0_254 = arith.constant 0 : index
    %c256_255 = arith.constant 256 : index
    %249 = vector.load %arg25[%c0_254, %c256_255] : memref<256x1152xbf16, #tpu.memory_space<vmem>>, vector<16x64xbf16>
    tpu.vector_store %arg25[%c0_254, %c256_255], %248 {strides = array<i32>} : memref<256x1152xbf16, #tpu.memory_space<vmem>>, vector<16x64xbf16>,
    %c1_256 = arith.constant 1 : index
    %c2_257 = arith.constant 2 : index
    %c0_258 = arith.constant 0 : index
    %250 = vector.load %arg24[%c1_256, %c2_257, %c0_258] : memref<18x18x128xf32, #tpu.memory_space<vmem>>, vector<4x4x64xf32>
    %251 = vector.shape_cast %250 : vector<4x4x64xf32> to vector<16x64xf32>
    %252 = arith.truncf %251 : vector<16x64xf32> to vector<16x64xbf16>
    %c0_259 = arith.constant 0 : index
    %c320 = arith.constant 320 : index
    %253 = vector.load %arg25[%c0_259, %c320] : memref<256x1152xbf16, #tpu.memory_space<vmem>>, vector<16x64xbf16>
    tpu.vector_store %arg25[%c0_259, %c320], %252 {strides = array<i32>} : memref<256x1152xbf16, #tpu.memory_space<vmem>>, vector<16x64xbf16>,
    %c2_260 = arith.constant 2 : index
    %c0_261 = arith.constant 0 : index
    %c0_262 = arith.constant 0 : index
    %254 = vector.load %arg24[%c2_260, %c0_261, %c0_262] : memref<18x18x128xf32, #tpu.memory_space<vmem>>, vector<4x4x64xf32>
    %255 = vector.shape_cast %254 : vector<4x4x64xf32> to vector<16x64xf32>
    %256 = arith.truncf %255 : vector<16x64xf32> to vector<16x64xbf16>
    %c0_263 = arith.constant 0 : index
    %c384 = arith.constant 384 : index
    %257 = vector.load %arg25[%c0_263, %c384] : memref<256x1152xbf16, #tpu.memory_space<vmem>>, vector<16x64xbf16>
    tpu.vector_store %arg25[%c0_263, %c384], %256 {strides = array<i32>} : memref<256x1152xbf16, #tpu.memory_space<vmem>>, vector<16x64xbf16>,
    %c2_264 = arith.constant 2 : index
    %c1_265 = arith.constant 1 : index
    %c0_266 = arith.constant 0 : index
    %258 = vector.load %arg24[%c2_264, %c1_265, %c0_266] : memref<18x18x128xf32, #tpu.memory_space<vmem>>, vector<4x4x64xf32>
    %259 = vector.shape_cast %258 : vector<4x4x64xf32> to vector<16x64xf32>
    %260 = arith.truncf %259 : vector<16x64xf32> to vector<16x64xbf16>
    %c0_267 = arith.constant 0 : index
    %c448 = arith.constant 448 : index
    %261 = vector.load %arg25[%c0_267, %c448] : memref<256x1152xbf16, #tpu.memory_space<vmem>>, vector<16x64xbf16>
    tpu.vector_store %arg25[%c0_267, %c448], %260 {strides = array<i32>} : memref<256x1152xbf16, #tpu.memory_space<vmem>>, vector<16x64xbf16>,
    %c2_268 = arith.constant 2 : index
    %c2_269 = arith.constant 2 : index
    %c0_270 = arith.constant 0 : index
    %262 = vector.load %arg24[%c2_268, %c2_269, %c0_270] : memref<18x18x128xf32, #tpu.memory_space<vmem>>, vector<4x4x64xf32>
    %263 = vector.shape_cast %262 : vector<4x4x64xf32> to vector<16x64xf32>
    %264 = arith.truncf %263 : vector<16x64xf32> to vector<16x64xbf16>
    %c0_271 = arith.constant 0 : index
    %c512 = arith.constant 512 : index
    %265 = vector.load %arg25[%c0_271, %c512] : memref<256x1152xbf16, #tpu.memory_space<vmem>>, vector<16x64xbf16>
    tpu.vector_store %arg25[%c0_271, %c512], %264 {strides = array<i32>} : memref<256x1152xbf16, #tpu.memory_space<vmem>>, vector<16x64xbf16>,
    %c0_272 = arith.constant 0 : index
    %c0_273 = arith.constant 0 : index
    %266 = vector.load %arg25[%c0_272, %c0_273] : memref<256x1152xbf16, #tpu.memory_space<vmem>>, vector<16x576xbf16>
    %c0_274 = arith.constant 0 : index
    %c0_275 = arith.constant 0 : index
    %267 = vector.load %arg13[%c0_274, %c0_275] : memref<576x128xbf16, #tpu.memory_space<vmem>>, vector<576x128xbf16>
    %cst_276 = arith.constant dense<0.000000e+00> : vector<16x128xf32>
    %268 = tpu.matmul %266, %267, %cst_276 {dimension_numbers = #tpu.dot_dimension_numbers<[1], [0], [0], [1], [0, 0, 1, 1], [], []>} : vector<16x576xbf16>, vector<576x128xbf16>, vector<16x128xf32> -> vector<16x128xf32>
    %c0_277 = arith.constant 0 : index
    %c0_278 = arith.constant 0 : index
    %269 = vector.load %arg14[%c0_277, %c0_278] : memref<1x128xf32, #tpu.memory_space<vmem>>, vector<1x128xf32>
    %270 = vector.shape_cast %269 : vector<1x128xf32> to vector<128xf32>
    %271 = vector.shape_cast %270 : vector<128xf32> to vector<1x128xf32>
    %272 = vector.broadcast %271 : vector<1x128xf32> to vector<16x128xf32>
    %273 = arith.addf %268, %272 : vector<16x128xf32>
    %cst_279 = arith.constant 0.000000e+00 : f32
    %274 = vector.broadcast %cst_279 : f32 to vector<16x128xf32>
    %275 = arith.maximumf %273, %274 : vector<16x128xf32>
    %c0_280 = arith.constant 0 : index
    %c0_281 = arith.constant 0 : index
    %276 = vector.load %arg15[%c0_280, %c0_281] : memref<64x16xbf16, #tpu.memory_space<vmem>>, vector<64x16xbf16>
    %277 = arith.truncf %275 : vector<16x128xf32> to vector<16x128xbf16>
    %cst_282 = arith.constant dense<0.000000e+00> : vector<64x128xf32>
    %278 = tpu.matmul %276, %277, %cst_282 {dimension_numbers = #tpu.dot_dimension_numbers<[1], [0], [0], [1], [0, 0, 1, 1], [], []>} : vector<64x16xbf16>, vector<16x128xbf16>, vector<64x128xf32> -> vector<64x128xf32>
    %cst_283 = arith.constant 0.000000e+00 : f32
    %279 = vector.broadcast %cst_283 : f32 to vector<1x10x128xf32>
    %c0_284 = arith.constant 0 : index
    %c0_285 = arith.constant 0 : index
    %c0_286 = arith.constant 0 : index
    %280 = vector.load %arg24[%c0_284, %c0_285, %c0_286] : memref<18x18x128xf32, #tpu.memory_space<vmem>>, vector<1x10x128xf32>
    tpu.vector_store %arg24[%c0_284, %c0_285, %c0_286], %279 {strides = array<i32>} : memref<18x18x128xf32, #tpu.memory_space<vmem>>, vector<1x10x128xf32>,
    %cst_287 = arith.constant 0.000000e+00 : f32
    %281 = vector.broadcast %cst_287 : f32 to vector<1x10x128xf32>
    %c9_288 = arith.constant 9 : index
    %c0_289 = arith.constant 0 : index
    %c0_290 = arith.constant 0 : index
    %282 = vector.load %arg24[%c9_288, %c0_289, %c0_290] : memref<18x18x128xf32, #tpu.memory_space<vmem>>, vector<1x10x128xf32>
    tpu.vector_store %arg24[%c9_288, %c0_289, %c0_290], %281 {strides = array<i32>} : memref<18x18x128xf32, #tpu.memory_space<vmem>>, vector<1x10x128xf32>,
    %cst_291 = arith.constant 0.000000e+00 : f32
    %283 = vector.broadcast %cst_291 : f32 to vector<8x1x128xf32>
    %c1_292 = arith.constant 1 : index
    %c0_293 = arith.constant 0 : index
    %c0_294 = arith.constant 0 : index
    %284 = vector.load %arg24[%c1_292, %c0_293, %c0_294] : memref<18x18x128xf32, #tpu.memory_space<vmem>>, vector<8x1x128xf32>
    tpu.vector_store %arg24[%c1_292, %c0_293, %c0_294], %283 {strides = array<i32>} : memref<18x18x128xf32, #tpu.memory_space<vmem>>, vector<8x1x128xf32>,
    %cst_295 = arith.constant 0.000000e+00 : f32
    %285 = vector.broadcast %cst_295 : f32 to vector<8x1x128xf32>
    %c1_296 = arith.constant 1 : index
    %c9_297 = arith.constant 9 : index
    %c0_298 = arith.constant 0 : index
    %286 = vector.load %arg24[%c1_296, %c9_297, %c0_298] : memref<18x18x128xf32, #tpu.memory_space<vmem>>, vector<8x1x128xf32>
    tpu.vector_store %arg24[%c1_296, %c9_297, %c0_298], %285 {strides = array<i32>} : memref<18x18x128xf32, #tpu.memory_space<vmem>>, vector<8x1x128xf32>,
    %287 = vector.shape_cast %278 : vector<64x128xf32> to vector<8x8x128xf32>
    %c1_299 = arith.constant 1 : index
    %c1_300 = arith.constant 1 : index
    %c0_301 = arith.constant 0 : index
    %288 = vector.load %arg24[%c1_299, %c1_300, %c0_301] : memref<18x18x128xf32, #tpu.memory_space<vmem>>, vector<8x8x128xf32>
    tpu.vector_store %arg24[%c1_299, %c1_300, %c0_301], %287 {strides = array<i32>} : memref<18x18x128xf32, #tpu.memory_space<vmem>>, vector<8x8x128xf32>,
    %c0_302 = arith.constant 0 : index
    %c0_303 = arith.constant 0 : index
    %c0_304 = arith.constant 0 : index
    %289 = vector.load %arg24[%c0_302, %c0_303, %c0_304] : memref<18x18x128xf32, #tpu.memory_space<vmem>>, vector<8x8x128xf32>
    %290 = vector.shape_cast %289 : vector<8x8x128xf32> to vector<64x128xf32>
    %291 = arith.truncf %290 : vector<64x128xf32> to vector<64x128xbf16>
    %c0_305 = arith.constant 0 : index
    %c0_306 = arith.constant 0 : index
    %292 = vector.load %arg25[%c0_305, %c0_306] : memref<256x1152xbf16, #tpu.memory_space<vmem>>, vector<64x128xbf16>
    tpu.vector_store %arg25[%c0_305, %c0_306], %291 {strides = array<i32>} : memref<256x1152xbf16, #tpu.memory_space<vmem>>, vector<64x128xbf16>,
    %c0_307 = arith.constant 0 : index
    %c1_308 = arith.constant 1 : index
    %c0_309 = arith.constant 0 : index
    %293 = vector.load %arg24[%c0_307, %c1_308, %c0_309] : memref<18x18x128xf32, #tpu.memory_space<vmem>>, vector<8x8x128xf32>
    %294 = vector.shape_cast %293 : vector<8x8x128xf32> to vector<64x128xf32>
    %295 = arith.truncf %294 : vector<64x128xf32> to vector<64x128xbf16>
    %c0_310 = arith.constant 0 : index
    %c128_311 = arith.constant 128 : index
    %296 = vector.load %arg25[%c0_310, %c128_311] : memref<256x1152xbf16, #tpu.memory_space<vmem>>, vector<64x128xbf16>
    tpu.vector_store %arg25[%c0_310, %c128_311], %295 {strides = array<i32>} : memref<256x1152xbf16, #tpu.memory_space<vmem>>, vector<64x128xbf16>,
    %c0_312 = arith.constant 0 : index
    %c2_313 = arith.constant 2 : index
    %c0_314 = arith.constant 0 : index
    %297 = vector.load %arg24[%c0_312, %c2_313, %c0_314] : memref<18x18x128xf32, #tpu.memory_space<vmem>>, vector<8x8x128xf32>
    %298 = vector.shape_cast %297 : vector<8x8x128xf32> to vector<64x128xf32>
    %299 = arith.truncf %298 : vector<64x128xf32> to vector<64x128xbf16>
    %c0_315 = arith.constant 0 : index
    %c256_316 = arith.constant 256 : index
    %300 = vector.load %arg25[%c0_315, %c256_316] : memref<256x1152xbf16, #tpu.memory_space<vmem>>, vector<64x128xbf16>
    tpu.vector_store %arg25[%c0_315, %c256_316], %299 {strides = array<i32>} : memref<256x1152xbf16, #tpu.memory_space<vmem>>, vector<64x128xbf16>,
    %c1_317 = arith.constant 1 : index
    %c0_318 = arith.constant 0 : index
    %c0_319 = arith.constant 0 : index
    %301 = vector.load %arg24[%c1_317, %c0_318, %c0_319] : memref<18x18x128xf32, #tpu.memory_space<vmem>>, vector<8x8x128xf32>
    %302 = vector.shape_cast %301 : vector<8x8x128xf32> to vector<64x128xf32>
    %303 = arith.truncf %302 : vector<64x128xf32> to vector<64x128xbf16>
    %c0_320 = arith.constant 0 : index
    %c384_321 = arith.constant 384 : index
    %304 = vector.load %arg25[%c0_320, %c384_321] : memref<256x1152xbf16, #tpu.memory_space<vmem>>, vector<64x128xbf16>
    tpu.vector_store %arg25[%c0_320, %c384_321], %303 {strides = array<i32>} : memref<256x1152xbf16, #tpu.memory_space<vmem>>, vector<64x128xbf16>,
    %c1_322 = arith.constant 1 : index
    %c1_323 = arith.constant 1 : index
    %c0_324 = arith.constant 0 : index
    %305 = vector.load %arg24[%c1_322, %c1_323, %c0_324] : memref<18x18x128xf32, #tpu.memory_space<vmem>>, vector<8x8x128xf32>
    %306 = vector.shape_cast %305 : vector<8x8x128xf32> to vector<64x128xf32>
    %307 = arith.truncf %306 : vector<64x128xf32> to vector<64x128xbf16>
    %c0_325 = arith.constant 0 : index
    %c512_326 = arith.constant 512 : index
    %308 = vector.load %arg25[%c0_325, %c512_326] : memref<256x1152xbf16, #tpu.memory_space<vmem>>, vector<64x128xbf16>
    tpu.vector_store %arg25[%c0_325, %c512_326], %307 {strides = array<i32>} : memref<256x1152xbf16, #tpu.memory_space<vmem>>, vector<64x128xbf16>,
    %c1_327 = arith.constant 1 : index
    %c2_328 = arith.constant 2 : index
    %c0_329 = arith.constant 0 : index
    %309 = vector.load %arg24[%c1_327, %c2_328, %c0_329] : memref<18x18x128xf32, #tpu.memory_space<vmem>>, vector<8x8x128xf32>
    %310 = vector.shape_cast %309 : vector<8x8x128xf32> to vector<64x128xf32>
    %311 = arith.truncf %310 : vector<64x128xf32> to vector<64x128xbf16>
    %c0_330 = arith.constant 0 : index
    %c640 = arith.constant 640 : index
    %312 = vector.load %arg25[%c0_330, %c640] : memref<256x1152xbf16, #tpu.memory_space<vmem>>, vector<64x128xbf16>
    tpu.vector_store %arg25[%c0_330, %c640], %311 {strides = array<i32>} : memref<256x1152xbf16, #tpu.memory_space<vmem>>, vector<64x128xbf16>,
    %c2_331 = arith.constant 2 : index
    %c0_332 = arith.constant 0 : index
    %c0_333 = arith.constant 0 : index
    %313 = vector.load %arg24[%c2_331, %c0_332, %c0_333] : memref<18x18x128xf32, #tpu.memory_space<vmem>>, vector<8x8x128xf32>
    %314 = vector.shape_cast %313 : vector<8x8x128xf32> to vector<64x128xf32>
    %315 = arith.truncf %314 : vector<64x128xf32> to vector<64x128xbf16>
    %c0_334 = arith.constant 0 : index
    %c768 = arith.constant 768 : index
    %316 = vector.load %arg25[%c0_334, %c768] : memref<256x1152xbf16, #tpu.memory_space<vmem>>, vector<64x128xbf16>
    tpu.vector_store %arg25[%c0_334, %c768], %315 {strides = array<i32>} : memref<256x1152xbf16, #tpu.memory_space<vmem>>, vector<64x128xbf16>,
    %c2_335 = arith.constant 2 : index
    %c1_336 = arith.constant 1 : index
    %c0_337 = arith.constant 0 : index
    %317 = vector.load %arg24[%c2_335, %c1_336, %c0_337] : memref<18x18x128xf32, #tpu.memory_space<vmem>>, vector<8x8x128xf32>
    %318 = vector.shape_cast %317 : vector<8x8x128xf32> to vector<64x128xf32>
    %319 = arith.truncf %318 : vector<64x128xf32> to vector<64x128xbf16>
    %c0_338 = arith.constant 0 : index
    %c896 = arith.constant 896 : index
    %320 = vector.load %arg25[%c0_338, %c896] : memref<256x1152xbf16, #tpu.memory_space<vmem>>, vector<64x128xbf16>
    tpu.vector_store %arg25[%c0_338, %c896], %319 {strides = array<i32>} : memref<256x1152xbf16, #tpu.memory_space<vmem>>, vector<64x128xbf16>,
    %c2_339 = arith.constant 2 : index
    %c2_340 = arith.constant 2 : index
    %c0_341 = arith.constant 0 : index
    %321 = vector.load %arg24[%c2_339, %c2_340, %c0_341] : memref<18x18x128xf32, #tpu.memory_space<vmem>>, vector<8x8x128xf32>
    %322 = vector.shape_cast %321 : vector<8x8x128xf32> to vector<64x128xf32>
    %323 = arith.truncf %322 : vector<64x128xf32> to vector<64x128xbf16>
    %c0_342 = arith.constant 0 : index
    %c1024 = arith.constant 1024 : index
    %324 = vector.load %arg25[%c0_342, %c1024] : memref<256x1152xbf16, #tpu.memory_space<vmem>>, vector<64x128xbf16>
    tpu.vector_store %arg25[%c0_342, %c1024], %323 {strides = array<i32>} : memref<256x1152xbf16, #tpu.memory_space<vmem>>, vector<64x128xbf16>,
    %c0_343 = arith.constant 0 : index
    %c0_344 = arith.constant 0 : index
    %325 = vector.load %arg25[%c0_343, %c0_344] : memref<256x1152xbf16, #tpu.memory_space<vmem>>, vector<64x1152xbf16>
    %c0_345 = arith.constant 0 : index
    %c0_346 = arith.constant 0 : index
    %326 = vector.load %arg16[%c0_345, %c0_346] : memref<1152x64xbf16, #tpu.memory_space<vmem>>, vector<1152x64xbf16>
    %cst_347 = arith.constant dense<0.000000e+00> : vector<64x64xf32>
    %327 = tpu.matmul %325, %326, %cst_347 {dimension_numbers = #tpu.dot_dimension_numbers<[1], [0], [0], [1], [0, 0, 1, 1], [], []>} : vector<64x1152xbf16>, vector<1152x64xbf16>, vector<64x64xf32> -> vector<64x64xf32>
    %c0_348 = arith.constant 0 : index
    %c0_349 = arith.constant 0 : index
    %328 = vector.load %arg17[%c0_348, %c0_349] : memref<1x64xf32, #tpu.memory_space<vmem>>, vector<1x64xf32>
    %329 = vector.shape_cast %328 : vector<1x64xf32> to vector<64xf32>
    %330 = vector.shape_cast %329 : vector<64xf32> to vector<1x64xf32>
    %331 = vector.broadcast %330 : vector<1x64xf32> to vector<64x64xf32>
    %332 = arith.addf %327, %331 : vector<64x64xf32>
    %cst_350 = arith.constant 0.000000e+00 : f32
    %333 = vector.broadcast %cst_350 : f32 to vector<64x64xf32>
    %334 = arith.maximumf %332, %333 : vector<64x64xf32>
    %c0_351 = arith.constant 0 : index
    %c0_352 = arith.constant 0 : index
    %335 = vector.load %arg18[%c0_351, %c0_352] : memref<256x64xbf16, #tpu.memory_space<vmem>>, vector<256x64xbf16>
    %336 = arith.truncf %334 : vector<64x64xf32> to vector<64x64xbf16>
    %cst_353 = arith.constant dense<0.000000e+00> : vector<256x64xf32>
    %337 = tpu.matmul %335, %336, %cst_353 {dimension_numbers = #tpu.dot_dimension_numbers<[1], [0], [0], [1], [0, 0, 1, 1], [], []>} : vector<256x64xbf16>, vector<64x64xbf16>, vector<256x64xf32> -> vector<256x64xf32>
    %cst_354 = arith.constant 0.000000e+00 : f32
    %338 = vector.broadcast %cst_354 : f32 to vector<1x18x64xf32>
    %c0_355 = arith.constant 0 : index
    %c0_356 = arith.constant 0 : index
    %c0_357 = arith.constant 0 : index
    %339 = vector.load %arg24[%c0_355, %c0_356, %c0_357] : memref<18x18x128xf32, #tpu.memory_space<vmem>>, vector<1x18x64xf32>
    tpu.vector_store %arg24[%c0_355, %c0_356, %c0_357], %338 {strides = array<i32>} : memref<18x18x128xf32, #tpu.memory_space<vmem>>, vector<1x18x64xf32>,
    %cst_358 = arith.constant 0.000000e+00 : f32
    %340 = vector.broadcast %cst_358 : f32 to vector<1x18x64xf32>
    %c17_359 = arith.constant 17 : index
    %c0_360 = arith.constant 0 : index
    %c0_361 = arith.constant 0 : index
    %341 = vector.load %arg24[%c17_359, %c0_360, %c0_361] : memref<18x18x128xf32, #tpu.memory_space<vmem>>, vector<1x18x64xf32>
    tpu.vector_store %arg24[%c17_359, %c0_360, %c0_361], %340 {strides = array<i32>} : memref<18x18x128xf32, #tpu.memory_space<vmem>>, vector<1x18x64xf32>,
    %cst_362 = arith.constant 0.000000e+00 : f32
    %342 = vector.broadcast %cst_362 : f32 to vector<16x1x64xf32>
    %c1_363 = arith.constant 1 : index
    %c0_364 = arith.constant 0 : index
    %c0_365 = arith.constant 0 : index
    %343 = vector.load %arg24[%c1_363, %c0_364, %c0_365] : memref<18x18x128xf32, #tpu.memory_space<vmem>>, vector<16x1x64xf32>
    tpu.vector_store %arg24[%c1_363, %c0_364, %c0_365], %342 {strides = array<i32>} : memref<18x18x128xf32, #tpu.memory_space<vmem>>, vector<16x1x64xf32>,
    %cst_366 = arith.constant 0.000000e+00 : f32
    %344 = vector.broadcast %cst_366 : f32 to vector<16x1x64xf32>
    %c1_367 = arith.constant 1 : index
    %c17_368 = arith.constant 17 : index
    %c0_369 = arith.constant 0 : index
    %345 = vector.load %arg24[%c1_367, %c17_368, %c0_369] : memref<18x18x128xf32, #tpu.memory_space<vmem>>, vector<16x1x64xf32>
    tpu.vector_store %arg24[%c1_367, %c17_368, %c0_369], %344 {strides = array<i32>} : memref<18x18x128xf32, #tpu.memory_space<vmem>>, vector<16x1x64xf32>,
    %346 = vector.shape_cast %337 : vector<256x64xf32> to vector<16x16x64xf32>
    %c1_370 = arith.constant 1 : index
    %c1_371 = arith.constant 1 : index
    %c0_372 = arith.constant 0 : index
    %347 = vector.load %arg24[%c1_370, %c1_371, %c0_372] : memref<18x18x128xf32, #tpu.memory_space<vmem>>, vector<16x16x64xf32>
    tpu.vector_store %arg24[%c1_370, %c1_371, %c0_372], %346 {strides = array<i32>} : memref<18x18x128xf32, #tpu.memory_space<vmem>>, vector<16x16x64xf32>,
    %c0_373 = arith.constant 0 : index
    %c0_374 = arith.constant 0 : index
    %c0_375 = arith.constant 0 : index
    %348 = vector.load %arg24[%c0_373, %c0_374, %c0_375] : memref<18x18x128xf32, #tpu.memory_space<vmem>>, vector<16x16x64xf32>
    %349 = vector.shape_cast %348 : vector<16x16x64xf32> to vector<256x64xf32>
    %350 = arith.truncf %349 : vector<256x64xf32> to vector<256x64xbf16>
    %c0_376 = arith.constant 0 : index
    %c0_377 = arith.constant 0 : index
    %351 = vector.load %arg25[%c0_376, %c0_377] : memref<256x1152xbf16, #tpu.memory_space<vmem>>, vector<256x64xbf16>
    tpu.vector_store %arg25[%c0_376, %c0_377], %350 {strides = array<i32>} : memref<256x1152xbf16, #tpu.memory_space<vmem>>, vector<256x64xbf16>,
    %c0_378 = arith.constant 0 : index
    %c1_379 = arith.constant 1 : index
    %c0_380 = arith.constant 0 : index
    %352 = vector.load %arg24[%c0_378, %c1_379, %c0_380] : memref<18x18x128xf32, #tpu.memory_space<vmem>>, vector<16x16x64xf32>
    %353 = vector.shape_cast %352 : vector<16x16x64xf32> to vector<256x64xf32>
    %354 = arith.truncf %353 : vector<256x64xf32> to vector<256x64xbf16>
    %c0_381 = arith.constant 0 : index
    %c64_382 = arith.constant 64 : index
    %355 = vector.load %arg25[%c0_381, %c64_382] : memref<256x1152xbf16, #tpu.memory_space<vmem>>, vector<256x64xbf16>
    tpu.vector_store %arg25[%c0_381, %c64_382], %354 {strides = array<i32>} : memref<256x1152xbf16, #tpu.memory_space<vmem>>, vector<256x64xbf16>,
    %c0_383 = arith.constant 0 : index
    %c2_384 = arith.constant 2 : index
    %c0_385 = arith.constant 0 : index
    %356 = vector.load %arg24[%c0_383, %c2_384, %c0_385] : memref<18x18x128xf32, #tpu.memory_space<vmem>>, vector<16x16x64xf32>
    %357 = vector.shape_cast %356 : vector<16x16x64xf32> to vector<256x64xf32>
    %358 = arith.truncf %357 : vector<256x64xf32> to vector<256x64xbf16>
    %c0_386 = arith.constant 0 : index
    %c128_387 = arith.constant 128 : index
    %359 = vector.load %arg25[%c0_386, %c128_387] : memref<256x1152xbf16, #tpu.memory_space<vmem>>, vector<256x64xbf16>
    tpu.vector_store %arg25[%c0_386, %c128_387], %358 {strides = array<i32>} : memref<256x1152xbf16, #tpu.memory_space<vmem>>, vector<256x64xbf16>,
    %c1_388 = arith.constant 1 : index
    %c0_389 = arith.constant 0 : index
    %c0_390 = arith.constant 0 : index
    %360 = vector.load %arg24[%c1_388, %c0_389, %c0_390] : memref<18x18x128xf32, #tpu.memory_space<vmem>>, vector<16x16x64xf32>
    %361 = vector.shape_cast %360 : vector<16x16x64xf32> to vector<256x64xf32>
    %362 = arith.truncf %361 : vector<256x64xf32> to vector<256x64xbf16>
    %c0_391 = arith.constant 0 : index
    %c192_392 = arith.constant 192 : index
    %363 = vector.load %arg25[%c0_391, %c192_392] : memref<256x1152xbf16, #tpu.memory_space<vmem>>, vector<256x64xbf16>
    tpu.vector_store %arg25[%c0_391, %c192_392], %362 {strides = array<i32>} : memref<256x1152xbf16, #tpu.memory_space<vmem>>, vector<256x64xbf16>,
    %c1_393 = arith.constant 1 : index
    %c1_394 = arith.constant 1 : index
    %c0_395 = arith.constant 0 : index
    %364 = vector.load %arg24[%c1_393, %c1_394, %c0_395] : memref<18x18x128xf32, #tpu.memory_space<vmem>>, vector<16x16x64xf32>
    %365 = vector.shape_cast %364 : vector<16x16x64xf32> to vector<256x64xf32>
    %366 = arith.truncf %365 : vector<256x64xf32> to vector<256x64xbf16>
    %c0_396 = arith.constant 0 : index
    %c256_397 = arith.constant 256 : index
    %367 = vector.load %arg25[%c0_396, %c256_397] : memref<256x1152xbf16, #tpu.memory_space<vmem>>, vector<256x64xbf16>
    tpu.vector_store %arg25[%c0_396, %c256_397], %366 {strides = array<i32>} : memref<256x1152xbf16, #tpu.memory_space<vmem>>, vector<256x64xbf16>,
    %c1_398 = arith.constant 1 : index
    %c2_399 = arith.constant 2 : index
    %c0_400 = arith.constant 0 : index
    %368 = vector.load %arg24[%c1_398, %c2_399, %c0_400] : memref<18x18x128xf32, #tpu.memory_space<vmem>>, vector<16x16x64xf32>
    %369 = vector.shape_cast %368 : vector<16x16x64xf32> to vector<256x64xf32>
    %370 = arith.truncf %369 : vector<256x64xf32> to vector<256x64xbf16>
    %c0_401 = arith.constant 0 : index
    %c320_402 = arith.constant 320 : index
    %371 = vector.load %arg25[%c0_401, %c320_402] : memref<256x1152xbf16, #tpu.memory_space<vmem>>, vector<256x64xbf16>
    tpu.vector_store %arg25[%c0_401, %c320_402], %370 {strides = array<i32>} : memref<256x1152xbf16, #tpu.memory_space<vmem>>, vector<256x64xbf16>,
    %c2_403 = arith.constant 2 : index
    %c0_404 = arith.constant 0 : index
    %c0_405 = arith.constant 0 : index
    %372 = vector.load %arg24[%c2_403, %c0_404, %c0_405] : memref<18x18x128xf32, #tpu.memory_space<vmem>>, vector<16x16x64xf32>
    %373 = vector.shape_cast %372 : vector<16x16x64xf32> to vector<256x64xf32>
    %374 = arith.truncf %373 : vector<256x64xf32> to vector<256x64xbf16>
    %c0_406 = arith.constant 0 : index
    %c384_407 = arith.constant 384 : index
    %375 = vector.load %arg25[%c0_406, %c384_407] : memref<256x1152xbf16, #tpu.memory_space<vmem>>, vector<256x64xbf16>
    tpu.vector_store %arg25[%c0_406, %c384_407], %374 {strides = array<i32>} : memref<256x1152xbf16, #tpu.memory_space<vmem>>, vector<256x64xbf16>,
    %c2_408 = arith.constant 2 : index
    %c1_409 = arith.constant 1 : index
    %c0_410 = arith.constant 0 : index
    %376 = vector.load %arg24[%c2_408, %c1_409, %c0_410] : memref<18x18x128xf32, #tpu.memory_space<vmem>>, vector<16x16x64xf32>
    %377 = vector.shape_cast %376 : vector<16x16x64xf32> to vector<256x64xf32>
    %378 = arith.truncf %377 : vector<256x64xf32> to vector<256x64xbf16>
    %c0_411 = arith.constant 0 : index
    %c448_412 = arith.constant 448 : index
    %379 = vector.load %arg25[%c0_411, %c448_412] : memref<256x1152xbf16, #tpu.memory_space<vmem>>, vector<256x64xbf16>
    tpu.vector_store %arg25[%c0_411, %c448_412], %378 {strides = array<i32>} : memref<256x1152xbf16, #tpu.memory_space<vmem>>, vector<256x64xbf16>,
    %c2_413 = arith.constant 2 : index
    %c2_414 = arith.constant 2 : index
    %c0_415 = arith.constant 0 : index
    %380 = vector.load %arg24[%c2_413, %c2_414, %c0_415] : memref<18x18x128xf32, #tpu.memory_space<vmem>>, vector<16x16x64xf32>
    %381 = vector.shape_cast %380 : vector<16x16x64xf32> to vector<256x64xf32>
    %382 = arith.truncf %381 : vector<256x64xf32> to vector<256x64xbf16>
    %c0_416 = arith.constant 0 : index
    %c512_417 = arith.constant 512 : index
    %383 = vector.load %arg25[%c0_416, %c512_417] : memref<256x1152xbf16, #tpu.memory_space<vmem>>, vector<256x64xbf16>
    tpu.vector_store %arg25[%c0_416, %c512_417], %382 {strides = array<i32>} : memref<256x1152xbf16, #tpu.memory_space<vmem>>, vector<256x64xbf16>,
    %c0_418 = arith.constant 0 : index
    %c0_419 = arith.constant 0 : index
    %384 = vector.load %arg25[%c0_418, %c0_419] : memref<256x1152xbf16, #tpu.memory_space<vmem>>, vector<256x576xbf16>
    %c0_420 = arith.constant 0 : index
    %c0_421 = arith.constant 0 : index
    %385 = vector.load %arg19[%c0_420, %c0_421] : memref<576x32xbf16, #tpu.memory_space<vmem>>, vector<576x32xbf16>
    %cst_422 = arith.constant dense<0.000000e+00> : vector<256x32xf32>
    %386 = tpu.matmul %384, %385, %cst_422 {dimension_numbers = #tpu.dot_dimension_numbers<[1], [0], [0], [1], [0, 0, 1, 1], [], []>} : vector<256x576xbf16>, vector<576x32xbf16>, vector<256x32xf32> -> vector<256x32xf32>
    %c0_423 = arith.constant 0 : index
    %c0_424 = arith.constant 0 : index
    %387 = vector.load %arg20[%c0_423, %c0_424] : memref<1x32xf32, #tpu.memory_space<vmem>>, vector<1x32xf32>
    %388 = vector.shape_cast %387 : vector<1x32xf32> to vector<32xf32>
    %389 = vector.shape_cast %388 : vector<32xf32> to vector<1x32xf32>
    %390 = vector.broadcast %389 : vector<1x32xf32> to vector<256x32xf32>
    %391 = arith.addf %386, %390 : vector<256x32xf32>
    %cst_425 = arith.constant 0.000000e+00 : f32
    %392 = vector.broadcast %cst_425 : f32 to vector<256x32xf32>
    %393 = arith.maximumf %391, %392 : vector<256x32xf32>
    %c0_426 = arith.constant 0 : index
    %c0_427 = arith.constant 0 : index
    %394 = vector.load %arg21[%c0_426, %c0_427] : memref<1x32xbf16, #tpu.memory_space<vmem>>, vector<1x32xbf16>
    %395 = arith.truncf %393 : vector<256x32xf32> to vector<256x32xbf16>
    %cst_428 = arith.constant dense<0.000000e+00> : vector<1x256xf32>
    %396 = tpu.matmul %394, %395, %cst_428 {dimension_numbers = #tpu.dot_dimension_numbers<[1], [1], [0], [0], [0, 0, 1, 0], [], []>} : vector<1x32xbf16>, vector<256x32xbf16>, vector<1x256xf32> -> vector<1x256xf32>
    %c0_429 = arith.constant 0 : index
    %c0_430 = arith.constant 0 : index
    %397 = vector.load %arg22[%c0_429, %c0_430] : memref<1x1xf32, #tpu.memory_space<vmem>>, vector<1x1xf32>
    %398 = vector.shape_cast %397 : vector<1x1xf32> to vector<1xf32>
    %399 = vector.shape_cast %398 : vector<1xf32> to vector<1x1xf32>
    %400 = vector.broadcast %399 : vector<1x1xf32> to vector<1x256xf32>
    %401 = arith.addf %396, %400 : vector<1x256xf32>
    %402 = math.absf %401 : vector<1x256xf32>
    %cst_431 = arith.constant 0.000000e+00 : f32
    %403 = vector.broadcast %cst_431 : f32 to vector<1x256xf32>
    %404 = arith.subf %403, %402 : vector<1x256xf32>
    %405 = math.exp %404 : vector<1x256xf32>
    %cst_432 = arith.constant 0.000000e+00 : f32
    %406 = vector.broadcast %cst_432 : f32 to vector<1x256xf32>
    %407 = arith.cmpf oge, %401, %406 : vector<1x256xf32>
    %cst_433 = arith.constant 1.000000e+00 : f32
    %408 = vector.broadcast %cst_433 : f32 to vector<1x256xf32>
    %409 = arith.addf %408, %405 : vector<1x256xf32>
    %cst_434 = arith.constant 1.000000e+00 : f32
    %410 = vector.broadcast %cst_434 : f32 to vector<1x256xf32>
    %411 = arith.divf %410, %409 : vector<1x256xf32>
    %cst_435 = arith.constant 1.000000e+00 : f32
    %412 = vector.broadcast %cst_435 : f32 to vector<1x256xf32>
    %413 = arith.addf %412, %405 : vector<1x256xf32>
    %414 = arith.divf %405, %413 : vector<1x256xf32>
    %415 = arith.select %407, %411, %414 : vector<1x256xi1>, vector<1x256xf32>
    %c0_436 = arith.constant 0 : index
    %c0_437 = arith.constant 0 : index
    %c0_438 = arith.constant 0 : index
    %416 = vector.load %arg23[%c0_436, %c0_437, %c0_438] : memref<1x1x256xf32, #tpu.memory_space<vmem>>, vector<1x1x256xf32>
    %417 = vector.shape_cast %416 : vector<1x1x256xf32> to vector<1x256xf32>
    %418 = vector.shape_cast %415 : vector<1x256xf32> to vector<1x1x256xf32>
    tpu.vector_store %arg23[%c0_436, %c0_437, %c0_438], %418 {strides = array<i32>} : memref<1x1x256xf32, #tpu.memory_space<vmem>>, vector<1x1x256xf32>,
    return
  }
  func.func @transform_0(%arg0: i32) -> (i32, i32, i32, i32) {
    %c0_i32 = arith.constant 0 : i32
    %c0_i32_0 = arith.constant 0 : i32
    %c0_i32_1 = arith.constant 0 : i32
    %c0_i32_2 = arith.constant 0 : i32
    return %arg0, %c0_i32, %c0_i32_0, %c0_i32_1 : i32, i32, i32, i32
  }
  func.func @transform_1(%arg0: i32) -> (i32, i32) {
    %c0_i32 = arith.constant 0 : i32
    %c0_i32_0 = arith.constant 0 : i32
    %c0_i32_1 = arith.constant 0 : i32
    return %c0_i32, %c0_i32_0 : i32, i32
  }
  func.func @transform_2(%arg0: i32) -> (i32, i32) {
    %c0_i32 = arith.constant 0 : i32
    %c0_i32_0 = arith.constant 0 : i32
    %c0_i32_1 = arith.constant 0 : i32
    return %c0_i32, %c0_i32_0 : i32, i32
  }
  func.func @transform_3(%arg0: i32) -> (i32, i32) {
    %c0_i32 = arith.constant 0 : i32
    %c0_i32_0 = arith.constant 0 : i32
    %c0_i32_1 = arith.constant 0 : i32
    return %c0_i32, %c0_i32_0 : i32, i32
  }
  func.func @transform_4(%arg0: i32) -> (i32, i32) {
    %c0_i32 = arith.constant 0 : i32
    %c0_i32_0 = arith.constant 0 : i32
    %c0_i32_1 = arith.constant 0 : i32
    return %c0_i32, %c0_i32_0 : i32, i32
  }
  func.func @transform_5(%arg0: i32) -> (i32, i32) {
    %c0_i32 = arith.constant 0 : i32
    %c0_i32_0 = arith.constant 0 : i32
    %c0_i32_1 = arith.constant 0 : i32
    return %c0_i32, %c0_i32_0 : i32, i32
  }
  func.func @transform_6(%arg0: i32) -> (i32, i32) {
    %c0_i32 = arith.constant 0 : i32
    %c0_i32_0 = arith.constant 0 : i32
    %c0_i32_1 = arith.constant 0 : i32
    return %c0_i32, %c0_i32_0 : i32, i32
  }
  func.func @transform_7(%arg0: i32) -> (i32, i32) {
    %c0_i32 = arith.constant 0 : i32
    %c0_i32_0 = arith.constant 0 : i32
    %c0_i32_1 = arith.constant 0 : i32
    return %c0_i32, %c0_i32_0 : i32, i32
  }
  func.func @transform_8(%arg0: i32) -> (i32, i32) {
    %c0_i32 = arith.constant 0 : i32
    %c0_i32_0 = arith.constant 0 : i32
    %c0_i32_1 = arith.constant 0 : i32
    return %c0_i32, %c0_i32_0 : i32, i32
  }
  func.func @transform_9(%arg0: i32) -> (i32, i32) {
    %c0_i32 = arith.constant 0 : i32
    %c0_i32_0 = arith.constant 0 : i32
    %c0_i32_1 = arith.constant 0 : i32
    return %c0_i32, %c0_i32_0 : i32, i32
  }
  func.func @transform_10(%arg0: i32) -> (i32, i32) {
    %c0_i32 = arith.constant 0 : i32
    %c0_i32_0 = arith.constant 0 : i32
    %c0_i32_1 = arith.constant 0 : i32
    return %c0_i32, %c0_i32_0 : i32, i32
  }
  func.func @transform_11(%arg0: i32) -> (i32, i32) {
    %c0_i32 = arith.constant 0 : i32
    %c0_i32_0 = arith.constant 0 : i32
    %c0_i32_1 = arith.constant 0 : i32
    return %c0_i32, %c0_i32_0 : i32, i32
  }
  func.func @transform_12(%arg0: i32) -> (i32, i32) {
    %c0_i32 = arith.constant 0 : i32
    %c0_i32_0 = arith.constant 0 : i32
    %c0_i32_1 = arith.constant 0 : i32
    return %c0_i32, %c0_i32_0 : i32, i32
  }
  func.func @transform_13(%arg0: i32) -> (i32, i32) {
    %c0_i32 = arith.constant 0 : i32
    %c0_i32_0 = arith.constant 0 : i32
    %c0_i32_1 = arith.constant 0 : i32
    return %c0_i32, %c0_i32_0 : i32, i32
  }
  func.func @transform_14(%arg0: i32) -> (i32, i32) {
    %c0_i32 = arith.constant 0 : i32
    %c0_i32_0 = arith.constant 0 : i32
    %c0_i32_1 = arith.constant 0 : i32
    return %c0_i32, %c0_i32_0 : i32, i32
  }
  func.func @transform_15(%arg0: i32) -> (i32, i32) {
    %c0_i32 = arith.constant 0 : i32
    %c0_i32_0 = arith.constant 0 : i32
    %c0_i32_1 = arith.constant 0 : i32
    return %c0_i32, %c0_i32_0 : i32, i32
  }
  func.func @transform_16(%arg0: i32) -> (i32, i32) {
    %c0_i32 = arith.constant 0 : i32
    %c0_i32_0 = arith.constant 0 : i32
    %c0_i32_1 = arith.constant 0 : i32
    return %c0_i32, %c0_i32_0 : i32, i32
  }
  func.func @transform_17(%arg0: i32) -> (i32, i32) {
    %c0_i32 = arith.constant 0 : i32
    %c0_i32_0 = arith.constant 0 : i32
    %c0_i32_1 = arith.constant 0 : i32
    return %c0_i32, %c0_i32_0 : i32, i32
  }
  func.func @transform_18(%arg0: i32) -> (i32, i32) {
    %c0_i32 = arith.constant 0 : i32
    %c0_i32_0 = arith.constant 0 : i32
    %c0_i32_1 = arith.constant 0 : i32
    return %c0_i32, %c0_i32_0 : i32, i32
  }
  func.func @transform_19(%arg0: i32) -> (i32, i32) {
    %c0_i32 = arith.constant 0 : i32
    %c0_i32_0 = arith.constant 0 : i32
    %c0_i32_1 = arith.constant 0 : i32
    return %c0_i32, %c0_i32_0 : i32, i32
  }
  func.func @transform_20(%arg0: i32) -> (i32, i32) {
    %c0_i32 = arith.constant 0 : i32
    %c0_i32_0 = arith.constant 0 : i32
    %c0_i32_1 = arith.constant 0 : i32
    return %c0_i32, %c0_i32_0 : i32, i32
  }
  func.func @transform_21(%arg0: i32) -> (i32, i32) {
    %c0_i32 = arith.constant 0 : i32
    %c0_i32_0 = arith.constant 0 : i32
    %c0_i32_1 = arith.constant 0 : i32
    return %c0_i32, %c0_i32_0 : i32, i32
  }
  func.func @transform_22(%arg0: i32) -> (i32, i32, i32) {
    %c0_i32 = arith.constant 0 : i32
    %c0_i32_0 = arith.constant 0 : i32
    %c0_i32_1 = arith.constant 0 : i32
    return %arg0, %c0_i32, %c0_i32_0 : i32, i32, i32
  }
}

</mosaic_0001>

<llo_original>
// kernel: weight_predictor_forward.1
$region0: #{weight_predictor_forward.1}
  #allocation0 [shape = 'u32[]', space=smem, size = 0x4, offset = 0x4, fixed_abs, tag = 'smem constant byte address 0x4 - core index']
  #allocation1 [shape = 'u32[144,128]{1,0:T(1,128)}', space=vmem, size = 0x12000, scoped, tag = 'internal scratch']
  #allocation2 [shape = 'f32[18,18,128]{2,1,0:T(8,128)}', space=vmem, size = 0x36000, scoped, tag = 'scratch operand']
  #allocation3 [shape = 'bf16[256,1152]{1,0:T(16,128)(2,1)}', space=vmem, size = 0x90000, scoped, tag = 'scratch operand']
  #allocation4 [shape = 'f32[1,1]{1,0:T(1,128)S(1)}', space=vmem, size = 0x200, scoped, tag = 'scoped memory for weight_predictor_forward.1']
  #allocation5 [shape = 'f32[1,1]{1,0:T(1,128)S(1)}', space=vmem, size = 0x200, scoped, tag = 'scoped memory for weight_predictor_forward.1']
  %s0 = inlined_call_operand.vmem [shape: f32[2,16,16,2], index: 0, kind: input, shape index: {}]
  %s1 = inlined_call_operand.vmem [shape: bf16[18,16], index: 1, kind: input, shape index: {}]
  %s2 = inlined_call_operand.vmem [shape: f32[1,16], index: 2, kind: input, shape index: {}]
  %s3 = inlined_call_operand.vmem [shape: bf16[256,256], index: 3, kind: input, shape index: {}]
  %s4 = inlined_call_operand.vmem [shape: bf16[144,32], index: 4, kind: input, shape index: {}]
  %s5 = inlined_call_operand.vmem [shape: f32[1,32], index: 5, kind: input, shape index: {}]
  %s6 = inlined_call_operand.vmem [shape: bf16[64,64], index: 6, kind: input, shape index: {}]
  %s7 = inlined_call_operand.vmem [shape: bf16[288,64], index: 7, kind: input, shape index: {}]
  %s8 = inlined_call_operand.vmem [shape: f32[1,64], index: 8, kind: input, shape index: {}]
  %s9 = inlined_call_operand.vmem [shape: bf16[64,80], index: 9, kind: input, shape index: {}]
  %s10 = inlined_call_operand.vmem [shape: f32[1,80], index: 10, kind: input, shape index: {}]
  %s11 = inlined_call_operand.<no memory space> [shape: f32[1,1], index: 11, kind: input, shape index: {}]
  %s12 = inlined_call_operand.vmem [shape: bf16[576,128], index: 12, kind: input, shape index: {}]
  %s13 = inlined_call_operand.vmem [shape: f32[1,128], index: 13, kind: input, shape index: {}]
  %s14 = inlined_call_operand.vmem [shape: bf16[64,16], index: 14, kind: input, shape index: {}]
  %s15 = inlined_call_operand.vmem [shape: bf16[1152,64], index: 15, kind: input, shape index: {}]
  %s16 = inlined_call_operand.vmem [shape: f32[1,64], index: 16, kind: input, shape index: {}]
  %s17 = inlined_call_operand.vmem [shape: bf16[256,64], index: 17, kind: input, shape index: {}]
  %s18 = inlined_call_operand.vmem [shape: bf16[576,32], index: 18, kind: input, shape index: {}]
  %s19 = inlined_call_operand.vmem [shape: f32[1,32], index: 19, kind: input, shape index: {}]
  %s20 = inlined_call_operand.vmem [shape: bf16[1,32], index: 20, kind: input, shape index: {}]
  %s21 = inlined_call_operand.<no memory space> [shape: f32[1,1], index: 21, kind: input, shape index: {}]
  %s22 = inlined_call_operand.vmem [shape: f32[2,1,256], index: 22, kind: output, shape index: {}]
  %s23 = sld [smem:[#allocation0]]
  $region121: #{weight_predictor_forward.1} parent=0
    _
  %s25 = ssub.s32 1, %s23
  %s26 = scalar_select 0, %s25, %s23
  %v27 = vstv %s11
  %28 = vst [vmem:[#allocation4] sm:$0x1] %v27
  %v29 = vstv %s21
  %30 = vst [vmem:[#allocation5] sm:$0x1] %v29
  loop: start=0, step=1, limit=4
  $region2: #{weight_predictor_forward.1} parent=0 // loop_pre_header
    _
  $region3: #{weight_predictor_forward.1} parent=0 // loop_header
    %s32 = sphi 0, %s36
    %p33 = scmp.ge.s32.totalorder %s32, 4
    %s42 = sphi 0, %s44
    %s45 = sphi 0, %s42
    %s46 = sphi 0, %s45
    %s62 = sphi 0, %s46
    %s66 = sphi 0, %s66
    %s68 = sphi 0, %s66
    %s69 = sphi 0, %s68
    %s83 = sphi 0, %s69
    %s87 = sphi 0, %s87
    %s89 = sphi 0, %s87
    %s90 = sphi 0, %s89
    %s104 = sphi 0, %s90
    %s108 = sphi 0, %s108
    %s110 = sphi 0, %s108
    %s111 = sphi 0, %s110
    %s125 = sphi 0, %s111
    %s129 = sphi 0, %s129
    %s131 = sphi 0, %s129
    %s132 = sphi 0, %s131
    %s146 = sphi 0, %s132
    %s150 = sphi 0, %s150
    %s152 = sphi 0, %s150
    %s153 = sphi 0, %s152
    %s167 = sphi 0, %s153
    %s171 = sphi 0, %s171
    %s173 = sphi 0, %s171
    %s174 = sphi 0, %s173
    %s188 = sphi 0, %s174
    %s192 = sphi 0, %s192
    %s194 = sphi 0, %s192
    %s195 = sphi 0, %s194
    %s209 = sphi 0, %s195
    %s213 = sphi 0, %s213
    %s215 = sphi 0, %s213
    %s216 = sphi 0, %s215
    %s230 = sphi 0, %s216
    %s234 = sphi 0, %s234
    %s236 = sphi 0, %s234
    %s237 = sphi 0, %s236
    %s251 = sphi 0, %s237
    %s255 = sphi 0, %s255
    %s257 = sphi 0, %s255
    %s258 = sphi 0, %s257
    %s272 = sphi 0, %s258
    %s276 = sphi 0, %s276
    %s278 = sphi 0, %s276
    %s279 = sphi 0, %s278
    %s293 = sphi 0, %s279
    %s297 = sphi 0, %s297
    %s299 = sphi 0, %s297
    %s300 = sphi 0, %s299
    %s314 = sphi 0, %s300
    %s318 = sphi 0, %s318
    %s320 = sphi 0, %s318
    %s321 = sphi 0, %s320
    %s335 = sphi 0, %s321
    %s339 = sphi 0, %s339
    %s341 = sphi 0, %s339
    %s342 = sphi 0, %s341
    %s356 = sphi 0, %s342
    %s360 = sphi 0, %s360
    %s362 = sphi 0, %s360
    %s363 = sphi 0, %s362
    %s377 = sphi 0, %s363
    %s381 = sphi 0, %s381
    %s383 = sphi 0, %s381
    %s384 = sphi 0, %s383
    %s398 = sphi 0, %s384
    %s402 = sphi 0, %s402
    %s404 = sphi 0, %s402
    %s405 = sphi 0, %s404
    %s419 = sphi 0, %s405
    %s423 = sphi 0, %s423
    %s425 = sphi 0, %s423
    %s426 = sphi 0, %s425
    %s440 = sphi 0, %s426
    %s444 = sphi 0, %s444
    %s446 = sphi 0, %s444
    %s447 = sphi 0, %s446
    %s461 = sphi 0, %s447
    %s465 = sphi 0, %s465
    %s467 = sphi 0, %s465
    %s468 = sphi 0, %s467
    %s482 = sphi 0, %s468
    %s486 = sphi 0, %s486
    %s488 = sphi 0, %s486
    %s489 = sphi 0, %s488
    %s503 = sphi 0, %s489
    %s509 = sphi 0, %s511
    %s512 = sphi 0, %s509
    %s513 = sphi 0, %s512
    %s529 = sphi 0, %s513
  $region4: #{weight_predictor_forward.1} parent=0 // loop_header_branch
    %35 = sbr.rel (%p33) target = $region8
  $region5: #{weight_predictor_forward.1} parent=0 // loop_body
    %s37 = ssub.s32 %s32, 1
    %s38 = ssub.s32 %s32, 2
    %s39 = sadd.s32 %s32, 1
    %s40 = ssub.s32 %s32, %s39
    %p41 = scmp.eq.s32.totalorder %s40, 0
    %s43 = sadd.s32 %s42, 1
    %s44 = scalar_select %p41, %s42, %s43
    %p47 = pneg %p41
    %p48 = scmp.eq.s32.totalorder %s32, 1
    %p49 = por %p47, %p48
    %p50 = scmp.ne.s32.totalorder %s42, %s45
    %p51 = scmp.eq.s32.totalorder %s32, 0
    %p52 = por %p50, %p51
    %p53 = scmp.ne.s32.totalorder %s42, %s45
    %p54 = scmp.eq.s32.totalorder %s37, 1
    %p55 = por %p53, %p54
    %p56 = scmp.ne.s32.totalorder %s45, %s46
    %p57 = scmp.eq.s32.totalorder %s37, 0
    %p58 = por %p56, %p57
    %p59 = scmp.ne.s32.totalorder %s45, %s46
    %p60 = scmp.eq.s32.totalorder %s38, 1
    %p61 = por %p59, %p60
    %p63 = scmp.ne.s32.totalorder %s46, %s62
    %p64 = scmp.eq.s32.totalorder %s38, 0
    %p65 = por %p63, %p64
    %s67 = sadd.s32 %s66, 1
    %p70 = scmp.eq.s32.totalorder %s32, 1
    %p71 = scmp.ne.s32.totalorder %s66, %s68
    %p72 = scmp.eq.s32.totalorder %s32, 0
    %p73 = por %p71, %p72
    %p74 = scmp.ne.s32.totalorder %s66, %s68
    %p75 = scmp.eq.s32.totalorder %s37, 1
    %p76 = por %p74, %p75
    %p77 = scmp.ne.s32.totalorder %s68, %s69
    %p78 = scmp.eq.s32.totalorder %s37, 0
    %p79 = por %p77, %p78
    %p80 = scmp.ne.s32.totalorder %s68, %s69
    %p81 = scmp.eq.s32.totalorder %s38, 1
    %p82 = por %p80, %p81
    %p84 = scmp.ne.s32.totalorder %s69, %s83
    %p85 = scmp.eq.s32.totalorder %s38, 0
    %p86 = por %p84, %p85
    %s88 = sadd.s32 %s87, 1
    %p91 = scmp.eq.s32.totalorder %s32, 1
    %p92 = scmp.ne.s32.totalorder %s87, %s89
    %p93 = scmp.eq.s32.totalorder %s32, 0
    %p94 = por %p92, %p93
    %p95 = scmp.ne.s32.totalorder %s87, %s89
    %p96 = scmp.eq.s32.totalorder %s37, 1
    %p97 = por %p95, %p96
    %p98 = scmp.ne.s32.totalorder %s89, %s90
    %p99 = scmp.eq.s32.totalorder %s37, 0
    %p100 = por %p98, %p99
    %p101 = scmp.ne.s32.totalorder %s89, %s90
    %p102 = scmp.eq.s32.totalorder %s38, 1
    %p103 = por %p101, %p102
    %p105 = scmp.ne.s32.totalorder %s90, %s104
    %p106 = scmp.eq.s32.totalorder %s38, 0
    %p107 = por %p105, %p106
    %s109 = sadd.s32 %s108, 1
    %p112 = scmp.eq.s32.totalorder %s32, 1
    %p113 = scmp.ne.s32.totalorder %s108, %s110
    %p114 = scmp.eq.s32.totalorder %s32, 0
    %p115 = por %p113, %p114
    %p116 = scmp.ne.s32.totalorder %s108, %s110
    %p117 = scmp.eq.s32.totalorder %s37, 1
    %p118 = por %p116, %p117
    %p119 = scmp.ne.s32.totalorder %s110, %s111
    %p120 = scmp.eq.s32.totalorder %s37, 0
    %p121 = por %p119, %p120
    %p122 = scmp.ne.s32.totalorder %s110, %s111
    %p123 = scmp.eq.s32.totalorder %s38, 1
    %p124 = por %p122, %p123
    %p126 = scmp.ne.s32.totalorder %s111, %s125
    %p127 = scmp.eq.s32.totalorder %s38, 0
    %p128 = por %p126, %p127
    %s130 = sadd.s32 %s129, 1
    %p133 = scmp.eq.s32.totalorder %s32, 1
    %p134 = scmp.ne.s32.totalorder %s129, %s131
    %p135 = scmp.eq.s32.totalorder %s32, 0
    %p136 = por %p134, %p135
    %p137 = scmp.ne.s32.totalorder %s129, %s131
    %p138 = scmp.eq.s32.totalorder %s37, 1
    %p139 = por %p137, %p138
    %p140 = scmp.ne.s32.totalorder %s131, %s132
    %p141 = scmp.eq.s32.totalorder %s37, 0
    %p142 = por %p140, %p141
    %p143 = scmp.ne.s32.totalorder %s131, %s132
    %p144 = scmp.eq.s32.totalorder %s38, 1
    %p145 = por %p143, %p144
    %p147 = scmp.ne.s32.totalorder %s132, %s146
    %p148 = scmp.eq.s32.totalorder %s38, 0
    %p149 = por %p147, %p148
    %s151 = sadd.s32 %s150, 1
    %p154 = scmp.eq.s32.totalorder %s32, 1
    %p155 = scmp.ne.s32.totalorder %s150, %s152
    %p156 = scmp.eq.s32.totalorder %s32, 0
    %p157 = por %p155, %p156
    %p158 = scmp.ne.s32.totalorder %s150, %s152
    %p159 = scmp.eq.s32.totalorder %s37, 1
    %p160 = por %p158, %p159
    %p161 = scmp.ne.s32.totalorder %s152, %s153
    %p162 = scmp.eq.s32.totalorder %s37, 0
    %p163 = por %p161, %p162
    %p164 = scmp.ne.s32.totalorder %s152, %s153
    %p165 = scmp.eq.s32.totalorder %s38, 1
    %p166 = por %p164, %p165
    %p168 = scmp.ne.s32.totalorder %s153, %s167
    %p169 = scmp.eq.s32.totalorder %s38, 0
    %p170 = por %p168, %p169
    %s172 = sadd.s32 %s171, 1
    %p175 = scmp.eq.s32.totalorder %s32, 1
    %p176 = scmp.ne.s32.totalorder %s171, %s173
    %p177 = scmp.eq.s32.totalorder %s32, 0
    %p178 = por %p176, %p177
    %p179 = scmp.ne.s32.totalorder %s171, %s173
    %p180 = scmp.eq.s32.totalorder %s37, 1
    %p181 = por %p179, %p180
    %p182 = scmp.ne.s32.totalorder %s173, %s174
    %p183 = scmp.eq.s32.totalorder %s37, 0
    %p184 = por %p182, %p183
    %p185 = scmp.ne.s32.totalorder %s173, %s174
    %p186 = scmp.eq.s32.totalorder %s38, 1
    %p187 = por %p185, %p186
    %p189 = scmp.ne.s32.totalorder %s174, %s188
    %p190 = scmp.eq.s32.totalorder %s38, 0
    %p191 = por %p189, %p190
    %s193 = sadd.s32 %s192, 1
    %p196 = scmp.eq.s32.totalorder %s32, 1
    %p197 = scmp.ne.s32.totalorder %s192, %s194
    %p198 = scmp.eq.s32.totalorder %s32, 0
    %p199 = por %p197, %p198
    %p200 = scmp.ne.s32.totalorder %s192, %s194
    %p201 = scmp.eq.s32.totalorder %s37, 1
    %p202 = por %p200, %p201
    %p203 = scmp.ne.s32.totalorder %s194, %s195
    %p204 = scmp.eq.s32.totalorder %s37, 0
    %p205 = por %p203, %p204
    %p206 = scmp.ne.s32.totalorder %s194, %s195
    %p207 = scmp.eq.s32.totalorder %s38, 1
    %p208 = por %p206, %p207
    %p210 = scmp.ne.s32.totalorder %s195, %s209
    %p211 = scmp.eq.s32.totalorder %s38, 0
    %p212 = por %p210, %p211
    %s214 = sadd.s32 %s213, 1
    %p217 = scmp.eq.s32.totalorder %s32, 1
    %p218 = scmp.ne.s32.totalorder %s213, %s215
    %p219 = scmp.eq.s32.totalorder %s32, 0
    %p220 = por %p218, %p219
    %p221 = scmp.ne.s32.totalorder %s213, %s215
    %p222 = scmp.eq.s32.totalorder %s37, 1
    %p223 = por %p221, %p222
    %p224 = scmp.ne.s32.totalorder %s215, %s216
    %p225 = scmp.eq.s32.totalorder %s37, 0
    %p226 = por %p224, %p225
    %p227 = scmp.ne.s32.totalorder %s215, %s216
    %p228 = scmp.eq.s32.totalorder %s38, 1
    %p229 = por %p227, %p228
    %p231 = scmp.ne.s32.totalorder %s216, %s230
    %p232 = scmp.eq.s32.totalorder %s38, 0
    %p233 = por %p231, %p232
    %s235 = sadd.s32 %s234, 1
    %p238 = scmp.eq.s32.totalorder %s32, 1
    %p239 = scmp.ne.s32.totalorder %s234, %s236
    %p240 = scmp.eq.s32.totalorder %s32, 0
    %p241 = por %p239, %p240
    %p242 = scmp.ne.s32.totalorder %s234, %s236
    %p243 = scmp.eq.s32.totalorder %s37, 1
    %p244 = por %p242, %p243
    %p245 = scmp.ne.s32.totalorder %s236, %s237
    %p246 = scmp.eq.s32.totalorder %s37, 0
    %p247 = por %p245, %p246
    %p248 = scmp.ne.s32.totalorder %s236, %s237
    %p249 = scmp.eq.s32.totalorder %s38, 1
    %p250 = por %p248, %p249
    %p252 = scmp.ne.s32.totalorder %s237, %s251
    %p253 = scmp.eq.s32.totalorder %s38, 0
    %p254 = por %p252, %p253
    %s256 = sadd.s32 %s255, 1
    %p259 = scmp.eq.s32.totalorder %s32, 1
    %p260 = scmp.ne.s32.totalorder %s255, %s257
    %p261 = scmp.eq.s32.totalorder %s32, 0
    %p262 = por %p260, %p261
    %p263 = scmp.ne.s32.totalorder %s255, %s257
    %p264 = scmp.eq.s32.totalorder %s37, 1
    %p265 = por %p263, %p264
    %p266 = scmp.ne.s32.totalorder %s257, %s258
    %p267 = scmp.eq.s32.totalorder %s37, 0
    %p268 = por %p266, %p267
    %p269 = scmp.ne.s32.totalorder %s257, %s258
    %p270 = scmp.eq.s32.totalorder %s38, 1
    %p271 = por %p269, %p270
    %p273 = scmp.ne.s32.totalorder %s258, %s272
    %p274 = scmp.eq.s32.totalorder %s38, 0
    %p275 = por %p273, %p274
    %s277 = sadd.s32 %s276, 1
    %p280 = scmp.eq.s32.totalorder %s32, 1
    %p281 = scmp.ne.s32.totalorder %s276, %s278
    %p282 = scmp.eq.s32.totalorder %s32, 0
    %p283 = por %p281, %p282
    %p284 = scmp.ne.s32.totalorder %s276, %s278
    %p285 = scmp.eq.s32.totalorder %s37, 1
    %p286 = por %p284, %p285
    %p287 = scmp.ne.s32.totalorder %s278, %s279
    %p288 = scmp.eq.s32.totalorder %s37, 0
    %p289 = por %p287, %p288
    %p290 = scmp.ne.s32.totalorder %s278, %s279
    %p291 = scmp.eq.s32.totalorder %s38, 1
    %p292 = por %p290, %p291
    %p294 = scmp.ne.s32.totalorder %s279, %s293
    %p295 = scmp.eq.s32.totalorder %s38, 0
    %p296 = por %p294, %p295
    %s298 = sadd.s32 %s297, 1
    %p301 = scmp.eq.s32.totalorder %s32, 1
    %p302 = scmp.ne.s32.totalorder %s297, %s299
    %p303 = scmp.eq.s32.totalorder %s32, 0
    %p304 = por %p302, %p303
    %p305 = scmp.ne.s32.totalorder %s297, %s299
    %p306 = scmp.eq.s32.totalorder %s37, 1
    %p307 = por %p305, %p306
    %p308 = scmp.ne.s32.totalorder %s299, %s300
    %p309 = scmp.eq.s32.totalorder %s37, 0
    %p310 = por %p308, %p309
    %p311 = scmp.ne.s32.totalorder %s299, %s300
    %p312 = scmp.eq.s32.totalorder %s38, 1
    %p313 = por %p311, %p312
    %p315 = scmp.ne.s32.totalorder %s300, %s314
    %p316 = scmp.eq.s32.totalorder %s38, 0
    %p317 = por %p315, %p316
    %s319 = sadd.s32 %s318, 1
    %p322 = scmp.eq.s32.totalorder %s32, 1
    %p323 = scmp.ne.s32.totalorder %s318, %s320
    %p324 = scmp.eq.s32.totalorder %s32, 0
    %p325 = por %p323, %p324
    %p326 = scmp.ne.s32.totalorder %s318, %s320
    %p327 = scmp.eq.s32.totalorder %s37, 1
    %p328 = por %p326, %p327
    %p329 = scmp.ne.s32.totalorder %s320, %s321
    %p330 = scmp.eq.s32.totalorder %s37, 0
    %p331 = por %p329, %p330
    %p332 = scmp.ne.s32.totalorder %s320, %s321
    %p333 = scmp.eq.s32.totalorder %s38, 1
    %p334 = por %p332, %p333
    %p336 = scmp.ne.s32.totalorder %s321, %s335
    %p337 = scmp.eq.s32.totalorder %s38, 0
    %p338 = por %p336, %p337
    %s340 = sadd.s32 %s339, 1
    %p343 = scmp.eq.s32.totalorder %s32, 1
    %p344 = scmp.ne.s32.totalorder %s339, %s341
    %p345 = scmp.eq.s32.totalorder %s32, 0
    %p346 = por %p344, %p345
    %p347 = scmp.ne.s32.totalorder %s339, %s341
    %p348 = scmp.eq.s32.totalorder %s37, 1
    %p349 = por %p347, %p348
    %p350 = scmp.ne.s32.totalorder %s341, %s342
    %p351 = scmp.eq.s32.totalorder %s37, 0
    %p352 = por %p350, %p351
    %p353 = scmp.ne.s32.totalorder %s341, %s342
    %p354 = scmp.eq.s32.totalorder %s38, 1
    %p355 = por %p353, %p354
    %p357 = scmp.ne.s32.totalorder %s342, %s356
    %p358 = scmp.eq.s32.totalorder %s38, 0
    %p359 = por %p357, %p358
    %s361 = sadd.s32 %s360, 1
    %p364 = scmp.eq.s32.totalorder %s32, 1
    %p365 = scmp.ne.s32.totalorder %s360, %s362
    %p366 = scmp.eq.s32.totalorder %s32, 0
    %p367 = por %p365, %p366
    %p368 = scmp.ne.s32.totalorder %s360, %s362
    %p369 = scmp.eq.s32.totalorder %s37, 1
    %p370 = por %p368, %p369
    %p371 = scmp.ne.s32.totalorder %s362, %s363
    %p372 = scmp.eq.s32.totalorder %s37, 0
    %p373 = por %p371, %p372
    %p374 = scmp.ne.s32.totalorder %s362, %s363
    %p375 = scmp.eq.s32.totalorder %s38, 1
    %p376 = por %p374, %p375
    %p378 = scmp.ne.s32.totalorder %s363, %s377
    %p379 = scmp.eq.s32.totalorder %s38, 0
    %p380 = por %p378, %p379
    %s382 = sadd.s32 %s381, 1
    %p385 = scmp.eq.s32.totalorder %s32, 1
    %p386 = scmp.ne.s32.totalorder %s381, %s383
    %p387 = scmp.eq.s32.totalorder %s32, 0
    %p388 = por %p386, %p387
    %p389 = scmp.ne.s32.totalorder %s381, %s383
    %p390 = scmp.eq.s32.totalorder %s37, 1
    %p391 = por %p389, %p390
    %p392 = scmp.ne.s32.totalorder %s383, %s384
    %p393 = scmp.eq.s32.totalorder %s37, 0
    %p394 = por %p392, %p393
    %p395 = scmp.ne.s32.totalorder %s383, %s384
    %p396 = scmp.eq.s32.totalorder %s38, 1
    %p397 = por %p395, %p396
    %p399 = scmp.ne.s32.totalorder %s384, %s398
    %p400 = scmp.eq.s32.totalorder %s38, 0
    %p401 = por %p399, %p400
    %s403 = sadd.s32 %s402, 1
    %p406 = scmp.eq.s32.totalorder %s32, 1
    %p407 = scmp.ne.s32.totalorder %s402, %s404
    %p408 = scmp.eq.s32.totalorder %s32, 0
    %p409 = por %p407, %p408
    %p410 = scmp.ne.s32.totalorder %s402, %s404
    %p411 = scmp.eq.s32.totalorder %s37, 1
    %p412 = por %p410, %p411
    %p413 = scmp.ne.s32.totalorder %s404, %s405
    %p414 = scmp.eq.s32.totalorder %s37, 0
    %p415 = por %p413, %p414
    %p416 = scmp.ne.s32.totalorder %s404, %s405
    %p417 = scmp.eq.s32.totalorder %s38, 1
    %p418 = por %p416, %p417
    %p420 = scmp.ne.s32.totalorder %s405, %s419
    %p421 = scmp.eq.s32.totalorder %s38, 0
    %p422 = por %p420, %p421
    %s424 = sadd.s32 %s423, 1
    %p427 = scmp.eq.s32.totalorder %s32, 1
    %p428 = scmp.ne.s32.totalorder %s423, %s425
    %p429 = scmp.eq.s32.totalorder %s32, 0
    %p430 = por %p428, %p429
    %p431 = scmp.ne.s32.totalorder %s423, %s425
    %p432 = scmp.eq.s32.totalorder %s37, 1
    %p433 = por %p431, %p432
    %p434 = scmp.ne.s32.totalorder %s425, %s426
    %p435 = scmp.eq.s32.totalorder %s37, 0
    %p436 = por %p434, %p435
    %p437 = scmp.ne.s32.totalorder %s425, %s426
    %p438 = scmp.eq.s32.totalorder %s38, 1
    %p439 = por %p437, %p438
    %p441 = scmp.ne.s32.totalorder %s426, %s440
    %p442 = scmp.eq.s32.totalorder %s38, 0
    %p443 = por %p441, %p442
    %s445 = sadd.s32 %s444, 1
    %p448 = scmp.eq.s32.totalorder %s32, 1
    %p449 = scmp.ne.s32.totalorder %s444, %s446
    %p450 = scmp.eq.s32.totalorder %s32, 0
    %p451 = por %p449, %p450
    %p452 = scmp.ne.s32.totalorder %s444, %s446
    %p453 = scmp.eq.s32.totalorder %s37, 1
    %p454 = por %p452, %p453
    %p455 = scmp.ne.s32.totalorder %s446, %s447
    %p456 = scmp.eq.s32.totalorder %s37, 0
    %p457 = por %p455, %p456
    %p458 = scmp.ne.s32.totalorder %s446, %s447
    %p459 = scmp.eq.s32.totalorder %s38, 1
    %p460 = por %p458, %p459
    %p462 = scmp.ne.s32.totalorder %s447, %s461
    %p463 = scmp.eq.s32.totalorder %s38, 0
    %p464 = por %p462, %p463
    %s466 = sadd.s32 %s465, 1
    %p469 = scmp.eq.s32.totalorder %s32, 1
    %p470 = scmp.ne.s32.totalorder %s465, %s467
    %p471 = scmp.eq.s32.totalorder %s32, 0
    %p472 = por %p470, %p471
    %p473 = scmp.ne.s32.totalorder %s465, %s467
    %p474 = scmp.eq.s32.totalorder %s37, 1
    %p475 = por %p473, %p474
    %p476 = scmp.ne.s32.totalorder %s467, %s468
    %p477 = scmp.eq.s32.totalorder %s37, 0
    %p478 = por %p476, %p477
    %p479 = scmp.ne.s32.totalorder %s467, %s468
    %p480 = scmp.eq.s32.totalorder %s38, 1
    %p481 = por %p479, %p480
    %p483 = scmp.ne.s32.totalorder %s468, %s482
    %p484 = scmp.eq.s32.totalorder %s38, 0
    %p485 = por %p483, %p484
    %s487 = sadd.s32 %s486, 1
    %p490 = scmp.eq.s32.totalorder %s32, 1
    %p491 = scmp.ne.s32.totalorder %s486, %s488
    %p492 = scmp.eq.s32.totalorder %s32, 0
    %p493 = por %p491, %p492
    %p494 = scmp.ne.s32.totalorder %s486, %s488
    %p495 = scmp.eq.s32.totalorder %s37, 1
    %p496 = por %p494, %p495
    %p497 = scmp.ne.s32.totalorder %s488, %s489
    %p498 = scmp.eq.s32.totalorder %s37, 0
    %p499 = por %p497, %p498
    %p500 = scmp.ne.s32.totalorder %s488, %s489
    %p501 = scmp.eq.s32.totalorder %s38, 1
    %p502 = por %p500, %p501
    %p504 = scmp.ne.s32.totalorder %s489, %s503
    %p505 = scmp.eq.s32.totalorder %s38, 0
    %p506 = por %p504, %p505
    %s507 = ssub.s32 %s32, %s39
    %p508 = scmp.eq.s32.totalorder %s507, 0
    %s510 = sadd.s32 %s509, 1
    %s511 = scalar_select %p508, %s509, %s510
    %p514 = pneg %p508
    %p515 = scmp.eq.s32.totalorder %s32, 1
    %p516 = por %p514, %p515
    %p517 = scmp.ne.s32.totalorder %s509, %s512
    %p518 = scmp.eq.s32.totalorder %s32, 0
    %p519 = por %p517, %p518
    %p520 = scmp.ne.s32.totalorder %s509, %s512
    %p521 = scmp.eq.s32.totalorder %s37, 1
    %p522 = por %p520, %p521
    %p523 = scmp.ne.s32.totalorder %s512, %s513
    %p524 = scmp.eq.s32.totalorder %s37, 0
    %p525 = por %p523, %p524
    %p526 = scmp.ne.s32.totalorder %s512, %s513
    %p527 = scmp.eq.s32.totalorder %s38, 1
    %p528 = por %p526, %p527
    %p530 = scmp.ne.s32.totalorder %s513, %s529
    %p531 = scmp.eq.s32.totalorder %s38, 0
    %p532 = por %p530, %p531
    %p533 = scmp.le.s32.totalorder 1, %s32
    %p534 = scmp.lt.s32.totalorder %s32, 3
    %p535 = pnand %p533, %p534
    %p536 = pneg %p535
    // Predicated region
    $region9: #{weight_predictor_forward.1} parent=5 // pred_check
      _
    $region10: #{weight_predictor_forward.1} parent=5 // pred_check_branch
      %538 = sbr.rel (%p535) target = $region12
    $region11: #{weight_predictor_forward.1} parent=5 // pred_region
      %s539 = ssub.s32 %s32, 1
      // Predicated region
      $region13: #{weight_predictor_forward.1} parent=11 // pred_check
        %p540 = pneg %p79
      $region14: #{weight_predictor_forward.1} parent=11 // pred_check_branch
        %542 = sbr.rel (%p540) target = $region16
      $region15: #{weight_predictor_forward.1} parent=11 // pred_region
        _
      $region16: #{weight_predictor_forward.1} parent=11 // pred_fallthru
        _
      // Predicated region
      $region17: #{weight_predictor_forward.1} parent=11 // pred_check
        %p543 = pneg %p100
      $region18: #{weight_predictor_forward.1} parent=11 // pred_check_branch
        %545 = sbr.rel (%p543) target = $region20
      $region19: #{weight_predictor_forward.1} parent=11 // pred_region
        _
      $region20: #{weight_predictor_forward.1} parent=11 // pred_fallthru
        _
      // Predicated region
      $region21: #{weight_predictor_forward.1} parent=11 // pred_check
        %p546 = pneg %p121
      $region22: #{weight_predictor_forward.1} parent=11 // pred_check_branch
        %548 = sbr.rel (%p546) target = $region24
      $region23: #{weight_predictor_forward.1} parent=11 // pred_region
        _
      $region24: #{weight_predictor_forward.1} parent=11 // pred_fallthru
        _
      // Predicated region
      $region25: #{weight_predictor_forward.1} parent=11 // pred_check
        %p549 = pneg %p142
      $region26: #{weight_predictor_forward.1} parent=11 // pred_check_branch
        %551 = sbr.rel (%p549) target = $region28
      $region27: #{weight_predictor_forward.1} parent=11 // pred_region
        _
      $region28: #{weight_predictor_forward.1} parent=11 // pred_fallthru
        _
      // Predicated region
      $region29: #{weight_predictor_forward.1} parent=11 // pred_check
        %p552 = pneg %p163
      $region30: #{weight_predictor_forward.1} parent=11 // pred_check_branch
        %554 = sbr.rel (%p552) target = $region32
      $region31: #{weight_predictor_forward.1} parent=11 // pred_region
        _
      $region32: #{weight_predictor_forward.1} parent=11 // pred_fallthru
        _
      // Predicated region
      $region33: #{weight_predictor_forward.1} parent=11 // pred_check
        %p555 = pneg %p184
      $region34: #{weight_predictor_forward.1} parent=11 // pred_check_branch
        %557 = sbr.rel (%p555) target = $region36
      $region35: #{weight_predictor_forward.1} parent=11 // pred_region
        _
      $region36: #{weight_predictor_forward.1} parent=11 // pred_fallthru
        _
      // Predicated region
      $region37: #{weight_predictor_forward.1} parent=11 // pred_check
        %p558 = pneg %p205
      $region38: #{weight_predictor_forward.1} parent=11 // pred_check_branch
        %560 = sbr.rel (%p558) target = $region40
      $region39: #{weight_predictor_forward.1} parent=11 // pred_region
        _
      $region40: #{weight_predictor_forward.1} parent=11 // pred_fallthru
        _
      // Predicated region
      $region41: #{weight_predictor_forward.1} parent=11 // pred_check
        %p561 = pneg %p226
      $region42: #{weight_predictor_forward.1} parent=11 // pred_check_branch
        %563 = sbr.rel (%p561) target = $region44
      $region43: #{weight_predictor_forward.1} parent=11 // pred_region
        _
      $region44: #{weight_predictor_forward.1} parent=11 // pred_fallthru
        _
      // Predicated region
      $region45: #{weight_predictor_forward.1} parent=11 // pred_check
        %p564 = pneg %p247
      $region46: #{weight_predictor_forward.1} parent=11 // pred_check_branch
        %566 = sbr.rel (%p564) target = $region48
      $region47: #{weight_predictor_forward.1} parent=11 // pred_region
        _
      $region48: #{weight_predictor_forward.1} parent=11 // pred_fallthru
        _
      // Predicated region
      $region49: #{weight_predictor_forward.1} parent=11 // pred_check
        %p567 = pneg %p268
      $region50: #{weight_predictor_forward.1} parent=11 // pred_check_branch
        %569 = sbr.rel (%p567) target = $region52
      $region51: #{weight_predictor_forward.1} parent=11 // pred_region
        _
      $region52: #{weight_predictor_forward.1} parent=11 // pred_fallthru
        _
      // Predicated region
      $region53: #{weight_predictor_forward.1} parent=11 // pred_check
        %p570 = pneg %p289
      $region54: #{weight_predictor_forward.1} parent=11 // pred_check_branch
        %572 = sbr.rel (%p570) target = $region56
      $region55: #{weight_predictor_forward.1} parent=11 // pred_region
        _
      $region56: #{weight_predictor_forward.1} parent=11 // pred_fallthru
        _
      // Predicated region
      $region57: #{weight_predictor_forward.1} parent=11 // pred_check
        %p573 = pneg %p310
      $region58: #{weight_predictor_forward.1} parent=11 // pred_check_branch
        %575 = sbr.rel (%p573) target = $region60
      $region59: #{weight_predictor_forward.1} parent=11 // pred_region
        _
      $region60: #{weight_predictor_forward.1} parent=11 // pred_fallthru
        _
      // Predicated region
      $region61: #{weight_predictor_forward.1} parent=11 // pred_check
        %p576 = pneg %p331
      $region62: #{weight_predictor_forward.1} parent=11 // pred_check_branch
        %578 = sbr.rel (%p576) target = $region64
      $region63: #{weight_predictor_forward.1} parent=11 // pred_region
        _
      $region64: #{weight_predictor_forward.1} parent=11 // pred_fallthru
        _
      // Predicated region
      $region65: #{weight_predictor_forward.1} parent=11 // pred_check
        %p579 = pneg %p352
      $region66: #{weight_predictor_forward.1} parent=11 // pred_check_branch
        %581 = sbr.rel (%p579) target = $region68
      $region67: #{weight_predictor_forward.1} parent=11 // pred_region
        _
      $region68: #{weight_predictor_forward.1} parent=11 // pred_fallthru
        _
      // Predicated region
      $region69: #{weight_predictor_forward.1} parent=11 // pred_check
        %p582 = pneg %p373
      $region70: #{weight_predictor_forward.1} parent=11 // pred_check_branch
        %584 = sbr.rel (%p582) target = $region72
      $region71: #{weight_predictor_forward.1} parent=11 // pred_region
        _
      $region72: #{weight_predictor_forward.1} parent=11 // pred_fallthru
        _
      // Predicated region
      $region73: #{weight_predictor_forward.1} parent=11 // pred_check
        %p585 = pneg %p394
      $region74: #{weight_predictor_forward.1} parent=11 // pred_check_branch
        %587 = sbr.rel (%p585) target = $region76
      $region75: #{weight_predictor_forward.1} parent=11 // pred_region
        _
      $region76: #{weight_predictor_forward.1} parent=11 // pred_fallthru
        _
      // Predicated region
      $region77: #{weight_predictor_forward.1} parent=11 // pred_check
        %p588 = pneg %p415
      $region78: #{weight_predictor_forward.1} parent=11 // pred_check_branch
        %590 = sbr.rel (%p588) target = $region80
      $region79: #{weight_predictor_forward.1} parent=11 // pred_region
        _
      $region80: #{weight_predictor_forward.1} parent=11 // pred_fallthru
        _
      // Predicated region
      $region81: #{weight_predictor_forward.1} parent=11 // pred_check
        %p591 = pneg %p436
      $region82: #{weight_predictor_forward.1} parent=11 // pred_check_branch
        %593 = sbr.rel (%p591) target = $region84
      $region83: #{weight_predictor_forward.1} parent=11 // pred_region
        _
      $region84: #{weight_predictor_forward.1} parent=11 // pred_fallthru
        _
      // Predicated region
      $region85: #{weight_predictor_forward.1} parent=11 // pred_check
        %p594 = pneg %p457
      $region86: #{weight_predictor_forward.1} parent=11 // pred_check_branch
        %596 = sbr.rel (%p594) target = $region88
      $region87: #{weight_predictor_forward.1} parent=11 // pred_region
        _
      $region88: #{weight_predictor_forward.1} parent=11 // pred_fallthru
        _
      // Predicated region
      $region89: #{weight_predictor_forward.1} parent=11 // pred_check
        %p597 = pneg %p478
      $region90: #{weight_predictor_forward.1} parent=11 // pred_check_branch
        %599 = sbr.rel (%p597) target = $region92
      $region91: #{weight_predictor_forward.1} parent=11 // pred_region
        _
      $region92: #{weight_predictor_forward.1} parent=11 // pred_fallthru
        _
      // Predicated region
      $region93: #{weight_predictor_forward.1} parent=11 // pred_check
        %p600 = pneg %p499
      $region94: #{weight_predictor_forward.1} parent=11 // pred_check_branch
        %602 = sbr.rel (%p600) target = $region96
      $region95: #{weight_predictor_forward.1} parent=11 // pred_region
        _
      $region96: #{weight_predictor_forward.1} parent=11 // pred_fallthru
        _
    $region12: #{weight_predictor_forward.1} parent=5 // pred_fallthru
      _
    %p603 = scmp.lt.s32.totalorder %s32, 2
    // Predicated region
    $region97: #{weight_predictor_forward.1} parent=5 // pred_check
      %p604 = pneg %p603
    $region98: #{weight_predictor_forward.1} parent=5 // pred_check_branch
      %606 = sbr.rel (%p604) target = $region100
    $region99: #{weight_predictor_forward.1} parent=5 // pred_region
      // Predicated region
      $region101: #{weight_predictor_forward.1} parent=99 // pred_check
        %p607 = pneg %p52
      $region102: #{weight_predictor_forward.1} parent=99 // pred_check_branch
        %609 = sbr.rel (%p607) target = $region104
      $region103: #{weight_predictor_forward.1} parent=99 // pred_region
        %p610 = scmp.lt.s32.totalorder %s32, 1
        %s611 = scalar_select %p610, %s32, 1
        %s612 = smul.addr %s611, 32
        %s613 = smul.addr %s612, 8
        %s614 = scalar_lea.vmem %s0, %s613
      $region104: #{weight_predictor_forward.1} parent=99 // pred_fallthru
        _
    $region100: #{weight_predictor_forward.1} parent=5 // pred_fallthru
      _
    %p615 = scmp.le.s32.totalorder 1, %s32
    %p616 = scmp.lt.s32.totalorder %s32, 3
    %p617 = pnand %p615, %p616
    %p618 = pneg %p617
    // Predicated region
    $region105: #{weight_predictor_forward.1} parent=5 // pred_check
      _
    $region106: #{weight_predictor_forward.1} parent=5 // pred_check_branch
      %620 = sbr.rel (%p617) target = $region108
    $region107: #{weight_predictor_forward.1} parent=5 // pred_region
      %s621 = ssub.s32 %s32, 1
      %p622 = scmp.lt.s32.totalorder %s37, 1
      %s623 = scalar_select %p622, %s37, 1
      %s624 = smul.addr %s623, 32
      %s625 = smul.addr %s624, 8
      %s626 = scalar_lea.vmem %s0, %s625
      %p627 = pneg %p58
      %p628 = pneg %p55
      %p629 = pneg %p79
      %p630 = pneg %p76
      %p631 = pneg %p100
      %p632 = pneg %p97
      %p633 = pneg %p121
      %p634 = pneg %p118
      %p635 = pneg %p142
      %p636 = pneg %p139
      %p637 = pneg %p163
      %p638 = pneg %p160
      %p639 = pneg %p184
      %p640 = pneg %p181
      %p641 = pneg %p205
      %p642 = pneg %p202
      %p643 = pneg %p226
      %p644 = pneg %p223
      %p645 = pneg %p247
      %p646 = pneg %p244
      %p647 = pneg %p268
      %p648 = pneg %p265
      %p649 = pneg %p289
      %p650 = pneg %p286
      %p651 = pneg %p310
      %p652 = pneg %p307
      %p653 = pneg %p331
      %p654 = pneg %p328
      %p655 = pneg %p352
      %p656 = pneg %p349
      %p657 = pneg %p373
      %p658 = pneg %p370
      %p659 = pneg %p394
      %p660 = pneg %p391
      %p661 = pneg %p415
      %p662 = pneg %p412
      %p663 = pneg %p436
      %p664 = pneg %p433
      %p665 = pneg %p457
      %p666 = pneg %p454
      %p667 = pneg %p478
      %p668 = pneg %p475
      %p669 = pneg %p499
      %p670 = pneg %p496
      %p671 = pneg %p525
      %p672 = pneg %p522
      %p673 = scmp.lt.s32.totalorder %s37, 1
      %s674 = scalar_select %p673, %s37, 1
      %s675 = smul.addr %s674, 2
      %s676 = scalar_lea.vmem %s22, %s675
      %p677 = scmp.lt.s32.totalorder %s37, 1
      %s678 = scalar_select %p677, %s37, 1
      %s679 = smul.addr %s678, 32
      %s680 = smul.addr %s679, 8
      %s681 = scalar_lea.vmem %s0, %s680
      %p682 = scmp.lt.s32.totalorder %s37, 1
      %s683 = scalar_select %p682, %s37, 1
      %s684 = smul.addr %s683, 2
      %s685 = scalar_lea.vmem %s22, %s684
      %vm687 = vcmask 15360
      %688 = vst.msk [vmem:[#allocation2] sm:$0xff] %vm687, 0.0
      %689 = vst.msk [vmem:[#allocation2 + $0x8] sm:$0xff] %vm687, 0.0
      %vm690 = vcmask 9216
      %691 = vst.msk [vmem:[#allocation2 + $0x10] sm:$0x3] %vm690, 0.0
      %s692 = scalar_lea.vmem [#allocation2], 408
      %693 = vst.msk [vmem:[%s692] sm:$0xff] %vm687, 0.0
      %694 = vst.msk [vmem:[%s692 + $0x8] sm:$0xff] %vm687, 0.0
      %695 = vst.msk [vmem:[%s692 + $0x10] sm:$0x3] %vm690, 0.0
      %s696 = scalar_lea.vmem [#allocation2], 24
      %vm697 = vcmask 8192
      %698 = vst.msk [vmem:[%s696] sm:$0x1] %vm697, 0.0
      %699 = vst.msk [vmem:[%s696 + $0x18] sm:$0x1] %vm697, 0.0
      %700 = vst.msk [vmem:[%s696 + $0x30] sm:$0x1] %vm697, 0.0
      %701 = vst.msk [vmem:[%s696 + $0x48] sm:$0x1] %vm697, 0.0
      %702 = vst.msk [vmem:[%s696 + $0x60] sm:$0x1] %vm697, 0.0
      %703 = vst.msk [vmem:[%s696 + $0x78] sm:$0x1] %vm697, 0.0
      %704 = vst.msk [vmem:[%s696 + $0x90] sm:$0x1] %vm697, 0.0
      %705 = vst.msk [vmem:[%s696 + $0xa8] sm:$0x1] %vm697, 0.0
      %706 = vst.msk [vmem:[%s696 + $0xc0] sm:$0x1] %vm697, 0.0
      %707 = vst.msk [vmem:[%s696 + $0xd8] sm:$0x1] %vm697, 0.0
      %708 = vst.msk [vmem:[%s696 + $0xf0] sm:$0x1] %vm697, 0.0
      %709 = vst.msk [vmem:[%s696 + $0x108] sm:$0x1] %vm697, 0.0
      %710 = vst.msk [vmem:[%s696 + $0x120] sm:$0x1] %vm697, 0.0
      %711 = vst.msk [vmem:[%s696 + $0x138] sm:$0x1] %vm697, 0.0
      %712 = vst.msk [vmem:[%s696 + $0x150] sm:$0x1] %vm697, 0.0
      %713 = vst.msk [vmem:[%s696 + $0x168] sm:$0x1] %vm697, 0.0
      %714 = vst.msk [vmem:[%s696 + $0x11] sm:$0x1] %vm697, 0.0
      %715 = vst.msk [vmem:[%s696 + $0x29] sm:$0x1] %vm697, 0.0
      %716 = vst.msk [vmem:[%s696 + $0x41] sm:$0x1] %vm697, 0.0
      %717 = vst.msk [vmem:[%s696 + $0x59] sm:$0x1] %vm697, 0.0
      %718 = vst.msk [vmem:[%s696 + $0x71] sm:$0x1] %vm697, 0.0
      %719 = vst.msk [vmem:[%s696 + $0x89] sm:$0x1] %vm697, 0.0
      %720 = vst.msk [vmem:[%s696 + $0xa1] sm:$0x1] %vm697, 0.0
      %721 = vst.msk [vmem:[%s696 + $0xb9] sm:$0x1] %vm697, 0.0
      %722 = vst.msk [vmem:[%s696 + $0xd1] sm:$0x1] %vm697, 0.0
      %723 = vst.msk [vmem:[%s696 + $0xe9] sm:$0x1] %vm697, 0.0
      %724 = vst.msk [vmem:[%s696 + $0x101] sm:$0x1] %vm697, 0.0
      %725 = vst.msk [vmem:[%s696 + $0x119] sm:$0x1] %vm697, 0.0
      %726 = vst.msk [vmem:[%s696 + $0x131] sm:$0x1] %vm697, 0.0
      %727 = vst.msk [vmem:[%s696 + $0x149] sm:$0x1] %vm697, 0.0
      %728 = vst.msk [vmem:[%s696 + $0x161] sm:$0x1] %vm697, 0.0
      %729 = vst.msk [vmem:[%s696 + $0x179] sm:$0x1] %vm697, 0.0
      %v730 = vld [vmem:[%s681] sm:$0xff]
      %v731 = vld [vmem:[%s681 + $0x8] sm:$0xff]
      %v732 = vld [vmem:[%s681 + $0x10] sm:$0xff]
      %v733 = vld [vmem:[%s681 + $0x18] sm:$0xff]
      %v734 = vld [vmem:[%s681 + $0x20] sm:$0xff]
      %v735 = vld [vmem:[%s681 + $0x28] sm:$0xff]
      %v736 = vld [vmem:[%s681 + $0x30] sm:$0xff]
      %v737 = vld [vmem:[%s681 + $0x38] sm:$0xff]
      %v738 = vld [vmem:[%s681 + $0x40] sm:$0xff]
      %v739 = vld [vmem:[%s681 + $0x48] sm:$0xff]
      %v740 = vld [vmem:[%s681 + $0x50] sm:$0xff]
      %v741 = vld [vmem:[%s681 + $0x58] sm:$0xff]
      %v742 = vld [vmem:[%s681 + $0x60] sm:$0xff]
      %v743 = vld [vmem:[%s681 + $0x68] sm:$0xff]
      %v744 = vld [vmem:[%s681 + $0x70] sm:$0xff]
      %v745 = vld [vmem:[%s681 + $0x78] sm:$0xff]
      %v746 = vld [vmem:[%s681 + $0x80] sm:$0xff]
      %v747 = vld [vmem:[%s681 + $0x88] sm:$0xff]
      %v748 = vld [vmem:[%s681 + $0x90] sm:$0xff]
      %v749 = vld [vmem:[%s681 + $0x98] sm:$0xff]
      %v750 = vld [vmem:[%s681 + $0xa0] sm:$0xff]
      %v751 = vld [vmem:[%s681 + $0xa8] sm:$0xff]
      %v752 = vld [vmem:[%s681 + $0xb0] sm:$0xff]
      %v753 = vld [vmem:[%s681 + $0xb8] sm:$0xff]
      %v754 = vld [vmem:[%s681 + $0xc0] sm:$0xff]
      %v755 = vld [vmem:[%s681 + $0xc8] sm:$0xff]
      %v756 = vld [vmem:[%s681 + $0xd0] sm:$0xff]
      %v757 = vld [vmem:[%s681 + $0xd8] sm:$0xff]
      %v758 = vld [vmem:[%s681 + $0xe0] sm:$0xff]
      %v759 = vld [vmem:[%s681 + $0xe8] sm:$0xff]
      %v760 = vld [vmem:[%s681 + $0xf0] sm:$0xff]
      %v761 = vld [vmem:[%s681 + $0xf8] sm:$0xff]
      %762 = vst.msk [vmem:[%s696 + $0x1] sm:$0xff] %vm687, %v730
      %763 = vst.msk [vmem:[%s696 + $0x9] sm:$0xff] %vm687, %v731
      %764 = vst.msk [vmem:[%s696 + $0x19] sm:$0xff] %vm687, %v732
      %765 = vst.msk [vmem:[%s696 + $0x21] sm:$0xff] %vm687, %v733
      %766 = vst.msk [vmem:[%s696 + $0x31] sm:$0xff] %vm687, %v734
      %767 = vst.msk [vmem:[%s696 + $0x39] sm:$0xff] %vm687, %v735
      %768 = vst.msk [vmem:[%s696 + $0x49] sm:$0xff] %vm687, %v736
      %769 = vst.msk [vmem:[%s696 + $0x51] sm:$0xff] %vm687, %v737
      %770 = vst.msk [vmem:[%s696 + $0x61] sm:$0xff] %vm687, %v738
      %771 = vst.msk [vmem:[%s696 + $0x69] sm:$0xff] %vm687, %v739
      %772 = vst.msk [vmem:[%s696 + $0x79] sm:$0xff] %vm687, %v740
      %773 = vst.msk [vmem:[%s696 + $0x81] sm:$0xff] %vm687, %v741
      %774 = vst.msk [vmem:[%s696 + $0x91] sm:$0xff] %vm687, %v742
      %775 = vst.msk [vmem:[%s696 + $0x99] sm:$0xff] %vm687, %v743
      %776 = vst.msk [vmem:[%s696 + $0xa9] sm:$0xff] %vm687, %v744
      %777 = vst.msk [vmem:[%s696 + $0xb1] sm:$0xff] %vm687, %v745
      %778 = vst.msk [vmem:[%s696 + $0xc1] sm:$0xff] %vm687, %v746
      %779 = vst.msk [vmem:[%s696 + $0xc9] sm:$0xff] %vm687, %v747
      %780 = vst.msk [vmem:[%s696 + $0xd9] sm:$0xff] %vm687, %v748
      %781 = vst.msk [vmem:[%s696 + $0xe1] sm:$0xff] %vm687, %v749
      %782 = vst.msk [vmem:[%s696 + $0xf1] sm:$0xff] %vm687, %v750
      %783 = vst.msk [vmem:[%s696 + $0xf9] sm:$0xff] %vm687, %v751
      %784 = vst.msk [vmem:[%s696 + $0x109] sm:$0xff] %vm687, %v752
      %785 = vst.msk [vmem:[%s696 + $0x111] sm:$0xff] %vm687, %v753
      %786 = vst.msk [vmem:[%s696 + $0x121] sm:$0xff] %vm687, %v754
      %787 = vst.msk [vmem:[%s696 + $0x129] sm:$0xff] %vm687, %v755
      %788 = vst.msk [vmem:[%s696 + $0x139] sm:$0xff] %vm687, %v756
      %789 = vst.msk [vmem:[%s696 + $0x141] sm:$0xff] %vm687, %v757
      %790 = vst.msk [vmem:[%s696 + $0x151] sm:$0xff] %vm687, %v758
      %791 = vst.msk [vmem:[%s696 + $0x159] sm:$0xff] %vm687, %v759
      %792 = vst.msk [vmem:[%s696 + $0x169] sm:$0xff] %vm687, %v760
      %793 = vst.msk [vmem:[%s696 + $0x171] sm:$0xff] %vm687, %v761
      %v794 = vld [vmem:[#allocation2] sm:$0xff]
      %v795 = vld [vmem:[#allocation2 + $0x8] sm:$0xff]
      %v796 = vld [vmem:[#allocation2 + $0x18] sm:$0xff]
      %v797 = vld [vmem:[#allocation2 + $0x20] sm:$0xff]
      %v798 = vld [vmem:[#allocation2 + $0x30] sm:$0xff]
      %v799 = vld [vmem:[#allocation2 + $0x38] sm:$0xff]
      %v800 = vld [vmem:[#allocation2 + $0x48] sm:$0xff]
      %v801 = vld [vmem:[#allocation2 + $0x50] sm:$0xff]
      %v802 = vld [vmem:[#allocation2 + $0x60] sm:$0xff]
      %v803 = vld [vmem:[#allocation2 + $0x68] sm:$0xff]
      %v804 = vld [vmem:[#allocation2 + $0x78] sm:$0xff]
      %v805 = vld [vmem:[#allocation2 + $0x80] sm:$0xff]
      %v806 = vld [vmem:[#allocation2 + $0x90] sm:$0xff]
      %v807 = vld [vmem:[#allocation2 + $0x98] sm:$0xff]
      %v808 = vld [vmem:[#allocation2 + $0xa8] sm:$0xff]
      %v809 = vld [vmem:[#allocation2 + $0xb0] sm:$0xff]
      %v810 = vld [vmem:[#allocation2 + $0xc0] sm:$0xff]
      %v811 = vld [vmem:[#allocation2 + $0xc8] sm:$0xff]
      %v812 = vld [vmem:[#allocation2 + $0xd8] sm:$0xff]
      %v813 = vld [vmem:[#allocation2 + $0xe0] sm:$0xff]
      %v814 = vld [vmem:[#allocation2 + $0xf0] sm:$0xff]
      %v815 = vld [vmem:[#allocation2 + $0xf8] sm:$0xff]
      %v816 = vld [vmem:[#allocation2 + $0x108] sm:$0xff]
      %v817 = vld [vmem:[#allocation2 + $0x110] sm:$0xff]
      %v818 = vld [vmem:[#allocation2 + $0x120] sm:$0xff]
      %v819 = vld [vmem:[#allocation2 + $0x128] sm:$0xff]
      %v820 = vld [vmem:[#allocation2 + $0x138] sm:$0xff]
      %v821 = vld [vmem:[#allocation2 + $0x140] sm:$0xff]
      %v822 = vld [vmem:[#allocation2 + $0x150] sm:$0xff]
      %v823 = vld [vmem:[#allocation2 + $0x158] sm:$0xff]
      %v824 = vld [vmem:[#allocation2 + $0x168] sm:$0xff]
      %v825 = vld [vmem:[#allocation2 + $0x170] sm:$0xff]
      %v826 = vpack.c.bf16 %v795, %v794
      %v827 = vpack.c.bf16 %v797, %v796
      %v828 = vpack.c.bf16 %v799, %v798
      %v829 = vpack.c.bf16 %v801, %v800
      %v830 = vpack.c.bf16 %v803, %v802
      %v831 = vpack.c.bf16 %v805, %v804
      %v832 = vpack.c.bf16 %v807, %v806
      %v833 = vpack.c.bf16 %v809, %v808
      %v834 = vpack.c.bf16 %v811, %v810
      %v835 = vpack.c.bf16 %v813, %v812
      %v836 = vpack.c.bf16 %v815, %v814
      %v837 = vpack.c.bf16 %v817, %v816
      %v838 = vpack.c.bf16 %v819, %v818
      %v839 = vpack.c.bf16 %v821, %v820
      %v840 = vpack.c.bf16 %v823, %v822
      %v841 = vpack.c.bf16 %v825, %v824
      %842 = vst.msk [vmem:[#allocation3] sm:$0xff] %vm687, %v826
      %843 = vst.msk [vmem:[#allocation3 + $0x48] sm:$0xff] %vm687, %v827
      %844 = vst.msk [vmem:[#allocation3 + $0x90] sm:$0xff] %vm687, %v828
      %845 = vst.msk [vmem:[#allocation3 + $0xd8] sm:$0xff] %vm687, %v829
      %846 = vst.msk [vmem:[#allocation3 + $0x120] sm:$0xff] %vm687, %v830
      %847 = vst.msk [vmem:[#allocation3 + $0x168] sm:$0xff] %vm687, %v831
      %848 = vst.msk [vmem:[#allocation3 + $0x1b0] sm:$0xff] %vm687, %v832
      %849 = vst.msk [vmem:[#allocation3 + $0x1f8] sm:$0xff] %vm687, %v833
      %850 = vst.msk [vmem:[#allocation3 + $0x240] sm:$0xff] %vm687, %v834
      %851 = vst.msk [vmem:[#allocation3 + $0x288] sm:$0xff] %vm687, %v835
      %852 = vst.msk [vmem:[#allocation3 + $0x2d0] sm:$0xff] %vm687, %v836
      %853 = vst.msk [vmem:[#allocation3 + $0x318] sm:$0xff] %vm687, %v837
      %854 = vst.msk [vmem:[#allocation3 + $0x360] sm:$0xff] %vm687, %v838
      %855 = vst.msk [vmem:[#allocation3 + $0x3a8] sm:$0xff] %vm687, %v839
      %856 = vst.msk [vmem:[#allocation3 + $0x3f0] sm:$0xff] %vm687, %v840
      %857 = vst.msk [vmem:[#allocation3 + $0x438] sm:$0xff] %vm687, %v841
      %v858 = vld [vmem:[#allocation2 + $0x1] sm:$0xff]
      %v859 = vld [vmem:[#allocation2 + $0x9] sm:$0xff]
      %v860 = vld [vmem:[#allocation2 + $0x19] sm:$0xff]
      %v861 = vld [vmem:[#allocation2 + $0x21] sm:$0xff]
      %v862 = vld [vmem:[#allocation2 + $0x31] sm:$0xff]
      %v863 = vld [vmem:[#allocation2 + $0x39] sm:$0xff]
      %v864 = vld [vmem:[#allocation2 + $0x49] sm:$0xff]
      %v865 = vld [vmem:[#allocation2 + $0x51] sm:$0xff]
      %v866 = vld [vmem:[#allocation2 + $0x61] sm:$0xff]
      %v867 = vld [vmem:[#allocation2 + $0x69] sm:$0xff]
      %v868 = vld [vmem:[#allocation2 + $0x79] sm:$0xff]
      %v869 = vld [vmem:[#allocation2 + $0x81] sm:$0xff]
      %v870 = vld [vmem:[#allocation2 + $0x91] sm:$0xff]
      %v871 = vld [vmem:[#allocation2 + $0x99] sm:$0xff]
      %v872 = vld [vmem:[#allocation2 + $0xa9] sm:$0xff]
      %v873 = vld [vmem:[#allocation2 + $0xb1] sm:$0xff]
      %v874 = vld [vmem:[#allocation2 + $0xc1] sm:$0xff]
      %v875 = vld [vmem:[#allocation2 + $0xc9] sm:$0xff]
      %v876 = vld [vmem:[#allocation2 + $0xd9] sm:$0xff]
      %v877 = vld [vmem:[#allocation2 + $0xe1] sm:$0xff]
      %v878 = vld [vmem:[#allocation2 + $0xf1] sm:$0xff]
      %v879 = vld [vmem:[#allocation2 + $0xf9] sm:$0xff]
      %v880 = vld [vmem:[#allocation2 + $0x109] sm:$0xff]
      %v881 = vld [vmem:[#allocation2 + $0x111] sm:$0xff]
      %v882 = vld [vmem:[#allocation2 + $0x121] sm:$0xff]
      %v883 = vld [vmem:[#allocation2 + $0x129] sm:$0xff]
      %v884 = vld [vmem:[#allocation2 + $0x139] sm:$0xff]
      %v885 = vld [vmem:[#allocation2 + $0x141] sm:$0xff]
      %v886 = vld [vmem:[#allocation2 + $0x151] sm:$0xff]
      %v887 = vld [vmem:[#allocation2 + $0x159] sm:$0xff]
      %v888 = vld [vmem:[#allocation2 + $0x169] sm:$0xff]
      %v889 = vld [vmem:[#allocation2 + $0x171] sm:$0xff]
      %v890 = vpack.c.bf16 %v859, %v858
      %v891 = vpack.c.bf16 %v861, %v860
      %v892 = vpack.c.bf16 %v863, %v862
      %v893 = vpack.c.bf16 %v865, %v864
      %v894 = vpack.c.bf16 %v867, %v866
      %v895 = vpack.c.bf16 %v869, %v868
      %v896 = vpack.c.bf16 %v871, %v870
      %v897 = vpack.c.bf16 %v873, %v872
      %v898 = vpack.c.bf16 %v875, %v874
      %v899 = vpack.c.bf16 %v877, %v876
      %v900 = vpack.c.bf16 %v879, %v878
      %v901 = vpack.c.bf16 %v881, %v880
      %v902 = vpack.c.bf16 %v883, %v882
      %v903 = vpack.c.bf16 %v885, %v884
      %v904 = vpack.c.bf16 %v887, %v886
      %v905 = vpack.c.bf16 %v889, %v888
      %922 = vrot.lane.b32.xlu0 %v890, 2
      %v923 = vpop.permute.xlu0 %922
      %924 = vrot.lane.b32.xlu0 %v891, 2
      %v925 = vpop.permute.xlu0 %924
      %926 = vrot.lane.b32.xlu0 %v892, 2
      %v927 = vpop.permute.xlu0 %926
      %928 = vrot.lane.b32.xlu0 %v893, 2
      %v929 = vpop.permute.xlu0 %928
      %930 = vrot.lane.b32.xlu0 %v894, 2
      %v931 = vpop.permute.xlu0 %930
      %932 = vrot.lane.b32.xlu0 %v895, 2
      %v933 = vpop.permute.xlu0 %932
      %934 = vrot.lane.b32.xlu0 %v896, 2
      %v935 = vpop.permute.xlu0 %934
      %936 = vrot.lane.b32.xlu0 %v897, 2
      %v937 = vpop.permute.xlu0 %936
      %938 = vrot.lane.b32.xlu0 %v898, 2
      %v939 = vpop.permute.xlu0 %938
      %940 = vrot.lane.b32.xlu0 %v899, 2
      %v941 = vpop.permute.xlu0 %940
      %942 = vrot.lane.b32.xlu0 %v900, 2
      %v943 = vpop.permute.xlu0 %942
      %944 = vrot.lane.b32.xlu0 %v901, 2
      %v945 = vpop.permute.xlu0 %944
      %946 = vrot.lane.b32.xlu0 %v902, 2
      %v947 = vpop.permute.xlu0 %946
      %948 = vrot.lane.b32.xlu0 %v903, 2
      %v949 = vpop.permute.xlu0 %948
      %950 = vrot.lane.b32.xlu0 %v904, 2
      %v951 = vpop.permute.xlu0 %950
      %952 = vrot.lane.b32.xlu0 %v905, 2
      %v953 = vpop.permute.xlu0 %952
      %vm970 = vcmask 31760
      %971 = vst.msk [vmem:[#allocation3] sm:$0xff] %vm970, %v923
      %972 = vst.msk [vmem:[#allocation3 + $0x48] sm:$0xff] %vm970, %v925
      %973 = vst.msk [vmem:[#allocation3 + $0x90] sm:$0xff] %vm970, %v927
      %974 = vst.msk [vmem:[#allocation3 + $0xd8] sm:$0xff] %vm970, %v929
      %975 = vst.msk [vmem:[#allocation3 + $0x120] sm:$0xff] %vm970, %v931
      %976 = vst.msk [vmem:[#allocation3 + $0x168] sm:$0xff] %vm970, %v933
      %977 = vst.msk [vmem:[#allocation3 + $0x1b0] sm:$0xff] %vm970, %v935
      %978 = vst.msk [vmem:[#allocation3 + $0x1f8] sm:$0xff] %vm970, %v937
      %979 = vst.msk [vmem:[#allocation3 + $0x240] sm:$0xff] %vm970, %v939
      %980 = vst.msk [vmem:[#allocation3 + $0x288] sm:$0xff] %vm970, %v941
      %981 = vst.msk [vmem:[#allocation3 + $0x2d0] sm:$0xff] %vm970, %v943
      %982 = vst.msk [vmem:[#allocation3 + $0x318] sm:$0xff] %vm970, %v945
      %983 = vst.msk [vmem:[#allocation3 + $0x360] sm:$0xff] %vm970, %v947
      %984 = vst.msk [vmem:[#allocation3 + $0x3a8] sm:$0xff] %vm970, %v949
      %985 = vst.msk [vmem:[#allocation3 + $0x3f0] sm:$0xff] %vm970, %v951
      %986 = vst.msk [vmem:[#allocation3 + $0x438] sm:$0xff] %vm970, %v953
      %v987 = vld [vmem:[#allocation2 + $0x2] sm:$0xff]
      %v988 = vld [vmem:[#allocation2 + $0xa] sm:$0xff]
      %v989 = vld [vmem:[#allocation2 + $0x1a] sm:$0xff]
      %v990 = vld [vmem:[#allocation2 + $0x22] sm:$0xff]
      %v991 = vld [vmem:[#allocation2 + $0x32] sm:$0xff]
      %v992 = vld [vmem:[#allocation2 + $0x3a] sm:$0xff]
      %v993 = vld [vmem:[#allocation2 + $0x4a] sm:$0xff]
      %v994 = vld [vmem:[#allocation2 + $0x52] sm:$0xff]
      %v995 = vld [vmem:[#allocation2 + $0x62] sm:$0xff]
      %v996 = vld [vmem:[#allocation2 + $0x6a] sm:$0xff]
      %v997 = vld [vmem:[#allocation2 + $0x7a] sm:$0xff]
      %v998 = vld [vmem:[#allocation2 + $0x82] sm:$0xff]
      %v999 = vld [vmem:[#allocation2 + $0x92] sm:$0xff]
      %v1000 = vld [vmem:[#allocation2 + $0x9a] sm:$0xff]
      %v1001 = vld [vmem:[#allocation2 + $0xaa] sm:$0xff]
      %v1002 = vld [vmem:[#allocation2 + $0xb2] sm:$0xff]
      %v1003 = vld [vmem:[#allocation2 + $0xc2] sm:$0xff]
      %v1004 = vld [vmem:[#allocation2 + $0xca] sm:$0xff]
      %v1005 = vld [vmem:[#allocation2 + $0xda] sm:$0xff]
      %v1006 = vld [vmem:[#allocation2 + $0xe2] sm:$0xff]
      %v1007 = vld [vmem:[#allocation2 + $0xf2] sm:$0xff]
      %v1008 = vld [vmem:[#allocation2 + $0xfa] sm:$0xff]
      %v1009 = vld [vmem:[#allocation2 + $0x10a] sm:$0xff]
      %v1010 = vld [vmem:[#allocation2 + $0x112] sm:$0xff]
      %v1011 = vld [vmem:[#allocation2 + $0x122] sm:$0xff]
      %v1012 = vld [vmem:[#allocation2 + $0x12a] sm:$0xff]
      %v1013 = vld [vmem:[#allocation2 + $0x13a] sm:$0xff]
      %v1014 = vld [vmem:[#allocation2 + $0x142] sm:$0xff]
      %v1015 = vld [vmem:[#allocation2 + $0x152] sm:$0xff]
      %v1016 = vld [vmem:[#allocation2 + $0x15a] sm:$0xff]
      %v1017 = vld [vmem:[#allocation2 + $0x16a] sm:$0xff]
      %v1018 = vld [vmem:[#allocation2 + $0x172] sm:$0xff]
      %v1019 = vpack.c.bf16 %v988, %v987
      %v1020 = vpack.c.bf16 %v990, %v989
      %v1021 = vpack.c.bf16 %v992, %v991
      %v1022 = vpack.c.bf16 %v994, %v993
      %v1023 = vpack.c.bf16 %v996, %v995
      %v1024 = vpack.c.bf16 %v998, %v997
      %v1025 = vpack.c.bf16 %v1000, %v999
      %v1026 = vpack.c.bf16 %v1002, %v1001
      %v1027 = vpack.c.bf16 %v1004, %v1003
      %v1028 = vpack.c.bf16 %v1006, %v1005
      %v1029 = vpack.c.bf16 %v1008, %v1007
      %v1030 = vpack.c.bf16 %v1010, %v1009
      %v1031 = vpack.c.bf16 %v1012, %v1011
      %v1032 = vpack.c.bf16 %v1014, %v1013
      %v1033 = vpack.c.bf16 %v1016, %v1015
      %v1034 = vpack.c.bf16 %v1018, %v1017
      %1051 = vrot.lane.b32.xlu0 %v1019, 4
      %v1052 = vpop.permute.xlu0 %1051
      %1053 = vrot.lane.b32.xlu0 %v1020, 4
      %v1054 = vpop.permute.xlu0 %1053
      %1055 = vrot.lane.b32.xlu0 %v1021, 4
      %v1056 = vpop.permute.xlu0 %1055
      %1057 = vrot.lane.b32.xlu0 %v1022, 4
      %v1058 = vpop.permute.xlu0 %1057
      %1059 = vrot.lane.b32.xlu0 %v1023, 4
      %v1060 = vpop.permute.xlu0 %1059
      %1061 = vrot.lane.b32.xlu0 %v1024, 4
      %v1062 = vpop.permute.xlu0 %1061
      %1063 = vrot.lane.b32.xlu0 %v1025, 4
      %v1064 = vpop.permute.xlu0 %1063
      %1065 = vrot.lane.b32.xlu0 %v1026, 4
      %v1066 = vpop.permute.xlu0 %1065
      %1067 = vrot.lane.b32.xlu0 %v1027, 4
      %v1068 = vpop.permute.xlu0 %1067
      %1069 = vrot.lane.b32.xlu0 %v1028, 4
      %v1070 = vpop.permute.xlu0 %1069
      %1071 = vrot.lane.b32.xlu0 %v1029, 4
      %v1072 = vpop.permute.xlu0 %1071
      %1073 = vrot.lane.b32.xlu0 %v1030, 4
      %v1074 = vpop.permute.xlu0 %1073
      %1075 = vrot.lane.b32.xlu0 %v1031, 4
      %v1076 = vpop.permute.xlu0 %1075
      %1077 = vrot.lane.b32.xlu0 %v1032, 4
      %v1078 = vpop.permute.xlu0 %1077
      %1079 = vrot.lane.b32.xlu0 %v1033, 4
      %v1080 = vpop.permute.xlu0 %1079
      %1081 = vrot.lane.b32.xlu0 %v1034, 4
      %v1082 = vpop.permute.xlu0 %1081
      %vm1099 = vcmask 48160
      %1100 = vst.msk [vmem:[#allocation3] sm:$0xff] %vm1099, %v1052
      %1101 = vst.msk [vmem:[#allocation3 + $0x48] sm:$0xff] %vm1099, %v1054
      %1102 = vst.msk [vmem:[#allocation3 + $0x90] sm:$0xff] %vm1099, %v1056
      %1103 = vst.msk [vmem:[#allocation3 + $0xd8] sm:$0xff] %vm1099, %v1058
      %1104 = vst.msk [vmem:[#allocation3 + $0x120] sm:$0xff] %vm1099, %v1060
      %1105 = vst.msk [vmem:[#allocation3 + $0x168] sm:$0xff] %vm1099, %v1062
      %1106 = vst.msk [vmem:[#allocation3 + $0x1b0] sm:$0xff] %vm1099, %v1064
      %1107 = vst.msk [vmem:[#allocation3 + $0x1f8] sm:$0xff] %vm1099, %v1066
      %1108 = vst.msk [vmem:[#allocation3 + $0x240] sm:$0xff] %vm1099, %v1068
      %1109 = vst.msk [vmem:[#allocation3 + $0x288] sm:$0xff] %vm1099, %v1070
      %1110 = vst.msk [vmem:[#allocation3 + $0x2d0] sm:$0xff] %vm1099, %v1072
      %1111 = vst.msk [vmem:[#allocation3 + $0x318] sm:$0xff] %vm1099, %v1074
      %1112 = vst.msk [vmem:[#allocation3 + $0x360] sm:$0xff] %vm1099, %v1076
      %1113 = vst.msk [vmem:[#allocation3 + $0x3a8] sm:$0xff] %vm1099, %v1078
      %1114 = vst.msk [vmem:[#allocation3 + $0x3f0] sm:$0xff] %vm1099, %v1080
      %1115 = vst.msk [vmem:[#allocation3 + $0x438] sm:$0xff] %vm1099, %v1082
      %v1116 = vld [vmem:[%s696] sm:$0xff]
      %v1117 = vld [vmem:[%s696 + $0x8] sm:$0xff]
      %v1118 = vld [vmem:[%s696 + $0x18] sm:$0xff]
      %v1119 = vld [vmem:[%s696 + $0x20] sm:$0xff]
      %v1120 = vld [vmem:[%s696 + $0x30] sm:$0xff]
      %v1121 = vld [vmem:[%s696 + $0x38] sm:$0xff]
      %v1122 = vld [vmem:[%s696 + $0x48] sm:$0xff]
      %v1123 = vld [vmem:[%s696 + $0x50] sm:$0xff]
      %v1124 = vld [vmem:[%s696 + $0x60] sm:$0xff]
      %v1125 = vld [vmem:[%s696 + $0x68] sm:$0xff]
      %v1126 = vld [vmem:[%s696 + $0x78] sm:$0xff]
      %v1127 = vld [vmem:[%s696 + $0x80] sm:$0xff]
      %v1128 = vld [vmem:[%s696 + $0x90] sm:$0xff]
      %v1129 = vld [vmem:[%s696 + $0x98] sm:$0xff]
      %v1130 = vld [vmem:[%s696 + $0xa8] sm:$0xff]
      %v1131 = vld [vmem:[%s696 + $0xb0] sm:$0xff]
      %v1132 = vld [vmem:[%s696 + $0xc0] sm:$0xff]
      %v1133 = vld [vmem:[%s696 + $0xc8] sm:$0xff]
      %v1134 = vld [vmem:[%s696 + $0xd8] sm:$0xff]
      %v1135 = vld [vmem:[%s696 + $0xe0] sm:$0xff]
      %v1136 = vld [vmem:[%s696 + $0xf0] sm:$0xff]
      %v1137 = vld [vmem:[%s696 + $0xf8] sm:$0xff]
      %v1138 = vld [vmem:[%s696 + $0x108] sm:$0xff]
      %v1139 = vld [vmem:[%s696 + $0x110] sm:$0xff]
      %v1140 = vld [vmem:[%s696 + $0x120] sm:$0xff]
      %v1141 = vld [vmem:[%s696 + $0x128] sm:$0xff]
      %v1142 = vld [vmem:[%s696 + $0x138] sm:$0xff]
      %v1143 = vld [vmem:[%s696 + $0x140] sm:$0xff]
      %v1144 = vld [vmem:[%s696 + $0x150] sm:$0xff]
      %v1145 = vld [vmem:[%s696 + $0x158] sm:$0xff]
      %v1146 = vld [vmem:[%s696 + $0x168] sm:$0xff]
      %v1147 = vld [vmem:[%s696 + $0x170] sm:$0xff]
      %v1148 = vpack.c.bf16 %v1117, %v1116
      %v1149 = vpack.c.bf16 %v1119, %v1118
      %v1150 = vpack.c.bf16 %v1121, %v1120
      %v1151 = vpack.c.bf16 %v1123, %v1122
      %v1152 = vpack.c.bf16 %v1125, %v1124
      %v1153 = vpack.c.bf16 %v1127, %v1126
      %v1154 = vpack.c.bf16 %v1129, %v1128
      %v1155 = vpack.c.bf16 %v1131, %v1130
      %v1156 = vpack.c.bf16 %v1133, %v1132
      %v1157 = vpack.c.bf16 %v1135, %v1134
      %v1158 = vpack.c.bf16 %v1137, %v1136
      %v1159 = vpack.c.bf16 %v1139, %v1138
      %v1160 = vpack.c.bf16 %v1141, %v1140
      %v1161 = vpack.c.bf16 %v1143, %v1142
      %v1162 = vpack.c.bf16 %v1145, %v1144
      %v1163 = vpack.c.bf16 %v1147, %v1146
      %1180 = vrot.lane.b32.xlu0 %v1148, 6
      %v1181 = vpop.permute.xlu0 %1180
      %1182 = vrot.lane.b32.xlu0 %v1149, 6
      %v1183 = vpop.permute.xlu0 %1182
      %1184 = vrot.lane.b32.xlu0 %v1150, 6
      %v1185 = vpop.permute.xlu0 %1184
      %1186 = vrot.lane.b32.xlu0 %v1151, 6
      %v1187 = vpop.permute.xlu0 %1186
      %1188 = vrot.lane.b32.xlu0 %v1152, 6
      %v1189 = vpop.permute.xlu0 %1188
      %1190 = vrot.lane.b32.xlu0 %v1153, 6
      %v1191 = vpop.permute.xlu0 %1190
      %1192 = vrot.lane.b32.xlu0 %v1154, 6
      %v1193 = vpop.permute.xlu0 %1192
      %1194 = vrot.lane.b32.xlu0 %v1155, 6
      %v1195 = vpop.permute.xlu0 %1194
      %1196 = vrot.lane.b32.xlu0 %v1156, 6
      %v1197 = vpop.permute.xlu0 %1196
      %1198 = vrot.lane.b32.xlu0 %v1157, 6
      %v1199 = vpop.permute.xlu0 %1198
      %1200 = vrot.lane.b32.xlu0 %v1158, 6
      %v1201 = vpop.permute.xlu0 %1200
      %1202 = vrot.lane.b32.xlu0 %v1159, 6
      %v1203 = vpop.permute.xlu0 %1202
      %1204 = vrot.lane.b32.xlu0 %v1160, 6
      %v1205 = vpop.permute.xlu0 %1204
      %1206 = vrot.lane.b32.xlu0 %v1161, 6
      %v1207 = vpop.permute.xlu0 %1206
      %1208 = vrot.lane.b32.xlu0 %v1162, 6
      %v1209 = vpop.permute.xlu0 %1208
      %1210 = vrot.lane.b32.xlu0 %v1163, 6
      %v1211 = vpop.permute.xlu0 %1210
      %vm1228 = vcmask 64560
      %1229 = vst.msk [vmem:[#allocation3] sm:$0xff] %vm1228, %v1181
      %1230 = vst.msk [vmem:[#allocation3 + $0x48] sm:$0xff] %vm1228, %v1183
      %1231 = vst.msk [vmem:[#allocation3 + $0x90] sm:$0xff] %vm1228, %v1185
      %1232 = vst.msk [vmem:[#allocation3 + $0xd8] sm:$0xff] %vm1228, %v1187
      %1233 = vst.msk [vmem:[#allocation3 + $0x120] sm:$0xff] %vm1228, %v1189
      %1234 = vst.msk [vmem:[#allocation3 + $0x168] sm:$0xff] %vm1228, %v1191
      %1235 = vst.msk [vmem:[#allocation3 + $0x1b0] sm:$0xff] %vm1228, %v1193
      %1236 = vst.msk [vmem:[#allocation3 + $0x1f8] sm:$0xff] %vm1228, %v1195
      %1237 = vst.msk [vmem:[#allocation3 + $0x240] sm:$0xff] %vm1228, %v1197
      %1238 = vst.msk [vmem:[#allocation3 + $0x288] sm:$0xff] %vm1228, %v1199
      %1239 = vst.msk [vmem:[#allocation3 + $0x2d0] sm:$0xff] %vm1228, %v1201
      %1240 = vst.msk [vmem:[#allocation3 + $0x318] sm:$0xff] %vm1228, %v1203
      %1241 = vst.msk [vmem:[#allocation3 + $0x360] sm:$0xff] %vm1228, %v1205
      %1242 = vst.msk [vmem:[#allocation3 + $0x3a8] sm:$0xff] %vm1228, %v1207
      %1243 = vst.msk [vmem:[#allocation3 + $0x3f0] sm:$0xff] %vm1228, %v1209
      %1244 = vst.msk [vmem:[#allocation3 + $0x438] sm:$0xff] %vm1228, %v1211
      %v1245 = vld [vmem:[%s696 + $0x1] sm:$0xff]
      %v1246 = vld [vmem:[%s696 + $0x9] sm:$0xff]
      %v1247 = vld [vmem:[%s696 + $0x19] sm:$0xff]
      %v1248 = vld [vmem:[%s696 + $0x21] sm:$0xff]
      %v1249 = vld [vmem:[%s696 + $0x31] sm:$0xff]
      %v1250 = vld [vmem:[%s696 + $0x39] sm:$0xff]
      %v1251 = vld [vmem:[%s696 + $0x49] sm:$0xff]
      %v1252 = vld [vmem:[%s696 + $0x51] sm:$0xff]
      %v1253 = vld [vmem:[%s696 + $0x61] sm:$0xff]
      %v1254 = vld [vmem:[%s696 + $0x69] sm:$0xff]
      %v1255 = vld [vmem:[%s696 + $0x79] sm:$0xff]
      %v1256 = vld [vmem:[%s696 + $0x81] sm:$0xff]
      %v1257 = vld [vmem:[%s696 + $0x91] sm:$0xff]
      %v1258 = vld [vmem:[%s696 + $0x99] sm:$0xff]
      %v1259 = vld [vmem:[%s696 + $0xa9] sm:$0xff]
      %v1260 = vld [vmem:[%s696 + $0xb1] sm:$0xff]
      %v1261 = vld [vmem:[%s696 + $0xc1] sm:$0xff]
      %v1262 = vld [vmem:[%s696 + $0xc9] sm:$0xff]
      %v1263 = vld [vmem:[%s696 + $0xd9] sm:$0xff]
      %v1264 = vld [vmem:[%s696 + $0xe1] sm:$0xff]
      %v1265 = vld [vmem:[%s696 + $0xf1] sm:$0xff]
      %v1266 = vld [vmem:[%s696 + $0xf9] sm:$0xff]
      %v1267 = vld [vmem:[%s696 + $0x109] sm:$0xff]
      %v1268 = vld [vmem:[%s696 + $0x111] sm:$0xff]
      %v1269 = vld [vmem:[%s696 + $0x121] sm:$0xff]
      %v1270 = vld [vmem:[%s696 + $0x129] sm:$0xff]
      %v1271 = vld [vmem:[%s696 + $0x139] sm:$0xff]
      %v1272 = vld [vmem:[%s696 + $0x141] sm:$0xff]
      %v1273 = vld [vmem:[%s696 + $0x151] sm:$0xff]
      %v1274 = vld [vmem:[%s696 + $0x159] sm:$0xff]
      %v1275 = vld [vmem:[%s696 + $0x169] sm:$0xff]
      %v1276 = vld [vmem:[%s696 + $0x171] sm:$0xff]
      %v1277 = vpack.c.bf16 %v1246, %v1245
      %v1278 = vpack.c.bf16 %v1248, %v1247
      %v1279 = vpack.c.bf16 %v1250, %v1249
      %v1280 = vpack.c.bf16 %v1252, %v1251
      %v1281 = vpack.c.bf16 %v1254, %v1253
      %v1282 = vpack.c.bf16 %v1256, %v1255
      %v1283 = vpack.c.bf16 %v1258, %v1257
      %v1284 = vpack.c.bf16 %v1260, %v1259
      %v1285 = vpack.c.bf16 %v1262, %v1261
      %v1286 = vpack.c.bf16 %v1264, %v1263
      %v1287 = vpack.c.bf16 %v1266, %v1265
      %v1288 = vpack.c.bf16 %v1268, %v1267
      %v1289 = vpack.c.bf16 %v1270, %v1269
      %v1290 = vpack.c.bf16 %v1272, %v1271
      %v1291 = vpack.c.bf16 %v1274, %v1273
      %v1292 = vpack.c.bf16 %v1276, %v1275
      %1309 = vrot.lane.b32.xlu0 %v1277, 8
      %v1310 = vpop.permute.xlu0 %1309
      %1311 = vrot.lane.b32.xlu0 %v1278, 8
      %v1312 = vpop.permute.xlu0 %1311
      %1313 = vrot.lane.b32.xlu0 %v1279, 8
      %v1314 = vpop.permute.xlu0 %1313
      %1315 = vrot.lane.b32.xlu0 %v1280, 8
      %v1316 = vpop.permute.xlu0 %1315
      %1317 = vrot.lane.b32.xlu0 %v1281, 8
      %v1318 = vpop.permute.xlu0 %1317
      %1319 = vrot.lane.b32.xlu0 %v1282, 8
      %v1320 = vpop.permute.xlu0 %1319
      %1321 = vrot.lane.b32.xlu0 %v1283, 8
      %v1322 = vpop.permute.xlu0 %1321
      %1323 = vrot.lane.b32.xlu0 %v1284, 8
      %v1324 = vpop.permute.xlu0 %1323
      %1325 = vrot.lane.b32.xlu0 %v1285, 8
      %v1326 = vpop.permute.xlu0 %1325
      %1327 = vrot.lane.b32.xlu0 %v1286, 8
      %v1328 = vpop.permute.xlu0 %1327
      %1329 = vrot.lane.b32.xlu0 %v1287, 8
      %v1330 = vpop.permute.xlu0 %1329
      %1331 = vrot.lane.b32.xlu0 %v1288, 8
      %v1332 = vpop.permute.xlu0 %1331
      %1333 = vrot.lane.b32.xlu0 %v1289, 8
      %v1334 = vpop.permute.xlu0 %1333
      %1335 = vrot.lane.b32.xlu0 %v1290, 8
      %v1336 = vpop.permute.xlu0 %1335
      %1337 = vrot.lane.b32.xlu0 %v1291, 8
      %v1338 = vpop.permute.xlu0 %1337
      %1339 = vrot.lane.b32.xlu0 %v1292, 8
      %v1340 = vpop.permute.xlu0 %1339
      %vm1357 = vcmask 80960
      %1358 = vst.msk [vmem:[#allocation3] sm:$0xff] %vm1357, %v1310
      %1359 = vst.msk [vmem:[#allocation3 + $0x48] sm:$0xff] %vm1357, %v1312
      %1360 = vst.msk [vmem:[#allocation3 + $0x90] sm:$0xff] %vm1357, %v1314
      %1361 = vst.msk [vmem:[#allocation3 + $0xd8] sm:$0xff] %vm1357, %v1316
      %1362 = vst.msk [vmem:[#allocation3 + $0x120] sm:$0xff] %vm1357, %v1318
      %1363 = vst.msk [vmem:[#allocation3 + $0x168] sm:$0xff] %vm1357, %v1320
      %1364 = vst.msk [vmem:[#allocation3 + $0x1b0] sm:$0xff] %vm1357, %v1322
      %1365 = vst.msk [vmem:[#allocation3 + $0x1f8] sm:$0xff] %vm1357, %v1324
      %1366 = vst.msk [vmem:[#allocation3 + $0x240] sm:$0xff] %vm1357, %v1326
      %1367 = vst.msk [vmem:[#allocation3 + $0x288] sm:$0xff] %vm1357, %v1328
      %1368 = vst.msk [vmem:[#allocation3 + $0x2d0] sm:$0xff] %vm1357, %v1330
      %1369 = vst.msk [vmem:[#allocation3 + $0x318] sm:$0xff] %vm1357, %v1332
      %1370 = vst.msk [vmem:[#allocation3 + $0x360] sm:$0xff] %vm1357, %v1334
      %1371 = vst.msk [vmem:[#allocation3 + $0x3a8] sm:$0xff] %vm1357, %v1336
      %1372 = vst.msk [vmem:[#allocation3 + $0x3f0] sm:$0xff] %vm1357, %v1338
      %1373 = vst.msk [vmem:[#allocation3 + $0x438] sm:$0xff] %vm1357, %v1340
      %v1374 = vld [vmem:[%s696 + $0x2] sm:$0xff]
      %v1375 = vld [vmem:[%s696 + $0xa] sm:$0xff]
      %v1376 = vld [vmem:[%s696 + $0x1a] sm:$0xff]
      %v1377 = vld [vmem:[%s696 + $0x22] sm:$0xff]
      %v1378 = vld [vmem:[%s696 + $0x32] sm:$0xff]
      %v1379 = vld [vmem:[%s696 + $0x3a] sm:$0xff]
      %v1380 = vld [vmem:[%s696 + $0x4a] sm:$0xff]
      %v1381 = vld [vmem:[%s696 + $0x52] sm:$0xff]
      %v1382 = vld [vmem:[%s696 + $0x62] sm:$0xff]
      %v1383 = vld [vmem:[%s696 + $0x6a] sm:$0xff]
      %v1384 = vld [vmem:[%s696 + $0x7a] sm:$0xff]
      %v1385 = vld [vmem:[%s696 + $0x82] sm:$0xff]
      %v1386 = vld [vmem:[%s696 + $0x92] sm:$0xff]
      %v1387 = vld [vmem:[%s696 + $0x9a] sm:$0xff]
      %v1388 = vld [vmem:[%s696 + $0xaa] sm:$0xff]
      %v1389 = vld [vmem:[%s696 + $0xb2] sm:$0xff]
      %v1390 = vld [vmem:[%s696 + $0xc2] sm:$0xff]
      %v1391 = vld [vmem:[%s696 + $0xca] sm:$0xff]
      %v1392 = vld [vmem:[%s696 + $0xda] sm:$0xff]
      %v1393 = vld [vmem:[%s696 + $0xe2] sm:$0xff]
      %v1394 = vld [vmem:[%s696 + $0xf2] sm:$0xff]
      %v1395 = vld [vmem:[%s696 + $0xfa] sm:$0xff]
      %v1396 = vld [vmem:[%s696 + $0x10a] sm:$0xff]
      %v1397 = vld [vmem:[%s696 + $0x112] sm:$0xff]
      %v1398 = vld [vmem:[%s696 + $0x122] sm:$0xff]
      %v1399 = vld [vmem:[%s696 + $0x12a] sm:$0xff]
      %v1400 = vld [vmem:[%s696 + $0x13a] sm:$0xff]
      %v1401 = vld [vmem:[%s696 + $0x142] sm:$0xff]
      %v1402 = vld [vmem:[%s696 + $0x152] sm:$0xff]
      %v1403 = vld [vmem:[%s696 + $0x15a] sm:$0xff]
      %v1404 = vld [vmem:[%s696 + $0x16a] sm:$0xff]
      %v1405 = vld [vmem:[%s696 + $0x172] sm:$0xff]
      %v1406 = vpack.c.bf16 %v1375, %v1374
      %v1407 = vpack.c.bf16 %v1377, %v1376
      %v1408 = vpack.c.bf16 %v1379, %v1378
      %v1409 = vpack.c.bf16 %v1381, %v1380
      %v1410 = vpack.c.bf16 %v1383, %v1382
      %v1411 = vpack.c.bf16 %v1385, %v1384
      %v1412 = vpack.c.bf16 %v1387, %v1386
      %v1413 = vpack.c.bf16 %v1389, %v1388
      %v1414 = vpack.c.bf16 %v1391, %v1390
      %v1415 = vpack.c.bf16 %v1393, %v1392
      %v1416 = vpack.c.bf16 %v1395, %v1394
      %v1417 = vpack.c.bf16 %v1397, %v1396
      %v1418 = vpack.c.bf16 %v1399, %v1398
      %v1419 = vpack.c.bf16 %v1401, %v1400
      %v1420 = vpack.c.bf16 %v1403, %v1402
      %v1421 = vpack.c.bf16 %v1405, %v1404
      %1438 = vrot.lane.b32.xlu0 %v1406, 10
      %v1439 = vpop.permute.xlu0 %1438
      %1440 = vrot.lane.b32.xlu0 %v1407, 10
      %v1441 = vpop.permute.xlu0 %1440
      %1442 = vrot.lane.b32.xlu0 %v1408, 10
      %v1443 = vpop.permute.xlu0 %1442
      %1444 = vrot.lane.b32.xlu0 %v1409, 10
      %v1445 = vpop.permute.xlu0 %1444
      %1446 = vrot.lane.b32.xlu0 %v1410, 10
      %v1447 = vpop.permute.xlu0 %1446
      %1448 = vrot.lane.b32.xlu0 %v1411, 10
      %v1449 = vpop.permute.xlu0 %1448
      %1450 = vrot.lane.b32.xlu0 %v1412, 10
      %v1451 = vpop.permute.xlu0 %1450
      %1452 = vrot.lane.b32.xlu0 %v1413, 10
      %v1453 = vpop.permute.xlu0 %1452
      %1454 = vrot.lane.b32.xlu0 %v1414, 10
      %v1455 = vpop.permute.xlu0 %1454
      %1456 = vrot.lane.b32.xlu0 %v1415, 10
      %v1457 = vpop.permute.xlu0 %1456
      %1458 = vrot.lane.b32.xlu0 %v1416, 10
      %v1459 = vpop.permute.xlu0 %1458
      %1460 = vrot.lane.b32.xlu0 %v1417, 10
      %v1461 = vpop.permute.xlu0 %1460
      %1462 = vrot.lane.b32.xlu0 %v1418, 10
      %v1463 = vpop.permute.xlu0 %1462
      %1464 = vrot.lane.b32.xlu0 %v1419, 10
      %v1465 = vpop.permute.xlu0 %1464
      %1466 = vrot.lane.b32.xlu0 %v1420, 10
      %v1467 = vpop.permute.xlu0 %1466
      %1468 = vrot.lane.b32.xlu0 %v1421, 10
      %v1469 = vpop.permute.xlu0 %1468
      %vm1486 = vcmask 97360
      %1487 = vst.msk [vmem:[#allocation3] sm:$0xff] %vm1486, %v1439
      %1488 = vst.msk [vmem:[#allocation3 + $0x48] sm:$0xff] %vm1486, %v1441
      %1489 = vst.msk [vmem:[#allocation3 + $0x90] sm:$0xff] %vm1486, %v1443
      %1490 = vst.msk [vmem:[#allocation3 + $0xd8] sm:$0xff] %vm1486, %v1445
      %1491 = vst.msk [vmem:[#allocation3 + $0x120] sm:$0xff] %vm1486, %v1447
      %1492 = vst.msk [vmem:[#allocation3 + $0x168] sm:$0xff] %vm1486, %v1449
      %1493 = vst.msk [vmem:[#allocation3 + $0x1b0] sm:$0xff] %vm1486, %v1451
      %1494 = vst.msk [vmem:[#allocation3 + $0x1f8] sm:$0xff] %vm1486, %v1453
      %1495 = vst.msk [vmem:[#allocation3 + $0x240] sm:$0xff] %vm1486, %v1455
      %1496 = vst.msk [vmem:[#allocation3 + $0x288] sm:$0xff] %vm1486, %v1457
      %1497 = vst.msk [vmem:[#allocation3 + $0x2d0] sm:$0xff] %vm1486, %v1459
      %1498 = vst.msk [vmem:[#allocation3 + $0x318] sm:$0xff] %vm1486, %v1461
      %1499 = vst.msk [vmem:[#allocation3 + $0x360] sm:$0xff] %vm1486, %v1463
      %1500 = vst.msk [vmem:[#allocation3 + $0x3a8] sm:$0xff] %vm1486, %v1465
      %1501 = vst.msk [vmem:[#allocation3 + $0x3f0] sm:$0xff] %vm1486, %v1467
      %1502 = vst.msk [vmem:[#allocation3 + $0x438] sm:$0xff] %vm1486, %v1469
      %s1503 = scalar_lea.vmem [#allocation2], 48
      %v1504 = vld [vmem:[%s1503] sm:$0xff]
      %v1505 = vld [vmem:[%s1503 + $0x8] sm:$0xff]
      %v1506 = vld [vmem:[%s1503 + $0x18] sm:$0xff]
      %v1507 = vld [vmem:[%s1503 + $0x20] sm:$0xff]
      %v1508 = vld [vmem:[%s1503 + $0x30] sm:$0xff]
      %v1509 = vld [vmem:[%s1503 + $0x38] sm:$0xff]
      %v1510 = vld [vmem:[%s1503 + $0x48] sm:$0xff]
      %v1511 = vld [vmem:[%s1503 + $0x50] sm:$0xff]
      %v1512 = vld [vmem:[%s1503 + $0x60] sm:$0xff]
      %v1513 = vld [vmem:[%s1503 + $0x68] sm:$0xff]
      %v1514 = vld [vmem:[%s1503 + $0x78] sm:$0xff]
      %v1515 = vld [vmem:[%s1503 + $0x80] sm:$0xff]
      %v1516 = vld [vmem:[%s1503 + $0x90] sm:$0xff]
      %v1517 = vld [vmem:[%s1503 + $0x98] sm:$0xff]
      %v1518 = vld [vmem:[%s1503 + $0xa8] sm:$0xff]
      %v1519 = vld [vmem:[%s1503 + $0xb0] sm:$0xff]
      %v1520 = vld [vmem:[%s1503 + $0xc0] sm:$0xff]
      %v1521 = vld [vmem:[%s1503 + $0xc8] sm:$0xff]
      %v1522 = vld [vmem:[%s1503 + $0xd8] sm:$0xff]
      %v1523 = vld [vmem:[%s1503 + $0xe0] sm:$0xff]
      %v1524 = vld [vmem:[%s1503 + $0xf0] sm:$0xff]
      %v1525 = vld [vmem:[%s1503 + $0xf8] sm:$0xff]
      %v1526 = vld [vmem:[%s1503 + $0x108] sm:$0xff]
      %v1527 = vld [vmem:[%s1503 + $0x110] sm:$0xff]
      %v1528 = vld [vmem:[%s1503 + $0x120] sm:$0xff]
      %v1529 = vld [vmem:[%s1503 + $0x128] sm:$0xff]
      %v1530 = vld [vmem:[%s1503 + $0x138] sm:$0xff]
      %v1531 = vld [vmem:[%s1503 + $0x140] sm:$0xff]
      %v1532 = vld [vmem:[%s1503 + $0x150] sm:$0xff]
      %v1533 = vld [vmem:[%s1503 + $0x158] sm:$0xff]
      %v1534 = vld [vmem:[%s1503 + $0x168] sm:$0xff]
      %v1535 = vld [vmem:[%s1503 + $0x170] sm:$0xff]
      %v1536 = vpack.c.bf16 %v1505, %v1504
      %v1537 = vpack.c.bf16 %v1507, %v1506
      %v1538 = vpack.c.bf16 %v1509, %v1508
      %v1539 = vpack.c.bf16 %v1511, %v1510
      %v1540 = vpack.c.bf16 %v1513, %v1512
      %v1541 = vpack.c.bf16 %v1515, %v1514
      %v1542 = vpack.c.bf16 %v1517, %v1516
      %v1543 = vpack.c.bf16 %v1519, %v1518
      %v1544 = vpack.c.bf16 %v1521, %v1520
      %v1545 = vpack.c.bf16 %v1523, %v1522
      %v1546 = vpack.c.bf16 %v1525, %v1524
      %v1547 = vpack.c.bf16 %v1527, %v1526
      %v1548 = vpack.c.bf16 %v1529, %v1528
      %v1549 = vpack.c.bf16 %v1531, %v1530
      %v1550 = vpack.c.bf16 %v1533, %v1532
      %v1551 = vpack.c.bf16 %v1535, %v1534
      %1568 = vrot.lane.b32.xlu0 %v1536, 12
      %v1569 = vpop.permute.xlu0 %1568
      %1570 = vrot.lane.b32.xlu0 %v1537, 12
      %v1571 = vpop.permute.xlu0 %1570
      %1572 = vrot.lane.b32.xlu0 %v1538, 12
      %v1573 = vpop.permute.xlu0 %1572
      %1574 = vrot.lane.b32.xlu0 %v1539, 12
      %v1575 = vpop.permute.xlu0 %1574
      %1576 = vrot.lane.b32.xlu0 %v1540, 12
      %v1577 = vpop.permute.xlu0 %1576
      %1578 = vrot.lane.b32.xlu0 %v1541, 12
      %v1579 = vpop.permute.xlu0 %1578
      %1580 = vrot.lane.b32.xlu0 %v1542, 12
      %v1581 = vpop.permute.xlu0 %1580
      %1582 = vrot.lane.b32.xlu0 %v1543, 12
      %v1583 = vpop.permute.xlu0 %1582
      %1584 = vrot.lane.b32.xlu0 %v1544, 12
      %v1585 = vpop.permute.xlu0 %1584
      %1586 = vrot.lane.b32.xlu0 %v1545, 12
      %v1587 = vpop.permute.xlu0 %1586
      %1588 = vrot.lane.b32.xlu0 %v1546, 12
      %v1589 = vpop.permute.xlu0 %1588
      %1590 = vrot.lane.b32.xlu0 %v1547, 12
      %v1591 = vpop.permute.xlu0 %1590
      %1592 = vrot.lane.b32.xlu0 %v1548, 12
      %v1593 = vpop.permute.xlu0 %1592
      %1594 = vrot.lane.b32.xlu0 %v1549, 12
      %v1595 = vpop.permute.xlu0 %1594
      %1596 = vrot.lane.b32.xlu0 %v1550, 12
      %v1597 = vpop.permute.xlu0 %1596
      %1598 = vrot.lane.b32.xlu0 %v1551, 12
      %v1599 = vpop.permute.xlu0 %1598
      %vm1616 = vcmask 113760
      %1617 = vst.msk [vmem:[#allocation3] sm:$0xff] %vm1616, %v1569
      %1618 = vst.msk [vmem:[#allocation3 + $0x48] sm:$0xff] %vm1616, %v1571
      %1619 = vst.msk [vmem:[#allocation3 + $0x90] sm:$0xff] %vm1616, %v1573
      %1620 = vst.msk [vmem:[#allocation3 + $0xd8] sm:$0xff] %vm1616, %v1575
      %1621 = vst.msk [vmem:[#allocation3 + $0x120] sm:$0xff] %vm1616, %v1577
      %1622 = vst.msk [vmem:[#allocation3 + $0x168] sm:$0xff] %vm1616, %v1579
      %1623 = vst.msk [vmem:[#allocation3 + $0x1b0] sm:$0xff] %vm1616, %v1581
      %1624 = vst.msk [vmem:[#allocation3 + $0x1f8] sm:$0xff] %vm1616, %v1583
      %1625 = vst.msk [vmem:[#allocation3 + $0x240] sm:$0xff] %vm1616, %v1585
      %1626 = vst.msk [vmem:[#allocation3 + $0x288] sm:$0xff] %vm1616, %v1587
      %1627 = vst.msk [vmem:[#allocation3 + $0x2d0] sm:$0xff] %vm1616, %v1589
      %1628 = vst.msk [vmem:[#allocation3 + $0x318] sm:$0xff] %vm1616, %v1591
      %1629 = vst.msk [vmem:[#allocation3 + $0x360] sm:$0xff] %vm1616, %v1593
      %1630 = vst.msk [vmem:[#allocation3 + $0x3a8] sm:$0xff] %vm1616, %v1595
      %1631 = vst.msk [vmem:[#allocation3 + $0x3f0] sm:$0xff] %vm1616, %v1597
      %1632 = vst.msk [vmem:[#allocation3 + $0x438] sm:$0xff] %vm1616, %v1599
      %v1633 = vld [vmem:[%s1503 + $0x1] sm:$0xff]
      %v1634 = vld [vmem:[%s1503 + $0x9] sm:$0xff]
      %v1635 = vld [vmem:[%s1503 + $0x19] sm:$0xff]
      %v1636 = vld [vmem:[%s1503 + $0x21] sm:$0xff]
      %v1637 = vld [vmem:[%s1503 + $0x31] sm:$0xff]
      %v1638 = vld [vmem:[%s1503 + $0x39] sm:$0xff]
      %v1639 = vld [vmem:[%s1503 + $0x49] sm:$0xff]
      %v1640 = vld [vmem:[%s1503 + $0x51] sm:$0xff]
      %v1641 = vld [vmem:[%s1503 + $0x61] sm:$0xff]
      %v1642 = vld [vmem:[%s1503 + $0x69] sm:$0xff]
      %v1643 = vld [vmem:[%s1503 + $0x79] sm:$0xff]
      %v1644 = vld [vmem:[%s1503 + $0x81] sm:$0xff]
      %v1645 = vld [vmem:[%s1503 + $0x91] sm:$0xff]
      %v1646 = vld [vmem:[%s1503 + $0x99] sm:$0xff]
      %v1647 = vld [vmem:[%s1503 + $0xa9] sm:$0xff]
      %v1648 = vld [vmem:[%s1503 + $0xb1] sm:$0xff]
      %v1649 = vld [vmem:[%s1503 + $0xc1] sm:$0xff]
      %v1650 = vld [vmem:[%s1503 + $0xc9] sm:$0xff]
      %v1651 = vld [vmem:[%s1503 + $0xd9] sm:$0xff]
      %v1652 = vld [vmem:[%s1503 + $0xe1] sm:$0xff]
      %v1653 = vld [vmem:[%s1503 + $0xf1] sm:$0xff]
      %v1654 = vld [vmem:[%s1503 + $0xf9] sm:$0xff]
      %v1655 = vld [vmem:[%s1503 + $0x109] sm:$0xff]
      %v1656 = vld [vmem:[%s1503 + $0x111] sm:$0xff]
      %v1657 = vld [vmem:[%s1503 + $0x121] sm:$0xff]
      %v1658 = vld [vmem:[%s1503 + $0x129] sm:$0xff]
      %v1659 = vld [vmem:[%s1503 + $0x139] sm:$0xff]
      %v1660 = vld [vmem:[%s1503 + $0x141] sm:$0xff]
      %v1661 = vld [vmem:[%s1503 + $0x151] sm:$0xff]
      %v1662 = vld [vmem:[%s1503 + $0x159] sm:$0xff]
      %v1663 = vld [vmem:[%s1503 + $0x169] sm:$0xff]
      %v1664 = vld [vmem:[%s1503 + $0x171] sm:$0xff]
      %v1665 = vpack.c.bf16 %v1634, %v1633
      %v1666 = vpack.c.bf16 %v1636, %v1635
      %v1667 = vpack.c.bf16 %v1638, %v1637
      %v1668 = vpack.c.bf16 %v1640, %v1639
      %v1669 = vpack.c.bf16 %v1642, %v1641
      %v1670 = vpack.c.bf16 %v1644, %v1643
      %v1671 = vpack.c.bf16 %v1646, %v1645
      %v1672 = vpack.c.bf16 %v1648, %v1647
      %v1673 = vpack.c.bf16 %v1650, %v1649
      %v1674 = vpack.c.bf16 %v1652, %v1651
      %v1675 = vpack.c.bf16 %v1654, %v1653
      %v1676 = vpack.c.bf16 %v1656, %v1655
      %v1677 = vpack.c.bf16 %v1658, %v1657
      %v1678 = vpack.c.bf16 %v1660, %v1659
      %v1679 = vpack.c.bf16 %v1662, %v1661
      %v1680 = vpack.c.bf16 %v1664, %v1663
      %1697 = vrot.lane.b32.xlu0 %v1665, 14
      %v1698 = vpop.permute.xlu0 %1697
      %1699 = vrot.lane.b32.xlu0 %v1666, 14
      %v1700 = vpop.permute.xlu0 %1699
      %1701 = vrot.lane.b32.xlu0 %v1667, 14
      %v1702 = vpop.permute.xlu0 %1701
      %1703 = vrot.lane.b32.xlu0 %v1668, 14
      %v1704 = vpop.permute.xlu0 %1703
      %1705 = vrot.lane.b32.xlu0 %v1669, 14
      %v1706 = vpop.permute.xlu0 %1705
      %1707 = vrot.lane.b32.xlu0 %v1670, 14
      %v1708 = vpop.permute.xlu0 %1707
      %1709 = vrot.lane.b32.xlu0 %v1671, 14
      %v1710 = vpop.permute.xlu0 %1709
      %1711 = vrot.lane.b32.xlu0 %v1672, 14
      %v1712 = vpop.permute.xlu0 %1711
      %1713 = vrot.lane.b32.xlu0 %v1673, 14
      %v1714 = vpop.permute.xlu0 %1713
      %1715 = vrot.lane.b32.xlu0 %v1674, 14
      %v1716 = vpop.permute.xlu0 %1715
      %1717 = vrot.lane.b32.xlu0 %v1675, 14
      %v1718 = vpop.permute.xlu0 %1717
      %1719 = vrot.lane.b32.xlu0 %v1676, 14
      %v1720 = vpop.permute.xlu0 %1719
      %1721 = vrot.lane.b32.xlu0 %v1677, 14
      %v1722 = vpop.permute.xlu0 %1721
      %1723 = vrot.lane.b32.xlu0 %v1678, 14
      %v1724 = vpop.permute.xlu0 %1723
      %1725 = vrot.lane.b32.xlu0 %v1679, 14
      %v1726 = vpop.permute.xlu0 %1725
      %1727 = vrot.lane.b32.xlu0 %v1680, 14
      %v1728 = vpop.permute.xlu0 %1727
      %vm1745 = vcmask 130160
      %1746 = vst.msk [vmem:[#allocation3] sm:$0xff] %vm1745, %v1698
      %1747 = vst.msk [vmem:[#allocation3 + $0x48] sm:$0xff] %vm1745, %v1700
      %1748 = vst.msk [vmem:[#allocation3 + $0x90] sm:$0xff] %vm1745, %v1702
      %1749 = vst.msk [vmem:[#allocation3 + $0xd8] sm:$0xff] %vm1745, %v1704
      %1750 = vst.msk [vmem:[#allocation3 + $0x120] sm:$0xff] %vm1745, %v1706
      %1751 = vst.msk [vmem:[#allocation3 + $0x168] sm:$0xff] %vm1745, %v1708
      %1752 = vst.msk [vmem:[#allocation3 + $0x1b0] sm:$0xff] %vm1745, %v1710
      %1753 = vst.msk [vmem:[#allocation3 + $0x1f8] sm:$0xff] %vm1745, %v1712
      %1754 = vst.msk [vmem:[#allocation3 + $0x240] sm:$0xff] %vm1745, %v1714
      %1755 = vst.msk [vmem:[#allocation3 + $0x288] sm:$0xff] %vm1745, %v1716
      %1756 = vst.msk [vmem:[#allocation3 + $0x2d0] sm:$0xff] %vm1745, %v1718
      %1757 = vst.msk [vmem:[#allocation3 + $0x318] sm:$0xff] %vm1745, %v1720
      %1758 = vst.msk [vmem:[#allocation3 + $0x360] sm:$0xff] %vm1745, %v1722
      %1759 = vst.msk [vmem:[#allocation3 + $0x3a8] sm:$0xff] %vm1745, %v1724
      %1760 = vst.msk [vmem:[#allocation3 + $0x3f0] sm:$0xff] %vm1745, %v1726
      %1761 = vst.msk [vmem:[#allocation3 + $0x438] sm:$0xff] %vm1745, %v1728
      %v1762 = vld [vmem:[%s1503 + $0x2] sm:$0xff]
      %v1763 = vld [vmem:[%s1503 + $0xa] sm:$0xff]
      %v1764 = vld [vmem:[%s1503 + $0x1a] sm:$0xff]
      %v1765 = vld [vmem:[%s1503 + $0x22] sm:$0xff]
      %v1766 = vld [vmem:[%s1503 + $0x32] sm:$0xff]
      %v1767 = vld [vmem:[%s1503 + $0x3a] sm:$0xff]
      %v1768 = vld [vmem:[%s1503 + $0x4a] sm:$0xff]
      %v1769 = vld [vmem:[%s1503 + $0x52] sm:$0xff]
      %v1770 = vld [vmem:[%s1503 + $0x62] sm:$0xff]
      %v1771 = vld [vmem:[%s1503 + $0x6a] sm:$0xff]
      %v1772 = vld [vmem:[%s1503 + $0x7a] sm:$0xff]
      %v1773 = vld [vmem:[%s1503 + $0x82] sm:$0xff]
      %v1774 = vld [vmem:[%s1503 + $0x92] sm:$0xff]
      %v1775 = vld [vmem:[%s1503 + $0x9a] sm:$0xff]
      %v1776 = vld [vmem:[%s1503 + $0xaa] sm:$0xff]
      %v1777 = vld [vmem:[%s1503 + $0xb2] sm:$0xff]
      %v1778 = vld [vmem:[%s1503 + $0xc2] sm:$0xff]
      %v1779 = vld [vmem:[%s1503 + $0xca] sm:$0xff]
      %v1780 = vld [vmem:[%s1503 + $0xda] sm:$0xff]
      %v1781 = vld [vmem:[%s1503 + $0xe2] sm:$0xff]
      %v1782 = vld [vmem:[%s1503 + $0xf2] sm:$0xff]
      %v1783 = vld [vmem:[%s1503 + $0xfa] sm:$0xff]
      %v1784 = vld [vmem:[%s1503 + $0x10a] sm:$0xff]
      %v1785 = vld [vmem:[%s1503 + $0x112] sm:$0xff]
      %v1786 = vld [vmem:[%s1503 + $0x122] sm:$0xff]
      %v1787 = vld [vmem:[%s1503 + $0x12a] sm:$0xff]
      %v1788 = vld [vmem:[%s1503 + $0x13a] sm:$0xff]
      %v1789 = vld [vmem:[%s1503 + $0x142] sm:$0xff]
      %v1790 = vld [vmem:[%s1503 + $0x152] sm:$0xff]
      %v1791 = vld [vmem:[%s1503 + $0x15a] sm:$0xff]
      %v1792 = vld [vmem:[%s1503 + $0x16a] sm:$0xff]
      %v1793 = vld [vmem:[%s1503 + $0x172] sm:$0xff]
      %v1794 = vpack.c.bf16 %v1763, %v1762
      %v1795 = vpack.c.bf16 %v1765, %v1764
      %v1796 = vpack.c.bf16 %v1767, %v1766
      %v1797 = vpack.c.bf16 %v1769, %v1768
      %v1798 = vpack.c.bf16 %v1771, %v1770
      %v1799 = vpack.c.bf16 %v1773, %v1772
      %v1800 = vpack.c.bf16 %v1775, %v1774
      %v1801 = vpack.c.bf16 %v1777, %v1776
      %v1802 = vpack.c.bf16 %v1779, %v1778
      %v1803 = vpack.c.bf16 %v1781, %v1780
      %v1804 = vpack.c.bf16 %v1783, %v1782
      %v1805 = vpack.c.bf16 %v1785, %v1784
      %v1806 = vpack.c.bf16 %v1787, %v1786
      %v1807 = vpack.c.bf16 %v1789, %v1788
      %v1808 = vpack.c.bf16 %v1791, %v1790
      %v1809 = vpack.c.bf16 %v1793, %v1792
      %1826 = vrot.lane.b32.xlu0 %v1794, 16
      %v1827 = vpop.permute.xlu0 %1826
      %1828 = vrot.lane.b32.xlu0 %v1795, 16
      %v1829 = vpop.permute.xlu0 %1828
      %1830 = vrot.lane.b32.xlu0 %v1796, 16
      %v1831 = vpop.permute.xlu0 %1830
      %1832 = vrot.lane.b32.xlu0 %v1797, 16
      %v1833 = vpop.permute.xlu0 %1832
      %1834 = vrot.lane.b32.xlu0 %v1798, 16
      %v1835 = vpop.permute.xlu0 %1834
      %1836 = vrot.lane.b32.xlu0 %v1799, 16
      %v1837 = vpop.permute.xlu0 %1836
      %1838 = vrot.lane.b32.xlu0 %v1800, 16
      %v1839 = vpop.permute.xlu0 %1838
      %1840 = vrot.lane.b32.xlu0 %v1801, 16
      %v1841 = vpop.permute.xlu0 %1840
      %1842 = vrot.lane.b32.xlu0 %v1802, 16
      %v1843 = vpop.permute.xlu0 %1842
      %1844 = vrot.lane.b32.xlu0 %v1803, 16
      %v1845 = vpop.permute.xlu0 %1844
      %1846 = vrot.lane.b32.xlu0 %v1804, 16
      %v1847 = vpop.permute.xlu0 %1846
      %1848 = vrot.lane.b32.xlu0 %v1805, 16
      %v1849 = vpop.permute.xlu0 %1848
      %1850 = vrot.lane.b32.xlu0 %v1806, 16
      %v1851 = vpop.permute.xlu0 %1850
      %1852 = vrot.lane.b32.xlu0 %v1807, 16
      %v1853 = vpop.permute.xlu0 %1852
      %1854 = vrot.lane.b32.xlu0 %v1808, 16
      %v1855 = vpop.permute.xlu0 %1854
      %1856 = vrot.lane.b32.xlu0 %v1809, 16
      %v1857 = vpop.permute.xlu0 %1856
      %vm1874 = vcmask 146560
      %1875 = vst.msk [vmem:[#allocation3] sm:$0xff] %vm1874, %v1827
      %1876 = vst.msk [vmem:[#allocation3 + $0x48] sm:$0xff] %vm1874, %v1829
      %1877 = vst.msk [vmem:[#allocation3 + $0x90] sm:$0xff] %vm1874, %v1831
      %1878 = vst.msk [vmem:[#allocation3 + $0xd8] sm:$0xff] %vm1874, %v1833
      %1879 = vst.msk [vmem:[#allocation3 + $0x120] sm:$0xff] %vm1874, %v1835
      %1880 = vst.msk [vmem:[#allocation3 + $0x168] sm:$0xff] %vm1874, %v1837
      %1881 = vst.msk [vmem:[#allocation3 + $0x1b0] sm:$0xff] %vm1874, %v1839
      %1882 = vst.msk [vmem:[#allocation3 + $0x1f8] sm:$0xff] %vm1874, %v1841
      %1883 = vst.msk [vmem:[#allocation3 + $0x240] sm:$0xff] %vm1874, %v1843
      %1884 = vst.msk [vmem:[#allocation3 + $0x288] sm:$0xff] %vm1874, %v1845
      %1885 = vst.msk [vmem:[#allocation3 + $0x2d0] sm:$0xff] %vm1874, %v1847
      %1886 = vst.msk [vmem:[#allocation3 + $0x318] sm:$0xff] %vm1874, %v1849
      %1887 = vst.msk [vmem:[#allocation3 + $0x360] sm:$0xff] %vm1874, %v1851
      %1888 = vst.msk [vmem:[#allocation3 + $0x3a8] sm:$0xff] %vm1874, %v1853
      %1889 = vst.msk [vmem:[#allocation3 + $0x3f0] sm:$0xff] %vm1874, %v1855
      %1890 = vst.msk [vmem:[#allocation3 + $0x438] sm:$0xff] %vm1874, %v1857
      %v1891 = vld [vmem:[#allocation3] sm:$0xff]
      %v1892 = vld [vmem:[#allocation3 + $0x48] sm:$0xff]
      %v1893 = vld [vmem:[#allocation3 + $0x90] sm:$0xff]
      %v1894 = vld [vmem:[#allocation3 + $0xd8] sm:$0xff]
      %v1895 = vld [vmem:[#allocation3 + $0x120] sm:$0xff]
      %v1896 = vld [vmem:[#allocation3 + $0x168] sm:$0xff]
      %v1897 = vld [vmem:[#allocation3 + $0x1b0] sm:$0xff]
      %v1898 = vld [vmem:[#allocation3 + $0x1f8] sm:$0xff]
      %v1899 = vld [vmem:[#allocation3 + $0x240] sm:$0xff]
      %v1900 = vld [vmem:[#allocation3 + $0x288] sm:$0xff]
      %v1901 = vld [vmem:[#allocation3 + $0x2d0] sm:$0xff]
      %v1902 = vld [vmem:[#allocation3 + $0x318] sm:$0xff]
      %v1903 = vld [vmem:[#allocation3 + $0x360] sm:$0xff]
      %v1904 = vld [vmem:[#allocation3 + $0x3a8] sm:$0xff]
      %v1905 = vld [vmem:[#allocation3 + $0x3f0] sm:$0xff]
      %v1906 = vld [vmem:[#allocation3 + $0x438] sm:$0xff]
      %v1907 = vld [vmem:[%s1] sm:$0xf]
      %v1908 = vld [vmem:[%s1 + $0x4] sm:$0xf]
      %v1909 = vld [vmem:[%s1 + $0x8] sm:$0x1]
      %v1910 = vld [vmem:[%s2] sm:$0x1]
      %v1912 = vlaneseq
      %v1913 = vshrl.u32 %v1912, 7
      %v1914 = vsub.s32 0, %v1913
      %v1915 = vrot.slane %v1910, %v1914
      %v1920 = vunpack.c.l.b16 %v1907
      %v1921 = vunpack.c.l.b16 %v1908
      %v1922 = vunpack.c.l.b16 %v1909
      %v1923 = vpack.c.b16 %v1921, %v1920
      %v1924 = vpack.c.b16 %v1922, %v1922
      %vm1926 = vcmask 146432
      %v1928 = vsel %vm1926, %v1891, 0
      %v1931 = vsel %vm1926, %v1892, 0
      %v1934 = vsel %vm1926, %v1893, 0
      %v1937 = vsel %vm1926, %v1894, 0
      %v1940 = vsel %vm1926, %v1895, 0
      %v1943 = vsel %vm1926, %v1896, 0
      %v1946 = vsel %vm1926, %v1897, 0
      %v1949 = vsel %vm1926, %v1898, 0
      %v1952 = vsel %vm1926, %v1899, 0
      %v1955 = vsel %vm1926, %v1900, 0
      %v1958 = vsel %vm1926, %v1901, 0
      %v1961 = vsel %vm1926, %v1902, 0
      %v1964 = vsel %vm1926, %v1903, 0
      %v1967 = vsel %vm1926, %v1904, 0
      %v1970 = vsel %vm1926, %v1905, 0
      %v1973 = vsel %vm1926, %v1906, 0
      %vm1975 = vcmask 1040384
      %v1977 = vsel %vm1975, %v1924, 0
      %1979 = vmatprep.subr.bf16.mxu0 0
      %1980 = vmatpush1.bf16.msra.mxu0 %v1923
      %1981 = vmatprep.subr.bf16.mxu0 0
      %1982 = vmatpush1.bf16.msra.mxu0 %v1977
      %1983 = vmatprep.subr.bf16.mxu0 0
      %1984 = vmatpush1.bf16.msra.mxu0 0
      %1985 = vmatprep.subr.bf16.mxu0 0
      %1986 = vmatpush1.bf16.msra.mxu0 0
      %1987 = vmatprep.subr.bf16.mxu0 0
      %1988 = vmatpush1.bf16.msra.mxu0 0
      %1989 = vmatprep.subr.bf16.mxu0 0
      %1990 = vmatpush1.bf16.msra.mxu0 0
      %1991 = vmatprep.subr.bf16.mxu0 0
      %1992 = vmatpush1.bf16.msra.mxu0 0
      %1993 = vmatprep.subr.bf16.mxu0 0
      %1994 = vmatpush1.bf16.msra.mxu0 0
      %1995 = vmatprep.subr.bf16.mxu0 0
      %1996 = vmatpush1.bf16.msra.mxu0 0
      %1997 = vmatprep.subr.bf16.mxu0 0
      %1998 = vmatpush1.bf16.msra.mxu0 0
      %1999 = vmatprep.subr.bf16.mxu0 0
      %2000 = vmatpush1.bf16.msra.mxu0 0
      %2001 = vmatprep.subr.bf16.mxu0 0
      %2002 = vmatpush1.bf16.msra.mxu0 0
      %2003 = vmatprep.subr.bf16.mxu0 0
      %2004 = vmatpush1.bf16.msra.mxu0 0
      %2005 = vmatprep.subr.bf16.mxu0 0
      %2006 = vmatpush1.bf16.msra.mxu0 0
      %2007 = vmatprep.subr.bf16.mxu0 0
      %2008 = vmatpush1.bf16.msra.mxu0 0
      %2009 = vmatprep.subr.bf16.mxu0 0
      %2010 = vmatpush1.bf16.msra.mxu0 0
      %2011 = vmatprep.mubr.bf16.mxu0 0
      %2012 = vmatmul.mubr.bf16.gmra.mrb[0].mxu0 %v1928
      %v2013 = vpop.f32.mrb[0].mxu0
      %v2014 = vadd.f32 %v1915, %v2013
      %v2015 = vpop.f32.mrb[0].mxu0
      %v2016 = vpop.f32.mrb[0].mxu0
      %v2017 = vadd.f32 %v1915, %v2016
      %v2018 = vpop.f32.mrb[0].mxu0
      %2019 = vmatprep.mubr.bf16.mxu0 0
      %2020 = vmatmul.mubr.bf16.gmra.mrb[0].mxu0 %v1931
      %v2021 = vpop.f32.mrb[0].mxu0
      %v2022 = vadd.f32 %v1915, %v2021
      %v2023 = vpop.f32.mrb[0].mxu0
      %v2024 = vpop.f32.mrb[0].mxu0
      %v2025 = vadd.f32 %v1915, %v2024
      %v2026 = vpop.f32.mrb[0].mxu0
      %2027 = vmatprep.mubr.bf16.mxu0 0
      %2028 = vmatmul.mubr.bf16.gmra.mrb[0].mxu0 %v1934
      %v2029 = vpop.f32.mrb[0].mxu0
      %v2030 = vadd.f32 %v1915, %v2029
      %v2031 = vpop.f32.mrb[0].mxu0
      %v2032 = vpop.f32.mrb[0].mxu0
      %v2033 = vadd.f32 %v1915, %v2032
      %v2034 = vpop.f32.mrb[0].mxu0
      %2035 = vmatprep.mubr.bf16.mxu0 0
      %2036 = vmatmul.mubr.bf16.gmra.mrb[0].mxu0 %v1937
      %v2037 = vpop.f32.mrb[0].mxu0
      %v2038 = vadd.f32 %v1915, %v2037
      %v2039 = vpop.f32.mrb[0].mxu0
      %v2040 = vpop.f32.mrb[0].mxu0
      %v2041 = vadd.f32 %v1915, %v2040
      %v2042 = vpop.f32.mrb[0].mxu0
      %2043 = vmatprep.mubr.bf16.mxu0 0
      %2044 = vmatmul.mubr.bf16.gmra.mrb[0].mxu0 %v1940
      %v2045 = vpop.f32.mrb[0].mxu0
      %v2046 = vadd.f32 %v1915, %v2045
      %v2047 = vpop.f32.mrb[0].mxu0
      %v2048 = vpop.f32.mrb[0].mxu0
      %v2049 = vadd.f32 %v1915, %v2048
      %v2050 = vpop.f32.mrb[0].mxu0
      %2051 = vmatprep.mubr.bf16.mxu0 0
      %2052 = vmatmul.mubr.bf16.gmra.mrb[0].mxu0 %v1943
      %v2053 = vpop.f32.mrb[0].mxu0
      %v2054 = vadd.f32 %v1915, %v2053
      %v2055 = vpop.f32.mrb[0].mxu0
      %v2056 = vpop.f32.mrb[0].mxu0
      %v2057 = vadd.f32 %v1915, %v2056
      %v2058 = vpop.f32.mrb[0].mxu0
      %2059 = vmatprep.mubr.bf16.mxu0 0
      %2060 = vmatmul.mubr.bf16.gmra.mrb[0].mxu0 %v1946
      %v2061 = vpop.f32.mrb[0].mxu0
      %v2062 = vadd.f32 %v1915, %v2061
      %v2063 = vpop.f32.mrb[0].mxu0
      %v2064 = vpop.f32.mrb[0].mxu0
      %v2065 = vadd.f32 %v1915, %v2064
      %v2066 = vpop.f32.mrb[0].mxu0
      %2067 = vmatprep.mubr.bf16.mxu0 0
      %2068 = vmatmul.mubr.bf16.gmra.mrb[0].mxu0 %v1949
      %v2069 = vpop.f32.mrb[0].mxu0
      %v2070 = vadd.f32 %v1915, %v2069
      %v2071 = vpop.f32.mrb[0].mxu0
      %v2072 = vpop.f32.mrb[0].mxu0
      %v2073 = vadd.f32 %v1915, %v2072
      %v2074 = vpop.f32.mrb[0].mxu0
      %2075 = vmatprep.mubr.bf16.mxu0 0
      %2076 = vmatmul.mubr.bf16.gmra.mrb[0].mxu0 %v1952
      %v2077 = vpop.f32.mrb[0].mxu0
      %v2078 = vadd.f32 %v1915, %v2077
      %v2079 = vpop.f32.mrb[0].mxu0
      %v2080 = vpop.f32.mrb[0].mxu0
      %v2081 = vadd.f32 %v1915, %v2080
      %v2082 = vpop.f32.mrb[0].mxu0
      %2083 = vmatprep.mubr.bf16.mxu0 0
      %2084 = vmatmul.mubr.bf16.gmra.mrb[0].mxu0 %v1955
      %v2085 = vpop.f32.mrb[0].mxu0
      %v2086 = vadd.f32 %v1915, %v2085
      %v2087 = vpop.f32.mrb[0].mxu0
      %v2088 = vpop.f32.mrb[0].mxu0
      %v2089 = vadd.f32 %v1915, %v2088
      %v2090 = vpop.f32.mrb[0].mxu0
      %2091 = vmatprep.mubr.bf16.mxu0 0
      %2092 = vmatmul.mubr.bf16.gmra.mrb[0].mxu0 %v1958
      %v2093 = vpop.f32.mrb[0].mxu0
      %v2094 = vadd.f32 %v1915, %v2093
      %v2095 = vpop.f32.mrb[0].mxu0
      %v2096 = vpop.f32.mrb[0].mxu0
      %v2097 = vadd.f32 %v1915, %v2096
      %v2098 = vpop.f32.mrb[0].mxu0
      %2099 = vmatprep.mubr.bf16.mxu0 0
      %2100 = vmatmul.mubr.bf16.gmra.mrb[0].mxu0 %v1961
      %v2101 = vpop.f32.mrb[0].mxu0
      %v2102 = vadd.f32 %v1915, %v2101
      %v2103 = vpop.f32.mrb[0].mxu0
      %v2104 = vpop.f32.mrb[0].mxu0
      %v2105 = vadd.f32 %v1915, %v2104
      %v2106 = vpop.f32.mrb[0].mxu0
      %2107 = vmatprep.mubr.bf16.mxu0 0
      %2108 = vmatmul.mubr.bf16.gmra.mrb[0].mxu0 %v1964
      %v2109 = vpop.f32.mrb[0].mxu0
      %v2110 = vadd.f32 %v1915, %v2109
      %v2111 = vpop.f32.mrb[0].mxu0
      %v2112 = vpop.f32.mrb[0].mxu0
      %v2113 = vadd.f32 %v1915, %v2112
      %v2114 = vpop.f32.mrb[0].mxu0
      %2115 = vmatprep.mubr.bf16.mxu0 0
      %2116 = vmatmul.mubr.bf16.gmra.mrb[0].mxu0 %v1967
      %v2117 = vpop.f32.mrb[0].mxu0
      %v2118 = vadd.f32 %v1915, %v2117
      %v2119 = vpop.f32.mrb[0].mxu0
      %v2120 = vpop.f32.mrb[0].mxu0
      %v2121 = vadd.f32 %v1915, %v2120
      %v2122 = vpop.f32.mrb[0].mxu0
      %2123 = vmatprep.mubr.bf16.mxu0 0
      %2124 = vmatmul.mubr.bf16.gmra.mrb[0].mxu0 %v1970
      %v2125 = vpop.f32.mrb[0].mxu0
      %v2126 = vadd.f32 %v1915, %v2125
      %v2127 = vpop.f32.mrb[0].mxu0
      %v2128 = vpop.f32.mrb[0].mxu0
      %v2129 = vadd.f32 %v1915, %v2128
      %v2130 = vpop.f32.mrb[0].mxu0
      %2131 = vmatprep.mubr.bf16.mxu0 0
      %2132 = vmatmul.mubr.bf16.gmra.mrb[0].mxu0 %v1973
      %v2133 = vpop.f32.mrb[0].mxu0
      %v2134 = vadd.f32 %v1915, %v2133
      %v2135 = vpop.f32.mrb[0].mxu0
      %v2136 = vpop.f32.mrb[0].mxu0
      %v2137 = vadd.f32 %v1915, %v2136
      %v2138 = vpop.f32.mrb[0].mxu0
      %2139 = vdwg.mxu0
      %v2140 = vmax.f32 %v2014, 0.0
      %v2141 = vmax.f32 %v2017, 0.0
      %v2142 = vmax.f32 %v2022, 0.0
      %v2143 = vmax.f32 %v2025, 0.0
      %v2144 = vmax.f32 %v2030, 0.0
      %v2145 = vmax.f32 %v2033, 0.0
      %v2146 = vmax.f32 %v2038, 0.0
      %v2147 = vmax.f32 %v2041, 0.0
      %v2148 = vmax.f32 %v2046, 0.0
      %v2149 = vmax.f32 %v2049, 0.0
      %v2150 = vmax.f32 %v2054, 0.0
      %v2151 = vmax.f32 %v2057, 0.0
      %v2152 = vmax.f32 %v2062, 0.0
      %v2153 = vmax.f32 %v2065, 0.0
      %v2154 = vmax.f32 %v2070, 0.0
      %v2155 = vmax.f32 %v2073, 0.0
      %v2156 = vmax.f32 %v2078, 0.0
      %v2157 = vmax.f32 %v2081, 0.0
      %v2158 = vmax.f32 %v2086, 0.0
      %v2159 = vmax.f32 %v2089, 0.0
      %v2160 = vmax.f32 %v2094, 0.0
      %v2161 = vmax.f32 %v2097, 0.0
      %v2162 = vmax.f32 %v2102, 0.0
      %v2163 = vmax.f32 %v2105, 0.0
      %v2164 = vmax.f32 %v2110, 0.0
      %v2165 = vmax.f32 %v2113, 0.0
      %v2166 = vmax.f32 %v2118, 0.0
      %v2167 = vmax.f32 %v2121, 0.0
      %v2168 = vmax.f32 %v2126, 0.0
      %v2169 = vmax.f32 %v2129, 0.0
      %v2170 = vmax.f32 %v2134, 0.0
      %v2171 = vmax.f32 %v2137, 0.0
      %v2172 = vld [vmem:[%s3] sm:$0xff]
      %v2173 = vld [vmem:[%s3 + $0x8] sm:$0xff]
      %v2174 = vld [vmem:[%s3 + $0x10] sm:$0xff]
      %v2175 = vld [vmem:[%s3 + $0x18] sm:$0xff]
      %v2176 = vld [vmem:[%s3 + $0x20] sm:$0xff]
      %v2177 = vld [vmem:[%s3 + $0x28] sm:$0xff]
      %v2178 = vld [vmem:[%s3 + $0x30] sm:$0xff]
      %v2179 = vld [vmem:[%s3 + $0x38] sm:$0xff]
      %v2180 = vld [vmem:[%s3 + $0x40] sm:$0xff]
      %v2181 = vld [vmem:[%s3 + $0x48] sm:$0xff]
      %v2182 = vld [vmem:[%s3 + $0x50] sm:$0xff]
      %v2183 = vld [vmem:[%s3 + $0x58] sm:$0xff]
      %v2184 = vld [vmem:[%s3 + $0x60] sm:$0xff]
      %v2185 = vld [vmem:[%s3 + $0x68] sm:$0xff]
      %v2186 = vld [vmem:[%s3 + $0x70] sm:$0xff]
      %v2187 = vld [vmem:[%s3 + $0x78] sm:$0xff]
      %v2188 = vld [vmem:[%s3 + $0x80] sm:$0xff]
      %v2189 = vld [vmem:[%s3 + $0x88] sm:$0xff]
      %v2190 = vld [vmem:[%s3 + $0x90] sm:$0xff]
      %v2191 = vld [vmem:[%s3 + $0x98] sm:$0xff]
      %v2192 = vld [vmem:[%s3 + $0xa0] sm:$0xff]
      %v2193 = vld [vmem:[%s3 + $0xa8] sm:$0xff]
      %v2194 = vld [vmem:[%s3 + $0xb0] sm:$0xff]
      %v2195 = vld [vmem:[%s3 + $0xb8] sm:$0xff]
      %v2196 = vld [vmem:[%s3 + $0xc0] sm:$0xff]
      %v2197 = vld [vmem:[%s3 + $0xc8] sm:$0xff]
      %v2198 = vld [vmem:[%s3 + $0xd0] sm:$0xff]
      %v2199 = vld [vmem:[%s3 + $0xd8] sm:$0xff]
      %v2200 = vld [vmem:[%s3 + $0xe0] sm:$0xff]
      %v2201 = vld [vmem:[%s3 + $0xe8] sm:$0xff]
      %v2202 = vld [vmem:[%s3 + $0xf0] sm:$0xff]
      %v2203 = vld [vmem:[%s3 + $0xf8] sm:$0xff]
      %v2204 = vpack.c.bf16 %v2141, %v2140
      %v2205 = vpack.c.bf16 %v2143, %v2142
      %v2206 = vpack.c.bf16 %v2145, %v2144
      %v2207 = vpack.c.bf16 %v2147, %v2146
      %v2208 = vpack.c.bf16 %v2149, %v2148
      %v2209 = vpack.c.bf16 %v2151, %v2150
      %v2210 = vpack.c.bf16 %v2153, %v2152
      %v2211 = vpack.c.bf16 %v2155, %v2154
      %v2212 = vpack.c.bf16 %v2157, %v2156
      %v2213 = vpack.c.bf16 %v2159, %v2158
      %v2214 = vpack.c.bf16 %v2161, %v2160
      %v2215 = vpack.c.bf16 %v2163, %v2162
      %v2216 = vpack.c.bf16 %v2165, %v2164
      %v2217 = vpack.c.bf16 %v2167, %v2166
      %v2218 = vpack.c.bf16 %v2169, %v2168
      %v2219 = vpack.c.bf16 %v2171, %v2170
      %v2252 = vunpack.c.l.b16 %v2172
      %v2253 = vunpack.c.h.b16 %v2172
      %v2254 = vunpack.c.l.b16 %v2173
      %v2255 = vunpack.c.h.b16 %v2173
      %v2256 = vunpack.c.l.b16 %v2174
      %v2257 = vunpack.c.h.b16 %v2174
      %v2258 = vunpack.c.l.b16 %v2175
      %v2259 = vunpack.c.h.b16 %v2175
      %v2260 = vunpack.c.l.b16 %v2176
      %v2261 = vunpack.c.h.b16 %v2176
      %v2262 = vunpack.c.l.b16 %v2177
      %v2263 = vunpack.c.h.b16 %v2177
      %v2264 = vunpack.c.l.b16 %v2178
      %v2265 = vunpack.c.h.b16 %v2178
      %v2266 = vunpack.c.l.b16 %v2179
      %v2267 = vunpack.c.h.b16 %v2179
      %v2268 = vunpack.c.l.b16 %v2180
      %v2269 = vunpack.c.h.b16 %v2180
      %v2270 = vunpack.c.l.b16 %v2181
      %v2271 = vunpack.c.h.b16 %v2181
      %v2272 = vunpack.c.l.b16 %v2182
      %v2273 = vunpack.c.h.b16 %v2182
      %v2274 = vunpack.c.l.b16 %v2183
      %v2275 = vunpack.c.h.b16 %v2183
      %v2276 = vunpack.c.l.b16 %v2184
      %v2277 = vunpack.c.h.b16 %v2184
      %v2278 = vunpack.c.l.b16 %v2185
      %v2279 = vunpack.c.h.b16 %v2185
      %v2280 = vunpack.c.l.b16 %v2186
      %v2281 = vunpack.c.h.b16 %v2186
      %v2282 = vunpack.c.l.b16 %v2187
      %v2283 = vunpack.c.h.b16 %v2187
      %v2284 = vunpack.c.l.b16 %v2188
      %v2285 = vunpack.c.h.b16 %v2188
      %v2286 = vunpack.c.l.b16 %v2189
      %v2287 = vunpack.c.h.b16 %v2189
      %v2288 = vunpack.c.l.b16 %v2190
      %v2289 = vunpack.c.h.b16 %v2190
      %v2290 = vunpack.c.l.b16 %v2191
      %v2291 = vunpack.c.h.b16 %v2191
      %v2292 = vunpack.c.l.b16 %v2192
      %v2293 = vunpack.c.h.b16 %v2192
      %v2294 = vunpack.c.l.b16 %v2193
      %v2295 = vunpack.c.h.b16 %v2193
      %v2296 = vunpack.c.l.b16 %v2194
      %v2297 = vunpack.c.h.b16 %v2194
      %v2298 = vunpack.c.l.b16 %v2195
      %v2299 = vunpack.c.h.b16 %v2195
      %v2300 = vunpack.c.l.b16 %v2196
      %v2301 = vunpack.c.h.b16 %v2196
      %v2302 = vunpack.c.l.b16 %v2197
      %v2303 = vunpack.c.h.b16 %v2197
      %v2304 = vunpack.c.l.b16 %v2198
      %v2305 = vunpack.c.h.b16 %v2198
      %v2306 = vunpack.c.l.b16 %v2199
      %v2307 = vunpack.c.h.b16 %v2199
      %v2308 = vunpack.c.l.b16 %v2200
      %v2309 = vunpack.c.h.b16 %v2200
      %v2310 = vunpack.c.l.b16 %v2201
      %v2311 = vunpack.c.h.b16 %v2201
      %v2312 = vunpack.c.l.b16 %v2202
      %v2313 = vunpack.c.h.b16 %v2202
      %v2314 = vunpack.c.l.b16 %v2203
      %v2315 = vunpack.c.h.b16 %v2203
      %v2316 = vpack.c.b16 %v2254, %v2252
      %v2317 = vpack.c.b16 %v2255, %v2253
      %v2318 = vpack.c.b16 %v2258, %v2256
      %v2319 = vpack.c.b16 %v2259, %v2257
      %v2320 = vpack.c.b16 %v2262, %v2260
      %v2321 = vpack.c.b16 %v2263, %v2261
      %v2322 = vpack.c.b16 %v2266, %v2264
      %v2323 = vpack.c.b16 %v2267, %v2265
      %v2324 = vpack.c.b16 %v2270, %v2268
      %v2325 = vpack.c.b16 %v2271, %v2269
      %v2326 = vpack.c.b16 %v2274, %v2272
      %v2327 = vpack.c.b16 %v2275, %v2273
      %v2328 = vpack.c.b16 %v2278, %v2276
      %v2329 = vpack.c.b16 %v2279, %v2277
      %v2330 = vpack.c.b16 %v2282, %v2280
      %v2331 = vpack.c.b16 %v2283, %v2281
      %v2332 = vpack.c.b16 %v2286, %v2284
      %v2333 = vpack.c.b16 %v2287, %v2285
      %v2334 = vpack.c.b16 %v2290, %v2288
      %v2335 = vpack.c.b16 %v2291, %v2289
      %v2336 = vpack.c.b16 %v2294, %v2292
      %v2337 = vpack.c.b16 %v2295, %v2293
      %v2338 = vpack.c.b16 %v2298, %v2296
      %v2339 = vpack.c.b16 %v2299, %v2297
      %v2340 = vpack.c.b16 %v2302, %v2300
      %v2341 = vpack.c.b16 %v2303, %v2301
      %v2342 = vpack.c.b16 %v2306, %v2304
      %v2343 = vpack.c.b16 %v2307, %v2305
      %v2344 = vpack.c.b16 %v2310, %v2308
      %v2345 = vpack.c.b16 %v2311, %v2309
      %v2346 = vpack.c.b16 %v2314, %v2312
      %v2347 = vpack.c.b16 %v2315, %v2313
      %2380 = vmatprep.subr.bf16.mxu0 0
      %2381 = vmatpush1.bf16.msra.mxu0 %v2204
      %2382 = vmatprep.subr.bf16.mxu0 0
      %2383 = vmatpush1.bf16.msra.mxu0 %v2205
      %2384 = vmatprep.subr.bf16.mxu0 0
      %2385 = vmatpush1.bf16.msra.mxu0 %v2206
      %2386 = vmatprep.subr.bf16.mxu0 0
      %2387 = vmatpush1.bf16.msra.mxu0 %v2207
      %2388 = vmatprep.subr.bf16.mxu0 0
      %2389 = vmatpush1.bf16.msra.mxu0 %v2208
      %2390 = vmatprep.subr.bf16.mxu0 0
      %2391 = vmatpush1.bf16.msra.mxu0 %v2209
      %2392 = vmatprep.subr.bf16.mxu0 0
      %2393 = vmatpush1.bf16.msra.mxu0 %v2210
      %2394 = vmatprep.subr.bf16.mxu0 0
      %2395 = vmatpush1.bf16.msra.mxu0 %v2211
      %2396 = vmatprep.subr.bf16.mxu0 0
      %2397 = vmatpush1.bf16.msra.mxu0 %v2212
      %2398 = vmatprep.subr.bf16.mxu0 0
      %2399 = vmatpush1.bf16.msra.mxu0 %v2213
      %2400 = vmatprep.subr.bf16.mxu0 0
      %2401 = vmatpush1.bf16.msra.mxu0 %v2214
      %2402 = vmatprep.subr.bf16.mxu0 0
      %2403 = vmatpush1.bf16.msra.mxu0 %v2215
      %2404 = vmatprep.subr.bf16.mxu0 0
      %2405 = vmatpush1.bf16.msra.mxu0 %v2216
      %2406 = vmatprep.subr.bf16.mxu0 0
      %2407 = vmatpush1.bf16.msra.mxu0 %v2217
      %2408 = vmatprep.subr.bf16.mxu0 0
      %2409 = vmatpush1.bf16.msra.mxu0 %v2218
      %2410 = vmatprep.subr.bf16.mxu0 0
      %2411 = vmatpush1.bf16.msra.mxu0 %v2219
      %2412 = vmatprep.mubr.bf16.mxu0 %v2317
      %2413 = vmatmul.mubr.bf16.gmra.mrb[0].mxu0 %v2316
      %v2414 = vpop.f32.mrb[0].mxu0
      %v2415 = vadd.f32 0.0, %v2414
      %v2416 = vpop.f32.mrb[0].mxu0
      %v2417 = vpop.f32.mrb[0].mxu0
      %v2418 = vadd.f32 0.0, %v2417
      %v2419 = vpop.f32.mrb[0].mxu0
      %2420 = vmatprep.mubr.bf16.mxu0 %v2319
      %2421 = vmatmul.mubr.bf16.gmra.mrb[0].mxu0 %v2318
      %v2422 = vpop.f32.mrb[0].mxu0
      %v2423 = vadd.f32 0.0, %v2422
      %v2424 = vpop.f32.mrb[0].mxu0
      %v2425 = vpop.f32.mrb[0].mxu0
      %v2426 = vadd.f32 0.0, %v2425
      %v2427 = vpop.f32.mrb[0].mxu0
      %2428 = vmatprep.mubr.bf16.mxu0 %v2321
      %2429 = vmatmul.mubr.bf16.gmra.mrb[0].mxu0 %v2320
      %v2430 = vpop.f32.mrb[0].mxu0
      %v2431 = vadd.f32 0.0, %v2430
      %v2432 = vpop.f32.mrb[0].mxu0
      %v2433 = vpop.f32.mrb[0].mxu0
      %v2434 = vadd.f32 0.0, %v2433
      %v2435 = vpop.f32.mrb[0].mxu0
      %2436 = vmatprep.mubr.bf16.mxu0 %v2323
      %2437 = vmatmul.mubr.bf16.gmra.mrb[0].mxu0 %v2322
      %v2438 = vpop.f32.mrb[0].mxu0
      %v2439 = vadd.f32 0.0, %v2438
      %v2440 = vpop.f32.mrb[0].mxu0
      %v2441 = vpop.f32.mrb[0].mxu0
      %v2442 = vadd.f32 0.0, %v2441
      %v2443 = vpop.f32.mrb[0].mxu0
      %2444 = vmatprep.mubr.bf16.mxu0 %v2325
      %2445 = vmatmul.mubr.bf16.gmra.mrb[0].mxu0 %v2324
      %v2446 = vpop.f32.mrb[0].mxu0
      %v2447 = vadd.f32 0.0, %v2446
      %v2448 = vpop.f32.mrb[0].mxu0
      %v2449 = vpop.f32.mrb[0].mxu0
      %v2450 = vadd.f32 0.0, %v2449
      %v2451 = vpop.f32.mrb[0].mxu0
      %2452 = vmatprep.mubr.bf16.mxu0 %v2327
      %2453 = vmatmul.mubr.bf16.gmra.mrb[0].mxu0 %v2326
      %v2454 = vpop.f32.mrb[0].mxu0
      %v2455 = vadd.f32 0.0, %v2454
      %v2456 = vpop.f32.mrb[0].mxu0
      %v2457 = vpop.f32.mrb[0].mxu0
      %v2458 = vadd.f32 0.0, %v2457
      %v2459 = vpop.f32.mrb[0].mxu0
      %2460 = vmatprep.mubr.bf16.mxu0 %v2329
      %2461 = vmatmul.mubr.bf16.gmra.mrb[0].mxu0 %v2328
      %v2462 = vpop.f32.mrb[0].mxu0
      %v2463 = vadd.f32 0.0, %v2462
      %v2464 = vpop.f32.mrb[0].mxu0
      %v2465 = vpop.f32.mrb[0].mxu0
      %v2466 = vadd.f32 0.0, %v2465
      %v2467 = vpop.f32.mrb[0].mxu0
      %2468 = vmatprep.mubr.bf16.mxu0 %v2331
      %2469 = vmatmul.mubr.bf16.gmra.mrb[0].mxu0 %v2330
      %v2470 = vpop.f32.mrb[0].mxu0
      %v2471 = vadd.f32 0.0, %v2470
      %v2472 = vpop.f32.mrb[0].mxu0
      %v2473 = vpop.f32.mrb[0].mxu0
      %v2474 = vadd.f32 0.0, %v2473
      %v2475 = vpop.f32.mrb[0].mxu0
      %2476 = vmatprep.mubr.bf16.mxu0 %v2333
      %2477 = vmatmul.mubr.bf16.gmra.mrb[0].mxu0 %v2332
      %v2478 = vpop.f32.mrb[0].mxu0
      %v2479 = vadd.f32 0.0, %v2478
      %v2480 = vpop.f32.mrb[0].mxu0
      %v2481 = vpop.f32.mrb[0].mxu0
      %v2482 = vadd.f32 0.0, %v2481
      %v2483 = vpop.f32.mrb[0].mxu0
      %2484 = vmatprep.mubr.bf16.mxu0 %v2335
      %2485 = vmatmul.mubr.bf16.gmra.mrb[0].mxu0 %v2334
      %v2486 = vpop.f32.mrb[0].mxu0
      %v2487 = vadd.f32 0.0, %v2486
      %v2488 = vpop.f32.mrb[0].mxu0
      %v2489 = vpop.f32.mrb[0].mxu0
      %v2490 = vadd.f32 0.0, %v2489
      %v2491 = vpop.f32.mrb[0].mxu0
      %2492 = vmatprep.mubr.bf16.mxu0 %v2337
      %2493 = vmatmul.mubr.bf16.gmra.mrb[0].mxu0 %v2336
      %v2494 = vpop.f32.mrb[0].mxu0
      %v2495 = vadd.f32 0.0, %v2494
      %v2496 = vpop.f32.mrb[0].mxu0
      %v2497 = vpop.f32.mrb[0].mxu0
      %v2498 = vadd.f32 0.0, %v2497
      %v2499 = vpop.f32.mrb[0].mxu0
      %2500 = vmatprep.mubr.bf16.mxu0 %v2339
      %2501 = vmatmul.mubr.bf16.gmra.mrb[0].mxu0 %v2338
      %v2502 = vpop.f32.mrb[0].mxu0
      %v2503 = vadd.f32 0.0, %v2502
      %v2504 = vpop.f32.mrb[0].mxu0
      %v2505 = vpop.f32.mrb[0].mxu0
      %v2506 = vadd.f32 0.0, %v2505
      %v2507 = vpop.f32.mrb[0].mxu0
      %2508 = vmatprep.mubr.bf16.mxu0 %v2341
      %2509 = vmatmul.mubr.bf16.gmra.mrb[0].mxu0 %v2340
      %v2510 = vpop.f32.mrb[0].mxu0
      %v2511 = vadd.f32 0.0, %v2510
      %v2512 = vpop.f32.mrb[0].mxu0
      %v2513 = vpop.f32.mrb[0].mxu0
      %v2514 = vadd.f32 0.0, %v2513
      %v2515 = vpop.f32.mrb[0].mxu0
      %2516 = vmatprep.mubr.bf16.mxu0 %v2343
      %2517 = vmatmul.mubr.bf16.gmra.mrb[0].mxu0 %v2342
      %v2518 = vpop.f32.mrb[0].mxu0
      %v2519 = vadd.f32 0.0, %v2518
      %v2520 = vpop.f32.mrb[0].mxu0
      %v2521 = vpop.f32.mrb[0].mxu0
      %v2522 = vadd.f32 0.0, %v2521
      %v2523 = vpop.f32.mrb[0].mxu0
      %2524 = vmatprep.mubr.bf16.mxu0 %v2345
      %2525 = vmatmul.mubr.bf16.gmra.mrb[0].mxu0 %v2344
      %v2526 = vpop.f32.mrb[0].mxu0
      %v2527 = vadd.f32 0.0, %v2526
      %v2528 = vpop.f32.mrb[0].mxu0
      %v2529 = vpop.f32.mrb[0].mxu0
      %v2530 = vadd.f32 0.0, %v2529
      %v2531 = vpop.f32.mrb[0].mxu0
      %2532 = vmatprep.mubr.bf16.mxu0 %v2347
      %2533 = vmatmul.mubr.bf16.gmra.mrb[0].mxu0 %v2346
      %v2534 = vpop.f32.mrb[0].mxu0
      %v2535 = vadd.f32 0.0, %v2534
      %v2536 = vpop.f32.mrb[0].mxu0
      %v2537 = vpop.f32.mrb[0].mxu0
      %v2538 = vadd.f32 0.0, %v2537
      %v2539 = vpop.f32.mrb[0].mxu0
      %2540 = vdwg.mxu0
      %v2541 = vmax.f32 %v2415, %v2447
      %v2542 = vmax.f32 %v2418, %v2450
      %v2543 = vmax.f32 %v2423, %v2455
      %v2544 = vmax.f32 %v2426, %v2458
      %v2545 = vmax.f32 %v2431, %v2463
      %v2546 = vmax.f32 %v2434, %v2466
      %v2547 = vmax.f32 %v2439, %v2471
      %v2548 = vmax.f32 %v2442, %v2474
      %v2549 = vmax.f32 %v2479, %v2511
      %v2550 = vmax.f32 %v2482, %v2514
      %v2551 = vmax.f32 %v2487, %v2519
      %v2552 = vmax.f32 %v2490, %v2522
      %v2553 = vmax.f32 %v2495, %v2527
      %v2554 = vmax.f32 %v2498, %v2530
      %v2555 = vmax.f32 %v2503, %v2535
      %v2556 = vmax.f32 %v2506, %v2538
      %v2557 = vmax.f32 %v2541, %v2549
      %v2558 = vmax.f32 %v2542, %v2550
      %v2559 = vmax.f32 %v2543, %v2551
      %v2560 = vmax.f32 %v2544, %v2552
      %v2561 = vmax.f32 %v2545, %v2553
      %v2562 = vmax.f32 %v2546, %v2554
      %v2563 = vmax.f32 %v2547, %v2555
      %v2564 = vmax.f32 %v2548, %v2556
      %vm2565 = vcmask 130048
      %2566 = vst.msk [vmem:[#allocation2] sm:$0xff] %vm2565, 0.0
      %vm2567 = vcmask 123904
      %2568 = vst.msk [vmem:[#allocation2 + $0x8] sm:$0x3] %vm2567, 0.0
      %s2569 = scalar_lea.vmem [#allocation2], 216
      %2570 = vst.msk [vmem:[%s2569] sm:$0xff] %vm2565, 0.0
      %2571 = vst.msk [vmem:[%s2569 + $0x8] sm:$0x3] %vm2567, 0.0
      %vm2572 = vcmask 122880
      %2573 = vst.msk [vmem:[%s696] sm:$0x1] %vm2572, 0.0
      %2574 = vst.msk [vmem:[%s696 + $0x18] sm:$0x1] %vm2572, 0.0
      %2575 = vst.msk [vmem:[%s696 + $0x30] sm:$0x1] %vm2572, 0.0
      %2576 = vst.msk [vmem:[%s696 + $0x48] sm:$0x1] %vm2572, 0.0
      %2577 = vst.msk [vmem:[%s696 + $0x60] sm:$0x1] %vm2572, 0.0
      %2578 = vst.msk [vmem:[%s696 + $0x78] sm:$0x1] %vm2572, 0.0
      %2579 = vst.msk [vmem:[%s696 + $0x90] sm:$0x1] %vm2572, 0.0
      %2580 = vst.msk [vmem:[%s696 + $0xa8] sm:$0x1] %vm2572, 0.0
      %2581 = vst.msk [vmem:[%s696 + $0x9] sm:$0x1] %vm2572, 0.0
      %2582 = vst.msk [vmem:[%s696 + $0x21] sm:$0x1] %vm2572, 0.0
      %2583 = vst.msk [vmem:[%s696 + $0x39] sm:$0x1] %vm2572, 0.0
      %2584 = vst.msk [vmem:[%s696 + $0x51] sm:$0x1] %vm2572, 0.0
      %2585 = vst.msk [vmem:[%s696 + $0x69] sm:$0x1] %vm2572, 0.0
      %2586 = vst.msk [vmem:[%s696 + $0x81] sm:$0x1] %vm2572, 0.0
      %2587 = vst.msk [vmem:[%s696 + $0x99] sm:$0x1] %vm2572, 0.0
      %2588 = vst.msk [vmem:[%s696 + $0xb1] sm:$0x1] %vm2572, 0.0
      %2589 = vst.msk [vmem:[%s696 + $0x1] sm:$0xff] %vm2565, %v2557
      %2590 = vst.msk [vmem:[%s696 + $0x19] sm:$0xff] %vm2565, %v2558
      %2591 = vst.msk [vmem:[%s696 + $0x31] sm:$0xff] %vm2565, %v2559
      %2592 = vst.msk [vmem:[%s696 + $0x49] sm:$0xff] %vm2565, %v2560
      %2593 = vst.msk [vmem:[%s696 + $0x61] sm:$0xff] %vm2565, %v2561
      %2594 = vst.msk [vmem:[%s696 + $0x79] sm:$0xff] %vm2565, %v2562
      %2595 = vst.msk [vmem:[%s696 + $0x91] sm:$0xff] %vm2565, %v2563
      %2596 = vst.msk [vmem:[%s696 + $0xa9] sm:$0xff] %vm2565, %v2564
      %v2597 = vld [vmem:[#allocation2] sm:$0xff]
      %v2598 = vld [vmem:[#allocation2 + $0x18] sm:$0xff]
      %v2599 = vld [vmem:[#allocation2 + $0x30] sm:$0xff]
      %v2600 = vld [vmem:[#allocation2 + $0x48] sm:$0xff]
      %v2601 = vld [vmem:[#allocation2 + $0x60] sm:$0xff]
      %v2602 = vld [vmem:[#allocation2 + $0x78] sm:$0xff]
      %v2603 = vld [vmem:[#allocation2 + $0x90] sm:$0xff]
      %v2604 = vld [vmem:[#allocation2 + $0xa8] sm:$0xff]
      %v2605 = vpack.c.bf16 %v2598, %v2597
      %v2606 = vpack.c.bf16 %v2600, %v2599
      %v2607 = vpack.c.bf16 %v2602, %v2601
      %v2608 = vpack.c.bf16 %v2604, %v2603
      %2609 = vst.msk [vmem:[#allocation3] sm:$0xff] %vm2565, %v2605
      %2610 = vst.msk [vmem:[#allocation3 + $0x48] sm:$0xff] %vm2565, %v2606
      %2611 = vst.msk [vmem:[#allocation3 + $0x90] sm:$0xff] %vm2565, %v2607
      %2612 = vst.msk [vmem:[#allocation3 + $0xd8] sm:$0xff] %vm2565, %v2608
      %v2613 = vld [vmem:[#allocation2 + $0x1] sm:$0xff]
      %v2614 = vld [vmem:[#allocation2 + $0x19] sm:$0xff]
      %v2615 = vld [vmem:[#allocation2 + $0x31] sm:$0xff]
      %v2616 = vld [vmem:[#allocation2 + $0x49] sm:$0xff]
      %v2617 = vld [vmem:[#allocation2 + $0x61] sm:$0xff]
      %v2618 = vld [vmem:[#allocation2 + $0x79] sm:$0xff]
      %v2619 = vld [vmem:[#allocation2 + $0x91] sm:$0xff]
      %v2620 = vld [vmem:[#allocation2 + $0xa9] sm:$0xff]
      %v2621 = vpack.c.bf16 %v2614, %v2613
      %v2622 = vpack.c.bf16 %v2616, %v2615
      %v2623 = vpack.c.bf16 %v2618, %v2617
      %v2624 = vpack.c.bf16 %v2620, %v2619
      %2629 = vrot.lane.b32.xlu0 %v2621, 16
      %v2630 = vpop.permute.xlu0 %2629
      %2631 = vrot.lane.b32.xlu0 %v2622, 16
      %v2632 = vpop.permute.xlu0 %2631
      %2633 = vrot.lane.b32.xlu0 %v2623, 16
      %v2634 = vpop.permute.xlu0 %2633
      %2635 = vrot.lane.b32.xlu0 %v2624, 16
      %v2636 = vpop.permute.xlu0 %2635
      %vm2641 = vcmask 261248
      %2642 = vst.msk [vmem:[#allocation3] sm:$0xff] %vm2641, %v2630
      %2643 = vst.msk [vmem:[#allocation3 + $0x48] sm:$0xff] %vm2641, %v2632
      %2644 = vst.msk [vmem:[#allocation3 + $0x90] sm:$0xff] %vm2641, %v2634
      %2645 = vst.msk [vmem:[#allocation3 + $0xd8] sm:$0xff] %vm2641, %v2636
      %v2646 = vld [vmem:[#allocation2 + $0x2] sm:$0xff]
      %v2647 = vld [vmem:[#allocation2 + $0x1a] sm:$0xff]
      %v2648 = vld [vmem:[#allocation2 + $0x32] sm:$0xff]
      %v2649 = vld [vmem:[#allocation2 + $0x4a] sm:$0xff]
      %v2650 = vld [vmem:[#allocation2 + $0x62] sm:$0xff]
      %v2651 = vld [vmem:[#allocation2 + $0x7a] sm:$0xff]
      %v2652 = vld [vmem:[#allocation2 + $0x92] sm:$0xff]
      %v2653 = vld [vmem:[#allocation2 + $0xaa] sm:$0xff]
      %v2654 = vpack.c.bf16 %v2647, %v2646
      %v2655 = vpack.c.bf16 %v2649, %v2648
      %v2656 = vpack.c.bf16 %v2651, %v2650
      %v2657 = vpack.c.bf16 %v2653, %v2652
      %2662 = vrot.lane.b32.xlu0 %v2654, 32
      %v2663 = vpop.permute.xlu0 %2662
      %2664 = vrot.lane.b32.xlu0 %v2655, 32
      %v2665 = vpop.permute.xlu0 %2664
      %2666 = vrot.lane.b32.xlu0 %v2656, 32
      %v2667 = vpop.permute.xlu0 %2666
      %2668 = vrot.lane.b32.xlu0 %v2657, 32
      %v2669 = vpop.permute.xlu0 %2668
      %vm2674 = vcmask 392448
      %2675 = vst.msk [vmem:[#allocation3] sm:$0xff] %vm2674, %v2663
      %2676 = vst.msk [vmem:[#allocation3 + $0x48] sm:$0xff] %vm2674, %v2665
      %2677 = vst.msk [vmem:[#allocation3 + $0x90] sm:$0xff] %vm2674, %v2667
      %2678 = vst.msk [vmem:[#allocation3 + $0xd8] sm:$0xff] %vm2674, %v2669
      %v2679 = vld [vmem:[%s696] sm:$0xff]
      %v2680 = vld [vmem:[%s696 + $0x18] sm:$0xff]
      %v2681 = vld [vmem:[%s696 + $0x30] sm:$0xff]
      %v2682 = vld [vmem:[%s696 + $0x48] sm:$0xff]
      %v2683 = vld [vmem:[%s696 + $0x60] sm:$0xff]
      %v2684 = vld [vmem:[%s696 + $0x78] sm:$0xff]
      %v2685 = vld [vmem:[%s696 + $0x90] sm:$0xff]
      %v2686 = vld [vmem:[%s696 + $0xa8] sm:$0xff]
      %v2687 = vpack.c.bf16 %v2680, %v2679
      %v2688 = vpack.c.bf16 %v2682, %v2681
      %v2689 = vpack.c.bf16 %v2684, %v2683
      %v2690 = vpack.c.bf16 %v2686, %v2685
      %2695 = vrot.lane.b32.xlu0 %v2687, 48
      %v2696 = vpop.permute.xlu0 %2695
      %2697 = vrot.lane.b32.xlu0 %v2688, 48
      %v2698 = vpop.permute.xlu0 %2697
      %2699 = vrot.lane.b32.xlu0 %v2689, 48
      %v2700 = vpop.permute.xlu0 %2699
      %2701 = vrot.lane.b32.xlu0 %v2690, 48
      %v2702 = vpop.permute.xlu0 %2701
      %vm2707 = vcmask 523648
      %2708 = vst.msk [vmem:[#allocation3] sm:$0xff] %vm2707, %v2696
      %2709 = vst.msk [vmem:[#allocation3 + $0x48] sm:$0xff] %vm2707, %v2698
      %2710 = vst.msk [vmem:[#allocation3 + $0x90] sm:$0xff] %vm2707, %v2700
      %2711 = vst.msk [vmem:[#allocation3 + $0xd8] sm:$0xff] %vm2707, %v2702
      %v2712 = vld [vmem:[%s696 + $0x1] sm:$0xff]
      %v2713 = vld [vmem:[%s696 + $0x19] sm:$0xff]
      %v2714 = vld [vmem:[%s696 + $0x31] sm:$0xff]
      %v2715 = vld [vmem:[%s696 + $0x49] sm:$0xff]
      %v2716 = vld [vmem:[%s696 + $0x61] sm:$0xff]
      %v2717 = vld [vmem:[%s696 + $0x79] sm:$0xff]
      %v2718 = vld [vmem:[%s696 + $0x91] sm:$0xff]
      %v2719 = vld [vmem:[%s696 + $0xa9] sm:$0xff]
      %v2720 = vpack.c.bf16 %v2713, %v2712
      %v2721 = vpack.c.bf16 %v2715, %v2714
      %v2722 = vpack.c.bf16 %v2717, %v2716
      %v2723 = vpack.c.bf16 %v2719, %v2718
      %2728 = vrot.lane.b32.xlu0 %v2720, 64
      %v2729 = vpop.permute.xlu0 %2728
      %2730 = vrot.lane.b32.xlu0 %v2721, 64
      %v2731 = vpop.permute.xlu0 %2730
      %2732 = vrot.lane.b32.xlu0 %v2722, 64
      %v2733 = vpop.permute.xlu0 %2732
      %2734 = vrot.lane.b32.xlu0 %v2723, 64
      %v2735 = vpop.permute.xlu0 %2734
      %vm2740 = vcmask 654848
      %2741 = vst.msk [vmem:[#allocation3] sm:$0xff] %vm2740, %v2729
      %2742 = vst.msk [vmem:[#allocation3 + $0x48] sm:$0xff] %vm2740, %v2731
      %2743 = vst.msk [vmem:[#allocation3 + $0x90] sm:$0xff] %vm2740, %v2733
      %2744 = vst.msk [vmem:[#allocation3 + $0xd8] sm:$0xff] %vm2740, %v2735
      %v2745 = vld [vmem:[%s696 + $0x2] sm:$0xff]
      %v2746 = vld [vmem:[%s696 + $0x1a] sm:$0xff]
      %v2747 = vld [vmem:[%s696 + $0x32] sm:$0xff]
      %v2748 = vld [vmem:[%s696 + $0x4a] sm:$0xff]
      %v2749 = vld [vmem:[%s696 + $0x62] sm:$0xff]
      %v2750 = vld [vmem:[%s696 + $0x7a] sm:$0xff]
      %v2751 = vld [vmem:[%s696 + $0x92] sm:$0xff]
      %v2752 = vld [vmem:[%s696 + $0xaa] sm:$0xff]
      %v2753 = vpack.c.bf16 %v2746, %v2745
      %v2754 = vpack.c.bf16 %v2748, %v2747
      %v2755 = vpack.c.bf16 %v2750, %v2749
      %v2756 = vpack.c.bf16 %v2752, %v2751
      %2761 = vrot.lane.b32.xlu0 %v2753, 80
      %v2762 = vpop.permute.xlu0 %2761
      %2763 = vrot.lane.b32.xlu0 %v2754, 80
      %v2764 = vpop.permute.xlu0 %2763
      %2765 = vrot.lane.b32.xlu0 %v2755, 80
      %v2766 = vpop.permute.xlu0 %2765
      %2767 = vrot.lane.b32.xlu0 %v2756, 80
      %v2768 = vpop.permute.xlu0 %2767
      %vm2773 = vcmask 786048
      %2774 = vst.msk [vmem:[#allocation3] sm:$0xff] %vm2773, %v2762
      %2775 = vst.msk [vmem:[#allocation3 + $0x48] sm:$0xff] %vm2773, %v2764
      %2776 = vst.msk [vmem:[#allocation3 + $0x90] sm:$0xff] %vm2773, %v2766
      %2777 = vst.msk [vmem:[#allocation3 + $0xd8] sm:$0xff] %vm2773, %v2768
      %v2778 = vld [vmem:[%s1503] sm:$0xff]
      %v2779 = vld [vmem:[%s1503 + $0x18] sm:$0xff]
      %v2780 = vld [vmem:[%s1503 + $0x30] sm:$0xff]
      %v2781 = vld [vmem:[%s1503 + $0x48] sm:$0xff]
      %v2782 = vld [vmem:[%s1503 + $0x60] sm:$0xff]
      %v2783 = vld [vmem:[%s1503 + $0x78] sm:$0xff]
      %v2784 = vld [vmem:[%s1503 + $0x90] sm:$0xff]
      %v2785 = vld [vmem:[%s1503 + $0xa8] sm:$0xff]
      %v2786 = vpack.c.bf16 %v2779, %v2778
      %v2787 = vpack.c.bf16 %v2781, %v2780
      %v2788 = vpack.c.bf16 %v2783, %v2782
      %v2789 = vpack.c.bf16 %v2785, %v2784
      %2794 = vrot.lane.b32.xlu0 %v2786, 96
      %v2795 = vpop.permute.xlu0 %2794
      %2796 = vrot.lane.b32.xlu0 %v2787, 96
      %v2797 = vpop.permute.xlu0 %2796
      %2798 = vrot.lane.b32.xlu0 %v2788, 96
      %v2799 = vpop.permute.xlu0 %2798
      %2800 = vrot.lane.b32.xlu0 %v2789, 96
      %v2801 = vpop.permute.xlu0 %2800
      %vm2806 = vcmask 917248
      %2807 = vst.msk [vmem:[#allocation3] sm:$0xff] %vm2806, %v2795
      %2808 = vst.msk [vmem:[#allocation3 + $0x48] sm:$0xff] %vm2806, %v2797
      %2809 = vst.msk [vmem:[#allocation3 + $0x90] sm:$0xff] %vm2806, %v2799
      %2810 = vst.msk [vmem:[#allocation3 + $0xd8] sm:$0xff] %vm2806, %v2801
      %v2811 = vld [vmem:[%s1503 + $0x1] sm:$0xff]
      %v2812 = vld [vmem:[%s1503 + $0x19] sm:$0xff]
      %v2813 = vld [vmem:[%s1503 + $0x31] sm:$0xff]
      %v2814 = vld [vmem:[%s1503 + $0x49] sm:$0xff]
      %v2815 = vld [vmem:[%s1503 + $0x61] sm:$0xff]
      %v2816 = vld [vmem:[%s1503 + $0x79] sm:$0xff]
      %v2817 = vld [vmem:[%s1503 + $0x91] sm:$0xff]
      %v2818 = vld [vmem:[%s1503 + $0xa9] sm:$0xff]
      %v2819 = vpack.c.bf16 %v2812, %v2811
      %v2820 = vpack.c.bf16 %v2814, %v2813
      %v2821 = vpack.c.bf16 %v2816, %v2815
      %v2822 = vpack.c.bf16 %v2818, %v2817
      %2827 = vrot.lane.b32.xlu0 %v2819, 112
      %v2828 = vpop.permute.xlu0 %2827
      %2829 = vrot.lane.b32.xlu0 %v2820, 112
      %v2830 = vpop.permute.xlu0 %2829
      %2831 = vrot.lane.b32.xlu0 %v2821, 112
      %v2832 = vpop.permute.xlu0 %2831
      %2833 = vrot.lane.b32.xlu0 %v2822, 112
      %v2834 = vpop.permute.xlu0 %2833
      %vm2839 = vcmask 1048448
      %2840 = vst.msk [vmem:[#allocation3] sm:$0xff] %vm2839, %v2828
      %2841 = vst.msk [vmem:[#allocation3 + $0x48] sm:$0xff] %vm2839, %v2830
      %2842 = vst.msk [vmem:[#allocation3 + $0x90] sm:$0xff] %vm2839, %v2832
      %2843 = vst.msk [vmem:[#allocation3 + $0xd8] sm:$0xff] %vm2839, %v2834
      %v2844 = vld [vmem:[%s1503 + $0x2] sm:$0xff]
      %v2845 = vld [vmem:[%s1503 + $0x1a] sm:$0xff]
      %v2846 = vld [vmem:[%s1503 + $0x32] sm:$0xff]
      %v2847 = vld [vmem:[%s1503 + $0x4a] sm:$0xff]
      %v2848 = vld [vmem:[%s1503 + $0x62] sm:$0xff]
      %v2849 = vld [vmem:[%s1503 + $0x7a] sm:$0xff]
      %v2850 = vld [vmem:[%s1503 + $0x92] sm:$0xff]
      %v2851 = vld [vmem:[%s1503 + $0xaa] sm:$0xff]
      %v2852 = vpack.c.bf16 %v2845, %v2844
      %v2853 = vpack.c.bf16 %v2847, %v2846
      %v2854 = vpack.c.bf16 %v2849, %v2848
      %v2855 = vpack.c.bf16 %v2851, %v2850
      %2856 = vst.msk [vmem:[#allocation3 + $0x8] sm:$0xff] %vm2565, %v2852
      %2857 = vst.msk [vmem:[#allocation3 + $0x50] sm:$0xff] %vm2565, %v2853
      %2858 = vst.msk [vmem:[#allocation3 + $0x98] sm:$0xff] %vm2565, %v2854
      %2859 = vst.msk [vmem:[#allocation3 + $0xe0] sm:$0xff] %vm2565, %v2855
      %v2860 = vld [vmem:[#allocation3] sm:$0xff]
      %v2861 = vld [vmem:[#allocation3 + $0x8] sm:$0xff]
      %v2862 = vld [vmem:[#allocation3 + $0x48] sm:$0xff]
      %v2863 = vld [vmem:[#allocation3 + $0x50] sm:$0xff]
      %v2864 = vld [vmem:[#allocation3 + $0x90] sm:$0xff]
      %v2865 = vld [vmem:[#allocation3 + $0x98] sm:$0xff]
      %v2866 = vld [vmem:[#allocation3 + $0xd8] sm:$0xff]
      %v2867 = vld [vmem:[#allocation3 + $0xe0] sm:$0xff]
      %v2868 = vld [vmem:[%s4] sm:$0xf]
      %v2869 = vld [vmem:[%s4 + $0x4] sm:$0xf]
      %v2870 = vld [vmem:[%s4 + $0x8] sm:$0xf]
      %v2871 = vld [vmem:[%s4 + $0xc] sm:$0xf]
      %v2872 = vld [vmem:[%s4 + $0x10] sm:$0xf]
      %v2873 = vld [vmem:[%s4 + $0x14] sm:$0xf]
      %v2874 = vld [vmem:[%s4 + $0x18] sm:$0xf]
      %v2875 = vld [vmem:[%s4 + $0x1c] sm:$0xf]
      %v2876 = vld [vmem:[%s4 + $0x20] sm:$0xf]
      %v2877 = vld [vmem:[%s4 + $0x24] sm:$0xf]
      %v2878 = vld [vmem:[%s4 + $0x28] sm:$0xf]
      %v2879 = vld [vmem:[%s4 + $0x2c] sm:$0xf]
      %v2880 = vld [vmem:[%s4 + $0x30] sm:$0xf]
      %v2881 = vld [vmem:[%s4 + $0x34] sm:$0xf]
      %v2882 = vld [vmem:[%s4 + $0x38] sm:$0xf]
      %v2883 = vld [vmem:[%s4 + $0x3c] sm:$0xf]
      %v2884 = vld [vmem:[%s4 + $0x40] sm:$0xf]
      %v2885 = vld [vmem:[%s4 + $0x44] sm:$0xf]
      %v2886 = vld [vmem:[%s5] sm:$0x1]
      %v2888 = vlaneseq
      %v2889 = vshrl.u32 %v2888, 7
      %v2890 = vsub.s32 0, %v2889
      %v2891 = vrot.slane %v2886, %v2890
      %v2911 = vunpack.c.l.b16 %v2868
      %v2912 = vunpack.c.l.b16 %v2869
      %v2913 = vunpack.c.l.b16 %v2870
      %v2914 = vunpack.c.l.b16 %v2871
      %v2915 = vunpack.c.l.b16 %v2872
      %v2916 = vunpack.c.l.b16 %v2873
      %v2917 = vunpack.c.l.b16 %v2874
      %v2918 = vunpack.c.l.b16 %v2875
      %v2919 = vunpack.c.l.b16 %v2876
      %v2920 = vunpack.c.l.b16 %v2877
      %v2921 = vunpack.c.l.b16 %v2878
      %v2922 = vunpack.c.l.b16 %v2879
      %v2923 = vunpack.c.l.b16 %v2880
      %v2924 = vunpack.c.l.b16 %v2881
      %v2925 = vunpack.c.l.b16 %v2882
      %v2926 = vunpack.c.l.b16 %v2883
      %v2927 = vunpack.c.l.b16 %v2884
      %v2928 = vunpack.c.l.b16 %v2885
      %v2929 = vpack.c.b16 %v2912, %v2911
      %v2930 = vpack.c.b16 %v2914, %v2913
      %v2931 = vpack.c.b16 %v2916, %v2915
      %v2932 = vpack.c.b16 %v2918, %v2917
      %v2933 = vpack.c.b16 %v2920, %v2919
      %v2934 = vpack.c.b16 %v2922, %v2921
      %v2935 = vpack.c.b16 %v2924, %v2923
      %v2936 = vpack.c.b16 %v2926, %v2925
      %v2937 = vpack.c.b16 %v2928, %v2927
      %v2948 = vsel %vm2565, %v2861, 0
      %v2951 = vsel %vm2565, %v2863, 0
      %v2954 = vsel %vm2565, %v2865, 0
      %v2957 = vsel %vm2565, %v2867, 0
      %2959 = vmatprep.subr.bf16.mxu0 0
      %2960 = vmatpush1.bf16.msra.mxu0 %v2929
      %2961 = vmatprep.subr.bf16.mxu0 0
      %2962 = vmatpush1.bf16.msra.mxu0 %v2930
      %2963 = vmatprep.subr.bf16.mxu0 0
      %2964 = vmatpush1.bf16.msra.mxu0 %v2931
      %2965 = vmatprep.subr.bf16.mxu0 0
      %2966 = vmatpush1.bf16.msra.mxu0 %v2932
      %2967 = vmatprep.subr.bf16.mxu0 0
      %2968 = vmatpush1.bf16.msra.mxu0 %v2933
      %2969 = vmatprep.subr.bf16.mxu0 0
      %2970 = vmatpush1.bf16.msra.mxu0 %v2934
      %2971 = vmatprep.subr.bf16.mxu0 0
      %2972 = vmatpush1.bf16.msra.mxu0 %v2935
      %2973 = vmatprep.subr.bf16.mxu0 0
      %2974 = vmatpush1.bf16.msra.mxu0 %v2936
      %2975 = vmatprep.subr.bf16.mxu0 0
      %2976 = vmatpush1.bf16.msra.mxu0 %v2937
      %2977 = vmatprep.subr.bf16.mxu0 0
      %2978 = vmatpush1.bf16.msra.mxu0 0
      %2979 = vmatprep.subr.bf16.mxu0 0
      %2980 = vmatpush1.bf16.msra.mxu0 0
      %2981 = vmatprep.subr.bf16.mxu0 0
      %2982 = vmatpush1.bf16.msra.mxu0 0
      %2983 = vmatprep.subr.bf16.mxu0 0
      %2984 = vmatpush1.bf16.msra.mxu0 0
      %2985 = vmatprep.subr.bf16.mxu0 0
      %2986 = vmatpush1.bf16.msra.mxu0 0
      %2987 = vmatprep.subr.bf16.mxu0 0
      %2988 = vmatpush1.bf16.msra.mxu0 0
      %2989 = vmatprep.subr.bf16.mxu0 0
      %2990 = vmatpush1.bf16.msra.mxu0 0
      %2991 = vmatprep.mubr.bf16.mxu0 %v2948
      %2992 = vmatmul.mubr.bf16.gmra.mrb[0].mxu0 %v2860
      %v2993 = vpop.f32.mrb[0].mxu0
      %v2994 = vadd.f32 %v2891, %v2993
      %v2995 = vpop.f32.mrb[0].mxu0
      %v2996 = vpop.f32.mrb[0].mxu0
      %v2997 = vadd.f32 %v2891, %v2996
      %v2998 = vpop.f32.mrb[0].mxu0
      %2999 = vmatprep.mubr.bf16.mxu0 %v2951
      %3000 = vmatmul.mubr.bf16.gmra.mrb[0].mxu0 %v2862
      %v3001 = vpop.f32.mrb[0].mxu0
      %v3002 = vadd.f32 %v2891, %v3001
      %v3003 = vpop.f32.mrb[0].mxu0
      %v3004 = vpop.f32.mrb[0].mxu0
      %v3005 = vadd.f32 %v2891, %v3004
      %v3006 = vpop.f32.mrb[0].mxu0
      %3007 = vmatprep.mubr.bf16.mxu0 %v2954
      %3008 = vmatmul.mubr.bf16.gmra.mrb[0].mxu0 %v2864
      %v3009 = vpop.f32.mrb[0].mxu0
      %v3010 = vadd.f32 %v2891, %v3009
      %v3011 = vpop.f32.mrb[0].mxu0
      %v3012 = vpop.f32.mrb[0].mxu0
      %v3013 = vadd.f32 %v2891, %v3012
      %v3014 = vpop.f32.mrb[0].mxu0
      %3015 = vmatprep.mubr.bf16.mxu0 %v2957
      %3016 = vmatmul.mubr.bf16.gmra.mrb[0].mxu0 %v2866
      %v3017 = vpop.f32.mrb[0].mxu0
      %v3018 = vadd.f32 %v2891, %v3017
      %v3019 = vpop.f32.mrb[0].mxu0
      %v3020 = vpop.f32.mrb[0].mxu0
      %v3021 = vadd.f32 %v2891, %v3020
      %v3022 = vpop.f32.mrb[0].mxu0
      %3023 = vdwg.mxu0
      %v3024 = vmax.f32 %v2994, 0.0
      %v3025 = vmax.f32 %v2997, 0.0
      %v3026 = vmax.f32 %v3002, 0.0
      %v3027 = vmax.f32 %v3005, 0.0
      %v3028 = vmax.f32 %v3010, 0.0
      %v3029 = vmax.f32 %v3013, 0.0
      %v3030 = vmax.f32 %v3018, 0.0
      %v3031 = vmax.f32 %v3021, 0.0
      %v3032 = vld [vmem:[%s6] sm:$0xf]
      %v3033 = vld [vmem:[%s6 + $0x4] sm:$0xf]
      %v3034 = vld [vmem:[%s6 + $0x8] sm:$0xf]
      %v3035 = vld [vmem:[%s6 + $0xc] sm:$0xf]
      %v3036 = vld [vmem:[%s6 + $0x10] sm:$0xf]
      %v3037 = vld [vmem:[%s6 + $0x14] sm:$0xf]
      %v3038 = vld [vmem:[%s6 + $0x18] sm:$0xf]
      %v3039 = vld [vmem:[%s6 + $0x1c] sm:$0xf]
      %v3040 = vpack.c.bf16 %v3025, %v3024
      %v3041 = vpack.c.bf16 %v3027, %v3026
      %v3042 = vpack.c.bf16 %v3029, %v3028
      %v3043 = vpack.c.bf16 %v3031, %v3030
      %v3052 = vunpack.c.l.b16 %v3032
      %v3053 = vunpack.c.l.b16 %v3033
      %v3054 = vunpack.c.l.b16 %v3034
      %v3055 = vunpack.c.l.b16 %v3035
      %v3056 = vunpack.c.l.b16 %v3036
      %v3057 = vunpack.c.l.b16 %v3037
      %v3058 = vunpack.c.l.b16 %v3038
      %v3059 = vunpack.c.l.b16 %v3039
      %v3060 = vpack.c.b16 %v3053, %v3052
      %v3061 = vpack.c.b16 %v3055, %v3054
      %v3062 = vpack.c.b16 %v3057, %v3056
      %v3063 = vpack.c.b16 %v3059, %v3058
      %vm3064 = vcmask 523264
      %v3066 = vsel %vm3064, %v3060, 0
      %v3069 = vsel %vm3064, %v3061, 0
      %v3072 = vsel %vm3064, %v3062, 0
      %v3075 = vsel %vm3064, %v3063, 0
      %3077 = vmatprep.subr.bf16.mxu0 0
      %3078 = vmatpush1.bf16.msra.mxu0 %v3040
      %3079 = vmatprep.subr.bf16.mxu0 0
      %3080 = vmatpush1.bf16.msra.mxu0 %v3041
      %3081 = vmatprep.subr.bf16.mxu0 0
      %3082 = vmatpush1.bf16.msra.mxu0 %v3042
      %3083 = vmatprep.subr.bf16.mxu0 0
      %3084 = vmatpush1.bf16.msra.mxu0 %v3043
      %3085 = vmatprep.subr.bf16.mxu0 0
      %3086 = vmatpush1.bf16.msra.mxu0 0
      %3087 = vmatprep.subr.bf16.mxu0 0
      %3088 = vmatpush1.bf16.msra.mxu0 0
      %3089 = vmatprep.subr.bf16.mxu0 0
      %3090 = vmatpush1.bf16.msra.mxu0 0
      %3091 = vmatprep.subr.bf16.mxu0 0
      %3092 = vmatpush1.bf16.msra.mxu0 0
      %3093 = vmatprep.subr.bf16.mxu0 0
      %3094 = vmatpush1.bf16.msra.mxu0 0
      %3095 = vmatprep.subr.bf16.mxu0 0
      %3096 = vmatpush1.bf16.msra.mxu0 0
      %3097 = vmatprep.subr.bf16.mxu0 0
      %3098 = vmatpush1.bf16.msra.mxu0 0
      %3099 = vmatprep.subr.bf16.mxu0 0
      %3100 = vmatpush1.bf16.msra.mxu0 0
      %3101 = vmatprep.subr.bf16.mxu0 0
      %3102 = vmatpush1.bf16.msra.mxu0 0
      %3103 = vmatprep.subr.bf16.mxu0 0
      %3104 = vmatpush1.bf16.msra.mxu0 0
      %3105 = vmatprep.subr.bf16.mxu0 0
      %3106 = vmatpush1.bf16.msra.mxu0 0
      %3107 = vmatprep.subr.bf16.mxu0 0
      %3108 = vmatpush1.bf16.msra.mxu0 0
      %3109 = vmatprep.mubr.bf16.mxu0 0
      %3110 = vmatmul.mubr.bf16.gmra.mrb[0].mxu0 %v3066
      %v3111 = vpop.f32.mrb[0].mxu0
      %v3112 = vadd.f32 0.0, %v3111
      %v3113 = vpop.f32.mrb[0].mxu0
      %v3114 = vpop.f32.mrb[0].mxu0
      %v3115 = vadd.f32 0.0, %v3114
      %v3116 = vpop.f32.mrb[0].mxu0
      %3117 = vmatprep.mubr.bf16.mxu0 0
      %3118 = vmatmul.mubr.bf16.gmra.mrb[0].mxu0 %v3069
      %v3119 = vpop.f32.mrb[0].mxu0
      %v3120 = vadd.f32 0.0, %v3119
      %v3121 = vpop.f32.mrb[0].mxu0
      %v3122 = vpop.f32.mrb[0].mxu0
      %v3123 = vadd.f32 0.0, %v3122
      %v3124 = vpop.f32.mrb[0].mxu0
      %3125 = vmatprep.mubr.bf16.mxu0 0
      %3126 = vmatmul.mubr.bf16.gmra.mrb[0].mxu0 %v3072
      %v3127 = vpop.f32.mrb[0].mxu0
      %v3128 = vadd.f32 0.0, %v3127
      %v3129 = vpop.f32.mrb[0].mxu0
      %v3130 = vpop.f32.mrb[0].mxu0
      %v3131 = vadd.f32 0.0, %v3130
      %v3132 = vpop.f32.mrb[0].mxu0
      %3133 = vmatprep.mubr.bf16.mxu0 0
      %3134 = vmatmul.mubr.bf16.gmra.mrb[0].mxu0 %v3075
      %v3135 = vpop.f32.mrb[0].mxu0
      %v3136 = vadd.f32 0.0, %v3135
      %v3137 = vpop.f32.mrb[0].mxu0
      %v3138 = vpop.f32.mrb[0].mxu0
      %v3139 = vadd.f32 0.0, %v3138
      %v3140 = vpop.f32.mrb[0].mxu0
      %3141 = vdwg.mxu0
      %v3142 = vmax.f32 %v3112, %v3120
      %v3143 = vmax.f32 %v3115, %v3123
      %v3144 = vmax.f32 %v3128, %v3136
      %v3145 = vmax.f32 %v3131, %v3139
      %v3146 = vmax.f32 %v3142, %v3144
      %v3147 = vmax.f32 %v3143, %v3145
      %vm3148 = vcmask 259072
      %3149 = vst.msk [vmem:[#allocation2] sm:$0x3f] %vm3148, 0.0
      %s3150 = scalar_lea.vmem [#allocation2], 120
      %3151 = vst.msk [vmem:[%s3150] sm:$0x3f] %vm3148, 0.0
      %vm3152 = vcmask 253952
      %3153 = vst.msk [vmem:[%s696] sm:$0x1] %vm3152, 0.0
      %3154 = vst.msk [vmem:[%s696 + $0x18] sm:$0x1] %vm3152, 0.0
      %3155 = vst.msk [vmem:[%s696 + $0x30] sm:$0x1] %vm3152, 0.0
      %3156 = vst.msk [vmem:[%s696 + $0x48] sm:$0x1] %vm3152, 0.0
      %3157 = vst.msk [vmem:[%s696 + $0x5] sm:$0x1] %vm3152, 0.0
      %3158 = vst.msk [vmem:[%s696 + $0x1d] sm:$0x1] %vm3152, 0.0
      %3159 = vst.msk [vmem:[%s696 + $0x35] sm:$0x1] %vm3152, 0.0
      %3160 = vst.msk [vmem:[%s696 + $0x4d] sm:$0x1] %vm3152, 0.0
      %v3163 = vcombine.high %v3146, %v3146
      %v3164 = vcombine.high %v3147, %v3147
      %vm3167 = vcmask 257024
      %3168 = vst.msk [vmem:[%s696 + $0x1] sm:$0xf] %vm3167, %v3146
      %3169 = vst.msk [vmem:[%s696 + $0x19] sm:$0xf] %vm3167, %v3163
      %3170 = vst.msk [vmem:[%s696 + $0x31] sm:$0xf] %vm3167, %v3147
      %3171 = vst.msk [vmem:[%s696 + $0x49] sm:$0xf] %vm3167, %v3164
      %v3172 = vld [vmem:[#allocation2] sm:$0xf]
      %v3173 = vld [vmem:[#allocation2 + $0x18] sm:$0xf]
      %v3174 = vld [vmem:[#allocation2 + $0x30] sm:$0xf]
      %v3175 = vld [vmem:[#allocation2 + $0x48] sm:$0xf]
      %v3180 = vcombine.low %v3172, %v3173
      %v3181 = vcombine.low %v3174, %v3175
      %v3184 = vpack.c.bf16 %v3181, %v3180
      %vm3185 = vcmask 261120
      %3186 = vst.msk [vmem:[#allocation3] sm:$0xff] %vm3185, %v3184
      %v3187 = vld [vmem:[#allocation2 + $0x1] sm:$0xf]
      %v3188 = vld [vmem:[#allocation2 + $0x19] sm:$0xf]
      %v3189 = vld [vmem:[#allocation2 + $0x31] sm:$0xf]
      %v3190 = vld [vmem:[#allocation2 + $0x49] sm:$0xf]
      %v3195 = vcombine.low %v3187, %v3188
      %v3196 = vcombine.low %v3189, %v3190
      %v3199 = vpack.c.bf16 %v3196, %v3195
      %3201 = vrot.lane.b32.xlu0 %v3199, 32
      %v3202 = vpop.permute.xlu0 %3201
      %vm3204 = vcmask 523520
      %3205 = vst.msk [vmem:[#allocation3] sm:$0xff] %vm3204, %v3202
      %v3206 = vld [vmem:[#allocation2 + $0x2] sm:$0xf]
      %v3207 = vld [vmem:[#allocation2 + $0x1a] sm:$0xf]
      %v3208 = vld [vmem:[#allocation2 + $0x32] sm:$0xf]
      %v3209 = vld [vmem:[#allocation2 + $0x4a] sm:$0xf]
      %v3214 = vcombine.low %v3206, %v3207
      %v3215 = vcombine.low %v3208, %v3209
      %v3218 = vpack.c.bf16 %v3215, %v3214
      %3220 = vrot.lane.b32.xlu0 %v3218, 64
      %v3221 = vpop.permute.xlu0 %3220
      %vm3223 = vcmask 785920
      %3224 = vst.msk [vmem:[#allocation3] sm:$0xff] %vm3223, %v3221
      %v3225 = vld [vmem:[%s696] sm:$0xf]
      %v3226 = vld [vmem:[%s696 + $0x18] sm:$0xf]
      %v3227 = vld [vmem:[%s696 + $0x30] sm:$0xf]
      %v3228 = vld [vmem:[%s696 + $0x48] sm:$0xf]
      %v3233 = vcombine.low %v3225, %v3226
      %v3234 = vcombine.low %v3227, %v3228
      %v3237 = vpack.c.bf16 %v3234, %v3233
      %3239 = vrot.lane.b32.xlu0 %v3237, 96
      %v3240 = vpop.permute.xlu0 %3239
      %vm3242 = vcmask 1048320
      %3243 = vst.msk [vmem:[#allocation3] sm:$0xff] %vm3242, %v3240
      %v3244 = vld [vmem:[%s696 + $0x1] sm:$0xf]
      %v3245 = vld [vmem:[%s696 + $0x19] sm:$0xf]
      %v3246 = vld [vmem:[%s696 + $0x31] sm:$0xf]
      %v3247 = vld [vmem:[%s696 + $0x49] sm:$0xf]
      %v3252 = vcombine.low %v3244, %v3245
      %v3253 = vcombine.low %v3246, %v3247
      %v3256 = vpack.c.bf16 %v3253, %v3252
      %3257 = vst.msk [vmem:[#allocation3 + $0x8] sm:$0xff] %vm3185, %v3256
      %v3258 = vld [vmem:[%s696 + $0x2] sm:$0xf]
      %v3259 = vld [vmem:[%s696 + $0x1a] sm:$0xf]
      %v3260 = vld [vmem:[%s696 + $0x32] sm:$0xf]
      %v3261 = vld [vmem:[%s696 + $0x4a] sm:$0xf]
      %v3266 = vcombine.low %v3258, %v3259
      %v3267 = vcombine.low %v3260, %v3261
      %v3270 = vpack.c.bf16 %v3267, %v3266
      %3272 = vrot.lane.b32.xlu0 %v3270, 32
      %v3273 = vpop.permute.xlu0 %3272
      %3275 = vst.msk [vmem:[#allocation3 + $0x8] sm:$0xff] %vm3204, %v3273
      %v3276 = vld [vmem:[%s1503] sm:$0xf]
      %v3277 = vld [vmem:[%s1503 + $0x18] sm:$0xf]
      %v3278 = vld [vmem:[%s1503 + $0x30] sm:$0xf]
      %v3279 = vld [vmem:[%s1503 + $0x48] sm:$0xf]
      %v3284 = vcombine.low %v3276, %v3277
      %v3285 = vcombine.low %v3278, %v3279
      %v3288 = vpack.c.bf16 %v3285, %v3284
      %3290 = vrot.lane.b32.xlu0 %v3288, 64
      %v3291 = vpop.permute.xlu0 %3290
      %3293 = vst.msk [vmem:[#allocation3 + $0x8] sm:$0xff] %vm3223, %v3291
      %v3294 = vld [vmem:[%s1503 + $0x1] sm:$0xf]
      %v3295 = vld [vmem:[%s1503 + $0x19] sm:$0xf]
      %v3296 = vld [vmem:[%s1503 + $0x31] sm:$0xf]
      %v3297 = vld [vmem:[%s1503 + $0x49] sm:$0xf]
      %v3302 = vcombine.low %v3294, %v3295
      %v3303 = vcombine.low %v3296, %v3297
      %v3306 = vpack.c.bf16 %v3303, %v3302
      %3308 = vrot.lane.b32.xlu0 %v3306, 96
      %v3309 = vpop.permute.xlu0 %3308
      %3311 = vst.msk [vmem:[#allocation3 + $0x8] sm:$0xff] %vm3242, %v3309
      %v3312 = vld [vmem:[%s1503 + $0x2] sm:$0xf]
      %v3313 = vld [vmem:[%s1503 + $0x1a] sm:$0xf]
      %v3314 = vld [vmem:[%s1503 + $0x32] sm:$0xf]
      %v3315 = vld [vmem:[%s1503 + $0x4a] sm:$0xf]
      %v3320 = vcombine.low %v3312, %v3313
      %v3321 = vcombine.low %v3314, %v3315
      %v3324 = vpack.c.bf16 %v3321, %v3320
      %3325 = vst.msk [vmem:[#allocation3 + $0x10] sm:$0xff] %vm3185, %v3324
      %v3326 = vld [vmem:[#allocation3] sm:$0xff]
      %v3327 = vld [vmem:[#allocation3 + $0x8] sm:$0xff]
      %v3328 = vld [vmem:[#allocation3 + $0x10] sm:$0xff]
      %v3329 = vld [vmem:[%s7] sm:$0xf]
      %v3330 = vld [vmem:[%s7 + $0x4] sm:$0xf]
      %v3331 = vld [vmem:[%s7 + $0x8] sm:$0xf]
      %v3332 = vld [vmem:[%s7 + $0xc] sm:$0xf]
      %v3333 = vld [vmem:[%s7 + $0x10] sm:$0xf]
      %v3334 = vld [vmem:[%s7 + $0x14] sm:$0xf]
      %v3335 = vld [vmem:[%s7 + $0x18] sm:$0xf]
      %v3336 = vld [vmem:[%s7 + $0x1c] sm:$0xf]
      %v3337 = vld [vmem:[%s7 + $0x20] sm:$0xf]
      %v3338 = vld [vmem:[%s7 + $0x24] sm:$0xf]
      %v3339 = vld [vmem:[%s7 + $0x28] sm:$0xf]
      %v3340 = vld [vmem:[%s7 + $0x2c] sm:$0xf]
      %v3341 = vld [vmem:[%s7 + $0x30] sm:$0xf]
      %v3342 = vld [vmem:[%s7 + $0x34] sm:$0xf]
      %v3343 = vld [vmem:[%s7 + $0x38] sm:$0xf]
      %v3344 = vld [vmem:[%s7 + $0x3c] sm:$0xf]
      %v3345 = vld [vmem:[%s7 + $0x40] sm:$0xf]
      %v3346 = vld [vmem:[%s7 + $0x44] sm:$0xf]
      %v3347 = vld [vmem:[%s7 + $0x48] sm:$0xf]
      %v3348 = vld [vmem:[%s7 + $0x4c] sm:$0xf]
      %v3349 = vld [vmem:[%s7 + $0x50] sm:$0xf]
      %v3350 = vld [vmem:[%s7 + $0x54] sm:$0xf]
      %v3351 = vld [vmem:[%s7 + $0x58] sm:$0xf]
      %v3352 = vld [vmem:[%s7 + $0x5c] sm:$0xf]
      %v3353 = vld [vmem:[%s7 + $0x60] sm:$0xf]
      %v3354 = vld [vmem:[%s7 + $0x64] sm:$0xf]
      %v3355 = vld [vmem:[%s7 + $0x68] sm:$0xf]
      %v3356 = vld [vmem:[%s7 + $0x6c] sm:$0xf]
      %v3357 = vld [vmem:[%s7 + $0x70] sm:$0xf]
      %v3358 = vld [vmem:[%s7 + $0x74] sm:$0xf]
      %v3359 = vld [vmem:[%s7 + $0x78] sm:$0xf]
      %v3360 = vld [vmem:[%s7 + $0x7c] sm:$0xf]
      %v3361 = vld [vmem:[%s7 + $0x80] sm:$0xf]
      %v3362 = vld [vmem:[%s7 + $0x84] sm:$0xf]
      %v3363 = vld [vmem:[%s7 + $0x88] sm:$0xf]
      %v3364 = vld [vmem:[%s7 + $0x8c] sm:$0xf]
      %v3365 = vld [vmem:[%s8] sm:$0x1]
      %v3367 = vlaneseq
      %v3368 = vshrl.u32 %v3367, 7
      %v3369 = vsub.s32 0, %v3368
      %v3370 = vrot.slane %v3365, %v3369
      %v3408 = vunpack.c.l.b16 %v3329
      %v3409 = vunpack.c.l.b16 %v3330
      %v3410 = vunpack.c.l.b16 %v3331
      %v3411 = vunpack.c.l.b16 %v3332
      %v3412 = vunpack.c.l.b16 %v3333
      %v3413 = vunpack.c.l.b16 %v3334
      %v3414 = vunpack.c.l.b16 %v3335
      %v3415 = vunpack.c.l.b16 %v3336
      %v3416 = vunpack.c.l.b16 %v3337
      %v3417 = vunpack.c.l.b16 %v3338
      %v3418 = vunpack.c.l.b16 %v3339
      %v3419 = vunpack.c.l.b16 %v3340
      %v3420 = vunpack.c.l.b16 %v3341
      %v3421 = vunpack.c.l.b16 %v3342
      %v3422 = vunpack.c.l.b16 %v3343
      %v3423 = vunpack.c.l.b16 %v3344
      %v3424 = vunpack.c.l.b16 %v3345
      %v3425 = vunpack.c.l.b16 %v3346
      %v3426 = vunpack.c.l.b16 %v3347
      %v3427 = vunpack.c.l.b16 %v3348
      %v3428 = vunpack.c.l.b16 %v3349
      %v3429 = vunpack.c.l.b16 %v3350
      %v3430 = vunpack.c.l.b16 %v3351
      %v3431 = vunpack.c.l.b16 %v3352
      %v3432 = vunpack.c.l.b16 %v3353
      %v3433 = vunpack.c.l.b16 %v3354
      %v3434 = vunpack.c.l.b16 %v3355
      %v3435 = vunpack.c.l.b16 %v3356
      %v3436 = vunpack.c.l.b16 %v3357
      %v3437 = vunpack.c.l.b16 %v3358
      %v3438 = vunpack.c.l.b16 %v3359
      %v3439 = vunpack.c.l.b16 %v3360
      %v3440 = vunpack.c.l.b16 %v3361
      %v3441 = vunpack.c.l.b16 %v3362
      %v3442 = vunpack.c.l.b16 %v3363
      %v3443 = vunpack.c.l.b16 %v3364
      %v3444 = vpack.c.b16 %v3409, %v3408
      %v3445 = vpack.c.b16 %v3411, %v3410
      %v3446 = vpack.c.b16 %v3413, %v3412
      %v3447 = vpack.c.b16 %v3415, %v3414
      %v3448 = vpack.c.b16 %v3417, %v3416
      %v3449 = vpack.c.b16 %v3419, %v3418
      %v3450 = vpack.c.b16 %v3421, %v3420
      %v3451 = vpack.c.b16 %v3423, %v3422
      %v3452 = vpack.c.b16 %v3425, %v3424
      %v3453 = vpack.c.b16 %v3427, %v3426
      %v3454 = vpack.c.b16 %v3429, %v3428
      %v3455 = vpack.c.b16 %v3431, %v3430
      %v3456 = vpack.c.b16 %v3433, %v3432
      %v3457 = vpack.c.b16 %v3435, %v3434
      %v3458 = vpack.c.b16 %v3437, %v3436
      %v3459 = vpack.c.b16 %v3439, %v3438
      %v3460 = vpack.c.b16 %v3441, %v3440
      %v3461 = vpack.c.b16 %v3443, %v3442
      %v3481 = vsel %vm3185, %v3328, 0
      %3483 = vmatprep.subr.bf16.mxu0 0
      %3484 = vmatpush1.bf16.msra.mxu0 %v3444
      %3485 = vmatprep.subr.bf16.mxu0 0
      %3486 = vmatpush1.bf16.msra.mxu0 %v3445
      %3487 = vmatprep.subr.bf16.mxu0 0
      %3488 = vmatpush1.bf16.msra.mxu0 %v3446
      %3489 = vmatprep.subr.bf16.mxu0 0
      %3490 = vmatpush1.bf16.msra.mxu0 %v3447
      %3491 = vmatprep.subr.bf16.mxu0 0
      %3492 = vmatpush1.bf16.msra.mxu0 %v3448
      %3493 = vmatprep.subr.bf16.mxu0 0
      %3494 = vmatpush1.bf16.msra.mxu0 %v3449
      %3495 = vmatprep.subr.bf16.mxu0 0
      %3496 = vmatpush1.bf16.msra.mxu0 %v3450
      %3497 = vmatprep.subr.bf16.mxu0 0
      %3498 = vmatpush1.bf16.msra.mxu0 %v3451
      %3499 = vmatprep.subr.bf16.mxu0 0
      %3500 = vmatpush1.bf16.msra.mxu0 %v3452
      %3501 = vmatprep.subr.bf16.mxu0 0
      %3502 = vmatpush1.bf16.msra.mxu0 %v3453
      %3503 = vmatprep.subr.bf16.mxu0 0
      %3504 = vmatpush1.bf16.msra.mxu0 %v3454
      %3505 = vmatprep.subr.bf16.mxu0 0
      %3506 = vmatpush1.bf16.msra.mxu0 %v3455
      %3507 = vmatprep.subr.bf16.mxu0 0
      %3508 = vmatpush1.bf16.msra.mxu0 %v3456
      %3509 = vmatprep.subr.bf16.mxu0 0
      %3510 = vmatpush1.bf16.msra.mxu0 %v3457
      %3511 = vmatprep.subr.bf16.mxu0 0
      %3512 = vmatpush1.bf16.msra.mxu0 %v3458
      %3513 = vmatprep.subr.bf16.mxu0 0
      %3514 = vmatpush1.bf16.msra.mxu0 %v3459
      %3515 = vmatprep.mubr.bf16.mxu0 %v3327
      %3516 = vmatmul.mubr.bf16.gmra.mrb[0].mxu0 %v3326
      %v3517 = vpop.f32.mrb[0].mxu0
      %v3518 = vadd.f32 %v3370, %v3517
      %v3519 = vpop.f32.mrb[0].mxu0
      %v3520 = vpop.f32.mrb[0].mxu0
      %v3521 = vadd.f32 %v3370, %v3520
      %v3522 = vpop.f32.mrb[0].mxu0
      %3523 = vdwg.mxu0
      %3524 = vmatprep.subr.bf16.mxu0 0
      %3525 = vmatpush1.bf16.msra.mxu0 %v3460
      %3526 = vmatprep.subr.bf16.mxu0 0
      %3527 = vmatpush1.bf16.msra.mxu0 %v3461
      %3528 = vmatprep.subr.bf16.mxu0 0
      %3529 = vmatpush1.bf16.msra.mxu0 0
      %3530 = vmatprep.subr.bf16.mxu0 0
      %3531 = vmatpush1.bf16.msra.mxu0 0
      %3532 = vmatprep.subr.bf16.mxu0 0
      %3533 = vmatpush1.bf16.msra.mxu0 0
      %3534 = vmatprep.subr.bf16.mxu0 0
      %3535 = vmatpush1.bf16.msra.mxu0 0
      %3536 = vmatprep.subr.bf16.mxu0 0
      %3537 = vmatpush1.bf16.msra.mxu0 0
      %3538 = vmatprep.subr.bf16.mxu0 0
      %3539 = vmatpush1.bf16.msra.mxu0 0
      %3540 = vmatprep.subr.bf16.mxu0 0
      %3541 = vmatpush1.bf16.msra.mxu0 0
      %3542 = vmatprep.subr.bf16.mxu0 0
      %3543 = vmatpush1.bf16.msra.mxu0 0
      %3544 = vmatprep.subr.bf16.mxu0 0
      %3545 = vmatpush1.bf16.msra.mxu0 0
      %3546 = vmatprep.subr.bf16.mxu0 0
      %3547 = vmatpush1.bf16.msra.mxu0 0
      %3548 = vmatprep.subr.bf16.mxu0 0
      %3549 = vmatpush1.bf16.msra.mxu0 0
      %3550 = vmatprep.subr.bf16.mxu0 0
      %3551 = vmatpush1.bf16.msra.mxu0 0
      %3552 = vmatprep.subr.bf16.mxu0 0
      %3553 = vmatpush1.bf16.msra.mxu0 0
      %3554 = vmatprep.subr.bf16.mxu0 0
      %3555 = vmatpush1.bf16.msra.mxu0 0
      %3556 = vmatprep.mubr.bf16.mxu0 0
      %3557 = vmatmul.mubr.bf16.gmra.mrb[0].mxu0 %v3481
      %v3558 = vpop.f32.mrb[0].mxu0
      %v3559 = vadd.f32 %v3518, %v3558
      %v3560 = vpop.f32.mrb[0].mxu0
      %v3561 = vpop.f32.mrb[0].mxu0
      %v3562 = vadd.f32 %v3521, %v3561
      %v3563 = vpop.f32.mrb[0].mxu0
      %3564 = vdwg.mxu0
      %v3565 = vmax.f32 %v3559, 0.0
      %v3566 = vmax.f32 %v3562, 0.0
      %v3567 = vpack.c.bf16 %v3566, %v3565
      %v3568 = vld [vmem:[%s9] sm:$0xf]
      %v3569 = vld [vmem:[%s9 + $0x4] sm:$0xf]
      %v3570 = vld [vmem:[%s9 + $0x8] sm:$0xf]
      %v3571 = vld [vmem:[%s9 + $0xc] sm:$0xf]
      %v3572 = vld [vmem:[%s9 + $0x10] sm:$0xf]
      %v3573 = vld [vmem:[%s9 + $0x14] sm:$0xf]
      %v3574 = vld [vmem:[%s9 + $0x18] sm:$0xf]
      %v3575 = vld [vmem:[%s9 + $0x1c] sm:$0xf]
      %v3576 = vld [vmem:[%s10] sm:$0x1]
      %v3578 = vlaneseq
      %v3579 = vshrl.u32 %v3578, 7
      %v3580 = vsub.s32 0, %v3579
      %v3581 = vrot.slane %v3576, %v3580
      %v3591 = vunpack.c.l.b16 %v3568
      %v3592 = vunpack.c.l.b16 %v3569
      %v3593 = vunpack.c.l.b16 %v3570
      %v3594 = vunpack.c.l.b16 %v3571
      %v3595 = vunpack.c.l.b16 %v3572
      %v3596 = vunpack.c.l.b16 %v3573
      %v3597 = vunpack.c.l.b16 %v3574
      %v3598 = vunpack.c.l.b16 %v3575
      %v3599 = vpack.c.b16 %v3592, %v3591
      %v3600 = vpack.c.b16 %v3594, %v3593
      %v3601 = vpack.c.b16 %v3596, %v3595
      %v3602 = vpack.c.b16 %v3598, %v3597
      %v3608 = vsel %vm3064, %v3567, 0
      %3610 = vmatprep.subr.bf16.mxu0 0
      %3611 = vmatpush1.bf16.msra.mxu0 %v3599
      %3612 = vmatprep.subr.bf16.mxu0 0
      %3613 = vmatpush1.bf16.msra.mxu0 %v3600
      %3614 = vmatprep.subr.bf16.mxu0 0
      %3615 = vmatpush1.bf16.msra.mxu0 %v3601
      %3616 = vmatprep.subr.bf16.mxu0 0
      %3617 = vmatpush1.bf16.msra.mxu0 %v3602
      %3618 = vmatprep.subr.bf16.mxu0 0
      %3619 = vmatpush1.bf16.msra.mxu0 0
      %3620 = vmatprep.subr.bf16.mxu0 0
      %3621 = vmatpush1.bf16.msra.mxu0 0
      %3622 = vmatprep.subr.bf16.mxu0 0
      %3623 = vmatpush1.bf16.msra.mxu0 0
      %3624 = vmatprep.subr.bf16.mxu0 0
      %3625 = vmatpush1.bf16.msra.mxu0 0
      %3626 = vmatprep.subr.bf16.mxu0 0
      %3627 = vmatpush1.bf16.msra.mxu0 0
      %3628 = vmatprep.subr.bf16.mxu0 0
      %3629 = vmatpush1.bf16.msra.mxu0 0
      %3630 = vmatprep.subr.bf16.mxu0 0
      %3631 = vmatpush1.bf16.msra.mxu0 0
      %3632 = vmatprep.subr.bf16.mxu0 0
      %3633 = vmatpush1.bf16.msra.mxu0 0
      %3634 = vmatprep.subr.bf16.mxu0 0
      %3635 = vmatpush1.bf16.msra.mxu0 0
      %3636 = vmatprep.subr.bf16.mxu0 0
      %3637 = vmatpush1.bf16.msra.mxu0 0
      %3638 = vmatprep.subr.bf16.mxu0 0
      %3639 = vmatpush1.bf16.msra.mxu0 0
      %3640 = vmatprep.subr.bf16.mxu0 0
      %3641 = vmatpush1.bf16.msra.mxu0 0
      %3642 = vmatprep.mubr.bf16.mxu0 0
      %3643 = vmatmul.mubr.bf16.gmra.mrb[0].mxu0 %v3608
      %v3644 = vpop.f32.mrb[0].mxu0
      %v3645 = vadd.f32 %v3581, %v3644
      %v3646 = vpop.f32.mrb[0].mxu0
      %v3647 = vpop.f32.mrb[0].mxu0
      %v3648 = vadd.f32 %v3581, %v3647
      %v3649 = vpop.f32.mrb[0].mxu0
      %3650 = vdwg.mxu0
      %v3651 = vpack.c.bf16 %v3648, %v3645
      %3653 = vrot.lane.b32.xlu0 %v3651, 120
      %v3654 = vpop.permute.xlu0 %3653
      %vm3655 = vcmask 64512
      %v3657 = vsel %vm3655, %v3651, 0
      %v3660 = vsel %vm3655, %v3654, 0
      %3662 = vmatprep.subr.bf16.mxu0 0
      %3663 = vmatpush1.bf16.xpose.msra.mxu0 %v3660
      %3664 = vmatprep.subr.bf16.mxu0 0
      %3665 = vmatpush1.bf16.xpose.msra.mxu0 0
      %3666 = vmatprep.subr.bf16.mxu0 0
      %3667 = vmatpush1.bf16.xpose.msra.mxu0 0
      %3668 = vmatprep.subr.bf16.mxu0 0
      %3669 = vmatpush1.bf16.xpose.msra.mxu0 0
      %3670 = vmatprep.subr.bf16.mxu0 0
      %3671 = vmatpush1.bf16.xpose.msra.mxu0 0
      %3672 = vmatprep.subr.bf16.mxu0 0
      %3673 = vmatpush1.bf16.xpose.msra.mxu0 0
      %3674 = vmatprep.subr.bf16.mxu0 0
      %3675 = vmatpush1.bf16.xpose.msra.mxu0 0
      %3676 = vmatprep.subr.bf16.mxu0 0
      %3677 = vmatpush1.bf16.xpose.msra.mxu0 0
      %3678 = vmatprep.subr.bf16.mxu0 0
      %3679 = vmatpush1.bf16.xpose.msra.mxu0 0
      %3680 = vmatprep.subr.bf16.mxu0 0
      %3681 = vmatpush1.bf16.xpose.msra.mxu0 0
      %3682 = vmatprep.subr.bf16.mxu0 0
      %3683 = vmatpush1.bf16.xpose.msra.mxu0 0
      %3684 = vmatprep.subr.bf16.mxu0 0
      %3685 = vmatpush1.bf16.xpose.msra.mxu0 0
      %3686 = vmatprep.subr.bf16.mxu0 0
      %3687 = vmatpush1.bf16.xpose.msra.mxu0 0
      %3688 = vmatprep.subr.bf16.mxu0 0
      %3689 = vmatpush1.bf16.xpose.msra.mxu0 0
      %3690 = vmatprep.subr.bf16.mxu0 0
      %3691 = vmatpush1.bf16.xpose.msra.mxu0 0
      %3692 = vmatprep.subr.bf16.mxu0 0
      %3693 = vmatpush1.bf16.xpose.msra.mxu0 0
      %3694 = vmatprep.mubr.bf16.mxu0 0
      %3695 = vmatmul.mubr.bf16.gmra.mrb[0].mxu0 %v3657
      %v3696 = vpop.f32.mrb[0].mxu0
      %v3697 = vadd.f32 0.0, %v3696
      %v3698 = vpop.f32.mrb[0].mxu0
      %v3699 = vpop.f32.mrb[0].mxu0
      %v3700 = vadd.f32 0.0, %v3699
      %v3701 = vpop.f32.mrb[0].mxu0
      %3702 = vdwg.mxu0
      %v3703 = vsel %vm2565, %v3697, -inf
      %3704 = vmax.xlane.f32.xlu0 %v3703
      %v3705 = vpop.xlane.xlu0 %3704
      %v3706 = vsel %vm2565, %v3700, -inf
      %3707 = vmax.xlane.f32.xlu0 %v3706
      %v3708 = vpop.xlane.xlu0 %3707
      %v3709 = vsub.f32 %v3697, %v3705
      %v3710 = vsub.f32 %v3700, %v3708
      %v3711 = vmul.f32 %v3709, 1.442695
      %v3712 = vpow.pop %v3711
      %v3713 = vmul.f32 %v3710, 1.442695
      %v3714 = vpow.pop %v3713
      %v3715 = vsel %vm2565, %v3712, 0.0
      %3716 = vadd.xlane.f32.xlu0 %v3715
      %v3717 = vpop.xlane.xlu0 %3716
      %v3718 = vsel %vm2565, %v3714, 0.0
      %3719 = vadd.xlane.f32.xlu0 %v3718
      %v3720 = vpop.xlane.xlu0 %3719
      %v3721 = vrcp.pop %v3717
      %v3722 = vmul.f32 %v3712, %v3721
      %v3723 = vrcp.pop %v3720
      %v3724 = vmul.f32 %v3714, %v3723
      %v3725 = vld [vmem:[#allocation4] sm:$0x1]
      %s3726 = vtos %v3725
      %v3727 = vpack.c.bf16 %v3724, %v3722
      %3728 = vrot.lane.b32.xlu0 %v3651, 112
      %v3729 = vpop.permute.xlu0 %3728
      %v3732 = vsel %vm2565, %v3727, 0
      %3734 = vmatprep.subr.bf16.mxu0 0
      %3735 = vmatpush1.bf16.msra.mxu0 %v3729
      %3736 = vmatprep.subr.bf16.mxu0 0
      %3737 = vmatpush1.bf16.msra.mxu0 0
      %3738 = vmatprep.subr.bf16.mxu0 0
      %3739 = vmatpush1.bf16.msra.mxu0 0
      %3740 = vmatprep.subr.bf16.mxu0 0
      %3741 = vmatpush1.bf16.msra.mxu0 0
      %3742 = vmatprep.subr.bf16.mxu0 0
      %3743 = vmatpush1.bf16.msra.mxu0 0
      %3744 = vmatprep.subr.bf16.mxu0 0
      %3745 = vmatpush1.bf16.msra.mxu0 0
      %3746 = vmatprep.subr.bf16.mxu0 0
      %3747 = vmatpush1.bf16.msra.mxu0 0
      %3748 = vmatprep.subr.bf16.mxu0 0
      %3749 = vmatpush1.bf16.msra.mxu0 0
      %3750 = vmatprep.subr.bf16.mxu0 0
      %3751 = vmatpush1.bf16.msra.mxu0 0
      %3752 = vmatprep.subr.bf16.mxu0 0
      %3753 = vmatpush1.bf16.msra.mxu0 0
      %3754 = vmatprep.subr.bf16.mxu0 0
      %3755 = vmatpush1.bf16.msra.mxu0 0
      %3756 = vmatprep.subr.bf16.mxu0 0
      %3757 = vmatpush1.bf16.msra.mxu0 0
      %3758 = vmatprep.subr.bf16.mxu0 0
      %3759 = vmatpush1.bf16.msra.mxu0 0
      %3760 = vmatprep.subr.bf16.mxu0 0
      %3761 = vmatpush1.bf16.msra.mxu0 0
      %3762 = vmatprep.subr.bf16.mxu0 0
      %3763 = vmatpush1.bf16.msra.mxu0 0
      %3764 = vmatprep.subr.bf16.mxu0 0
      %3765 = vmatpush1.bf16.msra.mxu0 0
      %3766 = vmatprep.mubr.bf16.mxu0 0
      %3767 = vmatmul.mubr.bf16.gmra.mrb[0].mxu0 %v3732
      %v3768 = vpop.f32.mrb[0].mxu0
      %v3769 = vadd.f32 0.0, %v3768
      %v3770 = vpop.f32.mrb[0].mxu0
      %v3771 = vpop.f32.mrb[0].mxu0
      %v3772 = vadd.f32 0.0, %v3771
      %v3773 = vpop.f32.mrb[0].mxu0
      %3774 = vdwg.mxu0
      %v3775 = vstv %s3726
      %v3776 = vmul.f32 %v3775, %v3769
      %v3777 = vmul.f32 %v3775, %v3772
      %v3778 = vadd.f32 %v3776, %v3565
      %v3779 = vadd.f32 %v3777, %v3566
      %vm3780 = vcmask 521216
      %3781 = vst.msk [vmem:[#allocation2] sm:$0x3f] %vm3780, 0.0
      %3782 = vst.msk [vmem:[%s3150] sm:$0x3f] %vm3780, 0.0
      %vm3783 = vcmask 516096
      %3784 = vst.msk [vmem:[%s696] sm:$0x1] %vm3783, 0.0
      %3785 = vst.msk [vmem:[%s696 + $0x18] sm:$0x1] %vm3783, 0.0
      %3786 = vst.msk [vmem:[%s696 + $0x30] sm:$0x1] %vm3783, 0.0
      %3787 = vst.msk [vmem:[%s696 + $0x48] sm:$0x1] %vm3783, 0.0
      %3788 = vst.msk [vmem:[%s696 + $0x5] sm:$0x1] %vm3783, 0.0
      %3789 = vst.msk [vmem:[%s696 + $0x1d] sm:$0x1] %vm3783, 0.0
      %3790 = vst.msk [vmem:[%s696 + $0x35] sm:$0x1] %vm3783, 0.0
      %3791 = vst.msk [vmem:[%s696 + $0x4d] sm:$0x1] %vm3783, 0.0
      %v3794 = vcombine.high %v3778, %v3778
      %v3795 = vcombine.high %v3779, %v3779
      %vm3798 = vcmask 519168
      %3799 = vst.msk [vmem:[%s696 + $0x1] sm:$0xf] %vm3798, %v3778
      %3800 = vst.msk [vmem:[%s696 + $0x19] sm:$0xf] %vm3798, %v3794
      %3801 = vst.msk [vmem:[%s696 + $0x31] sm:$0xf] %vm3798, %v3779
      %3802 = vst.msk [vmem:[%s696 + $0x49] sm:$0xf] %vm3798, %v3795
      %v3803 = vld [vmem:[#allocation2] sm:$0xf]
      %v3804 = vld [vmem:[#allocation2 + $0x18] sm:$0xf]
      %v3805 = vld [vmem:[#allocation2 + $0x30] sm:$0xf]
      %v3806 = vld [vmem:[#allocation2 + $0x48] sm:$0xf]
      %v3811 = vcombine.low %v3803, %v3804
      %v3812 = vcombine.low %v3805, %v3806
      %v3815 = vpack.c.bf16 %v3812, %v3811
      %3816 = vst.msk [vmem:[#allocation3] sm:$0xff] %vm3064, %v3815
      %v3817 = vld [vmem:[#allocation2 + $0x1] sm:$0xf]
      %v3818 = vld [vmem:[#allocation2 + $0x19] sm:$0xf]
      %v3819 = vld [vmem:[#allocation2 + $0x31] sm:$0xf]
      %v3820 = vld [vmem:[#allocation2 + $0x49] sm:$0xf]
      %v3825 = vcombine.low %v3817, %v3818
      %v3826 = vcombine.low %v3819, %v3820
      %v3829 = vpack.c.bf16 %v3826, %v3825
      %3831 = vrot.lane.b32.xlu0 %v3829, 64
      %v3832 = vpop.permute.xlu0 %3831
      %vm3834 = vcmask 1048064
      %3835 = vst.msk [vmem:[#allocation3] sm:$0xff] %vm3834, %v3832
      %v3836 = vld [vmem:[#allocation2 + $0x2] sm:$0xf]
      %v3837 = vld [vmem:[#allocation2 + $0x1a] sm:$0xf]
      %v3838 = vld [vmem:[#allocation2 + $0x32] sm:$0xf]
      %v3839 = vld [vmem:[#allocation2 + $0x4a] sm:$0xf]
      %v3844 = vcombine.low %v3836, %v3837
      %v3845 = vcombine.low %v3838, %v3839
      %v3848 = vpack.c.bf16 %v3845, %v3844
      %3849 = vst.msk [vmem:[#allocation3 + $0x8] sm:$0xff] %vm3064, %v3848
      %v3850 = vld [vmem:[%s696] sm:$0xf]
      %v3851 = vld [vmem:[%s696 + $0x18] sm:$0xf]
      %v3852 = vld [vmem:[%s696 + $0x30] sm:$0xf]
      %v3853 = vld [vmem:[%s696 + $0x48] sm:$0xf]
      %v3858 = vcombine.low %v3850, %v3851
      %v3859 = vcombine.low %v3852, %v3853
      %v3862 = vpack.c.bf16 %v3859, %v3858
      %3864 = vrot.lane.b32.xlu0 %v3862, 64
      %v3865 = vpop.permute.xlu0 %3864
      %3867 = vst.msk [vmem:[#allocation3 + $0x8] sm:$0xff] %vm3834, %v3865
      %v3868 = vld [vmem:[%s696 + $0x1] sm:$0xf]
      %v3869 = vld [vmem:[%s696 + $0x19] sm:$0xf]
      %v3870 = vld [vmem:[%s696 + $0x31] sm:$0xf]
      %v3871 = vld [vmem:[%s696 + $0x49] sm:$0xf]
      %v3876 = vcombine.low %v3868, %v3869
      %v3877 = vcombine.low %v3870, %v3871
      %v3880 = vpack.c.bf16 %v3877, %v3876
      %3881 = vst.msk [vmem:[#allocation3 + $0x10] sm:$0xff] %vm3064, %v3880
      %v3882 = vld [vmem:[%s696 + $0x2] sm:$0xf]
      %v3883 = vld [vmem:[%s696 + $0x1a] sm:$0xf]
      %v3884 = vld [vmem:[%s696 + $0x32] sm:$0xf]
      %v3885 = vld [vmem:[%s696 + $0x4a] sm:$0xf]
      %v3890 = vcombine.low %v3882, %v3883
      %v3891 = vcombine.low %v3884, %v3885
      %v3894 = vpack.c.bf16 %v3891, %v3890
      %3896 = vrot.lane.b32.xlu0 %v3894, 64
      %v3897 = vpop.permute.xlu0 %3896
      %3899 = vst.msk [vmem:[#allocation3 + $0x10] sm:$0xff] %vm3834, %v3897
      %v3900 = vld [vmem:[%s1503] sm:$0xf]
      %v3901 = vld [vmem:[%s1503 + $0x18] sm:$0xf]
      %v3902 = vld [vmem:[%s1503 + $0x30] sm:$0xf]
      %v3903 = vld [vmem:[%s1503 + $0x48] sm:$0xf]
      %v3908 = vcombine.low %v3900, %v3901
      %v3909 = vcombine.low %v3902, %v3903
      %v3912 = vpack.c.bf16 %v3909, %v3908
      %3913 = vst.msk [vmem:[#allocation3 + $0x18] sm:$0xff] %vm3064, %v3912
      %v3914 = vld [vmem:[%s1503 + $0x1] sm:$0xf]
      %v3915 = vld [vmem:[%s1503 + $0x19] sm:$0xf]
      %v3916 = vld [vmem:[%s1503 + $0x31] sm:$0xf]
      %v3917 = vld [vmem:[%s1503 + $0x49] sm:$0xf]
      %v3922 = vcombine.low %v3914, %v3915
      %v3923 = vcombine.low %v3916, %v3917
      %v3926 = vpack.c.bf16 %v3923, %v3922
      %3928 = vrot.lane.b32.xlu0 %v3926, 64
      %v3929 = vpop.permute.xlu0 %3928
      %3931 = vst.msk [vmem:[#allocation3 + $0x18] sm:$0xff] %vm3834, %v3929
      %v3932 = vld [vmem:[%s1503 + $0x2] sm:$0xf]
      %v3933 = vld [vmem:[%s1503 + $0x1a] sm:$0xf]
      %v3934 = vld [vmem:[%s1503 + $0x32] sm:$0xf]
      %v3935 = vld [vmem:[%s1503 + $0x4a] sm:$0xf]
      %v3940 = vcombine.low %v3932, %v3933
      %v3941 = vcombine.low %v3934, %v3935
      %v3944 = vpack.c.bf16 %v3941, %v3940
      %3945 = vst.msk [vmem:[#allocation3 + $0x20] sm:$0xff] %vm3064, %v3944
      %v3946 = vld [vmem:[#allocation3] sm:$0xff]
      %v3947 = vld [vmem:[#allocation3 + $0x8] sm:$0xff]
      %v3948 = vld [vmem:[#allocation3 + $0x10] sm:$0xff]
      %v3949 = vld [vmem:[#allocation3 + $0x18] sm:$0xff]
      %v3950 = vld [vmem:[#allocation3 + $0x20] sm:$0xff]
      %v3951 = vld [vmem:[%s12] sm:$0xf]
      %v3952 = vld [vmem:[%s12 + $0x4] sm:$0xf]
      %v3953 = vld [vmem:[%s12 + $0x8] sm:$0xf]
      %v3954 = vld [vmem:[%s12 + $0xc] sm:$0xf]
      %v3955 = vld [vmem:[%s12 + $0x10] sm:$0xf]
      %v3956 = vld [vmem:[%s12 + $0x14] sm:$0xf]
      %v3957 = vld [vmem:[%s12 + $0x18] sm:$0xf]
      %v3958 = vld [vmem:[%s12 + $0x1c] sm:$0xf]
      %v3959 = vld [vmem:[%s12 + $0x20] sm:$0xf]
      %v3960 = vld [vmem:[%s12 + $0x24] sm:$0xf]
      %v3961 = vld [vmem:[%s12 + $0x28] sm:$0xf]
      %v3962 = vld [vmem:[%s12 + $0x2c] sm:$0xf]
      %v3963 = vld [vmem:[%s12 + $0x30] sm:$0xf]
      %v3964 = vld [vmem:[%s12 + $0x34] sm:$0xf]
      %v3965 = vld [vmem:[%s12 + $0x38] sm:$0xf]
      %v3966 = vld [vmem:[%s12 + $0x3c] sm:$0xf]
      %v3967 = vld [vmem:[%s12 + $0x40] sm:$0xf]
      %v3968 = vld [vmem:[%s12 + $0x44] sm:$0xf]
      %v3969 = vld [vmem:[%s12 + $0x48] sm:$0xf]
      %v3970 = vld [vmem:[%s12 + $0x4c] sm:$0xf]
      %v3971 = vld [vmem:[%s12 + $0x50] sm:$0xf]
      %v3972 = vld [vmem:[%s12 + $0x54] sm:$0xf]
      %v3973 = vld [vmem:[%s12 + $0x58] sm:$0xf]
      %v3974 = vld [vmem:[%s12 + $0x5c] sm:$0xf]
      %v3975 = vld [vmem:[%s12 + $0x60] sm:$0xf]
      %v3976 = vld [vmem:[%s12 + $0x64] sm:$0xf]
      %v3977 = vld [vmem:[%s12 + $0x68] sm:$0xf]
      %v3978 = vld [vmem:[%s12 + $0x6c] sm:$0xf]
      %v3979 = vld [vmem:[%s12 + $0x70] sm:$0xf]
      %v3980 = vld [vmem:[%s12 + $0x74] sm:$0xf]
      %v3981 = vld [vmem:[%s12 + $0x78] sm:$0xf]
      %v3982 = vld [vmem:[%s12 + $0x7c] sm:$0xf]
      %v3983 = vld [vmem:[%s12 + $0x80] sm:$0xf]
      %v3984 = vld [vmem:[%s12 + $0x84] sm:$0xf]
      %v3985 = vld [vmem:[%s12 + $0x88] sm:$0xf]
      %v3986 = vld [vmem:[%s12 + $0x8c] sm:$0xf]
      %v3987 = vld [vmem:[%s12 + $0x90] sm:$0xf]
      %v3988 = vld [vmem:[%s12 + $0x94] sm:$0xf]
      %v3989 = vld [vmem:[%s12 + $0x98] sm:$0xf]
      %v3990 = vld [vmem:[%s12 + $0x9c] sm:$0xf]
      %v3991 = vld [vmem:[%s12 + $0xa0] sm:$0xf]
      %v3992 = vld [vmem:[%s12 + $0xa4] sm:$0xf]
      %v3993 = vld [vmem:[%s12 + $0xa8] sm:$0xf]
      %v3994 = vld [vmem:[%s12 + $0xac] sm:$0xf]
      %v3995 = vld [vmem:[%s12 + $0xb0] sm:$0xf]
      %v3996 = vld [vmem:[%s12 + $0xb4] sm:$0xf]
      %v3997 = vld [vmem:[%s12 + $0xb8] sm:$0xf]
      %v3998 = vld [vmem:[%s12 + $0xbc] sm:$0xf]
      %v3999 = vld [vmem:[%s12 + $0xc0] sm:$0xf]
      %v4000 = vld [vmem:[%s12 + $0xc4] sm:$0xf]
      %v4001 = vld [vmem:[%s12 + $0xc8] sm:$0xf]
      %v4002 = vld [vmem:[%s12 + $0xcc] sm:$0xf]
      %v4003 = vld [vmem:[%s12 + $0xd0] sm:$0xf]
      %v4004 = vld [vmem:[%s12 + $0xd4] sm:$0xf]
      %v4005 = vld [vmem:[%s12 + $0xd8] sm:$0xf]
      %v4006 = vld [vmem:[%s12 + $0xdc] sm:$0xf]
      %v4007 = vld [vmem:[%s12 + $0xe0] sm:$0xf]
      %v4008 = vld [vmem:[%s12 + $0xe4] sm:$0xf]
      %v4009 = vld [vmem:[%s12 + $0xe8] sm:$0xf]
      %v4010 = vld [vmem:[%s12 + $0xec] sm:$0xf]
      %v4011 = vld [vmem:[%s12 + $0xf0] sm:$0xf]
      %v4012 = vld [vmem:[%s12 + $0xf4] sm:$0xf]
      %v4013 = vld [vmem:[%s12 + $0xf8] sm:$0xf]
      %v4014 = vld [vmem:[%s12 + $0xfc] sm:$0xf]
      %v4015 = vld [vmem:[%s12 + $0x100] sm:$0xf]
      %v4016 = vld [vmem:[%s12 + $0x104] sm:$0xf]
      %v4017 = vld [vmem:[%s12 + $0x108] sm:$0xf]
      %v4018 = vld [vmem:[%s12 + $0x10c] sm:$0xf]
      %v4019 = vld [vmem:[%s12 + $0x110] sm:$0xf]
      %v4020 = vld [vmem:[%s12 + $0x114] sm:$0xf]
      %v4021 = vld [vmem:[%s12 + $0x118] sm:$0xf]
      %v4022 = vld [vmem:[%s12 + $0x11c] sm:$0xf]
      %v4023 = vld [vmem:[%s13] sm:$0x1]
      %v4025 = vlaneseq
      %v4026 = vshrl.u32 %v4025, 7
      %v4027 = vsub.s32 0, %v4026
      %v4028 = vrot.slane %v4023, %v4027
      %v4102 = vunpack.c.l.b16 %v3951
      %v4103 = vunpack.c.l.b16 %v3952
      %v4104 = vunpack.c.l.b16 %v3953
      %v4105 = vunpack.c.l.b16 %v3954
      %v4106 = vunpack.c.l.b16 %v3955
      %v4107 = vunpack.c.l.b16 %v3956
      %v4108 = vunpack.c.l.b16 %v3957
      %v4109 = vunpack.c.l.b16 %v3958
      %v4110 = vunpack.c.l.b16 %v3959
      %v4111 = vunpack.c.l.b16 %v3960
      %v4112 = vunpack.c.l.b16 %v3961
      %v4113 = vunpack.c.l.b16 %v3962
      %v4114 = vunpack.c.l.b16 %v3963
      %v4115 = vunpack.c.l.b16 %v3964
      %v4116 = vunpack.c.l.b16 %v3965
      %v4117 = vunpack.c.l.b16 %v3966
      %v4118 = vunpack.c.l.b16 %v3967
      %v4119 = vunpack.c.l.b16 %v3968
      %v4120 = vunpack.c.l.b16 %v3969
      %v4121 = vunpack.c.l.b16 %v3970
      %v4122 = vunpack.c.l.b16 %v3971
      %v4123 = vunpack.c.l.b16 %v3972
      %v4124 = vunpack.c.l.b16 %v3973
      %v4125 = vunpack.c.l.b16 %v3974
      %v4126 = vunpack.c.l.b16 %v3975
      %v4127 = vunpack.c.l.b16 %v3976
      %v4128 = vunpack.c.l.b16 %v3977
      %v4129 = vunpack.c.l.b16 %v3978
      %v4130 = vunpack.c.l.b16 %v3979
      %v4131 = vunpack.c.l.b16 %v3980
      %v4132 = vunpack.c.l.b16 %v3981
      %v4133 = vunpack.c.l.b16 %v3982
      %v4134 = vunpack.c.l.b16 %v3983
      %v4135 = vunpack.c.l.b16 %v3984
      %v4136 = vunpack.c.l.b16 %v3985
      %v4137 = vunpack.c.l.b16 %v3986
      %v4138 = vunpack.c.l.b16 %v3987
      %v4139 = vunpack.c.l.b16 %v3988
      %v4140 = vunpack.c.l.b16 %v3989
      %v4141 = vunpack.c.l.b16 %v3990
      %v4142 = vunpack.c.l.b16 %v3991
      %v4143 = vunpack.c.l.b16 %v3992
      %v4144 = vunpack.c.l.b16 %v3993
      %v4145 = vunpack.c.l.b16 %v3994
      %v4146 = vunpack.c.l.b16 %v3995
      %v4147 = vunpack.c.l.b16 %v3996
      %v4148 = vunpack.c.l.b16 %v3997
      %v4149 = vunpack.c.l.b16 %v3998
      %v4150 = vunpack.c.l.b16 %v3999
      %v4151 = vunpack.c.l.b16 %v4000
      %v4152 = vunpack.c.l.b16 %v4001
      %v4153 = vunpack.c.l.b16 %v4002
      %v4154 = vunpack.c.l.b16 %v4003
      %v4155 = vunpack.c.l.b16 %v4004
      %v4156 = vunpack.c.l.b16 %v4005
      %v4157 = vunpack.c.l.b16 %v4006
      %v4158 = vunpack.c.l.b16 %v4007
      %v4159 = vunpack.c.l.b16 %v4008
      %v4160 = vunpack.c.l.b16 %v4009
      %v4161 = vunpack.c.l.b16 %v4010
      %v4162 = vunpack.c.l.b16 %v4011
      %v4163 = vunpack.c.l.b16 %v4012
      %v4164 = vunpack.c.l.b16 %v4013
      %v4165 = vunpack.c.l.b16 %v4014
      %v4166 = vunpack.c.l.b16 %v4015
      %v4167 = vunpack.c.l.b16 %v4016
      %v4168 = vunpack.c.l.b16 %v4017
      %v4169 = vunpack.c.l.b16 %v4018
      %v4170 = vunpack.c.l.b16 %v4019
      %v4171 = vunpack.c.l.b16 %v4020
      %v4172 = vunpack.c.l.b16 %v4021
      %v4173 = vunpack.c.l.b16 %v4022
      %v4174 = vpack.c.b16 %v4103, %v4102
      %v4175 = vpack.c.b16 %v4105, %v4104
      %v4176 = vpack.c.b16 %v4107, %v4106
      %v4177 = vpack.c.b16 %v4109, %v4108
      %v4178 = vpack.c.b16 %v4111, %v4110
      %v4179 = vpack.c.b16 %v4113, %v4112
      %v4180 = vpack.c.b16 %v4115, %v4114
      %v4181 = vpack.c.b16 %v4117, %v4116
      %v4182 = vpack.c.b16 %v4119, %v4118
      %v4183 = vpack.c.b16 %v4121, %v4120
      %v4184 = vpack.c.b16 %v4123, %v4122
      %v4185 = vpack.c.b16 %v4125, %v4124
      %v4186 = vpack.c.b16 %v4127, %v4126
      %v4187 = vpack.c.b16 %v4129, %v4128
      %v4188 = vpack.c.b16 %v4131, %v4130
      %v4189 = vpack.c.b16 %v4133, %v4132
      %v4190 = vpack.c.b16 %v4135, %v4134
      %v4191 = vpack.c.b16 %v4137, %v4136
      %v4192 = vpack.c.b16 %v4139, %v4138
      %v4193 = vpack.c.b16 %v4141, %v4140
      %v4194 = vpack.c.b16 %v4143, %v4142
      %v4195 = vpack.c.b16 %v4145, %v4144
      %v4196 = vpack.c.b16 %v4147, %v4146
      %v4197 = vpack.c.b16 %v4149, %v4148
      %v4198 = vpack.c.b16 %v4151, %v4150
      %v4199 = vpack.c.b16 %v4153, %v4152
      %v4200 = vpack.c.b16 %v4155, %v4154
      %v4201 = vpack.c.b16 %v4157, %v4156
      %v4202 = vpack.c.b16 %v4159, %v4158
      %v4203 = vpack.c.b16 %v4161, %v4160
      %v4204 = vpack.c.b16 %v4163, %v4162
      %v4205 = vpack.c.b16 %v4165, %v4164
      %v4206 = vpack.c.b16 %v4167, %v4166
      %v4207 = vpack.c.b16 %v4169, %v4168
      %v4208 = vpack.c.b16 %v4171, %v4170
      %v4209 = vpack.c.b16 %v4173, %v4172
      %v4247 = vsel %vm3064, %v3950, 0
      %4249 = vmatprep.subr.bf16.mxu0 0
      %4250 = vmatpush1.bf16.msra.mxu0 %v4174
      %4251 = vmatprep.subr.bf16.mxu0 0
      %4252 = vmatpush1.bf16.msra.mxu0 %v4175
      %4253 = vmatprep.subr.bf16.mxu0 0
      %4254 = vmatpush1.bf16.msra.mxu0 %v4176
      %4255 = vmatprep.subr.bf16.mxu0 0
      %4256 = vmatpush1.bf16.msra.mxu0 %v4177
      %4257 = vmatprep.subr.bf16.mxu0 0
      %4258 = vmatpush1.bf16.msra.mxu0 %v4178
      %4259 = vmatprep.subr.bf16.mxu0 0
      %4260 = vmatpush1.bf16.msra.mxu0 %v4179
      %4261 = vmatprep.subr.bf16.mxu0 0
      %4262 = vmatpush1.bf16.msra.mxu0 %v4180
      %4263 = vmatprep.subr.bf16.mxu0 0
      %4264 = vmatpush1.bf16.msra.mxu0 %v4181
      %4265 = vmatprep.subr.bf16.mxu0 0
      %4266 = vmatpush1.bf16.msra.mxu0 %v4182
      %4267 = vmatprep.subr.bf16.mxu0 0
      %4268 = vmatpush1.bf16.msra.mxu0 %v4183
      %4269 = vmatprep.subr.bf16.mxu0 0
      %4270 = vmatpush1.bf16.msra.mxu0 %v4184
      %4271 = vmatprep.subr.bf16.mxu0 0
      %4272 = vmatpush1.bf16.msra.mxu0 %v4185
      %4273 = vmatprep.subr.bf16.mxu0 0
      %4274 = vmatpush1.bf16.msra.mxu0 %v4186
      %4275 = vmatprep.subr.bf16.mxu0 0
      %4276 = vmatpush1.bf16.msra.mxu0 %v4187
      %4277 = vmatprep.subr.bf16.mxu0 0
      %4278 = vmatpush1.bf16.msra.mxu0 %v4188
      %4279 = vmatprep.subr.bf16.mxu0 0
      %4280 = vmatpush1.bf16.msra.mxu0 %v4189
      %4281 = vmatprep.mubr.bf16.mxu0 %v3947
      %4282 = vmatmul.mubr.bf16.gmra.mrb[0].mxu0 %v3946
      %v4283 = vpop.f32.mrb[0].mxu0
      %v4284 = vadd.f32 %v4028, %v4283
      %v4285 = vpop.f32.mrb[0].mxu0
      %v4286 = vpop.f32.mrb[0].mxu0
      %v4287 = vadd.f32 %v4028, %v4286
      %v4288 = vpop.f32.mrb[0].mxu0
      %4289 = vdwg.mxu0
      %4290 = vmatprep.subr.bf16.mxu0 0
      %4291 = vmatpush1.bf16.msra.mxu0 %v4190
      %4292 = vmatprep.subr.bf16.mxu0 0
      %4293 = vmatpush1.bf16.msra.mxu0 %v4191
      %4294 = vmatprep.subr.bf16.mxu0 0
      %4295 = vmatpush1.bf16.msra.mxu0 %v4192
      %4296 = vmatprep.subr.bf16.mxu0 0
      %4297 = vmatpush1.bf16.msra.mxu0 %v4193
      %4298 = vmatprep.subr.bf16.mxu0 0
      %4299 = vmatpush1.bf16.msra.mxu0 %v4194
      %4300 = vmatprep.subr.bf16.mxu0 0
      %4301 = vmatpush1.bf16.msra.mxu0 %v4195
      %4302 = vmatprep.subr.bf16.mxu0 0
      %4303 = vmatpush1.bf16.msra.mxu0 %v4196
      %4304 = vmatprep.subr.bf16.mxu0 0
      %4305 = vmatpush1.bf16.msra.mxu0 %v4197
      %4306 = vmatprep.subr.bf16.mxu0 0
      %4307 = vmatpush1.bf16.msra.mxu0 %v4198
      %4308 = vmatprep.subr.bf16.mxu0 0
      %4309 = vmatpush1.bf16.msra.mxu0 %v4199
      %4310 = vmatprep.subr.bf16.mxu0 0
      %4311 = vmatpush1.bf16.msra.mxu0 %v4200
      %4312 = vmatprep.subr.bf16.mxu0 0
      %4313 = vmatpush1.bf16.msra.mxu0 %v4201
      %4314 = vmatprep.subr.bf16.mxu0 0
      %4315 = vmatpush1.bf16.msra.mxu0 %v4202
      %4316 = vmatprep.subr.bf16.mxu0 0
      %4317 = vmatpush1.bf16.msra.mxu0 %v4203
      %4318 = vmatprep.subr.bf16.mxu0 0
      %4319 = vmatpush1.bf16.msra.mxu0 %v4204
      %4320 = vmatprep.subr.bf16.mxu0 0
      %4321 = vmatpush1.bf16.msra.mxu0 %v4205
      %4322 = vmatprep.mubr.bf16.mxu0 %v3949
      %4323 = vmatmul.mubr.bf16.gmra.mrb[0].mxu0 %v3948
      %v4324 = vpop.f32.mrb[0].mxu0
      %v4325 = vadd.f32 %v4284, %v4324
      %v4326 = vpop.f32.mrb[0].mxu0
      %v4327 = vpop.f32.mrb[0].mxu0
      %v4328 = vadd.f32 %v4287, %v4327
      %v4329 = vpop.f32.mrb[0].mxu0
      %4330 = vdwg.mxu0
      %4331 = vmatprep.subr.bf16.mxu0 0
      %4332 = vmatpush1.bf16.msra.mxu0 %v4206
      %4333 = vmatprep.subr.bf16.mxu0 0
      %4334 = vmatpush1.bf16.msra.mxu0 %v4207
      %4335 = vmatprep.subr.bf16.mxu0 0
      %4336 = vmatpush1.bf16.msra.mxu0 %v4208
      %4337 = vmatprep.subr.bf16.mxu0 0
      %4338 = vmatpush1.bf16.msra.mxu0 %v4209
      %4339 = vmatprep.subr.bf16.mxu0 0
      %4340 = vmatpush1.bf16.msra.mxu0 0
      %4341 = vmatprep.subr.bf16.mxu0 0
      %4342 = vmatpush1.bf16.msra.mxu0 0
      %4343 = vmatprep.subr.bf16.mxu0 0
      %4344 = vmatpush1.bf16.msra.mxu0 0
      %4345 = vmatprep.subr.bf16.mxu0 0
      %4346 = vmatpush1.bf16.msra.mxu0 0
      %4347 = vmatprep.subr.bf16.mxu0 0
      %4348 = vmatpush1.bf16.msra.mxu0 0
      %4349 = vmatprep.subr.bf16.mxu0 0
      %4350 = vmatpush1.bf16.msra.mxu0 0
      %4351 = vmatprep.subr.bf16.mxu0 0
      %4352 = vmatpush1.bf16.msra.mxu0 0
      %4353 = vmatprep.subr.bf16.mxu0 0
      %4354 = vmatpush1.bf16.msra.mxu0 0
      %4355 = vmatprep.subr.bf16.mxu0 0
      %4356 = vmatpush1.bf16.msra.mxu0 0
      %4357 = vmatprep.subr.bf16.mxu0 0
      %4358 = vmatpush1.bf16.msra.mxu0 0
      %4359 = vmatprep.subr.bf16.mxu0 0
      %4360 = vmatpush1.bf16.msra.mxu0 0
      %4361 = vmatprep.subr.bf16.mxu0 0
      %4362 = vmatpush1.bf16.msra.mxu0 0
      %4363 = vmatprep.mubr.bf16.mxu0 0
      %4364 = vmatmul.mubr.bf16.gmra.mrb[0].mxu0 %v4247
      %v4365 = vpop.f32.mrb[0].mxu0
      %v4366 = vadd.f32 %v4325, %v4365
      %v4367 = vpop.f32.mrb[0].mxu0
      %v4368 = vpop.f32.mrb[0].mxu0
      %v4369 = vadd.f32 %v4328, %v4368
      %v4370 = vpop.f32.mrb[0].mxu0
      %4371 = vdwg.mxu0
      %v4372 = vmax.f32 %v4366, 0.0
      %v4373 = vmax.f32 %v4369, 0.0
      %v4374 = vld [vmem:[%s14] sm:$0xf]
      %v4375 = vld [vmem:[%s14 + $0x4] sm:$0xf]
      %v4376 = vld [vmem:[%s14 + $0x8] sm:$0xf]
      %v4377 = vld [vmem:[%s14 + $0xc] sm:$0xf]
      %v4378 = vld [vmem:[%s14 + $0x10] sm:$0xf]
      %v4379 = vld [vmem:[%s14 + $0x14] sm:$0xf]
      %v4380 = vld [vmem:[%s14 + $0x18] sm:$0xf]
      %v4381 = vld [vmem:[%s14 + $0x1c] sm:$0xf]
      %v4382 = vpack.c.bf16 %v4373, %v4372
      %v4391 = vunpack.c.l.b16 %v4374
      %v4392 = vunpack.c.l.b16 %v4375
      %v4393 = vunpack.c.l.b16 %v4376
      %v4394 = vunpack.c.l.b16 %v4377
      %v4395 = vunpack.c.l.b16 %v4378
      %v4396 = vunpack.c.l.b16 %v4379
      %v4397 = vunpack.c.l.b16 %v4380
      %v4398 = vunpack.c.l.b16 %v4381
      %v4399 = vpack.c.b16 %v4392, %v4391
      %v4400 = vpack.c.b16 %v4394, %v4393
      %v4401 = vpack.c.b16 %v4396, %v4395
      %v4402 = vpack.c.b16 %v4398, %v4397
      %v4404 = vsel %vm2565, %v4399, 0
      %v4407 = vsel %vm2565, %v4400, 0
      %v4410 = vsel %vm2565, %v4401, 0
      %v4413 = vsel %vm2565, %v4402, 0
      %4415 = vmatprep.subr.bf16.mxu0 0
      %4416 = vmatpush1.bf16.msra.mxu0 %v4382
      %4417 = vmatprep.subr.bf16.mxu0 0
      %4418 = vmatpush1.bf16.msra.mxu0 0
      %4419 = vmatprep.subr.bf16.mxu0 0
      %4420 = vmatpush1.bf16.msra.mxu0 0
      %4421 = vmatprep.subr.bf16.mxu0 0
      %4422 = vmatpush1.bf16.msra.mxu0 0
      %4423 = vmatprep.subr.bf16.mxu0 0
      %4424 = vmatpush1.bf16.msra.mxu0 0
      %4425 = vmatprep.subr.bf16.mxu0 0
      %4426 = vmatpush1.bf16.msra.mxu0 0
      %4427 = vmatprep.subr.bf16.mxu0 0
      %4428 = vmatpush1.bf16.msra.mxu0 0
      %4429 = vmatprep.subr.bf16.mxu0 0
      %4430 = vmatpush1.bf16.msra.mxu0 0
      %4431 = vmatprep.subr.bf16.mxu0 0
      %4432 = vmatpush1.bf16.msra.mxu0 0
      %4433 = vmatprep.subr.bf16.mxu0 0
      %4434 = vmatpush1.bf16.msra.mxu0 0
      %4435 = vmatprep.subr.bf16.mxu0 0
      %4436 = vmatpush1.bf16.msra.mxu0 0
      %4437 = vmatprep.subr.bf16.mxu0 0
      %4438 = vmatpush1.bf16.msra.mxu0 0
      %4439 = vmatprep.subr.bf16.mxu0 0
      %4440 = vmatpush1.bf16.msra.mxu0 0
      %4441 = vmatprep.subr.bf16.mxu0 0
      %4442 = vmatpush1.bf16.msra.mxu0 0
      %4443 = vmatprep.subr.bf16.mxu0 0
      %4444 = vmatpush1.bf16.msra.mxu0 0
      %4445 = vmatprep.subr.bf16.mxu0 0
      %4446 = vmatpush1.bf16.msra.mxu0 0
      %4447 = vmatprep.mubr.bf16.mxu0 0
      %4448 = vmatmul.mubr.bf16.gmra.mrb[0].mxu0 %v4404
      %v4449 = vpop.f32.mrb[0].mxu0
      %v4450 = vadd.f32 0.0, %v4449
      %v4451 = vpop.f32.mrb[0].mxu0
      %v4452 = vpop.f32.mrb[0].mxu0
      %v4453 = vadd.f32 0.0, %v4452
      %v4454 = vpop.f32.mrb[0].mxu0
      %4455 = vmatprep.mubr.bf16.mxu0 0
      %4456 = vmatmul.mubr.bf16.gmra.mrb[0].mxu0 %v4407
      %v4457 = vpop.f32.mrb[0].mxu0
      %v4458 = vadd.f32 0.0, %v4457
      %v4459 = vpop.f32.mrb[0].mxu0
      %v4460 = vpop.f32.mrb[0].mxu0
      %v4461 = vadd.f32 0.0, %v4460
      %v4462 = vpop.f32.mrb[0].mxu0
      %4463 = vmatprep.mubr.bf16.mxu0 0
      %4464 = vmatmul.mubr.bf16.gmra.mrb[0].mxu0 %v4410
      %v4465 = vpop.f32.mrb[0].mxu0
      %v4466 = vadd.f32 0.0, %v4465
      %v4467 = vpop.f32.mrb[0].mxu0
      %v4468 = vpop.f32.mrb[0].mxu0
      %v4469 = vadd.f32 0.0, %v4468
      %v4470 = vpop.f32.mrb[0].mxu0
      %4471 = vmatprep.mubr.bf16.mxu0 0
      %4472 = vmatmul.mubr.bf16.gmra.mrb[0].mxu0 %v4413
      %v4473 = vpop.f32.mrb[0].mxu0
      %v4474 = vadd.f32 0.0, %v4473
      %v4475 = vpop.f32.mrb[0].mxu0
      %v4476 = vpop.f32.mrb[0].mxu0
      %v4477 = vadd.f32 0.0, %v4476
      %v4478 = vpop.f32.mrb[0].mxu0
      %4479 = vdwg.mxu0
      %4480 = vst [vmem:[#allocation2] sm:$0xff] 0.0
      %4481 = vst [vmem:[#allocation2 + $0x8] sm:$0x3] 0.0
      %4482 = vst [vmem:[%s2569] sm:$0xff] 0.0
      %4483 = vst [vmem:[%s2569 + $0x8] sm:$0x3] 0.0
      %4484 = vst [vmem:[%s696] sm:$0x1] 0.0
      %4485 = vst [vmem:[%s696 + $0x18] sm:$0x1] 0.0
      %4486 = vst [vmem:[%s696 + $0x30] sm:$0x1] 0.0
      %4487 = vst [vmem:[%s696 + $0x48] sm:$0x1] 0.0
      %4488 = vst [vmem:[%s696 + $0x60] sm:$0x1] 0.0
      %4489 = vst [vmem:[%s696 + $0x78] sm:$0x1] 0.0
      %4490 = vst [vmem:[%s696 + $0x90] sm:$0x1] 0.0
      %4491 = vst [vmem:[%s696 + $0xa8] sm:$0x1] 0.0
      %4492 = vst [vmem:[%s696 + $0x9] sm:$0x1] 0.0
      %4493 = vst [vmem:[%s696 + $0x21] sm:$0x1] 0.0
      %4494 = vst [vmem:[%s696 + $0x39] sm:$0x1] 0.0
      %4495 = vst [vmem:[%s696 + $0x51] sm:$0x1] 0.0
      %4496 = vst [vmem:[%s696 + $0x69] sm:$0x1] 0.0
      %4497 = vst [vmem:[%s696 + $0x81] sm:$0x1] 0.0
      %4498 = vst [vmem:[%s696 + $0x99] sm:$0x1] 0.0
      %4499 = vst [vmem:[%s696 + $0xb1] sm:$0x1] 0.0
      %4500 = vst [vmem:[%s696 + $0x1] sm:$0xff] %v4450
      %4501 = vst [vmem:[%s696 + $0x19] sm:$0xff] %v4453
      %4502 = vst [vmem:[%s696 + $0x31] sm:$0xff] %v4458
      %4503 = vst [vmem:[%s696 + $0x49] sm:$0xff] %v4461
      %4504 = vst [vmem:[%s696 + $0x61] sm:$0xff] %v4466
      %4505 = vst [vmem:[%s696 + $0x79] sm:$0xff] %v4469
      %4506 = vst [vmem:[%s696 + $0x91] sm:$0xff] %v4474
      %4507 = vst [vmem:[%s696 + $0xa9] sm:$0xff] %v4477
      %v4508 = vld [vmem:[#allocation2] sm:$0xff]
      %v4509 = vld [vmem:[#allocation2 + $0x18] sm:$0xff]
      %v4510 = vld [vmem:[#allocation2 + $0x30] sm:$0xff]
      %v4511 = vld [vmem:[#allocation2 + $0x48] sm:$0xff]
      %v4512 = vld [vmem:[#allocation2 + $0x60] sm:$0xff]
      %v4513 = vld [vmem:[#allocation2 + $0x78] sm:$0xff]
      %v4514 = vld [vmem:[#allocation2 + $0x90] sm:$0xff]
      %v4515 = vld [vmem:[#allocation2 + $0xa8] sm:$0xff]
      %v4516 = vpack.c.bf16 %v4509, %v4508
      %v4517 = vpack.c.bf16 %v4511, %v4510
      %v4518 = vpack.c.bf16 %v4513, %v4512
      %v4519 = vpack.c.bf16 %v4515, %v4514
      %4520 = vst [vmem:[#allocation3] sm:$0xff] %v4516
      %4521 = vst [vmem:[#allocation3 + $0x48] sm:$0xff] %v4517
      %4522 = vst [vmem:[#allocation3 + $0x90] sm:$0xff] %v4518
      %4523 = vst [vmem:[#allocation3 + $0xd8] sm:$0xff] %v4519
      %v4524 = vld [vmem:[#allocation2 + $0x1] sm:$0xff]
      %v4525 = vld [vmem:[#allocation2 + $0x19] sm:$0xff]
      %v4526 = vld [vmem:[#allocation2 + $0x31] sm:$0xff]
      %v4527 = vld [vmem:[#allocation2 + $0x49] sm:$0xff]
      %v4528 = vld [vmem:[#allocation2 + $0x61] sm:$0xff]
      %v4529 = vld [vmem:[#allocation2 + $0x79] sm:$0xff]
      %v4530 = vld [vmem:[#allocation2 + $0x91] sm:$0xff]
      %v4531 = vld [vmem:[#allocation2 + $0xa9] sm:$0xff]
      %v4532 = vpack.c.bf16 %v4525, %v4524
      %v4533 = vpack.c.bf16 %v4527, %v4526
      %v4534 = vpack.c.bf16 %v4529, %v4528
      %v4535 = vpack.c.bf16 %v4531, %v4530
      %4536 = vst [vmem:[#allocation3 + $0x8] sm:$0xff] %v4532
      %4537 = vst [vmem:[#allocation3 + $0x50] sm:$0xff] %v4533
      %4538 = vst [vmem:[#allocation3 + $0x98] sm:$0xff] %v4534
      %4539 = vst [vmem:[#allocation3 + $0xe0] sm:$0xff] %v4535
      %v4540 = vld [vmem:[#allocation2 + $0x2] sm:$0xff]
      %v4541 = vld [vmem:[#allocation2 + $0x1a] sm:$0xff]
      %v4542 = vld [vmem:[#allocation2 + $0x32] sm:$0xff]
      %v4543 = vld [vmem:[#allocation2 + $0x4a] sm:$0xff]
      %v4544 = vld [vmem:[#allocation2 + $0x62] sm:$0xff]
      %v4545 = vld [vmem:[#allocation2 + $0x7a] sm:$0xff]
      %v4546 = vld [vmem:[#allocation2 + $0x92] sm:$0xff]
      %v4547 = vld [vmem:[#allocation2 + $0xaa] sm:$0xff]
      %v4548 = vpack.c.bf16 %v4541, %v4540
      %v4549 = vpack.c.bf16 %v4543, %v4542
      %v4550 = vpack.c.bf16 %v4545, %v4544
      %v4551 = vpack.c.bf16 %v4547, %v4546
      %4552 = vst [vmem:[#allocation3 + $0x10] sm:$0xff] %v4548
      %4553 = vst [vmem:[#allocation3 + $0x58] sm:$0xff] %v4549
      %4554 = vst [vmem:[#allocation3 + $0xa0] sm:$0xff] %v4550
      %4555 = vst [vmem:[#allocation3 + $0xe8] sm:$0xff] %v4551
      %v4556 = vld [vmem:[%s696] sm:$0xff]
      %v4557 = vld [vmem:[%s696 + $0x18] sm:$0xff]
      %v4558 = vld [vmem:[%s696 + $0x30] sm:$0xff]
      %v4559 = vld [vmem:[%s696 + $0x48] sm:$0xff]
      %v4560 = vld [vmem:[%s696 + $0x60] sm:$0xff]
      %v4561 = vld [vmem:[%s696 + $0x78] sm:$0xff]
      %v4562 = vld [vmem:[%s696 + $0x90] sm:$0xff]
      %v4563 = vld [vmem:[%s696 + $0xa8] sm:$0xff]
      %v4564 = vpack.c.bf16 %v4557, %v4556
      %v4565 = vpack.c.bf16 %v4559, %v4558
      %v4566 = vpack.c.bf16 %v4561, %v4560
      %v4567 = vpack.c.bf16 %v4563, %v4562
      %4568 = vst [vmem:[#allocation3 + $0x18] sm:$0xff] %v4564
      %4569 = vst [vmem:[#allocation3 + $0x60] sm:$0xff] %v4565
      %4570 = vst [vmem:[#allocation3 + $0xa8] sm:$0xff] %v4566
      %4571 = vst [vmem:[#allocation3 + $0xf0] sm:$0xff] %v4567
      %v4572 = vld [vmem:[%s696 + $0x1] sm:$0xff]
      %v4573 = vld [vmem:[%s696 + $0x19] sm:$0xff]
      %v4574 = vld [vmem:[%s696 + $0x31] sm:$0xff]
      %v4575 = vld [vmem:[%s696 + $0x49] sm:$0xff]
      %v4576 = vld [vmem:[%s696 + $0x61] sm:$0xff]
      %v4577 = vld [vmem:[%s696 + $0x79] sm:$0xff]
      %v4578 = vld [vmem:[%s696 + $0x91] sm:$0xff]
      %v4579 = vld [vmem:[%s696 + $0xa9] sm:$0xff]
      %v4580 = vpack.c.bf16 %v4573, %v4572
      %v4581 = vpack.c.bf16 %v4575, %v4574
      %v4582 = vpack.c.bf16 %v4577, %v4576
      %v4583 = vpack.c.bf16 %v4579, %v4578
      %4584 = vst [vmem:[#allocation3 + $0x20] sm:$0xff] %v4580
      %4585 = vst [vmem:[#allocation3 + $0x68] sm:$0xff] %v4581
      %4586 = vst [vmem:[#allocation3 + $0xb0] sm:$0xff] %v4582
      %4587 = vst [vmem:[#allocation3 + $0xf8] sm:$0xff] %v4583
      %v4588 = vld [vmem:[%s696 + $0x2] sm:$0xff]
      %v4589 = vld [vmem:[%s696 + $0x1a] sm:$0xff]
      %v4590 = vld [vmem:[%s696 + $0x32] sm:$0xff]
      %v4591 = vld [vmem:[%s696 + $0x4a] sm:$0xff]
      %v4592 = vld [vmem:[%s696 + $0x62] sm:$0xff]
      %v4593 = vld [vmem:[%s696 + $0x7a] sm:$0xff]
      %v4594 = vld [vmem:[%s696 + $0x92] sm:$0xff]
      %v4595 = vld [vmem:[%s696 + $0xaa] sm:$0xff]
      %v4596 = vpack.c.bf16 %v4589, %v4588
      %v4597 = vpack.c.bf16 %v4591, %v4590
      %v4598 = vpack.c.bf16 %v4593, %v4592
      %v4599 = vpack.c.bf16 %v4595, %v4594
      %4600 = vst [vmem:[#allocation3 + $0x28] sm:$0xff] %v4596
      %4601 = vst [vmem:[#allocation3 + $0x70] sm:$0xff] %v4597
      %4602 = vst [vmem:[#allocation3 + $0xb8] sm:$0xff] %v4598
      %4603 = vst [vmem:[#allocation3 + $0x100] sm:$0xff] %v4599
      %v4604 = vld [vmem:[%s1503] sm:$0xff]
      %v4605 = vld [vmem:[%s1503 + $0x18] sm:$0xff]
      %v4606 = vld [vmem:[%s1503 + $0x30] sm:$0xff]
      %v4607 = vld [vmem:[%s1503 + $0x48] sm:$0xff]
      %v4608 = vld [vmem:[%s1503 + $0x60] sm:$0xff]
      %v4609 = vld [vmem:[%s1503 + $0x78] sm:$0xff]
      %v4610 = vld [vmem:[%s1503 + $0x90] sm:$0xff]
      %v4611 = vld [vmem:[%s1503 + $0xa8] sm:$0xff]
      %v4612 = vpack.c.bf16 %v4605, %v4604
      %v4613 = vpack.c.bf16 %v4607, %v4606
      %v4614 = vpack.c.bf16 %v4609, %v4608
      %v4615 = vpack.c.bf16 %v4611, %v4610
      %4616 = vst [vmem:[#allocation3 + $0x30] sm:$0xff] %v4612
      %4617 = vst [vmem:[#allocation3 + $0x78] sm:$0xff] %v4613
      %4618 = vst [vmem:[#allocation3 + $0xc0] sm:$0xff] %v4614
      %4619 = vst [vmem:[#allocation3 + $0x108] sm:$0xff] %v4615
      %v4620 = vld [vmem:[%s1503 + $0x1] sm:$0xff]
      %v4621 = vld [vmem:[%s1503 + $0x19] sm:$0xff]
      %v4622 = vld [vmem:[%s1503 + $0x31] sm:$0xff]
      %v4623 = vld [vmem:[%s1503 + $0x49] sm:$0xff]
      %v4624 = vld [vmem:[%s1503 + $0x61] sm:$0xff]
      %v4625 = vld [vmem:[%s1503 + $0x79] sm:$0xff]
      %v4626 = vld [vmem:[%s1503 + $0x91] sm:$0xff]
      %v4627 = vld [vmem:[%s1503 + $0xa9] sm:$0xff]
      %v4628 = vpack.c.bf16 %v4621, %v4620
      %v4629 = vpack.c.bf16 %v4623, %v4622
      %v4630 = vpack.c.bf16 %v4625, %v4624
      %v4631 = vpack.c.bf16 %v4627, %v4626
      %4632 = vst [vmem:[#allocation3 + $0x38] sm:$0xff] %v4628
      %4633 = vst [vmem:[#allocation3 + $0x80] sm:$0xff] %v4629
      %4634 = vst [vmem:[#allocation3 + $0xc8] sm:$0xff] %v4630
      %4635 = vst [vmem:[#allocation3 + $0x110] sm:$0xff] %v4631
      %v4636 = vld [vmem:[%s1503 + $0x2] sm:$0xff]
      %v4637 = vld [vmem:[%s1503 + $0x1a] sm:$0xff]
      %v4638 = vld [vmem:[%s1503 + $0x32] sm:$0xff]
      %v4639 = vld [vmem:[%s1503 + $0x4a] sm:$0xff]
      %v4640 = vld [vmem:[%s1503 + $0x62] sm:$0xff]
      %v4641 = vld [vmem:[%s1503 + $0x7a] sm:$0xff]
      %v4642 = vld [vmem:[%s1503 + $0x92] sm:$0xff]
      %v4643 = vld [vmem:[%s1503 + $0xaa] sm:$0xff]
      %v4644 = vpack.c.bf16 %v4637, %v4636
      %v4645 = vpack.c.bf16 %v4639, %v4638
      %v4646 = vpack.c.bf16 %v4641, %v4640
      %v4647 = vpack.c.bf16 %v4643, %v4642
      %4648 = vst [vmem:[#allocation3 + $0x40] sm:$0xff] %v4644
      %4649 = vst [vmem:[#allocation3 + $0x88] sm:$0xff] %v4645
      %4650 = vst [vmem:[#allocation3 + $0xd0] sm:$0xff] %v4646
      %4651 = vst [vmem:[#allocation3 + $0x118] sm:$0xff] %v4647
      %v4652 = vld [vmem:[#allocation3] sm:$0xff]
      %v4653 = vld [vmem:[#allocation3 + $0x8] sm:$0xff]
      %v4654 = vld [vmem:[#allocation3 + $0x10] sm:$0xff]
      %v4655 = vld [vmem:[#allocation3 + $0x18] sm:$0xff]
      %v4656 = vld [vmem:[#allocation3 + $0x20] sm:$0xff]
      %v4657 = vld [vmem:[#allocation3 + $0x28] sm:$0xff]
      %v4658 = vld [vmem:[#allocation3 + $0x30] sm:$0xff]
      %v4659 = vld [vmem:[#allocation3 + $0x38] sm:$0xff]
      %v4660 = vld [vmem:[#allocation3 + $0x40] sm:$0xff]
      %v4661 = vld [vmem:[#allocation3 + $0x48] sm:$0xff]
      %v4662 = vld [vmem:[#allocation3 + $0x50] sm:$0xff]
      %v4663 = vld [vmem:[#allocation3 + $0x58] sm:$0xff]
      %v4664 = vld [vmem:[#allocation3 + $0x60] sm:$0xff]
      %v4665 = vld [vmem:[#allocation3 + $0x68] sm:$0xff]
      %v4666 = vld [vmem:[#allocation3 + $0x70] sm:$0xff]
      %v4667 = vld [vmem:[#allocation3 + $0x78] sm:$0xff]
      %v4668 = vld [vmem:[#allocation3 + $0x80] sm:$0xff]
      %v4669 = vld [vmem:[#allocation3 + $0x88] sm:$0xff]
      %v4670 = vld [vmem:[#allocation3 + $0x90] sm:$0xff]
      %v4671 = vld [vmem:[#allocation3 + $0x98] sm:$0xff]
      %v4672 = vld [vmem:[#allocation3 + $0xa0] sm:$0xff]
      %v4673 = vld [vmem:[#allocation3 + $0xa8] sm:$0xff]
      %v4674 = vld [vmem:[#allocation3 + $0xb0] sm:$0xff]
      %v4675 = vld [vmem:[#allocation3 + $0xb8] sm:$0xff]
      %v4676 = vld [vmem:[#allocation3 + $0xc0] sm:$0xff]
      %v4677 = vld [vmem:[#allocation3 + $0xc8] sm:$0xff]
      %v4678 = vld [vmem:[#allocation3 + $0xd0] sm:$0xff]
      %v4679 = vld [vmem:[#allocation3 + $0xd8] sm:$0xff]
      %v4680 = vld [vmem:[#allocation3 + $0xe0] sm:$0xff]
      %v4681 = vld [vmem:[#allocation3 + $0xe8] sm:$0xff]
      %v4682 = vld [vmem:[#allocation3 + $0xf0] sm:$0xff]
      %v4683 = vld [vmem:[#allocation3 + $0xf8] sm:$0xff]
      %v4684 = vld [vmem:[#allocation3 + $0x100] sm:$0xff]
      %v4685 = vld [vmem:[#allocation3 + $0x108] sm:$0xff]
      %v4686 = vld [vmem:[#allocation3 + $0x110] sm:$0xff]
      %v4687 = vld [vmem:[#allocation3 + $0x118] sm:$0xff]
      %v4688 = vld [vmem:[%s15] sm:$0xf]
      %v4689 = vld [vmem:[%s15 + $0x4] sm:$0xf]
      %v4690 = vld [vmem:[%s15 + $0x8] sm:$0xf]
      %v4691 = vld [vmem:[%s15 + $0xc] sm:$0xf]
      %v4692 = vld [vmem:[%s15 + $0x10] sm:$0xf]
      %v4693 = vld [vmem:[%s15 + $0x14] sm:$0xf]
      %v4694 = vld [vmem:[%s15 + $0x18] sm:$0xf]
      %v4695 = vld [vmem:[%s15 + $0x1c] sm:$0xf]
      %v4696 = vld [vmem:[%s15 + $0x20] sm:$0xf]
      %v4697 = vld [vmem:[%s15 + $0x24] sm:$0xf]
      %v4698 = vld [vmem:[%s15 + $0x28] sm:$0xf]
      %v4699 = vld [vmem:[%s15 + $0x2c] sm:$0xf]
      %v4700 = vld [vmem:[%s15 + $0x30] sm:$0xf]
      %v4701 = vld [vmem:[%s15 + $0x34] sm:$0xf]
      %v4702 = vld [vmem:[%s15 + $0x38] sm:$0xf]
      %v4703 = vld [vmem:[%s15 + $0x3c] sm:$0xf]
      %v4704 = vld [vmem:[%s15 + $0x40] sm:$0xf]
      %v4705 = vld [vmem:[%s15 + $0x44] sm:$0xf]
      %v4706 = vld [vmem:[%s15 + $0x48] sm:$0xf]
      %v4707 = vld [vmem:[%s15 + $0x4c] sm:$0xf]
      %v4708 = vld [vmem:[%s15 + $0x50] sm:$0xf]
      %v4709 = vld [vmem:[%s15 + $0x54] sm:$0xf]
      %v4710 = vld [vmem:[%s15 + $0x58] sm:$0xf]
      %v4711 = vld [vmem:[%s15 + $0x5c] sm:$0xf]
      %v4712 = vld [vmem:[%s15 + $0x60] sm:$0xf]
      %v4713 = vld [vmem:[%s15 + $0x64] sm:$0xf]
      %v4714 = vld [vmem:[%s15 + $0x68] sm:$0xf]
      %v4715 = vld [vmem:[%s15 + $0x6c] sm:$0xf]
      %v4716 = vld [vmem:[%s15 + $0x70] sm:$0xf]
      %v4717 = vld [vmem:[%s15 + $0x74] sm:$0xf]
      %v4718 = vld [vmem:[%s15 + $0x78] sm:$0xf]
      %v4719 = vld [vmem:[%s15 + $0x7c] sm:$0xf]
      %v4720 = vld [vmem:[%s15 + $0x80] sm:$0xf]
      %v4721 = vld [vmem:[%s15 + $0x84] sm:$0xf]
      %v4722 = vld [vmem:[%s15 + $0x88] sm:$0xf]
      %v4723 = vld [vmem:[%s15 + $0x8c] sm:$0xf]
      %v4724 = vld [vmem:[%s15 + $0x90] sm:$0xf]
      %v4725 = vld [vmem:[%s15 + $0x94] sm:$0xf]
      %v4726 = vld [vmem:[%s15 + $0x98] sm:$0xf]
      %v4727 = vld [vmem:[%s15 + $0x9c] sm:$0xf]
      %v4728 = vld [vmem:[%s15 + $0xa0] sm:$0xf]
      %v4729 = vld [vmem:[%s15 + $0xa4] sm:$0xf]
      %v4730 = vld [vmem:[%s15 + $0xa8] sm:$0xf]
      %v4731 = vld [vmem:[%s15 + $0xac] sm:$0xf]
      %v4732 = vld [vmem:[%s15 + $0xb0] sm:$0xf]
      %v4733 = vld [vmem:[%s15 + $0xb4] sm:$0xf]
      %v4734 = vld [vmem:[%s15 + $0xb8] sm:$0xf]
      %v4735 = vld [vmem:[%s15 + $0xbc] sm:$0xf]
      %v4736 = vld [vmem:[%s15 + $0xc0] sm:$0xf]
      %v4737 = vld [vmem:[%s15 + $0xc4] sm:$0xf]
      %v4738 = vld [vmem:[%s15 + $0xc8] sm:$0xf]
      %v4739 = vld [vmem:[%s15 + $0xcc] sm:$0xf]
      %v4740 = vld [vmem:[%s15 + $0xd0] sm:$0xf]
      %v4741 = vld [vmem:[%s15 + $0xd4] sm:$0xf]
      %v4742 = vld [vmem:[%s15 + $0xd8] sm:$0xf]
      %v4743 = vld [vmem:[%s15 + $0xdc] sm:$0xf]
      %v4744 = vld [vmem:[%s15 + $0xe0] sm:$0xf]
      %v4745 = vld [vmem:[%s15 + $0xe4] sm:$0xf]
      %v4746 = vld [vmem:[%s15 + $0xe8] sm:$0xf]
      %v4747 = vld [vmem:[%s15 + $0xec] sm:$0xf]
      %v4748 = vld [vmem:[%s15 + $0xf0] sm:$0xf]
      %v4749 = vld [vmem:[%s15 + $0xf4] sm:$0xf]
      %v4750 = vld [vmem:[%s15 + $0xf8] sm:$0xf]
      %v4751 = vld [vmem:[%s15 + $0xfc] sm:$0xf]
      %v4752 = vld [vmem:[%s15 + $0x100] sm:$0xf]
      %v4753 = vld [vmem:[%s15 + $0x104] sm:$0xf]
      %v4754 = vld [vmem:[%s15 + $0x108] sm:$0xf]
      %v4755 = vld [vmem:[%s15 + $0x10c] sm:$0xf]
      %v4756 = vld [vmem:[%s15 + $0x110] sm:$0xf]
      %v4757 = vld [vmem:[%s15 + $0x114] sm:$0xf]
      %v4758 = vld [vmem:[%s15 + $0x118] sm:$0xf]
      %v4759 = vld [vmem:[%s15 + $0x11c] sm:$0xf]
      %v4760 = vld [vmem:[%s15 + $0x120] sm:$0xf]
      %v4761 = vld [vmem:[%s15 + $0x124] sm:$0xf]
      %v4762 = vld [vmem:[%s15 + $0x128] sm:$0xf]
      %v4763 = vld [vmem:[%s15 + $0x12c] sm:$0xf]
      %v4764 = vld [vmem:[%s15 + $0x130] sm:$0xf]
      %v4765 = vld [vmem:[%s15 + $0x134] sm:$0xf]
      %v4766 = vld [vmem:[%s15 + $0x138] sm:$0xf]
      %v4767 = vld [vmem:[%s15 + $0x13c] sm:$0xf]
      %v4768 = vld [vmem:[%s15 + $0x140] sm:$0xf]
      %v4769 = vld [vmem:[%s15 + $0x144] sm:$0xf]
      %v4770 = vld [vmem:[%s15 + $0x148] sm:$0xf]
      %v4771 = vld [vmem:[%s15 + $0x14c] sm:$0xf]
      %v4772 = vld [vmem:[%s15 + $0x150] sm:$0xf]
      %v4773 = vld [vmem:[%s15 + $0x154] sm:$0xf]
      %v4774 = vld [vmem:[%s15 + $0x158] sm:$0xf]
      %v4775 = vld [vmem:[%s15 + $0x15c] sm:$0xf]
      %v4776 = vld [vmem:[%s15 + $0x160] sm:$0xf]
      %v4777 = vld [vmem:[%s15 + $0x164] sm:$0xf]
      %v4778 = vld [vmem:[%s15 + $0x168] sm:$0xf]
      %v4779 = vld [vmem:[%s15 + $0x16c] sm:$0xf]
      %v4780 = vld [vmem:[%s15 + $0x170] sm:$0xf]
      %v4781 = vld [vmem:[%s15 + $0x174] sm:$0xf]
      %v4782 = vld [vmem:[%s15 + $0x178] sm:$0xf]
      %v4783 = vld [vmem:[%s15 + $0x17c] sm:$0xf]
      %v4784 = vld [vmem:[%s15 + $0x180] sm:$0xf]
      %v4785 = vld [vmem:[%s15 + $0x184] sm:$0xf]
      %v4786 = vld [vmem:[%s15 + $0x188] sm:$0xf]
      %v4787 = vld [vmem:[%s15 + $0x18c] sm:$0xf]
      %v4788 = vld [vmem:[%s15 + $0x190] sm:$0xf]
      %v4789 = vld [vmem:[%s15 + $0x194] sm:$0xf]
      %v4790 = vld [vmem:[%s15 + $0x198] sm:$0xf]
      %v4791 = vld [vmem:[%s15 + $0x19c] sm:$0xf]
      %v4792 = vld [vmem:[%s15 + $0x1a0] sm:$0xf]
      %v4793 = vld [vmem:[%s15 + $0x1a4] sm:$0xf]
      %v4794 = vld [vmem:[%s15 + $0x1a8] sm:$0xf]
      %v4795 = vld [vmem:[%s15 + $0x1ac] sm:$0xf]
      %v4796 = vld [vmem:[%s15 + $0x1b0] sm:$0xf]
      %v4797 = vld [vmem:[%s15 + $0x1b4] sm:$0xf]
      %v4798 = vld [vmem:[%s15 + $0x1b8] sm:$0xf]
      %v4799 = vld [vmem:[%s15 + $0x1bc] sm:$0xf]
      %v4800 = vld [vmem:[%s15 + $0x1c0] sm:$0xf]
      %v4801 = vld [vmem:[%s15 + $0x1c4] sm:$0xf]
      %v4802 = vld [vmem:[%s15 + $0x1c8] sm:$0xf]
      %v4803 = vld [vmem:[%s15 + $0x1cc] sm:$0xf]
      %v4804 = vld [vmem:[%s15 + $0x1d0] sm:$0xf]
      %v4805 = vld [vmem:[%s15 + $0x1d4] sm:$0xf]
      %v4806 = vld [vmem:[%s15 + $0x1d8] sm:$0xf]
      %v4807 = vld [vmem:[%s15 + $0x1dc] sm:$0xf]
      %v4808 = vld [vmem:[%s15 + $0x1e0] sm:$0xf]
      %v4809 = vld [vmem:[%s15 + $0x1e4] sm:$0xf]
      %v4810 = vld [vmem:[%s15 + $0x1e8] sm:$0xf]
      %v4811 = vld [vmem:[%s15 + $0x1ec] sm:$0xf]
      %v4812 = vld [vmem:[%s15 + $0x1f0] sm:$0xf]
      %v4813 = vld [vmem:[%s15 + $0x1f4] sm:$0xf]
      %v4814 = vld [vmem:[%s15 + $0x1f8] sm:$0xf]
      %v4815 = vld [vmem:[%s15 + $0x1fc] sm:$0xf]
      %v4816 = vld [vmem:[%s15 + $0x200] sm:$0xf]
      %v4817 = vld [vmem:[%s15 + $0x204] sm:$0xf]
      %v4818 = vld [vmem:[%s15 + $0x208] sm:$0xf]
      %v4819 = vld [vmem:[%s15 + $0x20c] sm:$0xf]
      %v4820 = vld [vmem:[%s15 + $0x210] sm:$0xf]
      %v4821 = vld [vmem:[%s15 + $0x214] sm:$0xf]
      %v4822 = vld [vmem:[%s15 + $0x218] sm:$0xf]
      %v4823 = vld [vmem:[%s15 + $0x21c] sm:$0xf]
      %v4824 = vld [vmem:[%s15 + $0x220] sm:$0xf]
      %v4825 = vld [vmem:[%s15 + $0x224] sm:$0xf]
      %v4826 = vld [vmem:[%s15 + $0x228] sm:$0xf]
      %v4827 = vld [vmem:[%s15 + $0x22c] sm:$0xf]
      %v4828 = vld [vmem:[%s15 + $0x230] sm:$0xf]
      %v4829 = vld [vmem:[%s15 + $0x234] sm:$0xf]
      %v4830 = vld [vmem:[%s15 + $0x238] sm:$0xf]
      %v4831 = vld [vmem:[%s15 + $0x23c] sm:$0xf]
      %v4832 = vld [vmem:[%s16] sm:$0x1]
      %v4834 = vlaneseq
      %v4835 = vshrl.u32 %v4834, 7
      %v4836 = vsub.s32 0, %v4835
      %v4837 = vrot.slane %v4832, %v4836
      %v4983 = vunpack.c.l.b16 %v4688
      %v4984 = vunpack.c.l.b16 %v4689
      %v4985 = vunpack.c.l.b16 %v4690
      %v4986 = vunpack.c.l.b16 %v4691
      %v4987 = vunpack.c.l.b16 %v4692
      %v4988 = vunpack.c.l.b16 %v4693
      %v4989 = vunpack.c.l.b16 %v4694
      %v4990 = vunpack.c.l.b16 %v4695
      %v4991 = vunpack.c.l.b16 %v4696
      %v4992 = vunpack.c.l.b16 %v4697
      %v4993 = vunpack.c.l.b16 %v4698
      %v4994 = vunpack.c.l.b16 %v4699
      %v4995 = vunpack.c.l.b16 %v4700
      %v4996 = vunpack.c.l.b16 %v4701
      %v4997 = vunpack.c.l.b16 %v4702
      %v4998 = vunpack.c.l.b16 %v4703
      %v4999 = vunpack.c.l.b16 %v4704
      %v5000 = vunpack.c.l.b16 %v4705
      %v5001 = vunpack.c.l.b16 %v4706
      %v5002 = vunpack.c.l.b16 %v4707
      %v5003 = vunpack.c.l.b16 %v4708
      %v5004 = vunpack.c.l.b16 %v4709
      %v5005 = vunpack.c.l.b16 %v4710
      %v5006 = vunpack.c.l.b16 %v4711
      %v5007 = vunpack.c.l.b16 %v4712
      %v5008 = vunpack.c.l.b16 %v4713
      %v5009 = vunpack.c.l.b16 %v4714
      %v5010 = vunpack.c.l.b16 %v4715
      %v5011 = vunpack.c.l.b16 %v4716
      %v5012 = vunpack.c.l.b16 %v4717
      %v5013 = vunpack.c.l.b16 %v4718
      %v5014 = vunpack.c.l.b16 %v4719
      %v5015 = vunpack.c.l.b16 %v4720
      %v5016 = vunpack.c.l.b16 %v4721
      %v5017 = vunpack.c.l.b16 %v4722
      %v5018 = vunpack.c.l.b16 %v4723
      %v5019 = vunpack.c.l.b16 %v4724
      %v5020 = vunpack.c.l.b16 %v4725
      %v5021 = vunpack.c.l.b16 %v4726
      %v5022 = vunpack.c.l.b16 %v4727
      %v5023 = vunpack.c.l.b16 %v4728
      %v5024 = vunpack.c.l.b16 %v4729
      %v5025 = vunpack.c.l.b16 %v4730
      %v5026 = vunpack.c.l.b16 %v4731
      %v5027 = vunpack.c.l.b16 %v4732
      %v5028 = vunpack.c.l.b16 %v4733
      %v5029 = vunpack.c.l.b16 %v4734
      %v5030 = vunpack.c.l.b16 %v4735
      %v5031 = vunpack.c.l.b16 %v4736
      %v5032 = vunpack.c.l.b16 %v4737
      %v5033 = vunpack.c.l.b16 %v4738
      %v5034 = vunpack.c.l.b16 %v4739
      %v5035 = vunpack.c.l.b16 %v4740
      %v5036 = vunpack.c.l.b16 %v4741
      %v5037 = vunpack.c.l.b16 %v4742
      %v5038 = vunpack.c.l.b16 %v4743
      %v5039 = vunpack.c.l.b16 %v4744
      %v5040 = vunpack.c.l.b16 %v4745
      %v5041 = vunpack.c.l.b16 %v4746
      %v5042 = vunpack.c.l.b16 %v4747
      %v5043 = vunpack.c.l.b16 %v4748
      %v5044 = vunpack.c.l.b16 %v4749
      %v5045 = vunpack.c.l.b16 %v4750
      %v5046 = vunpack.c.l.b16 %v4751
      %v5047 = vunpack.c.l.b16 %v4752
      %v5048 = vunpack.c.l.b16 %v4753
      %v5049 = vunpack.c.l.b16 %v4754
      %v5050 = vunpack.c.l.b16 %v4755
      %v5051 = vunpack.c.l.b16 %v4756
      %v5052 = vunpack.c.l.b16 %v4757
      %v5053 = vunpack.c.l.b16 %v4758
      %v5054 = vunpack.c.l.b16 %v4759
      %v5055 = vunpack.c.l.b16 %v4760
      %v5056 = vunpack.c.l.b16 %v4761
      %v5057 = vunpack.c.l.b16 %v4762
      %v5058 = vunpack.c.l.b16 %v4763
      %v5059 = vunpack.c.l.b16 %v4764
      %v5060 = vunpack.c.l.b16 %v4765
      %v5061 = vunpack.c.l.b16 %v4766
      %v5062 = vunpack.c.l.b16 %v4767
      %v5063 = vunpack.c.l.b16 %v4768
      %v5064 = vunpack.c.l.b16 %v4769
      %v5065 = vunpack.c.l.b16 %v4770
      %v5066 = vunpack.c.l.b16 %v4771
      %v5067 = vunpack.c.l.b16 %v4772
      %v5068 = vunpack.c.l.b16 %v4773
      %v5069 = vunpack.c.l.b16 %v4774
      %v5070 = vunpack.c.l.b16 %v4775
      %v5071 = vunpack.c.l.b16 %v4776
      %v5072 = vunpack.c.l.b16 %v4777
      %v5073 = vunpack.c.l.b16 %v4778
      %v5074 = vunpack.c.l.b16 %v4779
      %v5075 = vunpack.c.l.b16 %v4780
      %v5076 = vunpack.c.l.b16 %v4781
      %v5077 = vunpack.c.l.b16 %v4782
      %v5078 = vunpack.c.l.b16 %v4783
      %v5079 = vunpack.c.l.b16 %v4784
      %v5080 = vunpack.c.l.b16 %v4785
      %v5081 = vunpack.c.l.b16 %v4786
      %v5082 = vunpack.c.l.b16 %v4787
      %v5083 = vunpack.c.l.b16 %v4788
      %v5084 = vunpack.c.l.b16 %v4789
      %v5085 = vunpack.c.l.b16 %v4790
      %v5086 = vunpack.c.l.b16 %v4791
      %v5087 = vunpack.c.l.b16 %v4792
      %v5088 = vunpack.c.l.b16 %v4793
      %v5089 = vunpack.c.l.b16 %v4794
      %v5090 = vunpack.c.l.b16 %v4795
      %v5091 = vunpack.c.l.b16 %v4796
      %v5092 = vunpack.c.l.b16 %v4797
      %v5093 = vunpack.c.l.b16 %v4798
      %v5094 = vunpack.c.l.b16 %v4799
      %v5095 = vunpack.c.l.b16 %v4800
      %v5096 = vunpack.c.l.b16 %v4801
      %v5097 = vunpack.c.l.b16 %v4802
      %v5098 = vunpack.c.l.b16 %v4803
      %v5099 = vunpack.c.l.b16 %v4804
      %v5100 = vunpack.c.l.b16 %v4805
      %v5101 = vunpack.c.l.b16 %v4806
      %v5102 = vunpack.c.l.b16 %v4807
      %v5103 = vunpack.c.l.b16 %v4808
      %v5104 = vunpack.c.l.b16 %v4809
      %v5105 = vunpack.c.l.b16 %v4810
      %v5106 = vunpack.c.l.b16 %v4811
      %v5107 = vunpack.c.l.b16 %v4812
      %v5108 = vunpack.c.l.b16 %v4813
      %v5109 = vunpack.c.l.b16 %v4814
      %v5110 = vunpack.c.l.b16 %v4815
      %v5111 = vunpack.c.l.b16 %v4816
      %v5112 = vunpack.c.l.b16 %v4817
      %v5113 = vunpack.c.l.b16 %v4818
      %v5114 = vunpack.c.l.b16 %v4819
      %v5115 = vunpack.c.l.b16 %v4820
      %v5116 = vunpack.c.l.b16 %v4821
      %v5117 = vunpack.c.l.b16 %v4822
      %v5118 = vunpack.c.l.b16 %v4823
      %v5119 = vunpack.c.l.b16 %v4824
      %v5120 = vunpack.c.l.b16 %v4825
      %v5121 = vunpack.c.l.b16 %v4826
      %v5122 = vunpack.c.l.b16 %v4827
      %v5123 = vunpack.c.l.b16 %v4828
      %v5124 = vunpack.c.l.b16 %v4829
      %v5125 = vunpack.c.l.b16 %v4830
      %v5126 = vunpack.c.l.b16 %v4831
      %v5127 = vpack.c.b16 %v4984, %v4983
      %v5128 = vpack.c.b16 %v4986, %v4985
      %v5129 = vpack.c.b16 %v4988, %v4987
      %v5130 = vpack.c.b16 %v4990, %v4989
      %v5131 = vpack.c.b16 %v4992, %v4991
      %v5132 = vpack.c.b16 %v4994, %v4993
      %v5133 = vpack.c.b16 %v4996, %v4995
      %v5134 = vpack.c.b16 %v4998, %v4997
      %v5135 = vpack.c.b16 %v5000, %v4999
      %v5136 = vpack.c.b16 %v5002, %v5001
      %v5137 = vpack.c.b16 %v5004, %v5003
      %v5138 = vpack.c.b16 %v5006, %v5005
      %v5139 = vpack.c.b16 %v5008, %v5007
      %v5140 = vpack.c.b16 %v5010, %v5009
      %v5141 = vpack.c.b16 %v5012, %v5011
      %v5142 = vpack.c.b16 %v5014, %v5013
      %v5143 = vpack.c.b16 %v5016, %v5015
      %v5144 = vpack.c.b16 %v5018, %v5017
      %v5145 = vpack.c.b16 %v5020, %v5019
      %v5146 = vpack.c.b16 %v5022, %v5021
      %v5147 = vpack.c.b16 %v5024, %v5023
      %v5148 = vpack.c.b16 %v5026, %v5025
      %v5149 = vpack.c.b16 %v5028, %v5027
      %v5150 = vpack.c.b16 %v5030, %v5029
      %v5151 = vpack.c.b16 %v5032, %v5031
      %v5152 = vpack.c.b16 %v5034, %v5033
      %v5153 = vpack.c.b16 %v5036, %v5035
      %v5154 = vpack.c.b16 %v5038, %v5037
      %v5155 = vpack.c.b16 %v5040, %v5039
      %v5156 = vpack.c.b16 %v5042, %v5041
      %v5157 = vpack.c.b16 %v5044, %v5043
      %v5158 = vpack.c.b16 %v5046, %v5045
      %v5159 = vpack.c.b16 %v5048, %v5047
      %v5160 = vpack.c.b16 %v5050, %v5049
      %v5161 = vpack.c.b16 %v5052, %v5051
      %v5162 = vpack.c.b16 %v5054, %v5053
      %v5163 = vpack.c.b16 %v5056, %v5055
      %v5164 = vpack.c.b16 %v5058, %v5057
      %v5165 = vpack.c.b16 %v5060, %v5059
      %v5166 = vpack.c.b16 %v5062, %v5061
      %v5167 = vpack.c.b16 %v5064, %v5063
      %v5168 = vpack.c.b16 %v5066, %v5065
      %v5169 = vpack.c.b16 %v5068, %v5067
      %v5170 = vpack.c.b16 %v5070, %v5069
      %v5171 = vpack.c.b16 %v5072, %v5071
      %v5172 = vpack.c.b16 %v5074, %v5073
      %v5173 = vpack.c.b16 %v5076, %v5075
      %v5174 = vpack.c.b16 %v5078, %v5077
      %v5175 = vpack.c.b16 %v5080, %v5079
      %v5176 = vpack.c.b16 %v5082, %v5081
      %v5177 = vpack.c.b16 %v5084, %v5083
      %v5178 = vpack.c.b16 %v5086, %v5085
      %v5179 = vpack.c.b16 %v5088, %v5087
      %v5180 = vpack.c.b16 %v5090, %v5089
      %v5181 = vpack.c.b16 %v5092, %v5091
      %v5182 = vpack.c.b16 %v5094, %v5093
      %v5183 = vpack.c.b16 %v5096, %v5095
      %v5184 = vpack.c.b16 %v5098, %v5097
      %v5185 = vpack.c.b16 %v5100, %v5099
      %v5186 = vpack.c.b16 %v5102, %v5101
      %v5187 = vpack.c.b16 %v5104, %v5103
      %v5188 = vpack.c.b16 %v5106, %v5105
      %v5189 = vpack.c.b16 %v5108, %v5107
      %v5190 = vpack.c.b16 %v5110, %v5109
      %v5191 = vpack.c.b16 %v5112, %v5111
      %v5192 = vpack.c.b16 %v5114, %v5113
      %v5193 = vpack.c.b16 %v5116, %v5115
      %v5194 = vpack.c.b16 %v5118, %v5117
      %v5195 = vpack.c.b16 %v5120, %v5119
      %v5196 = vpack.c.b16 %v5122, %v5121
      %v5197 = vpack.c.b16 %v5124, %v5123
      %v5198 = vpack.c.b16 %v5126, %v5125
      %5271 = vmatprep.subr.bf16.mxu0 0
      %5272 = vmatpush1.bf16.msra.mxu0 %v5127
      %5273 = vmatprep.subr.bf16.mxu0 0
      %5274 = vmatpush1.bf16.msra.mxu0 %v5128
      %5275 = vmatprep.subr.bf16.mxu0 0
      %5276 = vmatpush1.bf16.msra.mxu0 %v5129
      %5277 = vmatprep.subr.bf16.mxu0 0
      %5278 = vmatpush1.bf16.msra.mxu0 %v5130
      %5279 = vmatprep.subr.bf16.mxu0 0
      %5280 = vmatpush1.bf16.msra.mxu0 %v5131
      %5281 = vmatprep.subr.bf16.mxu0 0
      %5282 = vmatpush1.bf16.msra.mxu0 %v5132
      %5283 = vmatprep.subr.bf16.mxu0 0
      %5284 = vmatpush1.bf16.msra.mxu0 %v5133
      %5285 = vmatprep.subr.bf16.mxu0 0
      %5286 = vmatpush1.bf16.msra.mxu0 %v5134
      %5287 = vmatprep.subr.bf16.mxu0 0
      %5288 = vmatpush1.bf16.msra.mxu0 %v5135
      %5289 = vmatprep.subr.bf16.mxu0 0
      %5290 = vmatpush1.bf16.msra.mxu0 %v5136
      %5291 = vmatprep.subr.bf16.mxu0 0
      %5292 = vmatpush1.bf16.msra.mxu0 %v5137
      %5293 = vmatprep.subr.bf16.mxu0 0
      %5294 = vmatpush1.bf16.msra.mxu0 %v5138
      %5295 = vmatprep.subr.bf16.mxu0 0
      %5296 = vmatpush1.bf16.msra.mxu0 %v5139
      %5297 = vmatprep.subr.bf16.mxu0 0
      %5298 = vmatpush1.bf16.msra.mxu0 %v5140
      %5299 = vmatprep.subr.bf16.mxu0 0
      %5300 = vmatpush1.bf16.msra.mxu0 %v5141
      %5301 = vmatprep.subr.bf16.mxu0 0
      %5302 = vmatpush1.bf16.msra.mxu0 %v5142
      %5303 = vmatprep.mubr.bf16.mxu0 %v4653
      %5304 = vmatmul.mubr.bf16.gmra.mrb[0].mxu0 %v4652
      %v5305 = vpop.f32.mrb[0].mxu0
      %v5306 = vadd.f32 %v4837, %v5305
      %v5307 = vpop.f32.mrb[0].mxu0
      %v5308 = vpop.f32.mrb[0].mxu0
      %v5309 = vadd.f32 %v4837, %v5308
      %v5310 = vpop.f32.mrb[0].mxu0
      %5311 = vmatprep.mubr.bf16.mxu0 %v4662
      %5312 = vmatmul.mubr.bf16.gmra.mrb[0].mxu0 %v4661
      %v5313 = vpop.f32.mrb[0].mxu0
      %v5314 = vadd.f32 %v4837, %v5313
      %v5315 = vpop.f32.mrb[0].mxu0
      %v5316 = vpop.f32.mrb[0].mxu0
      %v5317 = vadd.f32 %v4837, %v5316
      %v5318 = vpop.f32.mrb[0].mxu0
      %5319 = vmatprep.mubr.bf16.mxu0 %v4671
      %5320 = vmatmul.mubr.bf16.gmra.mrb[0].mxu0 %v4670
      %v5321 = vpop.f32.mrb[0].mxu0
      %v5322 = vadd.f32 %v4837, %v5321
      %v5323 = vpop.f32.mrb[0].mxu0
      %v5324 = vpop.f32.mrb[0].mxu0
      %v5325 = vadd.f32 %v4837, %v5324
      %v5326 = vpop.f32.mrb[0].mxu0
      %5327 = vmatprep.mubr.bf16.mxu0 %v4680
      %5328 = vmatmul.mubr.bf16.gmra.mrb[0].mxu0 %v4679
      %v5329 = vpop.f32.mrb[0].mxu0
      %v5330 = vadd.f32 %v4837, %v5329
      %v5331 = vpop.f32.mrb[0].mxu0
      %v5332 = vpop.f32.mrb[0].mxu0
      %v5333 = vadd.f32 %v4837, %v5332
      %v5334 = vpop.f32.mrb[0].mxu0
      %5335 = vdwg.mxu0
      %5336 = vmatprep.subr.bf16.mxu0 0
      %5337 = vmatpush1.bf16.msra.mxu0 %v5143
      %5338 = vmatprep.subr.bf16.mxu0 0
      %5339 = vmatpush1.bf16.msra.mxu0 %v5144
      %5340 = vmatprep.subr.bf16.mxu0 0
      %5341 = vmatpush1.bf16.msra.mxu0 %v5145
      %5342 = vmatprep.subr.bf16.mxu0 0
      %5343 = vmatpush1.bf16.msra.mxu0 %v5146
      %5344 = vmatprep.subr.bf16.mxu0 0
      %5345 = vmatpush1.bf16.msra.mxu0 %v5147
      %5346 = vmatprep.subr.bf16.mxu0 0
      %5347 = vmatpush1.bf16.msra.mxu0 %v5148
      %5348 = vmatprep.subr.bf16.mxu0 0
      %5349 = vmatpush1.bf16.msra.mxu0 %v5149
      %5350 = vmatprep.subr.bf16.mxu0 0
      %5351 = vmatpush1.bf16.msra.mxu0 %v5150
      %5352 = vmatprep.subr.bf16.mxu0 0
      %5353 = vmatpush1.bf16.msra.mxu0 %v5151
      %5354 = vmatprep.subr.bf16.mxu0 0
      %5355 = vmatpush1.bf16.msra.mxu0 %v5152
      %5356 = vmatprep.subr.bf16.mxu0 0
      %5357 = vmatpush1.bf16.msra.mxu0 %v5153
      %5358 = vmatprep.subr.bf16.mxu0 0
      %5359 = vmatpush1.bf16.msra.mxu0 %v5154
      %5360 = vmatprep.subr.bf16.mxu0 0
      %5361 = vmatpush1.bf16.msra.mxu0 %v5155
      %5362 = vmatprep.subr.bf16.mxu0 0
      %5363 = vmatpush1.bf16.msra.mxu0 %v5156
      %5364 = vmatprep.subr.bf16.mxu0 0
      %5365 = vmatpush1.bf16.msra.mxu0 %v5157
      %5366 = vmatprep.subr.bf16.mxu0 0
      %5367 = vmatpush1.bf16.msra.mxu0 %v5158
      %5368 = vmatprep.mubr.bf16.mxu0 %v4655
      %5369 = vmatmul.mubr.bf16.gmra.mrb[0].mxu0 %v4654
      %v5370 = vpop.f32.mrb[0].mxu0
      %v5371 = vadd.f32 %v5306, %v5370
      %v5372 = vpop.f32.mrb[0].mxu0
      %v5373 = vpop.f32.mrb[0].mxu0
      %v5374 = vadd.f32 %v5309, %v5373
      %v5375 = vpop.f32.mrb[0].mxu0
      %5376 = vmatprep.mubr.bf16.mxu0 %v4664
      %5377 = vmatmul.mubr.bf16.gmra.mrb[0].mxu0 %v4663
      %v5378 = vpop.f32.mrb[0].mxu0
      %v5379 = vadd.f32 %v5314, %v5378
      %v5380 = vpop.f32.mrb[0].mxu0
      %v5381 = vpop.f32.mrb[0].mxu0
      %v5382 = vadd.f32 %v5317, %v5381
      %v5383 = vpop.f32.mrb[0].mxu0
      %5384 = vmatprep.mubr.bf16.mxu0 %v4673
      %5385 = vmatmul.mubr.bf16.gmra.mrb[0].mxu0 %v4672
      %v5386 = vpop.f32.mrb[0].mxu0
      %v5387 = vadd.f32 %v5322, %v5386
      %v5388 = vpop.f32.mrb[0].mxu0
      %v5389 = vpop.f32.mrb[0].mxu0
      %v5390 = vadd.f32 %v5325, %v5389
      %v5391 = vpop.f32.mrb[0].mxu0
      %5392 = vmatprep.mubr.bf16.mxu0 %v4682
      %5393 = vmatmul.mubr.bf16.gmra.mrb[0].mxu0 %v4681
      %v5394 = vpop.f32.mrb[0].mxu0
      %v5395 = vadd.f32 %v5330, %v5394
      %v5396 = vpop.f32.mrb[0].mxu0
      %v5397 = vpop.f32.mrb[0].mxu0
      %v5398 = vadd.f32 %v5333, %v5397
      %v5399 = vpop.f32.mrb[0].mxu0
      %5400 = vdwg.mxu0
      %5401 = vmatprep.subr.bf16.mxu0 0
      %5402 = vmatpush1.bf16.msra.mxu0 %v5159
      %5403 = vmatprep.subr.bf16.mxu0 0
      %5404 = vmatpush1.bf16.msra.mxu0 %v5160
      %5405 = vmatprep.subr.bf16.mxu0 0
      %5406 = vmatpush1.bf16.msra.mxu0 %v5161
      %5407 = vmatprep.subr.bf16.mxu0 0
      %5408 = vmatpush1.bf16.msra.mxu0 %v5162
      %5409 = vmatprep.subr.bf16.mxu0 0
      %5410 = vmatpush1.bf16.msra.mxu0 %v5163
      %5411 = vmatprep.subr.bf16.mxu0 0
      %5412 = vmatpush1.bf16.msra.mxu0 %v5164
      %5413 = vmatprep.subr.bf16.mxu0 0
      %5414 = vmatpush1.bf16.msra.mxu0 %v5165
      %5415 = vmatprep.subr.bf16.mxu0 0
      %5416 = vmatpush1.bf16.msra.mxu0 %v5166
      %5417 = vmatprep.subr.bf16.mxu0 0
      %5418 = vmatpush1.bf16.msra.mxu0 %v5167
      %5419 = vmatprep.subr.bf16.mxu0 0
      %5420 = vmatpush1.bf16.msra.mxu0 %v5168
      %5421 = vmatprep.subr.bf16.mxu0 0
      %5422 = vmatpush1.bf16.msra.mxu0 %v5169
      %5423 = vmatprep.subr.bf16.mxu0 0
      %5424 = vmatpush1.bf16.msra.mxu0 %v5170
      %5425 = vmatprep.subr.bf16.mxu0 0
      %5426 = vmatpush1.bf16.msra.mxu0 %v5171
      %5427 = vmatprep.subr.bf16.mxu0 0
      %5428 = vmatpush1.bf16.msra.mxu0 %v5172
      %5429 = vmatprep.subr.bf16.mxu0 0
      %5430 = vmatpush1.bf16.msra.mxu0 %v5173
      %5431 = vmatprep.subr.bf16.mxu0 0
      %5432 = vmatpush1.bf16.msra.mxu0 %v5174
      %5433 = vmatprep.mubr.bf16.mxu0 %v4657
      %5434 = vmatmul.mubr.bf16.gmra.mrb[0].mxu0 %v4656
      %v5435 = vpop.f32.mrb[0].mxu0
      %v5436 = vadd.f32 %v5371, %v5435
      %v5437 = vpop.f32.mrb[0].mxu0
      %v5438 = vpop.f32.mrb[0].mxu0
      %v5439 = vadd.f32 %v5374, %v5438
      %v5440 = vpop.f32.mrb[0].mxu0
      %5441 = vmatprep.mubr.bf16.mxu0 %v4666
      %5442 = vmatmul.mubr.bf16.gmra.mrb[0].mxu0 %v4665
      %v5443 = vpop.f32.mrb[0].mxu0
      %v5444 = vadd.f32 %v5379, %v5443
      %v5445 = vpop.f32.mrb[0].mxu0
      %v5446 = vpop.f32.mrb[0].mxu0
      %v5447 = vadd.f32 %v5382, %v5446
      %v5448 = vpop.f32.mrb[0].mxu0
      %5449 = vmatprep.mubr.bf16.mxu0 %v4675
      %5450 = vmatmul.mubr.bf16.gmra.mrb[0].mxu0 %v4674
      %v5451 = vpop.f32.mrb[0].mxu0
      %v5452 = vadd.f32 %v5387, %v5451
      %v5453 = vpop.f32.mrb[0].mxu0
      %v5454 = vpop.f32.mrb[0].mxu0
      %v5455 = vadd.f32 %v5390, %v5454
      %v5456 = vpop.f32.mrb[0].mxu0
      %5457 = vmatprep.mubr.bf16.mxu0 %v4684
      %5458 = vmatmul.mubr.bf16.gmra.mrb[0].mxu0 %v4683
      %v5459 = vpop.f32.mrb[0].mxu0
      %v5460 = vadd.f32 %v5395, %v5459
      %v5461 = vpop.f32.mrb[0].mxu0
      %v5462 = vpop.f32.mrb[0].mxu0
      %v5463 = vadd.f32 %v5398, %v5462
      %v5464 = vpop.f32.mrb[0].mxu0
      %5465 = vdwg.mxu0
      %5466 = vmatprep.subr.bf16.mxu0 0
      %5467 = vmatpush1.bf16.msra.mxu0 %v5175
      %5468 = vmatprep.subr.bf16.mxu0 0
      %5469 = vmatpush1.bf16.msra.mxu0 %v5176
      %5470 = vmatprep.subr.bf16.mxu0 0
      %5471 = vmatpush1.bf16.msra.mxu0 %v5177
      %5472 = vmatprep.subr.bf16.mxu0 0
      %5473 = vmatpush1.bf16.msra.mxu0 %v5178
      %5474 = vmatprep.subr.bf16.mxu0 0
      %5475 = vmatpush1.bf16.msra.mxu0 %v5179
      %5476 = vmatprep.subr.bf16.mxu0 0
      %5477 = vmatpush1.bf16.msra.mxu0 %v5180
      %5478 = vmatprep.subr.bf16.mxu0 0
      %5479 = vmatpush1.bf16.msra.mxu0 %v5181
      %5480 = vmatprep.subr.bf16.mxu0 0
      %5481 = vmatpush1.bf16.msra.mxu0 %v5182
      %5482 = vmatprep.subr.bf16.mxu0 0
      %5483 = vmatpush1.bf16.msra.mxu0 %v5183
      %5484 = vmatprep.subr.bf16.mxu0 0
      %5485 = vmatpush1.bf16.msra.mxu0 %v5184
      %5486 = vmatprep.subr.bf16.mxu0 0
      %5487 = vmatpush1.bf16.msra.mxu0 %v5185
      %5488 = vmatprep.subr.bf16.mxu0 0
      %5489 = vmatpush1.bf16.msra.mxu0 %v5186
      %5490 = vmatprep.subr.bf16.mxu0 0
      %5491 = vmatpush1.bf16.msra.mxu0 %v5187
      %5492 = vmatprep.subr.bf16.mxu0 0
      %5493 = vmatpush1.bf16.msra.mxu0 %v5188
      %5494 = vmatprep.subr.bf16.mxu0 0
      %5495 = vmatpush1.bf16.msra.mxu0 %v5189
      %5496 = vmatprep.subr.bf16.mxu0 0
      %5497 = vmatpush1.bf16.msra.mxu0 %v5190
      %5498 = vmatprep.mubr.bf16.mxu0 %v4659
      %5499 = vmatmul.mubr.bf16.gmra.mrb[0].mxu0 %v4658
      %v5500 = vpop.f32.mrb[0].mxu0
      %v5501 = vadd.f32 %v5436, %v5500
      %v5502 = vpop.f32.mrb[0].mxu0
      %v5503 = vpop.f32.mrb[0].mxu0
      %v5504 = vadd.f32 %v5439, %v5503
      %v5505 = vpop.f32.mrb[0].mxu0
      %5506 = vmatprep.mubr.bf16.mxu0 %v4668
      %5507 = vmatmul.mubr.bf16.gmra.mrb[0].mxu0 %v4667
      %v5508 = vpop.f32.mrb[0].mxu0
      %v5509 = vadd.f32 %v5444, %v5508
      %v5510 = vpop.f32.mrb[0].mxu0
      %v5511 = vpop.f32.mrb[0].mxu0
      %v5512 = vadd.f32 %v5447, %v5511
      %v5513 = vpop.f32.mrb[0].mxu0
      %5514 = vmatprep.mubr.bf16.mxu0 %v4677
      %5515 = vmatmul.mubr.bf16.gmra.mrb[0].mxu0 %v4676
      %v5516 = vpop.f32.mrb[0].mxu0
      %v5517 = vadd.f32 %v5452, %v5516
      %v5518 = vpop.f32.mrb[0].mxu0
      %v5519 = vpop.f32.mrb[0].mxu0
      %v5520 = vadd.f32 %v5455, %v5519
      %v5521 = vpop.f32.mrb[0].mxu0
      %5522 = vmatprep.mubr.bf16.mxu0 %v4686
      %5523 = vmatmul.mubr.bf16.gmra.mrb[0].mxu0 %v4685
      %v5524 = vpop.f32.mrb[0].mxu0
      %v5525 = vadd.f32 %v5460, %v5524
      %v5526 = vpop.f32.mrb[0].mxu0
      %v5527 = vpop.f32.mrb[0].mxu0
      %v5528 = vadd.f32 %v5463, %v5527
      %v5529 = vpop.f32.mrb[0].mxu0
      %5530 = vdwg.mxu0
      %5531 = vmatprep.subr.bf16.mxu0 0
      %5532 = vmatpush1.bf16.msra.mxu0 %v5191
      %5533 = vmatprep.subr.bf16.mxu0 0
      %5534 = vmatpush1.bf16.msra.mxu0 %v5192
      %5535 = vmatprep.subr.bf16.mxu0 0
      %5536 = vmatpush1.bf16.msra.mxu0 %v5193
      %5537 = vmatprep.subr.bf16.mxu0 0
      %5538 = vmatpush1.bf16.msra.mxu0 %v5194
      %5539 = vmatprep.subr.bf16.mxu0 0
      %5540 = vmatpush1.bf16.msra.mxu0 %v5195
      %5541 = vmatprep.subr.bf16.mxu0 0
      %5542 = vmatpush1.bf16.msra.mxu0 %v5196
      %5543 = vmatprep.subr.bf16.mxu0 0
      %5544 = vmatpush1.bf16.msra.mxu0 %v5197
      %5545 = vmatprep.subr.bf16.mxu0 0
      %5546 = vmatpush1.bf16.msra.mxu0 %v5198
      %5547 = vmatprep.subr.bf16.mxu0 0
      %5548 = vmatpush1.bf16.msra.mxu0 0
      %5549 = vmatprep.subr.bf16.mxu0 0
      %5550 = vmatpush1.bf16.msra.mxu0 0
      %5551 = vmatprep.subr.bf16.mxu0 0
      %5552 = vmatpush1.bf16.msra.mxu0 0
      %5553 = vmatprep.subr.bf16.mxu0 0
      %5554 = vmatpush1.bf16.msra.mxu0 0
      %5555 = vmatprep.subr.bf16.mxu0 0
      %5556 = vmatpush1.bf16.msra.mxu0 0
      %5557 = vmatprep.subr.bf16.mxu0 0
      %5558 = vmatpush1.bf16.msra.mxu0 0
      %5559 = vmatprep.subr.bf16.mxu0 0
      %5560 = vmatpush1.bf16.msra.mxu0 0
      %5561 = vmatprep.subr.bf16.mxu0 0
      %5562 = vmatpush1.bf16.msra.mxu0 0
      %5563 = vmatprep.mubr.bf16.mxu0 0
      %5564 = vmatmul.mubr.bf16.gmra.mrb[0].mxu0 %v4660
      %v5565 = vpop.f32.mrb[0].mxu0
      %v5566 = vadd.f32 %v5501, %v5565
      %v5567 = vpop.f32.mrb[0].mxu0
      %v5568 = vpop.f32.mrb[0].mxu0
      %v5569 = vadd.f32 %v5504, %v5568
      %v5570 = vpop.f32.mrb[0].mxu0
      %5571 = vmatprep.mubr.bf16.mxu0 0
      %5572 = vmatmul.mubr.bf16.gmra.mrb[0].mxu0 %v4669
      %v5573 = vpop.f32.mrb[0].mxu0
      %v5574 = vadd.f32 %v5509, %v5573
      %v5575 = vpop.f32.mrb[0].mxu0
      %v5576 = vpop.f32.mrb[0].mxu0
      %v5577 = vadd.f32 %v5512, %v5576
      %v5578 = vpop.f32.mrb[0].mxu0
      %5579 = vmatprep.mubr.bf16.mxu0 0
      %5580 = vmatmul.mubr.bf16.gmra.mrb[0].mxu0 %v4678
      %v5581 = vpop.f32.mrb[0].mxu0
      %v5582 = vadd.f32 %v5517, %v5581
      %v5583 = vpop.f32.mrb[0].mxu0
      %v5584 = vpop.f32.mrb[0].mxu0
      %v5585 = vadd.f32 %v5520, %v5584
      %v5586 = vpop.f32.mrb[0].mxu0
      %5587 = vmatprep.mubr.bf16.mxu0 0
      %5588 = vmatmul.mubr.bf16.gmra.mrb[0].mxu0 %v4687
      %v5589 = vpop.f32.mrb[0].mxu0
      %v5590 = vadd.f32 %v5525, %v5589
      %v5591 = vpop.f32.mrb[0].mxu0
      %v5592 = vpop.f32.mrb[0].mxu0
      %v5593 = vadd.f32 %v5528, %v5592
      %v5594 = vpop.f32.mrb[0].mxu0
      %5595 = vdwg.mxu0
      %v5596 = vmax.f32 %v5566, 0.0
      %v5597 = vmax.f32 %v5569, 0.0
      %v5598 = vmax.f32 %v5574, 0.0
      %v5599 = vmax.f32 %v5577, 0.0
      %v5600 = vmax.f32 %v5582, 0.0
      %v5601 = vmax.f32 %v5585, 0.0
      %v5602 = vmax.f32 %v5590, 0.0
      %v5603 = vmax.f32 %v5593, 0.0
      %v5604 = vld [vmem:[%s17] sm:$0xf]
      %v5605 = vld [vmem:[%s17 + $0x4] sm:$0xf]
      %v5606 = vld [vmem:[%s17 + $0x8] sm:$0xf]
      %v5607 = vld [vmem:[%s17 + $0xc] sm:$0xf]
      %v5608 = vld [vmem:[%s17 + $0x10] sm:$0xf]
      %v5609 = vld [vmem:[%s17 + $0x14] sm:$0xf]
      %v5610 = vld [vmem:[%s17 + $0x18] sm:$0xf]
      %v5611 = vld [vmem:[%s17 + $0x1c] sm:$0xf]
      %v5612 = vld [vmem:[%s17 + $0x20] sm:$0xf]
      %v5613 = vld [vmem:[%s17 + $0x24] sm:$0xf]
      %v5614 = vld [vmem:[%s17 + $0x28] sm:$0xf]
      %v5615 = vld [vmem:[%s17 + $0x2c] sm:$0xf]
      %v5616 = vld [vmem:[%s17 + $0x30] sm:$0xf]
      %v5617 = vld [vmem:[%s17 + $0x34] sm:$0xf]
      %v5618 = vld [vmem:[%s17 + $0x38] sm:$0xf]
      %v5619 = vld [vmem:[%s17 + $0x3c] sm:$0xf]
      %v5620 = vld [vmem:[%s17 + $0x40] sm:$0xf]
      %v5621 = vld [vmem:[%s17 + $0x44] sm:$0xf]
      %v5622 = vld [vmem:[%s17 + $0x48] sm:$0xf]
      %v5623 = vld [vmem:[%s17 + $0x4c] sm:$0xf]
      %v5624 = vld [vmem:[%s17 + $0x50] sm:$0xf]
      %v5625 = vld [vmem:[%s17 + $0x54] sm:$0xf]
      %v5626 = vld [vmem:[%s17 + $0x58] sm:$0xf]
      %v5627 = vld [vmem:[%s17 + $0x5c] sm:$0xf]
      %v5628 = vld [vmem:[%s17 + $0x60] sm:$0xf]
      %v5629 = vld [vmem:[%s17 + $0x64] sm:$0xf]
      %v5630 = vld [vmem:[%s17 + $0x68] sm:$0xf]
      %v5631 = vld [vmem:[%s17 + $0x6c] sm:$0xf]
      %v5632 = vld [vmem:[%s17 + $0x70] sm:$0xf]
      %v5633 = vld [vmem:[%s17 + $0x74] sm:$0xf]
      %v5634 = vld [vmem:[%s17 + $0x78] sm:$0xf]
      %v5635 = vld [vmem:[%s17 + $0x7c] sm:$0xf]
      %v5636 = vpack.c.bf16 %v5597, %v5596
      %v5637 = vpack.c.bf16 %v5599, %v5598
      %v5638 = vpack.c.bf16 %v5601, %v5600
      %v5639 = vpack.c.bf16 %v5603, %v5602
      %v5672 = vunpack.c.l.b16 %v5604
      %v5673 = vunpack.c.l.b16 %v5605
      %v5674 = vunpack.c.l.b16 %v5606
      %v5675 = vunpack.c.l.b16 %v5607
      %v5676 = vunpack.c.l.b16 %v5608
      %v5677 = vunpack.c.l.b16 %v5609
      %v5678 = vunpack.c.l.b16 %v5610
      %v5679 = vunpack.c.l.b16 %v5611
      %v5680 = vunpack.c.l.b16 %v5612
      %v5681 = vunpack.c.l.b16 %v5613
      %v5682 = vunpack.c.l.b16 %v5614
      %v5683 = vunpack.c.l.b16 %v5615
      %v5684 = vunpack.c.l.b16 %v5616
      %v5685 = vunpack.c.l.b16 %v5617
      %v5686 = vunpack.c.l.b16 %v5618
      %v5687 = vunpack.c.l.b16 %v5619
      %v5688 = vunpack.c.l.b16 %v5620
      %v5689 = vunpack.c.l.b16 %v5621
      %v5690 = vunpack.c.l.b16 %v5622
      %v5691 = vunpack.c.l.b16 %v5623
      %v5692 = vunpack.c.l.b16 %v5624
      %v5693 = vunpack.c.l.b16 %v5625
      %v5694 = vunpack.c.l.b16 %v5626
      %v5695 = vunpack.c.l.b16 %v5627
      %v5696 = vunpack.c.l.b16 %v5628
      %v5697 = vunpack.c.l.b16 %v5629
      %v5698 = vunpack.c.l.b16 %v5630
      %v5699 = vunpack.c.l.b16 %v5631
      %v5700 = vunpack.c.l.b16 %v5632
      %v5701 = vunpack.c.l.b16 %v5633
      %v5702 = vunpack.c.l.b16 %v5634
      %v5703 = vunpack.c.l.b16 %v5635
      %v5704 = vpack.c.b16 %v5673, %v5672
      %v5705 = vpack.c.b16 %v5675, %v5674
      %v5706 = vpack.c.b16 %v5677, %v5676
      %v5707 = vpack.c.b16 %v5679, %v5678
      %v5708 = vpack.c.b16 %v5681, %v5680
      %v5709 = vpack.c.b16 %v5683, %v5682
      %v5710 = vpack.c.b16 %v5685, %v5684
      %v5711 = vpack.c.b16 %v5687, %v5686
      %v5712 = vpack.c.b16 %v5689, %v5688
      %v5713 = vpack.c.b16 %v5691, %v5690
      %v5714 = vpack.c.b16 %v5693, %v5692
      %v5715 = vpack.c.b16 %v5695, %v5694
      %v5716 = vpack.c.b16 %v5697, %v5696
      %v5717 = vpack.c.b16 %v5699, %v5698
      %v5718 = vpack.c.b16 %v5701, %v5700
      %v5719 = vpack.c.b16 %v5703, %v5702
      %v5721 = vsel %vm3064, %v5704, 0
      %v5724 = vsel %vm3064, %v5705, 0
      %v5727 = vsel %vm3064, %v5706, 0
      %v5730 = vsel %vm3064, %v5707, 0
      %v5733 = vsel %vm3064, %v5708, 0
      %v5736 = vsel %vm3064, %v5709, 0
      %v5739 = vsel %vm3064, %v5710, 0
      %v5742 = vsel %vm3064, %v5711, 0
      %v5745 = vsel %vm3064, %v5712, 0
      %v5748 = vsel %vm3064, %v5713, 0
      %v5751 = vsel %vm3064, %v5714, 0
      %v5754 = vsel %vm3064, %v5715, 0
      %v5757 = vsel %vm3064, %v5716, 0
      %v5760 = vsel %vm3064, %v5717, 0
      %v5763 = vsel %vm3064, %v5718, 0
      %v5766 = vsel %vm3064, %v5719, 0
      %5768 = vmatprep.subr.bf16.mxu0 0
      %5769 = vmatpush1.bf16.msra.mxu0 %v5636
      %5770 = vmatprep.subr.bf16.mxu0 0
      %5771 = vmatpush1.bf16.msra.mxu0 %v5637
      %5772 = vmatprep.subr.bf16.mxu0 0
      %5773 = vmatpush1.bf16.msra.mxu0 %v5638
      %5774 = vmatprep.subr.bf16.mxu0 0
      %5775 = vmatpush1.bf16.msra.mxu0 %v5639
      %5776 = vmatprep.subr.bf16.mxu0 0
      %5777 = vmatpush1.bf16.msra.mxu0 0
      %5778 = vmatprep.subr.bf16.mxu0 0
      %5779 = vmatpush1.bf16.msra.mxu0 0
      %5780 = vmatprep.subr.bf16.mxu0 0
      %5781 = vmatpush1.bf16.msra.mxu0 0
      %5782 = vmatprep.subr.bf16.mxu0 0
      %5783 = vmatpush1.bf16.msra.mxu0 0
      %5784 = vmatprep.subr.bf16.mxu0 0
      %5785 = vmatpush1.bf16.msra.mxu0 0
      %5786 = vmatprep.subr.bf16.mxu0 0
      %5787 = vmatpush1.bf16.msra.mxu0 0
      %5788 = vmatprep.subr.bf16.mxu0 0
      %5789 = vmatpush1.bf16.msra.mxu0 0
      %5790 = vmatprep.subr.bf16.mxu0 0
      %5791 = vmatpush1.bf16.msra.mxu0 0
      %5792 = vmatprep.subr.bf16.mxu0 0
      %5793 = vmatpush1.bf16.msra.mxu0 0
      %5794 = vmatprep.subr.bf16.mxu0 0
      %5795 = vmatpush1.bf16.msra.mxu0 0
      %5796 = vmatprep.subr.bf16.mxu0 0
      %5797 = vmatpush1.bf16.msra.mxu0 0
      %5798 = vmatprep.subr.bf16.mxu0 0
      %5799 = vmatpush1.bf16.msra.mxu0 0
      %5800 = vmatprep.mubr.bf16.mxu0 0
      %5801 = vmatmul.mubr.bf16.gmra.mrb[0].mxu0 %v5721
      %v5802 = vpop.f32.mrb[0].mxu0
      %v5803 = vadd.f32 0.0, %v5802
      %v5804 = vpop.f32.mrb[0].mxu0
      %v5805 = vpop.f32.mrb[0].mxu0
      %v5806 = vadd.f32 0.0, %v5805
      %v5807 = vpop.f32.mrb[0].mxu0
      %5808 = vmatprep.mubr.bf16.mxu0 0
      %5809 = vmatmul.mubr.bf16.gmra.mrb[0].mxu0 %v5724
      %v5810 = vpop.f32.mrb[0].mxu0
      %v5811 = vadd.f32 0.0, %v5810
      %v5812 = vpop.f32.mrb[0].mxu0
      %v5813 = vpop.f32.mrb[0].mxu0
      %v5814 = vadd.f32 0.0, %v5813
      %v5815 = vpop.f32.mrb[0].mxu0
      %5816 = vmatprep.mubr.bf16.mxu0 0
      %5817 = vmatmul.mubr.bf16.gmra.mrb[0].mxu0 %v5727
      %v5818 = vpop.f32.mrb[0].mxu0
      %v5819 = vadd.f32 0.0, %v5818
      %v5820 = vpop.f32.mrb[0].mxu0
      %v5821 = vpop.f32.mrb[0].mxu0
      %v5822 = vadd.f32 0.0, %v5821
      %v5823 = vpop.f32.mrb[0].mxu0
      %5824 = vmatprep.mubr.bf16.mxu0 0
      %5825 = vmatmul.mubr.bf16.gmra.mrb[0].mxu0 %v5730
      %v5826 = vpop.f32.mrb[0].mxu0
      %v5827 = vadd.f32 0.0, %v5826
      %v5828 = vpop.f32.mrb[0].mxu0
      %v5829 = vpop.f32.mrb[0].mxu0
      %v5830 = vadd.f32 0.0, %v5829
      %v5831 = vpop.f32.mrb[0].mxu0
      %5832 = vmatprep.mubr.bf16.mxu0 0
      %5833 = vmatmul.mubr.bf16.gmra.mrb[0].mxu0 %v5733
      %v5834 = vpop.f32.mrb[0].mxu0
      %v5835 = vadd.f32 0.0, %v5834
      %v5836 = vpop.f32.mrb[0].mxu0
      %v5837 = vpop.f32.mrb[0].mxu0
      %v5838 = vadd.f32 0.0, %v5837
      %v5839 = vpop.f32.mrb[0].mxu0
      %5840 = vmatprep.mubr.bf16.mxu0 0
      %5841 = vmatmul.mubr.bf16.gmra.mrb[0].mxu0 %v5736
      %v5842 = vpop.f32.mrb[0].mxu0
      %v5843 = vadd.f32 0.0, %v5842
      %v5844 = vpop.f32.mrb[0].mxu0
      %v5845 = vpop.f32.mrb[0].mxu0
      %v5846 = vadd.f32 0.0, %v5845
      %v5847 = vpop.f32.mrb[0].mxu0
      %5848 = vmatprep.mubr.bf16.mxu0 0
      %5849 = vmatmul.mubr.bf16.gmra.mrb[0].mxu0 %v5739
      %v5850 = vpop.f32.mrb[0].mxu0
      %v5851 = vadd.f32 0.0, %v5850
      %v5852 = vpop.f32.mrb[0].mxu0
      %v5853 = vpop.f32.mrb[0].mxu0
      %v5854 = vadd.f32 0.0, %v5853
      %v5855 = vpop.f32.mrb[0].mxu0
      %5856 = vmatprep.mubr.bf16.mxu0 0
      %5857 = vmatmul.mubr.bf16.gmra.mrb[0].mxu0 %v5742
      %v5858 = vpop.f32.mrb[0].mxu0
      %v5859 = vadd.f32 0.0, %v5858
      %v5860 = vpop.f32.mrb[0].mxu0
      %v5861 = vpop.f32.mrb[0].mxu0
      %v5862 = vadd.f32 0.0, %v5861
      %v5863 = vpop.f32.mrb[0].mxu0
      %5864 = vmatprep.mubr.bf16.mxu0 0
      %5865 = vmatmul.mubr.bf16.gmra.mrb[0].mxu0 %v5745
      %v5866 = vpop.f32.mrb[0].mxu0
      %v5867 = vadd.f32 0.0, %v5866
      %v5868 = vpop.f32.mrb[0].mxu0
      %v5869 = vpop.f32.mrb[0].mxu0
      %v5870 = vadd.f32 0.0, %v5869
      %v5871 = vpop.f32.mrb[0].mxu0
      %5872 = vmatprep.mubr.bf16.mxu0 0
      %5873 = vmatmul.mubr.bf16.gmra.mrb[0].mxu0 %v5748
      %v5874 = vpop.f32.mrb[0].mxu0
      %v5875 = vadd.f32 0.0, %v5874
      %v5876 = vpop.f32.mrb[0].mxu0
      %v5877 = vpop.f32.mrb[0].mxu0
      %v5878 = vadd.f32 0.0, %v5877
      %v5879 = vpop.f32.mrb[0].mxu0
      %5880 = vmatprep.mubr.bf16.mxu0 0
      %5881 = vmatmul.mubr.bf16.gmra.mrb[0].mxu0 %v5751
      %v5882 = vpop.f32.mrb[0].mxu0
      %v5883 = vadd.f32 0.0, %v5882
      %v5884 = vpop.f32.mrb[0].mxu0
      %v5885 = vpop.f32.mrb[0].mxu0
      %v5886 = vadd.f32 0.0, %v5885
      %v5887 = vpop.f32.mrb[0].mxu0
      %5888 = vmatprep.mubr.bf16.mxu0 0
      %5889 = vmatmul.mubr.bf16.gmra.mrb[0].mxu0 %v5754
      %v5890 = vpop.f32.mrb[0].mxu0
      %v5891 = vadd.f32 0.0, %v5890
      %v5892 = vpop.f32.mrb[0].mxu0
      %v5893 = vpop.f32.mrb[0].mxu0
      %v5894 = vadd.f32 0.0, %v5893
      %v5895 = vpop.f32.mrb[0].mxu0
      %5896 = vmatprep.mubr.bf16.mxu0 0
      %5897 = vmatmul.mubr.bf16.gmra.mrb[0].mxu0 %v5757
      %v5898 = vpop.f32.mrb[0].mxu0
      %v5899 = vadd.f32 0.0, %v5898
      %v5900 = vpop.f32.mrb[0].mxu0
      %v5901 = vpop.f32.mrb[0].mxu0
      %v5902 = vadd.f32 0.0, %v5901
      %v5903 = vpop.f32.mrb[0].mxu0
      %5904 = vmatprep.mubr.bf16.mxu0 0
      %5905 = vmatmul.mubr.bf16.gmra.mrb[0].mxu0 %v5760
      %v5906 = vpop.f32.mrb[0].mxu0
      %v5907 = vadd.f32 0.0, %v5906
      %v5908 = vpop.f32.mrb[0].mxu0
      %v5909 = vpop.f32.mrb[0].mxu0
      %v5910 = vadd.f32 0.0, %v5909
      %v5911 = vpop.f32.mrb[0].mxu0
      %5912 = vmatprep.mubr.bf16.mxu0 0
      %5913 = vmatmul.mubr.bf16.gmra.mrb[0].mxu0 %v5763
      %v5914 = vpop.f32.mrb[0].mxu0
      %v5915 = vadd.f32 0.0, %v5914
      %v5916 = vpop.f32.mrb[0].mxu0
      %v5917 = vpop.f32.mrb[0].mxu0
      %v5918 = vadd.f32 0.0, %v5917
      %v5919 = vpop.f32.mrb[0].mxu0
      %5920 = vmatprep.mubr.bf16.mxu0 0
      %5921 = vmatmul.mubr.bf16.gmra.mrb[0].mxu0 %v5766
      %v5922 = vpop.f32.mrb[0].mxu0
      %v5923 = vadd.f32 0.0, %v5922
      %v5924 = vpop.f32.mrb[0].mxu0
      %v5925 = vpop.f32.mrb[0].mxu0
      %v5926 = vadd.f32 0.0, %v5925
      %v5927 = vpop.f32.mrb[0].mxu0
      %5928 = vdwg.mxu0
      %5929 = vst.msk [vmem:[#allocation2] sm:$0xff] %vm3064, 0.0
      %5930 = vst.msk [vmem:[#allocation2 + $0x8] sm:$0xff] %vm3064, 0.0
      %vm5931 = vcmask 517120
      %5932 = vst.msk [vmem:[#allocation2 + $0x10] sm:$0x3] %vm5931, 0.0
      %5933 = vst.msk [vmem:[%s692] sm:$0xff] %vm3064, 0.0
      %5934 = vst.msk [vmem:[%s692 + $0x8] sm:$0xff] %vm3064, 0.0
      %5935 = vst.msk [vmem:[%s692 + $0x10] sm:$0x3] %vm5931, 0.0
      %5936 = vst.msk [vmem:[%s696] sm:$0x1] %vm3783, 0.0
      %5937 = vst.msk [vmem:[%s696 + $0x18] sm:$0x1] %vm3783, 0.0
      %5938 = vst.msk [vmem:[%s696 + $0x30] sm:$0x1] %vm3783, 0.0
      %5939 = vst.msk [vmem:[%s696 + $0x48] sm:$0x1] %vm3783, 0.0
      %5940 = vst.msk [vmem:[%s696 + $0x60] sm:$0x1] %vm3783, 0.0
      %5941 = vst.msk [vmem:[%s696 + $0x78] sm:$0x1] %vm3783, 0.0
      %5942 = vst.msk [vmem:[%s696 + $0x90] sm:$0x1] %vm3783, 0.0
      %5943 = vst.msk [vmem:[%s696 + $0xa8] sm:$0x1] %vm3783, 0.0
      %5944 = vst.msk [vmem:[%s696 + $0xc0] sm:$0x1] %vm3783, 0.0
      %5945 = vst.msk [vmem:[%s696 + $0xd8] sm:$0x1] %vm3783, 0.0
      %5946 = vst.msk [vmem:[%s696 + $0xf0] sm:$0x1] %vm3783, 0.0
      %5947 = vst.msk [vmem:[%s696 + $0x108] sm:$0x1] %vm3783, 0.0
      %5948 = vst.msk [vmem:[%s696 + $0x120] sm:$0x1] %vm3783, 0.0
      %5949 = vst.msk [vmem:[%s696 + $0x138] sm:$0x1] %vm3783, 0.0
      %5950 = vst.msk [vmem:[%s696 + $0x150] sm:$0x1] %vm3783, 0.0
      %5951 = vst.msk [vmem:[%s696 + $0x168] sm:$0x1] %vm3783, 0.0
      %5952 = vst.msk [vmem:[%s696 + $0x11] sm:$0x1] %vm3783, 0.0
      %5953 = vst.msk [vmem:[%s696 + $0x29] sm:$0x1] %vm3783, 0.0
      %5954 = vst.msk [vmem:[%s696 + $0x41] sm:$0x1] %vm3783, 0.0
      %5955 = vst.msk [vmem:[%s696 + $0x59] sm:$0x1] %vm3783, 0.0
      %5956 = vst.msk [vmem:[%s696 + $0x71] sm:$0x1] %vm3783, 0.0
      %5957 = vst.msk [vmem:[%s696 + $0x89] sm:$0x1] %vm3783, 0.0
      %5958 = vst.msk [vmem:[%s696 + $0xa1] sm:$0x1] %vm3783, 0.0
      %5959 = vst.msk [vmem:[%s696 + $0xb9] sm:$0x1] %vm3783, 0.0
      %5960 = vst.msk [vmem:[%s696 + $0xd1] sm:$0x1] %vm3783, 0.0
      %5961 = vst.msk [vmem:[%s696 + $0xe9] sm:$0x1] %vm3783, 0.0
      %5962 = vst.msk [vmem:[%s696 + $0x101] sm:$0x1] %vm3783, 0.0
      %5963 = vst.msk [vmem:[%s696 + $0x119] sm:$0x1] %vm3783, 0.0
      %5964 = vst.msk [vmem:[%s696 + $0x131] sm:$0x1] %vm3783, 0.0
      %5965 = vst.msk [vmem:[%s696 + $0x149] sm:$0x1] %vm3783, 0.0
      %5966 = vst.msk [vmem:[%s696 + $0x161] sm:$0x1] %vm3783, 0.0
      %5967 = vst.msk [vmem:[%s696 + $0x179] sm:$0x1] %vm3783, 0.0
      %5968 = vst.msk [vmem:[%s696 + $0x1] sm:$0xff] %vm3064, %v5803
      %5969 = vst.msk [vmem:[%s696 + $0x9] sm:$0xff] %vm3064, %v5806
      %5970 = vst.msk [vmem:[%s696 + $0x19] sm:$0xff] %vm3064, %v5811
      %5971 = vst.msk [vmem:[%s696 + $0x21] sm:$0xff] %vm3064, %v5814
      %5972 = vst.msk [vmem:[%s696 + $0x31] sm:$0xff] %vm3064, %v5819
      %5973 = vst.msk [vmem:[%s696 + $0x39] sm:$0xff] %vm3064, %v5822
      %5974 = vst.msk [vmem:[%s696 + $0x49] sm:$0xff] %vm3064, %v5827
      %5975 = vst.msk [vmem:[%s696 + $0x51] sm:$0xff] %vm3064, %v5830
      %5976 = vst.msk [vmem:[%s696 + $0x61] sm:$0xff] %vm3064, %v5835
      %5977 = vst.msk [vmem:[%s696 + $0x69] sm:$0xff] %vm3064, %v5838
      %5978 = vst.msk [vmem:[%s696 + $0x79] sm:$0xff] %vm3064, %v5843
      %5979 = vst.msk [vmem:[%s696 + $0x81] sm:$0xff] %vm3064, %v5846
      %5980 = vst.msk [vmem:[%s696 + $0x91] sm:$0xff] %vm3064, %v5851
      %5981 = vst.msk [vmem:[%s696 + $0x99] sm:$0xff] %vm3064, %v5854
      %5982 = vst.msk [vmem:[%s696 + $0xa9] sm:$0xff] %vm3064, %v5859
      %5983 = vst.msk [vmem:[%s696 + $0xb1] sm:$0xff] %vm3064, %v5862
      %5984 = vst.msk [vmem:[%s696 + $0xc1] sm:$0xff] %vm3064, %v5867
      %5985 = vst.msk [vmem:[%s696 + $0xc9] sm:$0xff] %vm3064, %v5870
      %5986 = vst.msk [vmem:[%s696 + $0xd9] sm:$0xff] %vm3064, %v5875
      %5987 = vst.msk [vmem:[%s696 + $0xe1] sm:$0xff] %vm3064, %v5878
      %5988 = vst.msk [vmem:[%s696 + $0xf1] sm:$0xff] %vm3064, %v5883
      %5989 = vst.msk [vmem:[%s696 + $0xf9] sm:$0xff] %vm3064, %v5886
      %5990 = vst.msk [vmem:[%s696 + $0x109] sm:$0xff] %vm3064, %v5891
      %5991 = vst.msk [vmem:[%s696 + $0x111] sm:$0xff] %vm3064, %v5894
      %5992 = vst.msk [vmem:[%s696 + $0x121] sm:$0xff] %vm3064, %v5899
      %5993 = vst.msk [vmem:[%s696 + $0x129] sm:$0xff] %vm3064, %v5902
      %5994 = vst.msk [vmem:[%s696 + $0x139] sm:$0xff] %vm3064, %v5907
      %5995 = vst.msk [vmem:[%s696 + $0x141] sm:$0xff] %vm3064, %v5910
      %5996 = vst.msk [vmem:[%s696 + $0x151] sm:$0xff] %vm3064, %v5915
      %5997 = vst.msk [vmem:[%s696 + $0x159] sm:$0xff] %vm3064, %v5918
      %5998 = vst.msk [vmem:[%s696 + $0x169] sm:$0xff] %vm3064, %v5923
      %5999 = vst.msk [vmem:[%s696 + $0x171] sm:$0xff] %vm3064, %v5926
      %v6000 = vld [vmem:[#allocation2] sm:$0xff]
      %v6001 = vld [vmem:[#allocation2 + $0x8] sm:$0xff]
      %v6002 = vld [vmem:[#allocation2 + $0x18] sm:$0xff]
      %v6003 = vld [vmem:[#allocation2 + $0x20] sm:$0xff]
      %v6004 = vld [vmem:[#allocation2 + $0x30] sm:$0xff]
      %v6005 = vld [vmem:[#allocation2 + $0x38] sm:$0xff]
      %v6006 = vld [vmem:[#allocation2 + $0x48] sm:$0xff]
      %v6007 = vld [vmem:[#allocation2 + $0x50] sm:$0xff]
      %v6008 = vld [vmem:[#allocation2 + $0x60] sm:$0xff]
      %v6009 = vld [vmem:[#allocation2 + $0x68] sm:$0xff]
      %v6010 = vld [vmem:[#allocation2 + $0x78] sm:$0xff]
      %v6011 = vld [vmem:[#allocation2 + $0x80] sm:$0xff]
      %v6012 = vld [vmem:[#allocation2 + $0x90] sm:$0xff]
      %v6013 = vld [vmem:[#allocation2 + $0x98] sm:$0xff]
      %v6014 = vld [vmem:[#allocation2 + $0xa8] sm:$0xff]
      %v6015 = vld [vmem:[#allocation2 + $0xb0] sm:$0xff]
      %v6016 = vld [vmem:[#allocation2 + $0xc0] sm:$0xff]
      %v6017 = vld [vmem:[#allocation2 + $0xc8] sm:$0xff]
      %v6018 = vld [vmem:[#allocation2 + $0xd8] sm:$0xff]
      %v6019 = vld [vmem:[#allocation2 + $0xe0] sm:$0xff]
      %v6020 = vld [vmem:[#allocation2 + $0xf0] sm:$0xff]
      %v6021 = vld [vmem:[#allocation2 + $0xf8] sm:$0xff]
      %v6022 = vld [vmem:[#allocation2 + $0x108] sm:$0xff]
      %v6023 = vld [vmem:[#allocation2 + $0x110] sm:$0xff]
      %v6024 = vld [vmem:[#allocation2 + $0x120] sm:$0xff]
      %v6025 = vld [vmem:[#allocation2 + $0x128] sm:$0xff]
      %v6026 = vld [vmem:[#allocation2 + $0x138] sm:$0xff]
      %v6027 = vld [vmem:[#allocation2 + $0x140] sm:$0xff]
      %v6028 = vld [vmem:[#allocation2 + $0x150] sm:$0xff]
      %v6029 = vld [vmem:[#allocation2 + $0x158] sm:$0xff]
      %v6030 = vld [vmem:[#allocation2 + $0x168] sm:$0xff]
      %v6031 = vld [vmem:[#allocation2 + $0x170] sm:$0xff]
      %v6032 = vpack.c.bf16 %v6001, %v6000
      %v6033 = vpack.c.bf16 %v6003, %v6002
      %v6034 = vpack.c.bf16 %v6005, %v6004
      %v6035 = vpack.c.bf16 %v6007, %v6006
      %v6036 = vpack.c.bf16 %v6009, %v6008
      %v6037 = vpack.c.bf16 %v6011, %v6010
      %v6038 = vpack.c.bf16 %v6013, %v6012
      %v6039 = vpack.c.bf16 %v6015, %v6014
      %v6040 = vpack.c.bf16 %v6017, %v6016
      %v6041 = vpack.c.bf16 %v6019, %v6018
      %v6042 = vpack.c.bf16 %v6021, %v6020
      %v6043 = vpack.c.bf16 %v6023, %v6022
      %v6044 = vpack.c.bf16 %v6025, %v6024
      %v6045 = vpack.c.bf16 %v6027, %v6026
      %v6046 = vpack.c.bf16 %v6029, %v6028
      %v6047 = vpack.c.bf16 %v6031, %v6030
      %6048 = vst.msk [vmem:[#allocation3] sm:$0xff] %vm3064, %v6032
      %6049 = vst.msk [vmem:[#allocation3 + $0x48] sm:$0xff] %vm3064, %v6033
      %6050 = vst.msk [vmem:[#allocation3 + $0x90] sm:$0xff] %vm3064, %v6034
      %6051 = vst.msk [vmem:[#allocation3 + $0xd8] sm:$0xff] %vm3064, %v6035
      %6052 = vst.msk [vmem:[#allocation3 + $0x120] sm:$0xff] %vm3064, %v6036
      %6053 = vst.msk [vmem:[#allocation3 + $0x168] sm:$0xff] %vm3064, %v6037
      %6054 = vst.msk [vmem:[#allocation3 + $0x1b0] sm:$0xff] %vm3064, %v6038
      %6055 = vst.msk [vmem:[#allocation3 + $0x1f8] sm:$0xff] %vm3064, %v6039
      %6056 = vst.msk [vmem:[#allocation3 + $0x240] sm:$0xff] %vm3064, %v6040
      %6057 = vst.msk [vmem:[#allocation3 + $0x288] sm:$0xff] %vm3064, %v6041
      %6058 = vst.msk [vmem:[#allocation3 + $0x2d0] sm:$0xff] %vm3064, %v6042
      %6059 = vst.msk [vmem:[#allocation3 + $0x318] sm:$0xff] %vm3064, %v6043
      %6060 = vst.msk [vmem:[#allocation3 + $0x360] sm:$0xff] %vm3064, %v6044
      %6061 = vst.msk [vmem:[#allocation3 + $0x3a8] sm:$0xff] %vm3064, %v6045
      %6062 = vst.msk [vmem:[#allocation3 + $0x3f0] sm:$0xff] %vm3064, %v6046
      %6063 = vst.msk [vmem:[#allocation3 + $0x438] sm:$0xff] %vm3064, %v6047
      %v6064 = vld [vmem:[#allocation2 + $0x1] sm:$0xff]
      %v6065 = vld [vmem:[#allocation2 + $0x9] sm:$0xff]
      %v6066 = vld [vmem:[#allocation2 + $0x19] sm:$0xff]
      %v6067 = vld [vmem:[#allocation2 + $0x21] sm:$0xff]
      %v6068 = vld [vmem:[#allocation2 + $0x31] sm:$0xff]
      %v6069 = vld [vmem:[#allocation2 + $0x39] sm:$0xff]
      %v6070 = vld [vmem:[#allocation2 + $0x49] sm:$0xff]
      %v6071 = vld [vmem:[#allocation2 + $0x51] sm:$0xff]
      %v6072 = vld [vmem:[#allocation2 + $0x61] sm:$0xff]
      %v6073 = vld [vmem:[#allocation2 + $0x69] sm:$0xff]
      %v6074 = vld [vmem:[#allocation2 + $0x79] sm:$0xff]
      %v6075 = vld [vmem:[#allocation2 + $0x81] sm:$0xff]
      %v6076 = vld [vmem:[#allocation2 + $0x91] sm:$0xff]
      %v6077 = vld [vmem:[#allocation2 + $0x99] sm:$0xff]
      %v6078 = vld [vmem:[#allocation2 + $0xa9] sm:$0xff]
      %v6079 = vld [vmem:[#allocation2 + $0xb1] sm:$0xff]
      %v6080 = vld [vmem:[#allocation2 + $0xc1] sm:$0xff]
      %v6081 = vld [vmem:[#allocation2 + $0xc9] sm:$0xff]
      %v6082 = vld [vmem:[#allocation2 + $0xd9] sm:$0xff]
      %v6083 = vld [vmem:[#allocation2 + $0xe1] sm:$0xff]
      %v6084 = vld [vmem:[#allocation2 + $0xf1] sm:$0xff]
      %v6085 = vld [vmem:[#allocation2 + $0xf9] sm:$0xff]
      %v6086 = vld [vmem:[#allocation2 + $0x109] sm:$0xff]
      %v6087 = vld [vmem:[#allocation2 + $0x111] sm:$0xff]
      %v6088 = vld [vmem:[#allocation2 + $0x121] sm:$0xff]
      %v6089 = vld [vmem:[#allocation2 + $0x129] sm:$0xff]
      %v6090 = vld [vmem:[#allocation2 + $0x139] sm:$0xff]
      %v6091 = vld [vmem:[#allocation2 + $0x141] sm:$0xff]
      %v6092 = vld [vmem:[#allocation2 + $0x151] sm:$0xff]
      %v6093 = vld [vmem:[#allocation2 + $0x159] sm:$0xff]
      %v6094 = vld [vmem:[#allocation2 + $0x169] sm:$0xff]
      %v6095 = vld [vmem:[#allocation2 + $0x171] sm:$0xff]
      %v6096 = vpack.c.bf16 %v6065, %v6064
      %v6097 = vpack.c.bf16 %v6067, %v6066
      %v6098 = vpack.c.bf16 %v6069, %v6068
      %v6099 = vpack.c.bf16 %v6071, %v6070
      %v6100 = vpack.c.bf16 %v6073, %v6072
      %v6101 = vpack.c.bf16 %v6075, %v6074
      %v6102 = vpack.c.bf16 %v6077, %v6076
      %v6103 = vpack.c.bf16 %v6079, %v6078
      %v6104 = vpack.c.bf16 %v6081, %v6080
      %v6105 = vpack.c.bf16 %v6083, %v6082
      %v6106 = vpack.c.bf16 %v6085, %v6084
      %v6107 = vpack.c.bf16 %v6087, %v6086
      %v6108 = vpack.c.bf16 %v6089, %v6088
      %v6109 = vpack.c.bf16 %v6091, %v6090
      %v6110 = vpack.c.bf16 %v6093, %v6092
      %v6111 = vpack.c.bf16 %v6095, %v6094
      %6128 = vrot.lane.b32.xlu0 %v6096, 64
      %v6129 = vpop.permute.xlu0 %6128
      %6130 = vrot.lane.b32.xlu0 %v6097, 64
      %v6131 = vpop.permute.xlu0 %6130
      %6132 = vrot.lane.b32.xlu0 %v6098, 64
      %v6133 = vpop.permute.xlu0 %6132
      %6134 = vrot.lane.b32.xlu0 %v6099, 64
      %v6135 = vpop.permute.xlu0 %6134
      %6136 = vrot.lane.b32.xlu0 %v6100, 64
      %v6137 = vpop.permute.xlu0 %6136
      %6138 = vrot.lane.b32.xlu0 %v6101, 64
      %v6139 = vpop.permute.xlu0 %6138
      %6140 = vrot.lane.b32.xlu0 %v6102, 64
      %v6141 = vpop.permute.xlu0 %6140
      %6142 = vrot.lane.b32.xlu0 %v6103, 64
      %v6143 = vpop.permute.xlu0 %6142
      %6144 = vrot.lane.b32.xlu0 %v6104, 64
      %v6145 = vpop.permute.xlu0 %6144
      %6146 = vrot.lane.b32.xlu0 %v6105, 64
      %v6147 = vpop.permute.xlu0 %6146
      %6148 = vrot.lane.b32.xlu0 %v6106, 64
      %v6149 = vpop.permute.xlu0 %6148
      %6150 = vrot.lane.b32.xlu0 %v6107, 64
      %v6151 = vpop.permute.xlu0 %6150
      %6152 = vrot.lane.b32.xlu0 %v6108, 64
      %v6153 = vpop.permute.xlu0 %6152
      %6154 = vrot.lane.b32.xlu0 %v6109, 64
      %v6155 = vpop.permute.xlu0 %6154
      %6156 = vrot.lane.b32.xlu0 %v6110, 64
      %v6157 = vpop.permute.xlu0 %6156
      %6158 = vrot.lane.b32.xlu0 %v6111, 64
      %v6159 = vpop.permute.xlu0 %6158
      %6176 = vst.msk [vmem:[#allocation3] sm:$0xff] %vm3834, %v6129
      %6177 = vst.msk [vmem:[#allocation3 + $0x48] sm:$0xff] %vm3834, %v6131
      %6178 = vst.msk [vmem:[#allocation3 + $0x90] sm:$0xff] %vm3834, %v6133
      %6179 = vst.msk [vmem:[#allocation3 + $0xd8] sm:$0xff] %vm3834, %v6135
      %6180 = vst.msk [vmem:[#allocation3 + $0x120] sm:$0xff] %vm3834, %v6137
      %6181 = vst.msk [vmem:[#allocation3 + $0x168] sm:$0xff] %vm3834, %v6139
      %6182 = vst.msk [vmem:[#allocation3 + $0x1b0] sm:$0xff] %vm3834, %v6141
      %6183 = vst.msk [vmem:[#allocation3 + $0x1f8] sm:$0xff] %vm3834, %v6143
      %6184 = vst.msk [vmem:[#allocation3 + $0x240] sm:$0xff] %vm3834, %v6145
      %6185 = vst.msk [vmem:[#allocation3 + $0x288] sm:$0xff] %vm3834, %v6147
      %6186 = vst.msk [vmem:[#allocation3 + $0x2d0] sm:$0xff] %vm3834, %v6149
      %6187 = vst.msk [vmem:[#allocation3 + $0x318] sm:$0xff] %vm3834, %v6151
      %6188 = vst.msk [vmem:[#allocation3 + $0x360] sm:$0xff] %vm3834, %v6153
      %6189 = vst.msk [vmem:[#allocation3 + $0x3a8] sm:$0xff] %vm3834, %v6155
      %6190 = vst.msk [vmem:[#allocation3 + $0x3f0] sm:$0xff] %vm3834, %v6157
      %6191 = vst.msk [vmem:[#allocation3 + $0x438] sm:$0xff] %vm3834, %v6159
      %v6192 = vld [vmem:[#allocation2 + $0x2] sm:$0xff]
      %v6193 = vld [vmem:[#allocation2 + $0xa] sm:$0xff]
      %v6194 = vld [vmem:[#allocation2 + $0x1a] sm:$0xff]
      %v6195 = vld [vmem:[#allocation2 + $0x22] sm:$0xff]
      %v6196 = vld [vmem:[#allocation2 + $0x32] sm:$0xff]
      %v6197 = vld [vmem:[#allocation2 + $0x3a] sm:$0xff]
      %v6198 = vld [vmem:[#allocation2 + $0x4a] sm:$0xff]
      %v6199 = vld [vmem:[#allocation2 + $0x52] sm:$0xff]
      %v6200 = vld [vmem:[#allocation2 + $0x62] sm:$0xff]
      %v6201 = vld [vmem:[#allocation2 + $0x6a] sm:$0xff]
      %v6202 = vld [vmem:[#allocation2 + $0x7a] sm:$0xff]
      %v6203 = vld [vmem:[#allocation2 + $0x82] sm:$0xff]
      %v6204 = vld [vmem:[#allocation2 + $0x92] sm:$0xff]
      %v6205 = vld [vmem:[#allocation2 + $0x9a] sm:$0xff]
      %v6206 = vld [vmem:[#allocation2 + $0xaa] sm:$0xff]
      %v6207 = vld [vmem:[#allocation2 + $0xb2] sm:$0xff]
      %v6208 = vld [vmem:[#allocation2 + $0xc2] sm:$0xff]
      %v6209 = vld [vmem:[#allocation2 + $0xca] sm:$0xff]
      %v6210 = vld [vmem:[#allocation2 + $0xda] sm:$0xff]
      %v6211 = vld [vmem:[#allocation2 + $0xe2] sm:$0xff]
      %v6212 = vld [vmem:[#allocation2 + $0xf2] sm:$0xff]
      %v6213 = vld [vmem:[#allocation2 + $0xfa] sm:$0xff]
      %v6214 = vld [vmem:[#allocation2 + $0x10a] sm:$0xff]
      %v6215 = vld [vmem:[#allocation2 + $0x112] sm:$0xff]
      %v6216 = vld [vmem:[#allocation2 + $0x122] sm:$0xff]
      %v6217 = vld [vmem:[#allocation2 + $0x12a] sm:$0xff]
      %v6218 = vld [vmem:[#allocation2 + $0x13a] sm:$0xff]
      %v6219 = vld [vmem:[#allocation2 + $0x142] sm:$0xff]
      %v6220 = vld [vmem:[#allocation2 + $0x152] sm:$0xff]
      %v6221 = vld [vmem:[#allocation2 + $0x15a] sm:$0xff]
      %v6222 = vld [vmem:[#allocation2 + $0x16a] sm:$0xff]
      %v6223 = vld [vmem:[#allocation2 + $0x172] sm:$0xff]
      %v6224 = vpack.c.bf16 %v6193, %v6192
      %v6225 = vpack.c.bf16 %v6195, %v6194
      %v6226 = vpack.c.bf16 %v6197, %v6196
      %v6227 = vpack.c.bf16 %v6199, %v6198
      %v6228 = vpack.c.bf16 %v6201, %v6200
      %v6229 = vpack.c.bf16 %v6203, %v6202
      %v6230 = vpack.c.bf16 %v6205, %v6204
      %v6231 = vpack.c.bf16 %v6207, %v6206
      %v6232 = vpack.c.bf16 %v6209, %v6208
      %v6233 = vpack.c.bf16 %v6211, %v6210
      %v6234 = vpack.c.bf16 %v6213, %v6212
      %v6235 = vpack.c.bf16 %v6215, %v6214
      %v6236 = vpack.c.bf16 %v6217, %v6216
      %v6237 = vpack.c.bf16 %v6219, %v6218
      %v6238 = vpack.c.bf16 %v6221, %v6220
      %v6239 = vpack.c.bf16 %v6223, %v6222
      %6240 = vst.msk [vmem:[#allocation3 + $0x8] sm:$0xff] %vm3064, %v6224
      %6241 = vst.msk [vmem:[#allocation3 + $0x50] sm:$0xff] %vm3064, %v6225
      %6242 = vst.msk [vmem:[#allocation3 + $0x98] sm:$0xff] %vm3064, %v6226
      %6243 = vst.msk [vmem:[#allocation3 + $0xe0] sm:$0xff] %vm3064, %v6227
      %6244 = vst.msk [vmem:[#allocation3 + $0x128] sm:$0xff] %vm3064, %v6228
      %6245 = vst.msk [vmem:[#allocation3 + $0x170] sm:$0xff] %vm3064, %v6229
      %6246 = vst.msk [vmem:[#allocation3 + $0x1b8] sm:$0xff] %vm3064, %v6230
      %6247 = vst.msk [vmem:[#allocation3 + $0x200] sm:$0xff] %vm3064, %v6231
      %6248 = vst.msk [vmem:[#allocation3 + $0x248] sm:$0xff] %vm3064, %v6232
      %6249 = vst.msk [vmem:[#allocation3 + $0x290] sm:$0xff] %vm3064, %v6233
      %6250 = vst.msk [vmem:[#allocation3 + $0x2d8] sm:$0xff] %vm3064, %v6234
      %6251 = vst.msk [vmem:[#allocation3 + $0x320] sm:$0xff] %vm3064, %v6235
      %6252 = vst.msk [vmem:[#allocation3 + $0x368] sm:$0xff] %vm3064, %v6236
      %6253 = vst.msk [vmem:[#allocation3 + $0x3b0] sm:$0xff] %vm3064, %v6237
      %6254 = vst.msk [vmem:[#allocation3 + $0x3f8] sm:$0xff] %vm3064, %v6238
      %6255 = vst.msk [vmem:[#allocation3 + $0x440] sm:$0xff] %vm3064, %v6239
      %v6256 = vld [vmem:[%s696] sm:$0xff]
      %v6257 = vld [vmem:[%s696 + $0x8] sm:$0xff]
      %v6258 = vld [vmem:[%s696 + $0x18] sm:$0xff]
      %v6259 = vld [vmem:[%s696 + $0x20] sm:$0xff]
      %v6260 = vld [vmem:[%s696 + $0x30] sm:$0xff]
      %v6261 = vld [vmem:[%s696 + $0x38] sm:$0xff]
      %v6262 = vld [vmem:[%s696 + $0x48] sm:$0xff]
      %v6263 = vld [vmem:[%s696 + $0x50] sm:$0xff]
      %v6264 = vld [vmem:[%s696 + $0x60] sm:$0xff]
      %v6265 = vld [vmem:[%s696 + $0x68] sm:$0xff]
      %v6266 = vld [vmem:[%s696 + $0x78] sm:$0xff]
      %v6267 = vld [vmem:[%s696 + $0x80] sm:$0xff]
      %v6268 = vld [vmem:[%s696 + $0x90] sm:$0xff]
      %v6269 = vld [vmem:[%s696 + $0x98] sm:$0xff]
      %v6270 = vld [vmem:[%s696 + $0xa8] sm:$0xff]
      %v6271 = vld [vmem:[%s696 + $0xb0] sm:$0xff]
      %v6272 = vld [vmem:[%s696 + $0xc0] sm:$0xff]
      %v6273 = vld [vmem:[%s696 + $0xc8] sm:$0xff]
      %v6274 = vld [vmem:[%s696 + $0xd8] sm:$0xff]
      %v6275 = vld [vmem:[%s696 + $0xe0] sm:$0xff]
      %v6276 = vld [vmem:[%s696 + $0xf0] sm:$0xff]
      %v6277 = vld [vmem:[%s696 + $0xf8] sm:$0xff]
      %v6278 = vld [vmem:[%s696 + $0x108] sm:$0xff]
      %v6279 = vld [vmem:[%s696 + $0x110] sm:$0xff]
      %v6280 = vld [vmem:[%s696 + $0x120] sm:$0xff]
      %v6281 = vld [vmem:[%s696 + $0x128] sm:$0xff]
      %v6282 = vld [vmem:[%s696 + $0x138] sm:$0xff]
      %v6283 = vld [vmem:[%s696 + $0x140] sm:$0xff]
      %v6284 = vld [vmem:[%s696 + $0x150] sm:$0xff]
      %v6285 = vld [vmem:[%s696 + $0x158] sm:$0xff]
      %v6286 = vld [vmem:[%s696 + $0x168] sm:$0xff]
      %v6287 = vld [vmem:[%s696 + $0x170] sm:$0xff]
      %v6288 = vpack.c.bf16 %v6257, %v6256
      %v6289 = vpack.c.bf16 %v6259, %v6258
      %v6290 = vpack.c.bf16 %v6261, %v6260
      %v6291 = vpack.c.bf16 %v6263, %v6262
      %v6292 = vpack.c.bf16 %v6265, %v6264
      %v6293 = vpack.c.bf16 %v6267, %v6266
      %v6294 = vpack.c.bf16 %v6269, %v6268
      %v6295 = vpack.c.bf16 %v6271, %v6270
      %v6296 = vpack.c.bf16 %v6273, %v6272
      %v6297 = vpack.c.bf16 %v6275, %v6274
      %v6298 = vpack.c.bf16 %v6277, %v6276
      %v6299 = vpack.c.bf16 %v6279, %v6278
      %v6300 = vpack.c.bf16 %v6281, %v6280
      %v6301 = vpack.c.bf16 %v6283, %v6282
      %v6302 = vpack.c.bf16 %v6285, %v6284
      %v6303 = vpack.c.bf16 %v6287, %v6286
      %6320 = vrot.lane.b32.xlu0 %v6288, 64
      %v6321 = vpop.permute.xlu0 %6320
      %6322 = vrot.lane.b32.xlu0 %v6289, 64
      %v6323 = vpop.permute.xlu0 %6322
      %6324 = vrot.lane.b32.xlu0 %v6290, 64
      %v6325 = vpop.permute.xlu0 %6324
      %6326 = vrot.lane.b32.xlu0 %v6291, 64
      %v6327 = vpop.permute.xlu0 %6326
      %6328 = vrot.lane.b32.xlu0 %v6292, 64
      %v6329 = vpop.permute.xlu0 %6328
      %6330 = vrot.lane.b32.xlu0 %v6293, 64
      %v6331 = vpop.permute.xlu0 %6330
      %6332 = vrot.lane.b32.xlu0 %v6294, 64
      %v6333 = vpop.permute.xlu0 %6332
      %6334 = vrot.lane.b32.xlu0 %v6295, 64
      %v6335 = vpop.permute.xlu0 %6334
      %6336 = vrot.lane.b32.xlu0 %v6296, 64
      %v6337 = vpop.permute.xlu0 %6336
      %6338 = vrot.lane.b32.xlu0 %v6297, 64
      %v6339 = vpop.permute.xlu0 %6338
      %6340 = vrot.lane.b32.xlu0 %v6298, 64
      %v6341 = vpop.permute.xlu0 %6340
      %6342 = vrot.lane.b32.xlu0 %v6299, 64
      %v6343 = vpop.permute.xlu0 %6342
      %6344 = vrot.lane.b32.xlu0 %v6300, 64
      %v6345 = vpop.permute.xlu0 %6344
      %6346 = vrot.lane.b32.xlu0 %v6301, 64
      %v6347 = vpop.permute.xlu0 %6346
      %6348 = vrot.lane.b32.xlu0 %v6302, 64
      %v6349 = vpop.permute.xlu0 %6348
      %6350 = vrot.lane.b32.xlu0 %v6303, 64
      %v6351 = vpop.permute.xlu0 %6350
      %6368 = vst.msk [vmem:[#allocation3 + $0x8] sm:$0xff] %vm3834, %v6321
      %6369 = vst.msk [vmem:[#allocation3 + $0x50] sm:$0xff] %vm3834, %v6323
      %6370 = vst.msk [vmem:[#allocation3 + $0x98] sm:$0xff] %vm3834, %v6325
      %6371 = vst.msk [vmem:[#allocation3 + $0xe0] sm:$0xff] %vm3834, %v6327
      %6372 = vst.msk [vmem:[#allocation3 + $0x128] sm:$0xff] %vm3834, %v6329
      %6373 = vst.msk [vmem:[#allocation3 + $0x170] sm:$0xff] %vm3834, %v6331
      %6374 = vst.msk [vmem:[#allocation3 + $0x1b8] sm:$0xff] %vm3834, %v6333
      %6375 = vst.msk [vmem:[#allocation3 + $0x200] sm:$0xff] %vm3834, %v6335
      %6376 = vst.msk [vmem:[#allocation3 + $0x248] sm:$0xff] %vm3834, %v6337
      %6377 = vst.msk [vmem:[#allocation3 + $0x290] sm:$0xff] %vm3834, %v6339
      %6378 = vst.msk [vmem:[#allocation3 + $0x2d8] sm:$0xff] %vm3834, %v6341
      %6379 = vst.msk [vmem:[#allocation3 + $0x320] sm:$0xff] %vm3834, %v6343
      %6380 = vst.msk [vmem:[#allocation3 + $0x368] sm:$0xff] %vm3834, %v6345
      %6381 = vst.msk [vmem:[#allocation3 + $0x3b0] sm:$0xff] %vm3834, %v6347
      %6382 = vst.msk [vmem:[#allocation3 + $0x3f8] sm:$0xff] %vm3834, %v6349
      %6383 = vst.msk [vmem:[#allocation3 + $0x440] sm:$0xff] %vm3834, %v6351
      %v6384 = vld [vmem:[%s696 + $0x1] sm:$0xff]
      %v6385 = vld [vmem:[%s696 + $0x9] sm:$0xff]
      %v6386 = vld [vmem:[%s696 + $0x19] sm:$0xff]
      %v6387 = vld [vmem:[%s696 + $0x21] sm:$0xff]
      %v6388 = vld [vmem:[%s696 + $0x31] sm:$0xff]
      %v6389 = vld [vmem:[%s696 + $0x39] sm:$0xff]
      %v6390 = vld [vmem:[%s696 + $0x49] sm:$0xff]
      %v6391 = vld [vmem:[%s696 + $0x51] sm:$0xff]
      %v6392 = vld [vmem:[%s696 + $0x61] sm:$0xff]
      %v6393 = vld [vmem:[%s696 + $0x69] sm:$0xff]
      %v6394 = vld [vmem:[%s696 + $0x79] sm:$0xff]
      %v6395 = vld [vmem:[%s696 + $0x81] sm:$0xff]
      %v6396 = vld [vmem:[%s696 + $0x91] sm:$0xff]
      %v6397 = vld [vmem:[%s696 + $0x99] sm:$0xff]
      %v6398 = vld [vmem:[%s696 + $0xa9] sm:$0xff]
      %v6399 = vld [vmem:[%s696 + $0xb1] sm:$0xff]
      %v6400 = vld [vmem:[%s696 + $0xc1] sm:$0xff]
      %v6401 = vld [vmem:[%s696 + $0xc9] sm:$0xff]
      %v6402 = vld [vmem:[%s696 + $0xd9] sm:$0xff]
      %v6403 = vld [vmem:[%s696 + $0xe1] sm:$0xff]
      %v6404 = vld [vmem:[%s696 + $0xf1] sm:$0xff]
      %v6405 = vld [vmem:[%s696 + $0xf9] sm:$0xff]
      %v6406 = vld [vmem:[%s696 + $0x109] sm:$0xff]
      %v6407 = vld [vmem:[%s696 + $0x111] sm:$0xff]
      %v6408 = vld [vmem:[%s696 + $0x121] sm:$0xff]
      %v6409 = vld [vmem:[%s696 + $0x129] sm:$0xff]
      %v6410 = vld [vmem:[%s696 + $0x139] sm:$0xff]
      %v6411 = vld [vmem:[%s696 + $0x141] sm:$0xff]
      %v6412 = vld [vmem:[%s696 + $0x151] sm:$0xff]
      %v6413 = vld [vmem:[%s696 + $0x159] sm:$0xff]
      %v6414 = vld [vmem:[%s696 + $0x169] sm:$0xff]
      %v6415 = vld [vmem:[%s696 + $0x171] sm:$0xff]
      %v6416 = vpack.c.bf16 %v6385, %v6384
      %v6417 = vpack.c.bf16 %v6387, %v6386
      %v6418 = vpack.c.bf16 %v6389, %v6388
      %v6419 = vpack.c.bf16 %v6391, %v6390
      %v6420 = vpack.c.bf16 %v6393, %v6392
      %v6421 = vpack.c.bf16 %v6395, %v6394
      %v6422 = vpack.c.bf16 %v6397, %v6396
      %v6423 = vpack.c.bf16 %v6399, %v6398
      %v6424 = vpack.c.bf16 %v6401, %v6400
      %v6425 = vpack.c.bf16 %v6403, %v6402
      %v6426 = vpack.c.bf16 %v6405, %v6404
      %v6427 = vpack.c.bf16 %v6407, %v6406
      %v6428 = vpack.c.bf16 %v6409, %v6408
      %v6429 = vpack.c.bf16 %v6411, %v6410
      %v6430 = vpack.c.bf16 %v6413, %v6412
      %v6431 = vpack.c.bf16 %v6415, %v6414
      %6432 = vst.msk [vmem:[#allocation3 + $0x10] sm:$0xff] %vm3064, %v6416
      %6433 = vst.msk [vmem:[#allocation3 + $0x58] sm:$0xff] %vm3064, %v6417
      %6434 = vst.msk [vmem:[#allocation3 + $0xa0] sm:$0xff] %vm3064, %v6418
      %6435 = vst.msk [vmem:[#allocation3 + $0xe8] sm:$0xff] %vm3064, %v6419
      %6436 = vst.msk [vmem:[#allocation3 + $0x130] sm:$0xff] %vm3064, %v6420
      %6437 = vst.msk [vmem:[#allocation3 + $0x178] sm:$0xff] %vm3064, %v6421
      %6438 = vst.msk [vmem:[#allocation3 + $0x1c0] sm:$0xff] %vm3064, %v6422
      %6439 = vst.msk [vmem:[#allocation3 + $0x208] sm:$0xff] %vm3064, %v6423
      %6440 = vst.msk [vmem:[#allocation3 + $0x250] sm:$0xff] %vm3064, %v6424
      %6441 = vst.msk [vmem:[#allocation3 + $0x298] sm:$0xff] %vm3064, %v6425
      %6442 = vst.msk [vmem:[#allocation3 + $0x2e0] sm:$0xff] %vm3064, %v6426
      %6443 = vst.msk [vmem:[#allocation3 + $0x328] sm:$0xff] %vm3064, %v6427
      %6444 = vst.msk [vmem:[#allocation3 + $0x370] sm:$0xff] %vm3064, %v6428
      %6445 = vst.msk [vmem:[#allocation3 + $0x3b8] sm:$0xff] %vm3064, %v6429
      %6446 = vst.msk [vmem:[#allocation3 + $0x400] sm:$0xff] %vm3064, %v6430
      %6447 = vst.msk [vmem:[#allocation3 + $0x448] sm:$0xff] %vm3064, %v6431
      %v6448 = vld [vmem:[%s696 + $0x2] sm:$0xff]
      %v6449 = vld [vmem:[%s696 + $0xa] sm:$0xff]
      %v6450 = vld [vmem:[%s696 + $0x1a] sm:$0xff]
      %v6451 = vld [vmem:[%s696 + $0x22] sm:$0xff]
      %v6452 = vld [vmem:[%s696 + $0x32] sm:$0xff]
      %v6453 = vld [vmem:[%s696 + $0x3a] sm:$0xff]
      %v6454 = vld [vmem:[%s696 + $0x4a] sm:$0xff]
      %v6455 = vld [vmem:[%s696 + $0x52] sm:$0xff]
      %v6456 = vld [vmem:[%s696 + $0x62] sm:$0xff]
      %v6457 = vld [vmem:[%s696 + $0x6a] sm:$0xff]
      %v6458 = vld [vmem:[%s696 + $0x7a] sm:$0xff]
      %v6459 = vld [vmem:[%s696 + $0x82] sm:$0xff]
      %v6460 = vld [vmem:[%s696 + $0x92] sm:$0xff]
      %v6461 = vld [vmem:[%s696 + $0x9a] sm:$0xff]
      %v6462 = vld [vmem:[%s696 + $0xaa] sm:$0xff]
      %v6463 = vld [vmem:[%s696 + $0xb2] sm:$0xff]
      %v6464 = vld [vmem:[%s696 + $0xc2] sm:$0xff]
      %v6465 = vld [vmem:[%s696 + $0xca] sm:$0xff]
      %v6466 = vld [vmem:[%s696 + $0xda] sm:$0xff]
      %v6467 = vld [vmem:[%s696 + $0xe2] sm:$0xff]
      %v6468 = vld [vmem:[%s696 + $0xf2] sm:$0xff]
      %v6469 = vld [vmem:[%s696 + $0xfa] sm:$0xff]
      %v6470 = vld [vmem:[%s696 + $0x10a] sm:$0xff]
      %v6471 = vld [vmem:[%s696 + $0x112] sm:$0xff]
      %v6472 = vld [vmem:[%s696 + $0x122] sm:$0xff]
      %v6473 = vld [vmem:[%s696 + $0x12a] sm:$0xff]
      %v6474 = vld [vmem:[%s696 + $0x13a] sm:$0xff]
      %v6475 = vld [vmem:[%s696 + $0x142] sm:$0xff]
      %v6476 = vld [vmem:[%s696 + $0x152] sm:$0xff]
      %v6477 = vld [vmem:[%s696 + $0x15a] sm:$0xff]
      %v6478 = vld [vmem:[%s696 + $0x16a] sm:$0xff]
      %v6479 = vld [vmem:[%s696 + $0x172] sm:$0xff]
      %v6480 = vpack.c.bf16 %v6449, %v6448
      %v6481 = vpack.c.bf16 %v6451, %v6450
      %v6482 = vpack.c.bf16 %v6453, %v6452
      %v6483 = vpack.c.bf16 %v6455, %v6454
      %v6484 = vpack.c.bf16 %v6457, %v6456
      %v6485 = vpack.c.bf16 %v6459, %v6458
      %v6486 = vpack.c.bf16 %v6461, %v6460
      %v6487 = vpack.c.bf16 %v6463, %v6462
      %v6488 = vpack.c.bf16 %v6465, %v6464
      %v6489 = vpack.c.bf16 %v6467, %v6466
      %v6490 = vpack.c.bf16 %v6469, %v6468
      %v6491 = vpack.c.bf16 %v6471, %v6470
      %v6492 = vpack.c.bf16 %v6473, %v6472
      %v6493 = vpack.c.bf16 %v6475, %v6474
      %v6494 = vpack.c.bf16 %v6477, %v6476
      %v6495 = vpack.c.bf16 %v6479, %v6478
      %6512 = vrot.lane.b32.xlu0 %v6480, 64
      %v6513 = vpop.permute.xlu0 %6512
      %6514 = vrot.lane.b32.xlu0 %v6481, 64
      %v6515 = vpop.permute.xlu0 %6514
      %6516 = vrot.lane.b32.xlu0 %v6482, 64
      %v6517 = vpop.permute.xlu0 %6516
      %6518 = vrot.lane.b32.xlu0 %v6483, 64
      %v6519 = vpop.permute.xlu0 %6518
      %6520 = vrot.lane.b32.xlu0 %v6484, 64
      %v6521 = vpop.permute.xlu0 %6520
      %6522 = vrot.lane.b32.xlu0 %v6485, 64
      %v6523 = vpop.permute.xlu0 %6522
      %6524 = vrot.lane.b32.xlu0 %v6486, 64
      %v6525 = vpop.permute.xlu0 %6524
      %6526 = vrot.lane.b32.xlu0 %v6487, 64
      %v6527 = vpop.permute.xlu0 %6526
      %6528 = vrot.lane.b32.xlu0 %v6488, 64
      %v6529 = vpop.permute.xlu0 %6528
      %6530 = vrot.lane.b32.xlu0 %v6489, 64
      %v6531 = vpop.permute.xlu0 %6530
      %6532 = vrot.lane.b32.xlu0 %v6490, 64
      %v6533 = vpop.permute.xlu0 %6532
      %6534 = vrot.lane.b32.xlu0 %v6491, 64
      %v6535 = vpop.permute.xlu0 %6534
      %6536 = vrot.lane.b32.xlu0 %v6492, 64
      %v6537 = vpop.permute.xlu0 %6536
      %6538 = vrot.lane.b32.xlu0 %v6493, 64
      %v6539 = vpop.permute.xlu0 %6538
      %6540 = vrot.lane.b32.xlu0 %v6494, 64
      %v6541 = vpop.permute.xlu0 %6540
      %6542 = vrot.lane.b32.xlu0 %v6495, 64
      %v6543 = vpop.permute.xlu0 %6542
      %6560 = vst.msk [vmem:[#allocation3 + $0x10] sm:$0xff] %vm3834, %v6513
      %6561 = vst.msk [vmem:[#allocation3 + $0x58] sm:$0xff] %vm3834, %v6515
      %6562 = vst.msk [vmem:[#allocation3 + $0xa0] sm:$0xff] %vm3834, %v6517
      %6563 = vst.msk [vmem:[#allocation3 + $0xe8] sm:$0xff] %vm3834, %v6519
      %6564 = vst.msk [vmem:[#allocation3 + $0x130] sm:$0xff] %vm3834, %v6521
      %6565 = vst.msk [vmem:[#allocation3 + $0x178] sm:$0xff] %vm3834, %v6523
      %6566 = vst.msk [vmem:[#allocation3 + $0x1c0] sm:$0xff] %vm3834, %v6525
      %6567 = vst.msk [vmem:[#allocation3 + $0x208] sm:$0xff] %vm3834, %v6527
      %6568 = vst.msk [vmem:[#allocation3 + $0x250] sm:$0xff] %vm3834, %v6529
      %6569 = vst.msk [vmem:[#allocation3 + $0x298] sm:$0xff] %vm3834, %v6531
      %6570 = vst.msk [vmem:[#allocation3 + $0x2e0] sm:$0xff] %vm3834, %v6533
      %6571 = vst.msk [vmem:[#allocation3 + $0x328] sm:$0xff] %vm3834, %v6535
      %6572 = vst.msk [vmem:[#allocation3 + $0x370] sm:$0xff] %vm3834, %v6537
      %6573 = vst.msk [vmem:[#allocation3 + $0x3b8] sm:$0xff] %vm3834, %v6539
      %6574 = vst.msk [vmem:[#allocation3 + $0x400] sm:$0xff] %vm3834, %v6541
      %6575 = vst.msk [vmem:[#allocation3 + $0x448] sm:$0xff] %vm3834, %v6543
      %v6576 = vld [vmem:[%s1503] sm:$0xff]
      %v6577 = vld [vmem:[%s1503 + $0x8] sm:$0xff]
      %v6578 = vld [vmem:[%s1503 + $0x18] sm:$0xff]
      %v6579 = vld [vmem:[%s1503 + $0x20] sm:$0xff]
      %v6580 = vld [vmem:[%s1503 + $0x30] sm:$0xff]
      %v6581 = vld [vmem:[%s1503 + $0x38] sm:$0xff]
      %v6582 = vld [vmem:[%s1503 + $0x48] sm:$0xff]
      %v6583 = vld [vmem:[%s1503 + $0x50] sm:$0xff]
      %v6584 = vld [vmem:[%s1503 + $0x60] sm:$0xff]
      %v6585 = vld [vmem:[%s1503 + $0x68] sm:$0xff]
      %v6586 = vld [vmem:[%s1503 + $0x78] sm:$0xff]
      %v6587 = vld [vmem:[%s1503 + $0x80] sm:$0xff]
      %v6588 = vld [vmem:[%s1503 + $0x90] sm:$0xff]
      %v6589 = vld [vmem:[%s1503 + $0x98] sm:$0xff]
      %v6590 = vld [vmem:[%s1503 + $0xa8] sm:$0xff]
      %v6591 = vld [vmem:[%s1503 + $0xb0] sm:$0xff]
      %v6592 = vld [vmem:[%s1503 + $0xc0] sm:$0xff]
      %v6593 = vld [vmem:[%s1503 + $0xc8] sm:$0xff]
      %v6594 = vld [vmem:[%s1503 + $0xd8] sm:$0xff]
      %v6595 = vld [vmem:[%s1503 + $0xe0] sm:$0xff]
      %v6596 = vld [vmem:[%s1503 + $0xf0] sm:$0xff]
      %v6597 = vld [vmem:[%s1503 + $0xf8] sm:$0xff]
      %v6598 = vld [vmem:[%s1503 + $0x108] sm:$0xff]
      %v6599 = vld [vmem:[%s1503 + $0x110] sm:$0xff]
      %v6600 = vld [vmem:[%s1503 + $0x120] sm:$0xff]
      %v6601 = vld [vmem:[%s1503 + $0x128] sm:$0xff]
      %v6602 = vld [vmem:[%s1503 + $0x138] sm:$0xff]
      %v6603 = vld [vmem:[%s1503 + $0x140] sm:$0xff]
      %v6604 = vld [vmem:[%s1503 + $0x150] sm:$0xff]
      %v6605 = vld [vmem:[%s1503 + $0x158] sm:$0xff]
      %v6606 = vld [vmem:[%s1503 + $0x168] sm:$0xff]
      %v6607 = vld [vmem:[%s1503 + $0x170] sm:$0xff]
      %v6608 = vpack.c.bf16 %v6577, %v6576
      %v6609 = vpack.c.bf16 %v6579, %v6578
      %v6610 = vpack.c.bf16 %v6581, %v6580
      %v6611 = vpack.c.bf16 %v6583, %v6582
      %v6612 = vpack.c.bf16 %v6585, %v6584
      %v6613 = vpack.c.bf16 %v6587, %v6586
      %v6614 = vpack.c.bf16 %v6589, %v6588
      %v6615 = vpack.c.bf16 %v6591, %v6590
      %v6616 = vpack.c.bf16 %v6593, %v6592
      %v6617 = vpack.c.bf16 %v6595, %v6594
      %v6618 = vpack.c.bf16 %v6597, %v6596
      %v6619 = vpack.c.bf16 %v6599, %v6598
      %v6620 = vpack.c.bf16 %v6601, %v6600
      %v6621 = vpack.c.bf16 %v6603, %v6602
      %v6622 = vpack.c.bf16 %v6605, %v6604
      %v6623 = vpack.c.bf16 %v6607, %v6606
      %6624 = vst.msk [vmem:[#allocation3 + $0x18] sm:$0xff] %vm3064, %v6608
      %6625 = vst.msk [vmem:[#allocation3 + $0x60] sm:$0xff] %vm3064, %v6609
      %6626 = vst.msk [vmem:[#allocation3 + $0xa8] sm:$0xff] %vm3064, %v6610
      %6627 = vst.msk [vmem:[#allocation3 + $0xf0] sm:$0xff] %vm3064, %v6611
      %6628 = vst.msk [vmem:[#allocation3 + $0x138] sm:$0xff] %vm3064, %v6612
      %6629 = vst.msk [vmem:[#allocation3 + $0x180] sm:$0xff] %vm3064, %v6613
      %6630 = vst.msk [vmem:[#allocation3 + $0x1c8] sm:$0xff] %vm3064, %v6614
      %6631 = vst.msk [vmem:[#allocation3 + $0x210] sm:$0xff] %vm3064, %v6615
      %6632 = vst.msk [vmem:[#allocation3 + $0x258] sm:$0xff] %vm3064, %v6616
      %6633 = vst.msk [vmem:[#allocation3 + $0x2a0] sm:$0xff] %vm3064, %v6617
      %6634 = vst.msk [vmem:[#allocation3 + $0x2e8] sm:$0xff] %vm3064, %v6618
      %6635 = vst.msk [vmem:[#allocation3 + $0x330] sm:$0xff] %vm3064, %v6619
      %6636 = vst.msk [vmem:[#allocation3 + $0x378] sm:$0xff] %vm3064, %v6620
      %6637 = vst.msk [vmem:[#allocation3 + $0x3c0] sm:$0xff] %vm3064, %v6621
      %6638 = vst.msk [vmem:[#allocation3 + $0x408] sm:$0xff] %vm3064, %v6622
      %6639 = vst.msk [vmem:[#allocation3 + $0x450] sm:$0xff] %vm3064, %v6623
      %v6640 = vld [vmem:[%s1503 + $0x1] sm:$0xff]
      %v6641 = vld [vmem:[%s1503 + $0x9] sm:$0xff]
      %v6642 = vld [vmem:[%s1503 + $0x19] sm:$0xff]
      %v6643 = vld [vmem:[%s1503 + $0x21] sm:$0xff]
      %v6644 = vld [vmem:[%s1503 + $0x31] sm:$0xff]
      %v6645 = vld [vmem:[%s1503 + $0x39] sm:$0xff]
      %v6646 = vld [vmem:[%s1503 + $0x49] sm:$0xff]
      %v6647 = vld [vmem:[%s1503 + $0x51] sm:$0xff]
      %v6648 = vld [vmem:[%s1503 + $0x61] sm:$0xff]
      %v6649 = vld [vmem:[%s1503 + $0x69] sm:$0xff]
      %v6650 = vld [vmem:[%s1503 + $0x79] sm:$0xff]
      %v6651 = vld [vmem:[%s1503 + $0x81] sm:$0xff]
      %v6652 = vld [vmem:[%s1503 + $0x91] sm:$0xff]
      %v6653 = vld [vmem:[%s1503 + $0x99] sm:$0xff]
      %v6654 = vld [vmem:[%s1503 + $0xa9] sm:$0xff]
      %v6655 = vld [vmem:[%s1503 + $0xb1] sm:$0xff]
      %v6656 = vld [vmem:[%s1503 + $0xc1] sm:$0xff]
      %v6657 = vld [vmem:[%s1503 + $0xc9] sm:$0xff]
      %v6658 = vld [vmem:[%s1503 + $0xd9] sm:$0xff]
      %v6659 = vld [vmem:[%s1503 + $0xe1] sm:$0xff]
      %v6660 = vld [vmem:[%s1503 + $0xf1] sm:$0xff]
      %v6661 = vld [vmem:[%s1503 + $0xf9] sm:$0xff]
      %v6662 = vld [vmem:[%s1503 + $0x109] sm:$0xff]
      %v6663 = vld [vmem:[%s1503 + $0x111] sm:$0xff]
      %v6664 = vld [vmem:[%s1503 + $0x121] sm:$0xff]
      %v6665 = vld [vmem:[%s1503 + $0x129] sm:$0xff]
      %v6666 = vld [vmem:[%s1503 + $0x139] sm:$0xff]
      %v6667 = vld [vmem:[%s1503 + $0x141] sm:$0xff]
      %v6668 = vld [vmem:[%s1503 + $0x151] sm:$0xff]
      %v6669 = vld [vmem:[%s1503 + $0x159] sm:$0xff]
      %v6670 = vld [vmem:[%s1503 + $0x169] sm:$0xff]
      %v6671 = vld [vmem:[%s1503 + $0x171] sm:$0xff]
      %v6672 = vpack.c.bf16 %v6641, %v6640
      %v6673 = vpack.c.bf16 %v6643, %v6642
      %v6674 = vpack.c.bf16 %v6645, %v6644
      %v6675 = vpack.c.bf16 %v6647, %v6646
      %v6676 = vpack.c.bf16 %v6649, %v6648
      %v6677 = vpack.c.bf16 %v6651, %v6650
      %v6678 = vpack.c.bf16 %v6653, %v6652
      %v6679 = vpack.c.bf16 %v6655, %v6654
      %v6680 = vpack.c.bf16 %v6657, %v6656
      %v6681 = vpack.c.bf16 %v6659, %v6658
      %v6682 = vpack.c.bf16 %v6661, %v6660
      %v6683 = vpack.c.bf16 %v6663, %v6662
      %v6684 = vpack.c.bf16 %v6665, %v6664
      %v6685 = vpack.c.bf16 %v6667, %v6666
      %v6686 = vpack.c.bf16 %v6669, %v6668
      %v6687 = vpack.c.bf16 %v6671, %v6670
      %6704 = vrot.lane.b32.xlu0 %v6672, 64
      %v6705 = vpop.permute.xlu0 %6704
      %6706 = vrot.lane.b32.xlu0 %v6673, 64
      %v6707 = vpop.permute.xlu0 %6706
      %6708 = vrot.lane.b32.xlu0 %v6674, 64
      %v6709 = vpop.permute.xlu0 %6708
      %6710 = vrot.lane.b32.xlu0 %v6675, 64
      %v6711 = vpop.permute.xlu0 %6710
      %6712 = vrot.lane.b32.xlu0 %v6676, 64
      %v6713 = vpop.permute.xlu0 %6712
      %6714 = vrot.lane.b32.xlu0 %v6677, 64
      %v6715 = vpop.permute.xlu0 %6714
      %6716 = vrot.lane.b32.xlu0 %v6678, 64
      %v6717 = vpop.permute.xlu0 %6716
      %6718 = vrot.lane.b32.xlu0 %v6679, 64
      %v6719 = vpop.permute.xlu0 %6718
      %6720 = vrot.lane.b32.xlu0 %v6680, 64
      %v6721 = vpop.permute.xlu0 %6720
      %6722 = vrot.lane.b32.xlu0 %v6681, 64
      %v6723 = vpop.permute.xlu0 %6722
      %6724 = vrot.lane.b32.xlu0 %v6682, 64
      %v6725 = vpop.permute.xlu0 %6724
      %6726 = vrot.lane.b32.xlu0 %v6683, 64
      %v6727 = vpop.permute.xlu0 %6726
      %6728 = vrot.lane.b32.xlu0 %v6684, 64
      %v6729 = vpop.permute.xlu0 %6728
      %6730 = vrot.lane.b32.xlu0 %v6685, 64
      %v6731 = vpop.permute.xlu0 %6730
      %6732 = vrot.lane.b32.xlu0 %v6686, 64
      %v6733 = vpop.permute.xlu0 %6732
      %6734 = vrot.lane.b32.xlu0 %v6687, 64
      %v6735 = vpop.permute.xlu0 %6734
      %6752 = vst.msk [vmem:[#allocation3 + $0x18] sm:$0xff] %vm3834, %v6705
      %6753 = vst.msk [vmem:[#allocation3 + $0x60] sm:$0xff] %vm3834, %v6707
      %6754 = vst.msk [vmem:[#allocation3 + $0xa8] sm:$0xff] %vm3834, %v6709
      %6755 = vst.msk [vmem:[#allocation3 + $0xf0] sm:$0xff] %vm3834, %v6711
      %6756 = vst.msk [vmem:[#allocation3 + $0x138] sm:$0xff] %vm3834, %v6713
      %6757 = vst.msk [vmem:[#allocation3 + $0x180] sm:$0xff] %vm3834, %v6715
      %6758 = vst.msk [vmem:[#allocation3 + $0x1c8] sm:$0xff] %vm3834, %v6717
      %6759 = vst.msk [vmem:[#allocation3 + $0x210] sm:$0xff] %vm3834, %v6719
      %6760 = vst.msk [vmem:[#allocation3 + $0x258] sm:$0xff] %vm3834, %v6721
      %6761 = vst.msk [vmem:[#allocation3 + $0x2a0] sm:$0xff] %vm3834, %v6723
      %6762 = vst.msk [vmem:[#allocation3 + $0x2e8] sm:$0xff] %vm3834, %v6725
      %6763 = vst.msk [vmem:[#allocation3 + $0x330] sm:$0xff] %vm3834, %v6727
      %6764 = vst.msk [vmem:[#allocation3 + $0x378] sm:$0xff] %vm3834, %v6729
      %6765 = vst.msk [vmem:[#allocation3 + $0x3c0] sm:$0xff] %vm3834, %v6731
      %6766 = vst.msk [vmem:[#allocation3 + $0x408] sm:$0xff] %vm3834, %v6733
      %6767 = vst.msk [vmem:[#allocation3 + $0x450] sm:$0xff] %vm3834, %v6735
      %v6768 = vld [vmem:[%s1503 + $0x2] sm:$0xff]
      %v6769 = vld [vmem:[%s1503 + $0xa] sm:$0xff]
      %v6770 = vld [vmem:[%s1503 + $0x1a] sm:$0xff]
      %v6771 = vld [vmem:[%s1503 + $0x22] sm:$0xff]
      %v6772 = vld [vmem:[%s1503 + $0x32] sm:$0xff]
      %v6773 = vld [vmem:[%s1503 + $0x3a] sm:$0xff]
      %v6774 = vld [vmem:[%s1503 + $0x4a] sm:$0xff]
      %v6775 = vld [vmem:[%s1503 + $0x52] sm:$0xff]
      %v6776 = vld [vmem:[%s1503 + $0x62] sm:$0xff]
      %v6777 = vld [vmem:[%s1503 + $0x6a] sm:$0xff]
      %v6778 = vld [vmem:[%s1503 + $0x7a] sm:$0xff]
      %v6779 = vld [vmem:[%s1503 + $0x82] sm:$0xff]
      %v6780 = vld [vmem:[%s1503 + $0x92] sm:$0xff]
      %v6781 = vld [vmem:[%s1503 + $0x9a] sm:$0xff]
      %v6782 = vld [vmem:[%s1503 + $0xaa] sm:$0xff]
      %v6783 = vld [vmem:[%s1503 + $0xb2] sm:$0xff]
      %v6784 = vld [vmem:[%s1503 + $0xc2] sm:$0xff]
      %v6785 = vld [vmem:[%s1503 + $0xca] sm:$0xff]
      %v6786 = vld [vmem:[%s1503 + $0xda] sm:$0xff]
      %v6787 = vld [vmem:[%s1503 + $0xe2] sm:$0xff]
      %v6788 = vld [vmem:[%s1503 + $0xf2] sm:$0xff]
      %v6789 = vld [vmem:[%s1503 + $0xfa] sm:$0xff]
      %v6790 = vld [vmem:[%s1503 + $0x10a] sm:$0xff]
      %v6791 = vld [vmem:[%s1503 + $0x112] sm:$0xff]
      %v6792 = vld [vmem:[%s1503 + $0x122] sm:$0xff]
      %v6793 = vld [vmem:[%s1503 + $0x12a] sm:$0xff]
      %v6794 = vld [vmem:[%s1503 + $0x13a] sm:$0xff]
      %v6795 = vld [vmem:[%s1503 + $0x142] sm:$0xff]
      %v6796 = vld [vmem:[%s1503 + $0x152] sm:$0xff]
      %v6797 = vld [vmem:[%s1503 + $0x15a] sm:$0xff]
      %v6798 = vld [vmem:[%s1503 + $0x16a] sm:$0xff]
      %v6799 = vld [vmem:[%s1503 + $0x172] sm:$0xff]
      %v6800 = vpack.c.bf16 %v6769, %v6768
      %v6801 = vpack.c.bf16 %v6771, %v6770
      %v6802 = vpack.c.bf16 %v6773, %v6772
      %v6803 = vpack.c.bf16 %v6775, %v6774
      %v6804 = vpack.c.bf16 %v6777, %v6776
      %v6805 = vpack.c.bf16 %v6779, %v6778
      %v6806 = vpack.c.bf16 %v6781, %v6780
      %v6807 = vpack.c.bf16 %v6783, %v6782
      %v6808 = vpack.c.bf16 %v6785, %v6784
      %v6809 = vpack.c.bf16 %v6787, %v6786
      %v6810 = vpack.c.bf16 %v6789, %v6788
      %v6811 = vpack.c.bf16 %v6791, %v6790
      %v6812 = vpack.c.bf16 %v6793, %v6792
      %v6813 = vpack.c.bf16 %v6795, %v6794
      %v6814 = vpack.c.bf16 %v6797, %v6796
      %v6815 = vpack.c.bf16 %v6799, %v6798
      %6816 = vst.msk [vmem:[#allocation3 + $0x20] sm:$0xff] %vm3064, %v6800
      %6817 = vst.msk [vmem:[#allocation3 + $0x68] sm:$0xff] %vm3064, %v6801
      %6818 = vst.msk [vmem:[#allocation3 + $0xb0] sm:$0xff] %vm3064, %v6802
      %6819 = vst.msk [vmem:[#allocation3 + $0xf8] sm:$0xff] %vm3064, %v6803
      %6820 = vst.msk [vmem:[#allocation3 + $0x140] sm:$0xff] %vm3064, %v6804
      %6821 = vst.msk [vmem:[#allocation3 + $0x188] sm:$0xff] %vm3064, %v6805
      %6822 = vst.msk [vmem:[#allocation3 + $0x1d0] sm:$0xff] %vm3064, %v6806
      %6823 = vst.msk [vmem:[#allocation3 + $0x218] sm:$0xff] %vm3064, %v6807
      %6824 = vst.msk [vmem:[#allocation3 + $0x260] sm:$0xff] %vm3064, %v6808
      %6825 = vst.msk [vmem:[#allocation3 + $0x2a8] sm:$0xff] %vm3064, %v6809
      %6826 = vst.msk [vmem:[#allocation3 + $0x2f0] sm:$0xff] %vm3064, %v6810
      %6827 = vst.msk [vmem:[#allocation3 + $0x338] sm:$0xff] %vm3064, %v6811
      %6828 = vst.msk [vmem:[#allocation3 + $0x380] sm:$0xff] %vm3064, %v6812
      %6829 = vst.msk [vmem:[#allocation3 + $0x3c8] sm:$0xff] %vm3064, %v6813
      %6830 = vst.msk [vmem:[#allocation3 + $0x410] sm:$0xff] %vm3064, %v6814
      %6831 = vst.msk [vmem:[#allocation3 + $0x458] sm:$0xff] %vm3064, %v6815
      %v6832 = vld [vmem:[#allocation3] sm:$0xff]
      %v6833 = vld [vmem:[#allocation3 + $0x8] sm:$0xff]
      %v6834 = vld [vmem:[#allocation3 + $0x10] sm:$0xff]
      %v6835 = vld [vmem:[#allocation3 + $0x18] sm:$0xff]
      %v6836 = vld [vmem:[#allocation3 + $0x20] sm:$0xff]
      %v6837 = vld [vmem:[#allocation3 + $0x48] sm:$0xff]
      %v6838 = vld [vmem:[#allocation3 + $0x50] sm:$0xff]
      %v6839 = vld [vmem:[#allocation3 + $0x58] sm:$0xff]
      %v6840 = vld [vmem:[#allocation3 + $0x60] sm:$0xff]
      %v6841 = vld [vmem:[#allocation3 + $0x68] sm:$0xff]
      %v6842 = vld [vmem:[#allocation3 + $0x90] sm:$0xff]
      %v6843 = vld [vmem:[#allocation3 + $0x98] sm:$0xff]
      %v6844 = vld [vmem:[#allocation3 + $0xa0] sm:$0xff]
      %v6845 = vld [vmem:[#allocation3 + $0xa8] sm:$0xff]
      %v6846 = vld [vmem:[#allocation3 + $0xb0] sm:$0xff]
      %v6847 = vld [vmem:[#allocation3 + $0xd8] sm:$0xff]
      %v6848 = vld [vmem:[#allocation3 + $0xe0] sm:$0xff]
      %v6849 = vld [vmem:[#allocation3 + $0xe8] sm:$0xff]
      %v6850 = vld [vmem:[#allocation3 + $0xf0] sm:$0xff]
      %v6851 = vld [vmem:[#allocation3 + $0xf8] sm:$0xff]
      %v6852 = vld [vmem:[#allocation3 + $0x120] sm:$0xff]
      %v6853 = vld [vmem:[#allocation3 + $0x128] sm:$0xff]
      %v6854 = vld [vmem:[#allocation3 + $0x130] sm:$0xff]
      %v6855 = vld [vmem:[#allocation3 + $0x138] sm:$0xff]
      %v6856 = vld [vmem:[#allocation3 + $0x140] sm:$0xff]
      %v6857 = vld [vmem:[#allocation3 + $0x168] sm:$0xff]
      %v6858 = vld [vmem:[#allocation3 + $0x170] sm:$0xff]
      %v6859 = vld [vmem:[#allocation3 + $0x178] sm:$0xff]
      %v6860 = vld [vmem:[#allocation3 + $0x180] sm:$0xff]
      %v6861 = vld [vmem:[#allocation3 + $0x188] sm:$0xff]
      %v6862 = vld [vmem:[#allocation3 + $0x1b0] sm:$0xff]
      %v6863 = vld [vmem:[#allocation3 + $0x1b8] sm:$0xff]
      %v6864 = vld [vmem:[#allocation3 + $0x1c0] sm:$0xff]
      %v6865 = vld [vmem:[#allocation3 + $0x1c8] sm:$0xff]
      %v6866 = vld [vmem:[#allocation3 + $0x1d0] sm:$0xff]
      %v6867 = vld [vmem:[#allocation3 + $0x1f8] sm:$0xff]
      %v6868 = vld [vmem:[#allocation3 + $0x200] sm:$0xff]
      %v6869 = vld [vmem:[#allocation3 + $0x208] sm:$0xff]
      %v6870 = vld [vmem:[#allocation3 + $0x210] sm:$0xff]
      %v6871 = vld [vmem:[#allocation3 + $0x218] sm:$0xff]
      %v6872 = vld [vmem:[#allocation3 + $0x240] sm:$0xff]
      %v6873 = vld [vmem:[#allocation3 + $0x248] sm:$0xff]
      %v6874 = vld [vmem:[#allocation3 + $0x250] sm:$0xff]
      %v6875 = vld [vmem:[#allocation3 + $0x258] sm:$0xff]
      %v6876 = vld [vmem:[#allocation3 + $0x260] sm:$0xff]
      %v6877 = vld [vmem:[#allocation3 + $0x288] sm:$0xff]
      %v6878 = vld [vmem:[#allocation3 + $0x290] sm:$0xff]
      %v6879 = vld [vmem:[#allocation3 + $0x298] sm:$0xff]
      %v6880 = vld [vmem:[#allocation3 + $0x2a0] sm:$0xff]
      %v6881 = vld [vmem:[#allocation3 + $0x2a8] sm:$0xff]
      %v6882 = vld [vmem:[#allocation3 + $0x2d0] sm:$0xff]
      %v6883 = vld [vmem:[#allocation3 + $0x2d8] sm:$0xff]
      %v6884 = vld [vmem:[#allocation3 + $0x2e0] sm:$0xff]
      %v6885 = vld [vmem:[#allocation3 + $0x2e8] sm:$0xff]
      %v6886 = vld [vmem:[#allocation3 + $0x2f0] sm:$0xff]
      %v6887 = vld [vmem:[#allocation3 + $0x318] sm:$0xff]
      %v6888 = vld [vmem:[#allocation3 + $0x320] sm:$0xff]
      %v6889 = vld [vmem:[#allocation3 + $0x328] sm:$0xff]
      %v6890 = vld [vmem:[#allocation3 + $0x330] sm:$0xff]
      %v6891 = vld [vmem:[#allocation3 + $0x338] sm:$0xff]
      %v6892 = vld [vmem:[#allocation3 + $0x360] sm:$0xff]
      %v6893 = vld [vmem:[#allocation3 + $0x368] sm:$0xff]
      %v6894 = vld [vmem:[#allocation3 + $0x370] sm:$0xff]
      %v6895 = vld [vmem:[#allocation3 + $0x378] sm:$0xff]
      %v6896 = vld [vmem:[#allocation3 + $0x380] sm:$0xff]
      %v6897 = vld [vmem:[#allocation3 + $0x3a8] sm:$0xff]
      %v6898 = vld [vmem:[#allocation3 + $0x3b0] sm:$0xff]
      %v6899 = vld [vmem:[#allocation3 + $0x3b8] sm:$0xff]
      %v6900 = vld [vmem:[#allocation3 + $0x3c0] sm:$0xff]
      %v6901 = vld [vmem:[#allocation3 + $0x3c8] sm:$0xff]
      %v6902 = vld [vmem:[#allocation3 + $0x3f0] sm:$0xff]
      %v6903 = vld [vmem:[#allocation3 + $0x3f8] sm:$0xff]
      %v6904 = vld [vmem:[#allocation3 + $0x400] sm:$0xff]
      %v6905 = vld [vmem:[#allocation3 + $0x408] sm:$0xff]
      %v6906 = vld [vmem:[#allocation3 + $0x410] sm:$0xff]
      %v6907 = vld [vmem:[#allocation3 + $0x438] sm:$0xff]
      %v6908 = vld [vmem:[#allocation3 + $0x440] sm:$0xff]
      %v6909 = vld [vmem:[#allocation3 + $0x448] sm:$0xff]
      %v6910 = vld [vmem:[#allocation3 + $0x450] sm:$0xff]
      %v6911 = vld [vmem:[#allocation3 + $0x458] sm:$0xff]
      %v6912 = vld [vmem:[%s18] sm:$0xf]
      %v6913 = vld [vmem:[%s18 + $0x4] sm:$0xf]
      %v6914 = vld [vmem:[%s18 + $0x8] sm:$0xf]
      %v6915 = vld [vmem:[%s18 + $0xc] sm:$0xf]
      %v6916 = vld [vmem:[%s18 + $0x10] sm:$0xf]
      %v6917 = vld [vmem:[%s18 + $0x14] sm:$0xf]
      %v6918 = vld [vmem:[%s18 + $0x18] sm:$0xf]
      %v6919 = vld [vmem:[%s18 + $0x1c] sm:$0xf]
      %v6920 = vld [vmem:[%s18 + $0x20] sm:$0xf]
      %v6921 = vld [vmem:[%s18 + $0x24] sm:$0xf]
      %v6922 = vld [vmem:[%s18 + $0x28] sm:$0xf]
      %v6923 = vld [vmem:[%s18 + $0x2c] sm:$0xf]
      %v6924 = vld [vmem:[%s18 + $0x30] sm:$0xf]
      %v6925 = vld [vmem:[%s18 + $0x34] sm:$0xf]
      %v6926 = vld [vmem:[%s18 + $0x38] sm:$0xf]
      %v6927 = vld [vmem:[%s18 + $0x3c] sm:$0xf]
      %v6928 = vld [vmem:[%s18 + $0x40] sm:$0xf]
      %v6929 = vld [vmem:[%s18 + $0x44] sm:$0xf]
      %v6930 = vld [vmem:[%s18 + $0x48] sm:$0xf]
      %v6931 = vld [vmem:[%s18 + $0x4c] sm:$0xf]
      %v6932 = vld [vmem:[%s18 + $0x50] sm:$0xf]
      %v6933 = vld [vmem:[%s18 + $0x54] sm:$0xf]
      %v6934 = vld [vmem:[%s18 + $0x58] sm:$0xf]
      %v6935 = vld [vmem:[%s18 + $0x5c] sm:$0xf]
      %v6936 = vld [vmem:[%s18 + $0x60] sm:$0xf]
      %v6937 = vld [vmem:[%s18 + $0x64] sm:$0xf]
      %v6938 = vld [vmem:[%s18 + $0x68] sm:$0xf]
      %v6939 = vld [vmem:[%s18 + $0x6c] sm:$0xf]
      %v6940 = vld [vmem:[%s18 + $0x70] sm:$0xf]
      %v6941 = vld [vmem:[%s18 + $0x74] sm:$0xf]
      %v6942 = vld [vmem:[%s18 + $0x78] sm:$0xf]
      %v6943 = vld [vmem:[%s18 + $0x7c] sm:$0xf]
      %v6944 = vld [vmem:[%s18 + $0x80] sm:$0xf]
      %v6945 = vld [vmem:[%s18 + $0x84] sm:$0xf]
      %v6946 = vld [vmem:[%s18 + $0x88] sm:$0xf]
      %v6947 = vld [vmem:[%s18 + $0x8c] sm:$0xf]
      %v6948 = vld [vmem:[%s18 + $0x90] sm:$0xf]
      %v6949 = vld [vmem:[%s18 + $0x94] sm:$0xf]
      %v6950 = vld [vmem:[%s18 + $0x98] sm:$0xf]
      %v6951 = vld [vmem:[%s18 + $0x9c] sm:$0xf]
      %v6952 = vld [vmem:[%s18 + $0xa0] sm:$0xf]
      %v6953 = vld [vmem:[%s18 + $0xa4] sm:$0xf]
      %v6954 = vld [vmem:[%s18 + $0xa8] sm:$0xf]
      %v6955 = vld [vmem:[%s18 + $0xac] sm:$0xf]
      %v6956 = vld [vmem:[%s18 + $0xb0] sm:$0xf]
      %v6957 = vld [vmem:[%s18 + $0xb4] sm:$0xf]
      %v6958 = vld [vmem:[%s18 + $0xb8] sm:$0xf]
      %v6959 = vld [vmem:[%s18 + $0xbc] sm:$0xf]
      %v6960 = vld [vmem:[%s18 + $0xc0] sm:$0xf]
      %v6961 = vld [vmem:[%s18 + $0xc4] sm:$0xf]
      %v6962 = vld [vmem:[%s18 + $0xc8] sm:$0xf]
      %v6963 = vld [vmem:[%s18 + $0xcc] sm:$0xf]
      %v6964 = vld [vmem:[%s18 + $0xd0] sm:$0xf]
      %v6965 = vld [vmem:[%s18 + $0xd4] sm:$0xf]
      %v6966 = vld [vmem:[%s18 + $0xd8] sm:$0xf]
      %v6967 = vld [vmem:[%s18 + $0xdc] sm:$0xf]
      %v6968 = vld [vmem:[%s18 + $0xe0] sm:$0xf]
      %v6969 = vld [vmem:[%s18 + $0xe4] sm:$0xf]
      %v6970 = vld [vmem:[%s18 + $0xe8] sm:$0xf]
      %v6971 = vld [vmem:[%s18 + $0xec] sm:$0xf]
      %v6972 = vld [vmem:[%s18 + $0xf0] sm:$0xf]
      %v6973 = vld [vmem:[%s18 + $0xf4] sm:$0xf]
      %v6974 = vld [vmem:[%s18 + $0xf8] sm:$0xf]
      %v6975 = vld [vmem:[%s18 + $0xfc] sm:$0xf]
      %v6976 = vld [vmem:[%s18 + $0x100] sm:$0xf]
      %v6977 = vld [vmem:[%s18 + $0x104] sm:$0xf]
      %v6978 = vld [vmem:[%s18 + $0x108] sm:$0xf]
      %v6979 = vld [vmem:[%s18 + $0x10c] sm:$0xf]
      %v6980 = vld [vmem:[%s18 + $0x110] sm:$0xf]
      %v6981 = vld [vmem:[%s18 + $0x114] sm:$0xf]
      %v6982 = vld [vmem:[%s18 + $0x118] sm:$0xf]
      %v6983 = vld [vmem:[%s18 + $0x11c] sm:$0xf]
      %v6984 = vld [vmem:[%s19] sm:$0x1]
      %v6986 = vlaneseq
      %v6987 = vshrl.u32 %v6986, 7
      %v6988 = vsub.s32 0, %v6987
      %v6989 = vrot.slane %v6984, %v6988
      %v7063 = vunpack.c.l.b16 %v6912
      %v7064 = vunpack.c.l.b16 %v6913
      %v7065 = vunpack.c.l.b16 %v6914
      %v7066 = vunpack.c.l.b16 %v6915
      %v7067 = vunpack.c.l.b16 %v6916
      %v7068 = vunpack.c.l.b16 %v6917
      %v7069 = vunpack.c.l.b16 %v6918
      %v7070 = vunpack.c.l.b16 %v6919
      %v7071 = vunpack.c.l.b16 %v6920
      %v7072 = vunpack.c.l.b16 %v6921
      %v7073 = vunpack.c.l.b16 %v6922
      %v7074 = vunpack.c.l.b16 %v6923
      %v7075 = vunpack.c.l.b16 %v6924
      %v7076 = vunpack.c.l.b16 %v6925
      %v7077 = vunpack.c.l.b16 %v6926
      %v7078 = vunpack.c.l.b16 %v6927
      %v7079 = vunpack.c.l.b16 %v6928
      %v7080 = vunpack.c.l.b16 %v6929
      %v7081 = vunpack.c.l.b16 %v6930
      %v7082 = vunpack.c.l.b16 %v6931
      %v7083 = vunpack.c.l.b16 %v6932
      %v7084 = vunpack.c.l.b16 %v6933
      %v7085 = vunpack.c.l.b16 %v6934
      %v7086 = vunpack.c.l.b16 %v6935
      %v7087 = vunpack.c.l.b16 %v6936
      %v7088 = vunpack.c.l.b16 %v6937
      %v7089 = vunpack.c.l.b16 %v6938
      %v7090 = vunpack.c.l.b16 %v6939
      %v7091 = vunpack.c.l.b16 %v6940
      %v7092 = vunpack.c.l.b16 %v6941
      %v7093 = vunpack.c.l.b16 %v6942
      %v7094 = vunpack.c.l.b16 %v6943
      %v7095 = vunpack.c.l.b16 %v6944
      %v7096 = vunpack.c.l.b16 %v6945
      %v7097 = vunpack.c.l.b16 %v6946
      %v7098 = vunpack.c.l.b16 %v6947
      %v7099 = vunpack.c.l.b16 %v6948
      %v7100 = vunpack.c.l.b16 %v6949
      %v7101 = vunpack.c.l.b16 %v6950
      %v7102 = vunpack.c.l.b16 %v6951
      %v7103 = vunpack.c.l.b16 %v6952
      %v7104 = vunpack.c.l.b16 %v6953
      %v7105 = vunpack.c.l.b16 %v6954
      %v7106 = vunpack.c.l.b16 %v6955
      %v7107 = vunpack.c.l.b16 %v6956
      %v7108 = vunpack.c.l.b16 %v6957
      %v7109 = vunpack.c.l.b16 %v6958
      %v7110 = vunpack.c.l.b16 %v6959
      %v7111 = vunpack.c.l.b16 %v6960
      %v7112 = vunpack.c.l.b16 %v6961
      %v7113 = vunpack.c.l.b16 %v6962
      %v7114 = vunpack.c.l.b16 %v6963
      %v7115 = vunpack.c.l.b16 %v6964
      %v7116 = vunpack.c.l.b16 %v6965
      %v7117 = vunpack.c.l.b16 %v6966
      %v7118 = vunpack.c.l.b16 %v6967
      %v7119 = vunpack.c.l.b16 %v6968
      %v7120 = vunpack.c.l.b16 %v6969
      %v7121 = vunpack.c.l.b16 %v6970
      %v7122 = vunpack.c.l.b16 %v6971
      %v7123 = vunpack.c.l.b16 %v6972
      %v7124 = vunpack.c.l.b16 %v6973
      %v7125 = vunpack.c.l.b16 %v6974
      %v7126 = vunpack.c.l.b16 %v6975
      %v7127 = vunpack.c.l.b16 %v6976
      %v7128 = vunpack.c.l.b16 %v6977
      %v7129 = vunpack.c.l.b16 %v6978
      %v7130 = vunpack.c.l.b16 %v6979
      %v7131 = vunpack.c.l.b16 %v6980
      %v7132 = vunpack.c.l.b16 %v6981
      %v7133 = vunpack.c.l.b16 %v6982
      %v7134 = vunpack.c.l.b16 %v6983
      %v7135 = vpack.c.b16 %v7064, %v7063
      %v7136 = vpack.c.b16 %v7066, %v7065
      %v7137 = vpack.c.b16 %v7068, %v7067
      %v7138 = vpack.c.b16 %v7070, %v7069
      %v7139 = vpack.c.b16 %v7072, %v7071
      %v7140 = vpack.c.b16 %v7074, %v7073
      %v7141 = vpack.c.b16 %v7076, %v7075
      %v7142 = vpack.c.b16 %v7078, %v7077
      %v7143 = vpack.c.b16 %v7080, %v7079
      %v7144 = vpack.c.b16 %v7082, %v7081
      %v7145 = vpack.c.b16 %v7084, %v7083
      %v7146 = vpack.c.b16 %v7086, %v7085
      %v7147 = vpack.c.b16 %v7088, %v7087
      %v7148 = vpack.c.b16 %v7090, %v7089
      %v7149 = vpack.c.b16 %v7092, %v7091
      %v7150 = vpack.c.b16 %v7094, %v7093
      %v7151 = vpack.c.b16 %v7096, %v7095
      %v7152 = vpack.c.b16 %v7098, %v7097
      %v7153 = vpack.c.b16 %v7100, %v7099
      %v7154 = vpack.c.b16 %v7102, %v7101
      %v7155 = vpack.c.b16 %v7104, %v7103
      %v7156 = vpack.c.b16 %v7106, %v7105
      %v7157 = vpack.c.b16 %v7108, %v7107
      %v7158 = vpack.c.b16 %v7110, %v7109
      %v7159 = vpack.c.b16 %v7112, %v7111
      %v7160 = vpack.c.b16 %v7114, %v7113
      %v7161 = vpack.c.b16 %v7116, %v7115
      %v7162 = vpack.c.b16 %v7118, %v7117
      %v7163 = vpack.c.b16 %v7120, %v7119
      %v7164 = vpack.c.b16 %v7122, %v7121
      %v7165 = vpack.c.b16 %v7124, %v7123
      %v7166 = vpack.c.b16 %v7126, %v7125
      %v7167 = vpack.c.b16 %v7128, %v7127
      %v7168 = vpack.c.b16 %v7130, %v7129
      %v7169 = vpack.c.b16 %v7132, %v7131
      %v7170 = vpack.c.b16 %v7134, %v7133
      %v7208 = vsel %vm3064, %v6836, 0
      %v7211 = vsel %vm3064, %v6841, 0
      %v7214 = vsel %vm3064, %v6846, 0
      %v7217 = vsel %vm3064, %v6851, 0
      %v7220 = vsel %vm3064, %v6856, 0
      %v7223 = vsel %vm3064, %v6861, 0
      %v7226 = vsel %vm3064, %v6866, 0
      %v7229 = vsel %vm3064, %v6871, 0
      %v7232 = vsel %vm3064, %v6876, 0
      %v7235 = vsel %vm3064, %v6881, 0
      %v7238 = vsel %vm3064, %v6886, 0
      %v7241 = vsel %vm3064, %v6891, 0
      %v7244 = vsel %vm3064, %v6896, 0
      %v7247 = vsel %vm3064, %v6901, 0
      %v7250 = vsel %vm3064, %v6906, 0
      %v7253 = vsel %vm3064, %v6911, 0
      %7255 = vmatprep.subr.bf16.mxu0 0
      %7256 = vmatpush1.bf16.msra.mxu0 %v7135
      %7257 = vmatprep.subr.bf16.mxu0 0
      %7258 = vmatpush1.bf16.msra.mxu0 %v7136
      %7259 = vmatprep.subr.bf16.mxu0 0
      %7260 = vmatpush1.bf16.msra.mxu0 %v7137
      %7261 = vmatprep.subr.bf16.mxu0 0
      %7262 = vmatpush1.bf16.msra.mxu0 %v7138
      %7263 = vmatprep.subr.bf16.mxu0 0
      %7264 = vmatpush1.bf16.msra.mxu0 %v7139
      %7265 = vmatprep.subr.bf16.mxu0 0
      %7266 = vmatpush1.bf16.msra.mxu0 %v7140
      %7267 = vmatprep.subr.bf16.mxu0 0
      %7268 = vmatpush1.bf16.msra.mxu0 %v7141
      %7269 = vmatprep.subr.bf16.mxu0 0
      %7270 = vmatpush1.bf16.msra.mxu0 %v7142
      %7271 = vmatprep.subr.bf16.mxu0 0
      %7272 = vmatpush1.bf16.msra.mxu0 %v7143
      %7273 = vmatprep.subr.bf16.mxu0 0
      %7274 = vmatpush1.bf16.msra.mxu0 %v7144
      %7275 = vmatprep.subr.bf16.mxu0 0
      %7276 = vmatpush1.bf16.msra.mxu0 %v7145
      %7277 = vmatprep.subr.bf16.mxu0 0
      %7278 = vmatpush1.bf16.msra.mxu0 %v7146
      %7279 = vmatprep.subr.bf16.mxu0 0
      %7280 = vmatpush1.bf16.msra.mxu0 %v7147
      %7281 = vmatprep.subr.bf16.mxu0 0
      %7282 = vmatpush1.bf16.msra.mxu0 %v7148
      %7283 = vmatprep.subr.bf16.mxu0 0
      %7284 = vmatpush1.bf16.msra.mxu0 %v7149
      %7285 = vmatprep.subr.bf16.mxu0 0
      %7286 = vmatpush1.bf16.msra.mxu0 %v7150
      %7287 = vmatprep.mubr.bf16.mxu0 %v6833
      %7288 = vmatmul.mubr.bf16.gmra.mrb[0].mxu0 %v6832
      %v7289 = vpop.f32.mrb[0].mxu0
      %v7290 = vadd.f32 %v6989, %v7289
      %v7291 = vpop.f32.mrb[0].mxu0
      %v7292 = vpop.f32.mrb[0].mxu0
      %v7293 = vadd.f32 %v6989, %v7292
      %v7294 = vpop.f32.mrb[0].mxu0
      %7295 = vmatprep.mubr.bf16.mxu0 %v6838
      %7296 = vmatmul.mubr.bf16.gmra.mrb[0].mxu0 %v6837
      %v7297 = vpop.f32.mrb[0].mxu0
      %v7298 = vadd.f32 %v6989, %v7297
      %v7299 = vpop.f32.mrb[0].mxu0
      %v7300 = vpop.f32.mrb[0].mxu0
      %v7301 = vadd.f32 %v6989, %v7300
      %v7302 = vpop.f32.mrb[0].mxu0
      %7303 = vmatprep.mubr.bf16.mxu0 %v6843
      %7304 = vmatmul.mubr.bf16.gmra.mrb[0].mxu0 %v6842
      %v7305 = vpop.f32.mrb[0].mxu0
      %v7306 = vadd.f32 %v6989, %v7305
      %v7307 = vpop.f32.mrb[0].mxu0
      %v7308 = vpop.f32.mrb[0].mxu0
      %v7309 = vadd.f32 %v6989, %v7308
      %v7310 = vpop.f32.mrb[0].mxu0
      %7311 = vmatprep.mubr.bf16.mxu0 %v6848
      %7312 = vmatmul.mubr.bf16.gmra.mrb[0].mxu0 %v6847
      %v7313 = vpop.f32.mrb[0].mxu0
      %v7314 = vadd.f32 %v6989, %v7313
      %v7315 = vpop.f32.mrb[0].mxu0
      %v7316 = vpop.f32.mrb[0].mxu0
      %v7317 = vadd.f32 %v6989, %v7316
      %v7318 = vpop.f32.mrb[0].mxu0
      %7319 = vmatprep.mubr.bf16.mxu0 %v6853
      %7320 = vmatmul.mubr.bf16.gmra.mrb[0].mxu0 %v6852
      %v7321 = vpop.f32.mrb[0].mxu0
      %v7322 = vadd.f32 %v6989, %v7321
      %v7323 = vpop.f32.mrb[0].mxu0
      %v7324 = vpop.f32.mrb[0].mxu0
      %v7325 = vadd.f32 %v6989, %v7324
      %v7326 = vpop.f32.mrb[0].mxu0
      %7327 = vmatprep.mubr.bf16.mxu0 %v6858
      %7328 = vmatmul.mubr.bf16.gmra.mrb[0].mxu0 %v6857
      %v7329 = vpop.f32.mrb[0].mxu0
      %v7330 = vadd.f32 %v6989, %v7329
      %v7331 = vpop.f32.mrb[0].mxu0
      %v7332 = vpop.f32.mrb[0].mxu0
      %v7333 = vadd.f32 %v6989, %v7332
      %v7334 = vpop.f32.mrb[0].mxu0
      %7335 = vmatprep.mubr.bf16.mxu0 %v6863
      %7336 = vmatmul.mubr.bf16.gmra.mrb[0].mxu0 %v6862
      %v7337 = vpop.f32.mrb[0].mxu0
      %v7338 = vadd.f32 %v6989, %v7337
      %v7339 = vpop.f32.mrb[0].mxu0
      %v7340 = vpop.f32.mrb[0].mxu0
      %v7341 = vadd.f32 %v6989, %v7340
      %v7342 = vpop.f32.mrb[0].mxu0
      %7343 = vmatprep.mubr.bf16.mxu0 %v6868
      %7344 = vmatmul.mubr.bf16.gmra.mrb[0].mxu0 %v6867
      %v7345 = vpop.f32.mrb[0].mxu0
      %v7346 = vadd.f32 %v6989, %v7345
      %v7347 = vpop.f32.mrb[0].mxu0
      %v7348 = vpop.f32.mrb[0].mxu0
      %v7349 = vadd.f32 %v6989, %v7348
      %v7350 = vpop.f32.mrb[0].mxu0
      %7351 = vmatprep.mubr.bf16.mxu0 %v6873
      %7352 = vmatmul.mubr.bf16.gmra.mrb[0].mxu0 %v6872
      %v7353 = vpop.f32.mrb[0].mxu0
      %v7354 = vadd.f32 %v6989, %v7353
      %v7355 = vpop.f32.mrb[0].mxu0
      %v7356 = vpop.f32.mrb[0].mxu0
      %v7357 = vadd.f32 %v6989, %v7356
      %v7358 = vpop.f32.mrb[0].mxu0
      %7359 = vmatprep.mubr.bf16.mxu0 %v6878
      %7360 = vmatmul.mubr.bf16.gmra.mrb[0].mxu0 %v6877
      %v7361 = vpop.f32.mrb[0].mxu0
      %v7362 = vadd.f32 %v6989, %v7361
      %v7363 = vpop.f32.mrb[0].mxu0
      %v7364 = vpop.f32.mrb[0].mxu0
      %v7365 = vadd.f32 %v6989, %v7364
      %v7366 = vpop.f32.mrb[0].mxu0
      %7367 = vmatprep.mubr.bf16.mxu0 %v6883
      %7368 = vmatmul.mubr.bf16.gmra.mrb[0].mxu0 %v6882
      %v7369 = vpop.f32.mrb[0].mxu0
      %v7370 = vadd.f32 %v6989, %v7369
      %v7371 = vpop.f32.mrb[0].mxu0
      %v7372 = vpop.f32.mrb[0].mxu0
      %v7373 = vadd.f32 %v6989, %v7372
      %v7374 = vpop.f32.mrb[0].mxu0
      %7375 = vmatprep.mubr.bf16.mxu0 %v6888
      %7376 = vmatmul.mubr.bf16.gmra.mrb[0].mxu0 %v6887
      %v7377 = vpop.f32.mrb[0].mxu0
      %v7378 = vadd.f32 %v6989, %v7377
      %v7379 = vpop.f32.mrb[0].mxu0
      %v7380 = vpop.f32.mrb[0].mxu0
      %v7381 = vadd.f32 %v6989, %v7380
      %v7382 = vpop.f32.mrb[0].mxu0
      %7383 = vmatprep.mubr.bf16.mxu0 %v6893
      %7384 = vmatmul.mubr.bf16.gmra.mrb[0].mxu0 %v6892
      %v7385 = vpop.f32.mrb[0].mxu0
      %v7386 = vadd.f32 %v6989, %v7385
      %v7387 = vpop.f32.mrb[0].mxu0
      %v7388 = vpop.f32.mrb[0].mxu0
      %v7389 = vadd.f32 %v6989, %v7388
      %v7390 = vpop.f32.mrb[0].mxu0
      %7391 = vmatprep.mubr.bf16.mxu0 %v6898
      %7392 = vmatmul.mubr.bf16.gmra.mrb[0].mxu0 %v6897
      %v7393 = vpop.f32.mrb[0].mxu0
      %v7394 = vadd.f32 %v6989, %v7393
      %v7395 = vpop.f32.mrb[0].mxu0
      %v7396 = vpop.f32.mrb[0].mxu0
      %v7397 = vadd.f32 %v6989, %v7396
      %v7398 = vpop.f32.mrb[0].mxu0
      %7399 = vmatprep.mubr.bf16.mxu0 %v6903
      %7400 = vmatmul.mubr.bf16.gmra.mrb[0].mxu0 %v6902
      %v7401 = vpop.f32.mrb[0].mxu0
      %v7402 = vadd.f32 %v6989, %v7401
      %v7403 = vpop.f32.mrb[0].mxu0
      %v7404 = vpop.f32.mrb[0].mxu0
      %v7405 = vadd.f32 %v6989, %v7404
      %v7406 = vpop.f32.mrb[0].mxu0
      %7407 = vmatprep.mubr.bf16.mxu0 %v6908
      %7408 = vmatmul.mubr.bf16.gmra.mrb[0].mxu0 %v6907
      %v7409 = vpop.f32.mrb[0].mxu0
      %v7410 = vadd.f32 %v6989, %v7409
      %v7411 = vpop.f32.mrb[0].mxu0
      %v7412 = vpop.f32.mrb[0].mxu0
      %v7413 = vadd.f32 %v6989, %v7412
      %v7414 = vpop.f32.mrb[0].mxu0
      %7415 = vdwg.mxu0
      %7416 = vmatprep.subr.bf16.mxu0 0
      %7417 = vmatpush1.bf16.msra.mxu0 %v7151
      %7418 = vmatprep.subr.bf16.mxu0 0
      %7419 = vmatpush1.bf16.msra.mxu0 %v7152
      %7420 = vmatprep.subr.bf16.mxu0 0
      %7421 = vmatpush1.bf16.msra.mxu0 %v7153
      %7422 = vmatprep.subr.bf16.mxu0 0
      %7423 = vmatpush1.bf16.msra.mxu0 %v7154
      %7424 = vmatprep.subr.bf16.mxu0 0
      %7425 = vmatpush1.bf16.msra.mxu0 %v7155
      %7426 = vmatprep.subr.bf16.mxu0 0
      %7427 = vmatpush1.bf16.msra.mxu0 %v7156
      %7428 = vmatprep.subr.bf16.mxu0 0
      %7429 = vmatpush1.bf16.msra.mxu0 %v7157
      %7430 = vmatprep.subr.bf16.mxu0 0
      %7431 = vmatpush1.bf16.msra.mxu0 %v7158
      %7432 = vmatprep.subr.bf16.mxu0 0
      %7433 = vmatpush1.bf16.msra.mxu0 %v7159
      %7434 = vmatprep.subr.bf16.mxu0 0
      %7435 = vmatpush1.bf16.msra.mxu0 %v7160
      %7436 = vmatprep.subr.bf16.mxu0 0
      %7437 = vmatpush1.bf16.msra.mxu0 %v7161
      %7438 = vmatprep.subr.bf16.mxu0 0
      %7439 = vmatpush1.bf16.msra.mxu0 %v7162
      %7440 = vmatprep.subr.bf16.mxu0 0
      %7441 = vmatpush1.bf16.msra.mxu0 %v7163
      %7442 = vmatprep.subr.bf16.mxu0 0
      %7443 = vmatpush1.bf16.msra.mxu0 %v7164
      %7444 = vmatprep.subr.bf16.mxu0 0
      %7445 = vmatpush1.bf16.msra.mxu0 %v7165
      %7446 = vmatprep.subr.bf16.mxu0 0
      %7447 = vmatpush1.bf16.msra.mxu0 %v7166
      %7448 = vmatprep.mubr.bf16.mxu0 %v6835
      %7449 = vmatmul.mubr.bf16.gmra.mrb[0].mxu0 %v6834
      %v7450 = vpop.f32.mrb[0].mxu0
      %v7451 = vadd.f32 %v7290, %v7450
      %v7452 = vpop.f32.mrb[0].mxu0
      %v7453 = vpop.f32.mrb[0].mxu0
      %v7454 = vadd.f32 %v7293, %v7453
      %v7455 = vpop.f32.mrb[0].mxu0
      %7456 = vmatprep.mubr.bf16.mxu0 %v6840
      %7457 = vmatmul.mubr.bf16.gmra.mrb[0].mxu0 %v6839
      %v7458 = vpop.f32.mrb[0].mxu0
      %v7459 = vadd.f32 %v7298, %v7458
      %v7460 = vpop.f32.mrb[0].mxu0
      %v7461 = vpop.f32.mrb[0].mxu0
      %v7462 = vadd.f32 %v7301, %v7461
      %v7463 = vpop.f32.mrb[0].mxu0
      %7464 = vmatprep.mubr.bf16.mxu0 %v6845
      %7465 = vmatmul.mubr.bf16.gmra.mrb[0].mxu0 %v6844
      %v7466 = vpop.f32.mrb[0].mxu0
      %v7467 = vadd.f32 %v7306, %v7466
      %v7468 = vpop.f32.mrb[0].mxu0
      %v7469 = vpop.f32.mrb[0].mxu0
      %v7470 = vadd.f32 %v7309, %v7469
      %v7471 = vpop.f32.mrb[0].mxu0
      %7472 = vmatprep.mubr.bf16.mxu0 %v6850
      %7473 = vmatmul.mubr.bf16.gmra.mrb[0].mxu0 %v6849
      %v7474 = vpop.f32.mrb[0].mxu0
      %v7475 = vadd.f32 %v7314, %v7474
      %v7476 = vpop.f32.mrb[0].mxu0
      %v7477 = vpop.f32.mrb[0].mxu0
      %v7478 = vadd.f32 %v7317, %v7477
      %v7479 = vpop.f32.mrb[0].mxu0
      %7480 = vmatprep.mubr.bf16.mxu0 %v6855
      %7481 = vmatmul.mubr.bf16.gmra.mrb[0].mxu0 %v6854
      %v7482 = vpop.f32.mrb[0].mxu0
      %v7483 = vadd.f32 %v7322, %v7482
      %v7484 = vpop.f32.mrb[0].mxu0
      %v7485 = vpop.f32.mrb[0].mxu0
      %v7486 = vadd.f32 %v7325, %v7485
      %v7487 = vpop.f32.mrb[0].mxu0
      %7488 = vmatprep.mubr.bf16.mxu0 %v6860
      %7489 = vmatmul.mubr.bf16.gmra.mrb[0].mxu0 %v6859
      %v7490 = vpop.f32.mrb[0].mxu0
      %v7491 = vadd.f32 %v7330, %v7490
      %v7492 = vpop.f32.mrb[0].mxu0
      %v7493 = vpop.f32.mrb[0].mxu0
      %v7494 = vadd.f32 %v7333, %v7493
      %v7495 = vpop.f32.mrb[0].mxu0
      %7496 = vmatprep.mubr.bf16.mxu0 %v6865
      %7497 = vmatmul.mubr.bf16.gmra.mrb[0].mxu0 %v6864
      %v7498 = vpop.f32.mrb[0].mxu0
      %v7499 = vadd.f32 %v7338, %v7498
      %v7500 = vpop.f32.mrb[0].mxu0
      %v7501 = vpop.f32.mrb[0].mxu0
      %v7502 = vadd.f32 %v7341, %v7501
      %v7503 = vpop.f32.mrb[0].mxu0
      %7504 = vmatprep.mubr.bf16.mxu0 %v6870
      %7505 = vmatmul.mubr.bf16.gmra.mrb[0].mxu0 %v6869
      %v7506 = vpop.f32.mrb[0].mxu0
      %v7507 = vadd.f32 %v7346, %v7506
      %v7508 = vpop.f32.mrb[0].mxu0
      %v7509 = vpop.f32.mrb[0].mxu0
      %v7510 = vadd.f32 %v7349, %v7509
      %v7511 = vpop.f32.mrb[0].mxu0
      %7512 = vmatprep.mubr.bf16.mxu0 %v6875
      %7513 = vmatmul.mubr.bf16.gmra.mrb[0].mxu0 %v6874
      %v7514 = vpop.f32.mrb[0].mxu0
      %v7515 = vadd.f32 %v7354, %v7514
      %v7516 = vpop.f32.mrb[0].mxu0
      %v7517 = vpop.f32.mrb[0].mxu0
      %v7518 = vadd.f32 %v7357, %v7517
      %v7519 = vpop.f32.mrb[0].mxu0
      %7520 = vmatprep.mubr.bf16.mxu0 %v6880
      %7521 = vmatmul.mubr.bf16.gmra.mrb[0].mxu0 %v6879
      %v7522 = vpop.f32.mrb[0].mxu0
      %v7523 = vadd.f32 %v7362, %v7522
      %v7524 = vpop.f32.mrb[0].mxu0
      %v7525 = vpop.f32.mrb[0].mxu0
      %v7526 = vadd.f32 %v7365, %v7525
      %v7527 = vpop.f32.mrb[0].mxu0
      %7528 = vmatprep.mubr.bf16.mxu0 %v6885
      %7529 = vmatmul.mubr.bf16.gmra.mrb[0].mxu0 %v6884
      %v7530 = vpop.f32.mrb[0].mxu0
      %v7531 = vadd.f32 %v7370, %v7530
      %v7532 = vpop.f32.mrb[0].mxu0
      %v7533 = vpop.f32.mrb[0].mxu0
      %v7534 = vadd.f32 %v7373, %v7533
      %v7535 = vpop.f32.mrb[0].mxu0
      %7536 = vmatprep.mubr.bf16.mxu0 %v6890
      %7537 = vmatmul.mubr.bf16.gmra.mrb[0].mxu0 %v6889
      %v7538 = vpop.f32.mrb[0].mxu0
      %v7539 = vadd.f32 %v7378, %v7538
      %v7540 = vpop.f32.mrb[0].mxu0
      %v7541 = vpop.f32.mrb[0].mxu0
      %v7542 = vadd.f32 %v7381, %v7541
      %v7543 = vpop.f32.mrb[0].mxu0
      %7544 = vmatprep.mubr.bf16.mxu0 %v6895
      %7545 = vmatmul.mubr.bf16.gmra.mrb[0].mxu0 %v6894
      %v7546 = vpop.f32.mrb[0].mxu0
      %v7547 = vadd.f32 %v7386, %v7546
      %v7548 = vpop.f32.mrb[0].mxu0
      %v7549 = vpop.f32.mrb[0].mxu0
      %v7550 = vadd.f32 %v7389, %v7549
      %v7551 = vpop.f32.mrb[0].mxu0
      %7552 = vmatprep.mubr.bf16.mxu0 %v6900
      %7553 = vmatmul.mubr.bf16.gmra.mrb[0].mxu0 %v6899
      %v7554 = vpop.f32.mrb[0].mxu0
      %v7555 = vadd.f32 %v7394, %v7554
      %v7556 = vpop.f32.mrb[0].mxu0
      %v7557 = vpop.f32.mrb[0].mxu0
      %v7558 = vadd.f32 %v7397, %v7557
      %v7559 = vpop.f32.mrb[0].mxu0
      %7560 = vmatprep.mubr.bf16.mxu0 %v6905
      %7561 = vmatmul.mubr.bf16.gmra.mrb[0].mxu0 %v6904
      %v7562 = vpop.f32.mrb[0].mxu0
      %v7563 = vadd.f32 %v7402, %v7562
      %v7564 = vpop.f32.mrb[0].mxu0
      %v7565 = vpop.f32.mrb[0].mxu0
      %v7566 = vadd.f32 %v7405, %v7565
      %v7567 = vpop.f32.mrb[0].mxu0
      %7568 = vmatprep.mubr.bf16.mxu0 %v6910
      %7569 = vmatmul.mubr.bf16.gmra.mrb[0].mxu0 %v6909
      %v7570 = vpop.f32.mrb[0].mxu0
      %v7571 = vadd.f32 %v7410, %v7570
      %v7572 = vpop.f32.mrb[0].mxu0
      %v7573 = vpop.f32.mrb[0].mxu0
      %v7574 = vadd.f32 %v7413, %v7573
      %v7575 = vpop.f32.mrb[0].mxu0
      %7576 = vdwg.mxu0
      %7577 = vmatprep.subr.bf16.mxu0 0
      %7578 = vmatpush1.bf16.msra.mxu0 %v7167
      %7579 = vmatprep.subr.bf16.mxu0 0
      %7580 = vmatpush1.bf16.msra.mxu0 %v7168
      %7581 = vmatprep.subr.bf16.mxu0 0
      %7582 = vmatpush1.bf16.msra.mxu0 %v7169
      %7583 = vmatprep.subr.bf16.mxu0 0
      %7584 = vmatpush1.bf16.msra.mxu0 %v7170
      %7585 = vmatprep.subr.bf16.mxu0 0
      %7586 = vmatpush1.bf16.msra.mxu0 0
      %7587 = vmatprep.subr.bf16.mxu0 0
      %7588 = vmatpush1.bf16.msra.mxu0 0
      %7589 = vmatprep.subr.bf16.mxu0 0
      %7590 = vmatpush1.bf16.msra.mxu0 0
      %7591 = vmatprep.subr.bf16.mxu0 0
      %7592 = vmatpush1.bf16.msra.mxu0 0
      %7593 = vmatprep.subr.bf16.mxu0 0
      %7594 = vmatpush1.bf16.msra.mxu0 0
      %7595 = vmatprep.subr.bf16.mxu0 0
      %7596 = vmatpush1.bf16.msra.mxu0 0
      %7597 = vmatprep.subr.bf16.mxu0 0
      %7598 = vmatpush1.bf16.msra.mxu0 0
      %7599 = vmatprep.subr.bf16.mxu0 0
      %7600 = vmatpush1.bf16.msra.mxu0 0
      %7601 = vmatprep.subr.bf16.mxu0 0
      %7602 = vmatpush1.bf16.msra.mxu0 0
      %7603 = vmatprep.subr.bf16.mxu0 0
      %7604 = vmatpush1.bf16.msra.mxu0 0
      %7605 = vmatprep.subr.bf16.mxu0 0
      %7606 = vmatpush1.bf16.msra.mxu0 0
      %7607 = vmatprep.subr.bf16.mxu0 0
      %7608 = vmatpush1.bf16.msra.mxu0 0
      %7609 = vmatprep.mubr.bf16.mxu0 0
      %7610 = vmatmul.mubr.bf16.gmra.mrb[0].mxu0 %v7208
      %v7611 = vpop.f32.mrb[0].mxu0
      %v7612 = vadd.f32 %v7451, %v7611
      %v7613 = vpop.f32.mrb[0].mxu0
      %v7614 = vpop.f32.mrb[0].mxu0
      %v7615 = vadd.f32 %v7454, %v7614
      %v7616 = vpop.f32.mrb[0].mxu0
      %7617 = vmatprep.mubr.bf16.mxu0 0
      %7618 = vmatmul.mubr.bf16.gmra.mrb[0].mxu0 %v7211
      %v7619 = vpop.f32.mrb[0].mxu0
      %v7620 = vadd.f32 %v7459, %v7619
      %v7621 = vpop.f32.mrb[0].mxu0
      %v7622 = vpop.f32.mrb[0].mxu0
      %v7623 = vadd.f32 %v7462, %v7622
      %v7624 = vpop.f32.mrb[0].mxu0
      %7625 = vmatprep.mubr.bf16.mxu0 0
      %7626 = vmatmul.mubr.bf16.gmra.mrb[0].mxu0 %v7214
      %v7627 = vpop.f32.mrb[0].mxu0
      %v7628 = vadd.f32 %v7467, %v7627
      %v7629 = vpop.f32.mrb[0].mxu0
      %v7630 = vpop.f32.mrb[0].mxu0
      %v7631 = vadd.f32 %v7470, %v7630
      %v7632 = vpop.f32.mrb[0].mxu0
      %7633 = vmatprep.mubr.bf16.mxu0 0
      %7634 = vmatmul.mubr.bf16.gmra.mrb[0].mxu0 %v7217
      %v7635 = vpop.f32.mrb[0].mxu0
      %v7636 = vadd.f32 %v7475, %v7635
      %v7637 = vpop.f32.mrb[0].mxu0
      %v7638 = vpop.f32.mrb[0].mxu0
      %v7639 = vadd.f32 %v7478, %v7638
      %v7640 = vpop.f32.mrb[0].mxu0
      %7641 = vmatprep.mubr.bf16.mxu0 0
      %7642 = vmatmul.mubr.bf16.gmra.mrb[0].mxu0 %v7220
      %v7643 = vpop.f32.mrb[0].mxu0
      %v7644 = vadd.f32 %v7483, %v7643
      %v7645 = vpop.f32.mrb[0].mxu0
      %v7646 = vpop.f32.mrb[0].mxu0
      %v7647 = vadd.f32 %v7486, %v7646
      %v7648 = vpop.f32.mrb[0].mxu0
      %7649 = vmatprep.mubr.bf16.mxu0 0
      %7650 = vmatmul.mubr.bf16.gmra.mrb[0].mxu0 %v7223
      %v7651 = vpop.f32.mrb[0].mxu0
      %v7652 = vadd.f32 %v7491, %v7651
      %v7653 = vpop.f32.mrb[0].mxu0
      %v7654 = vpop.f32.mrb[0].mxu0
      %v7655 = vadd.f32 %v7494, %v7654
      %v7656 = vpop.f32.mrb[0].mxu0
      %7657 = vmatprep.mubr.bf16.mxu0 0
      %7658 = vmatmul.mubr.bf16.gmra.mrb[0].mxu0 %v7226
      %v7659 = vpop.f32.mrb[0].mxu0
      %v7660 = vadd.f32 %v7499, %v7659
      %v7661 = vpop.f32.mrb[0].mxu0
      %v7662 = vpop.f32.mrb[0].mxu0
      %v7663 = vadd.f32 %v7502, %v7662
      %v7664 = vpop.f32.mrb[0].mxu0
      %7665 = vmatprep.mubr.bf16.mxu0 0
      %7666 = vmatmul.mubr.bf16.gmra.mrb[0].mxu0 %v7229
      %v7667 = vpop.f32.mrb[0].mxu0
      %v7668 = vadd.f32 %v7507, %v7667
      %v7669 = vpop.f32.mrb[0].mxu0
      %v7670 = vpop.f32.mrb[0].mxu0
      %v7671 = vadd.f32 %v7510, %v7670
      %v7672 = vpop.f32.mrb[0].mxu0
      %7673 = vmatprep.mubr.bf16.mxu0 0
      %7674 = vmatmul.mubr.bf16.gmra.mrb[0].mxu0 %v7232
      %v7675 = vpop.f32.mrb[0].mxu0
      %v7676 = vadd.f32 %v7515, %v7675
      %v7677 = vpop.f32.mrb[0].mxu0
      %v7678 = vpop.f32.mrb[0].mxu0
      %v7679 = vadd.f32 %v7518, %v7678
      %v7680 = vpop.f32.mrb[0].mxu0
      %7681 = vmatprep.mubr.bf16.mxu0 0
      %7682 = vmatmul.mubr.bf16.gmra.mrb[0].mxu0 %v7235
      %v7683 = vpop.f32.mrb[0].mxu0
      %v7684 = vadd.f32 %v7523, %v7683
      %v7685 = vpop.f32.mrb[0].mxu0
      %v7686 = vpop.f32.mrb[0].mxu0
      %v7687 = vadd.f32 %v7526, %v7686
      %v7688 = vpop.f32.mrb[0].mxu0
      %7689 = vmatprep.mubr.bf16.mxu0 0
      %7690 = vmatmul.mubr.bf16.gmra.mrb[0].mxu0 %v7238
      %v7691 = vpop.f32.mrb[0].mxu0
      %v7692 = vadd.f32 %v7531, %v7691
      %v7693 = vpop.f32.mrb[0].mxu0
      %v7694 = vpop.f32.mrb[0].mxu0
      %v7695 = vadd.f32 %v7534, %v7694
      %v7696 = vpop.f32.mrb[0].mxu0
      %7697 = vmatprep.mubr.bf16.mxu0 0
      %7698 = vmatmul.mubr.bf16.gmra.mrb[0].mxu0 %v7241
      %v7699 = vpop.f32.mrb[0].mxu0
      %v7700 = vadd.f32 %v7539, %v7699
      %v7701 = vpop.f32.mrb[0].mxu0
      %v7702 = vpop.f32.mrb[0].mxu0
      %v7703 = vadd.f32 %v7542, %v7702
      %v7704 = vpop.f32.mrb[0].mxu0
      %7705 = vmatprep.mubr.bf16.mxu0 0
      %7706 = vmatmul.mubr.bf16.gmra.mrb[0].mxu0 %v7244
      %v7707 = vpop.f32.mrb[0].mxu0
      %v7708 = vadd.f32 %v7547, %v7707
      %v7709 = vpop.f32.mrb[0].mxu0
      %v7710 = vpop.f32.mrb[0].mxu0
      %v7711 = vadd.f32 %v7550, %v7710
      %v7712 = vpop.f32.mrb[0].mxu0
      %7713 = vmatprep.mubr.bf16.mxu0 0
      %7714 = vmatmul.mubr.bf16.gmra.mrb[0].mxu0 %v7247
      %v7715 = vpop.f32.mrb[0].mxu0
      %v7716 = vadd.f32 %v7555, %v7715
      %v7717 = vpop.f32.mrb[0].mxu0
      %v7718 = vpop.f32.mrb[0].mxu0
      %v7719 = vadd.f32 %v7558, %v7718
      %v7720 = vpop.f32.mrb[0].mxu0
      %7721 = vmatprep.mubr.bf16.mxu0 0
      %7722 = vmatmul.mubr.bf16.gmra.mrb[0].mxu0 %v7250
      %v7723 = vpop.f32.mrb[0].mxu0
      %v7724 = vadd.f32 %v7563, %v7723
      %v7725 = vpop.f32.mrb[0].mxu0
      %v7726 = vpop.f32.mrb[0].mxu0
      %v7727 = vadd.f32 %v7566, %v7726
      %v7728 = vpop.f32.mrb[0].mxu0
      %7729 = vmatprep.mubr.bf16.mxu0 0
      %7730 = vmatmul.mubr.bf16.gmra.mrb[0].mxu0 %v7253
      %v7731 = vpop.f32.mrb[0].mxu0
      %v7732 = vadd.f32 %v7571, %v7731
      %v7733 = vpop.f32.mrb[0].mxu0
      %v7734 = vpop.f32.mrb[0].mxu0
      %v7735 = vadd.f32 %v7574, %v7734
      %v7736 = vpop.f32.mrb[0].mxu0
      %7737 = vdwg.mxu0
      %v7738 = vmax.f32 %v7612, 0.0
      %v7739 = vmax.f32 %v7615, 0.0
      %v7740 = vmax.f32 %v7620, 0.0
      %v7741 = vmax.f32 %v7623, 0.0
      %v7742 = vmax.f32 %v7628, 0.0
      %v7743 = vmax.f32 %v7631, 0.0
      %v7744 = vmax.f32 %v7636, 0.0
      %v7745 = vmax.f32 %v7639, 0.0
      %v7746 = vmax.f32 %v7644, 0.0
      %v7747 = vmax.f32 %v7647, 0.0
      %v7748 = vmax.f32 %v7652, 0.0
      %v7749 = vmax.f32 %v7655, 0.0
      %v7750 = vmax.f32 %v7660, 0.0
      %v7751 = vmax.f32 %v7663, 0.0
      %v7752 = vmax.f32 %v7668, 0.0
      %v7753 = vmax.f32 %v7671, 0.0
      %v7754 = vmax.f32 %v7676, 0.0
      %v7755 = vmax.f32 %v7679, 0.0
      %v7756 = vmax.f32 %v7684, 0.0
      %v7757 = vmax.f32 %v7687, 0.0
      %v7758 = vmax.f32 %v7692, 0.0
      %v7759 = vmax.f32 %v7695, 0.0
      %v7760 = vmax.f32 %v7700, 0.0
      %v7761 = vmax.f32 %v7703, 0.0
      %v7762 = vmax.f32 %v7708, 0.0
      %v7763 = vmax.f32 %v7711, 0.0
      %v7764 = vmax.f32 %v7716, 0.0
      %v7765 = vmax.f32 %v7719, 0.0
      %v7766 = vmax.f32 %v7724, 0.0
      %v7767 = vmax.f32 %v7727, 0.0
      %v7768 = vmax.f32 %v7732, 0.0
      %v7769 = vmax.f32 %v7735, 0.0
      %v7770 = vld [vmem:[%s20] sm:$0x1]
      %v7771 = vpack.c.bf16 %v7739, %v7738
      %v7772 = vpack.c.bf16 %v7741, %v7740
      %v7773 = vpack.c.bf16 %v7743, %v7742
      %v7774 = vpack.c.bf16 %v7745, %v7744
      %v7775 = vpack.c.bf16 %v7747, %v7746
      %v7776 = vpack.c.bf16 %v7749, %v7748
      %v7777 = vpack.c.bf16 %v7751, %v7750
      %v7778 = vpack.c.bf16 %v7753, %v7752
      %v7779 = vpack.c.bf16 %v7755, %v7754
      %v7780 = vpack.c.bf16 %v7757, %v7756
      %v7781 = vpack.c.bf16 %v7759, %v7758
      %v7782 = vpack.c.bf16 %v7761, %v7760
      %v7783 = vpack.c.bf16 %v7763, %v7762
      %v7784 = vpack.c.bf16 %v7765, %v7764
      %v7785 = vpack.c.bf16 %v7767, %v7766
      %v7786 = vpack.c.bf16 %v7769, %v7768
      %v7787 = vld [vmem:[#allocation5] sm:$0x1]
      %7789 = vset.pattern.permute.xlu0 0
      %7790 = vperm.xlu0 %7789, %v7787
      %v7791 = vpop.permute.xlu0 %7790
      %v7793 = vlaneseq
      %v7794 = vshrl.u32 %v7793, 7
      %v7795 = vsub.s32 0, %v7794
      %v7796 = vrot.slane %v7791, %v7795
      %v7798 = vsel %vm3185, %v7770, 0
      %v7801 = vsel %vm3185, %v7771, 0
      %v7804 = vsel %vm3185, %v7772, 0
      %v7807 = vsel %vm3185, %v7773, 0
      %v7810 = vsel %vm3185, %v7774, 0
      %v7813 = vsel %vm3185, %v7775, 0
      %v7816 = vsel %vm3185, %v7776, 0
      %v7819 = vsel %vm3185, %v7777, 0
      %v7822 = vsel %vm3185, %v7778, 0
      %v7825 = vsel %vm3185, %v7779, 0
      %v7828 = vsel %vm3185, %v7780, 0
      %v7831 = vsel %vm3185, %v7781, 0
      %v7834 = vsel %vm3185, %v7782, 0
      %v7837 = vsel %vm3185, %v7783, 0
      %v7840 = vsel %vm3185, %v7784, 0
      %v7843 = vsel %vm3185, %v7785, 0
      %v7846 = vsel %vm3185, %v7786, 0
      %7848 = vmatprep.subr.bf16.mxu0 0
      %7849 = vmatpush1.bf16.xpose.msra.mxu0 %v7801
      %7850 = vmatprep.subr.bf16.mxu0 0
      %7851 = vmatpush1.bf16.xpose.msra.mxu0 %v7804
      %7852 = vmatprep.subr.bf16.mxu0 0
      %7853 = vmatpush1.bf16.xpose.msra.mxu0 %v7807
      %7854 = vmatprep.subr.bf16.mxu0 0
      %7855 = vmatpush1.bf16.xpose.msra.mxu0 %v7810
      %7856 = vmatprep.subr.bf16.mxu0 0
      %7857 = vmatpush1.bf16.xpose.msra.mxu0 %v7813
      %7858 = vmatprep.subr.bf16.mxu0 0
      %7859 = vmatpush1.bf16.xpose.msra.mxu0 %v7816
      %7860 = vmatprep.subr.bf16.mxu0 0
      %7861 = vmatpush1.bf16.xpose.msra.mxu0 %v7819
      %7862 = vmatprep.subr.bf16.mxu0 0
      %7863 = vmatpush1.bf16.xpose.msra.mxu0 %v7822
      %7864 = vmatprep.subr.bf16.mxu0 0
      %7865 = vmatpush1.bf16.xpose.msra.mxu0 %v7825
      %7866 = vmatprep.subr.bf16.mxu0 0
      %7867 = vmatpush1.bf16.xpose.msra.mxu0 %v7828
      %7868 = vmatprep.subr.bf16.mxu0 0
      %7869 = vmatpush1.bf16.xpose.msra.mxu0 %v7831
      %7870 = vmatprep.subr.bf16.mxu0 0
      %7871 = vmatpush1.bf16.xpose.msra.mxu0 %v7834
      %7872 = vmatprep.subr.bf16.mxu0 0
      %7873 = vmatpush1.bf16.xpose.msra.mxu0 %v7837
      %7874 = vmatprep.subr.bf16.mxu0 0
      %7875 = vmatpush1.bf16.xpose.msra.mxu0 %v7840
      %7876 = vmatprep.subr.bf16.mxu0 0
      %7877 = vmatpush1.bf16.xpose.msra.mxu0 %v7843
      %7878 = vmatprep.subr.bf16.mxu0 0
      %7879 = vmatpush1.bf16.xpose.msra.mxu0 %v7846
      %7880 = vmatprep.mubr.bf16.mxu0 0
      %7881 = vmatmul.mubr.bf16.gmra.mrb[0].mxu0 %v7798
      %v7882 = vpop.f32.mrb[0].mxu0
      %v7883 = vadd.f32 %v7796, %v7882
      %v7884 = vpop.f32.mrb[0].mxu0
      %v7885 = vadd.f32 %v7796, %v7884
      %v7886 = vpop.f32.mrb[0].mxu0
      %v7887 = vpop.f32.mrb[0].mxu0
      %7888 = vdwg.mxu0
      %v7889 = vand.u32 2147483647, %v7883
      %v7890 = vand.u32 2147483647, %v7885
      %v7891 = vsub.f32 0.0, %v7889
      %v7892 = vsub.f32 0.0, %v7890
      %v7893 = vmul.f32 %v7891, 1.442695
      %v7894 = vpow.pop %v7893
      %v7895 = vmul.f32 %v7892, 1.442695
      %v7896 = vpow.pop %v7895
      %vm7897 = vcmp.ge.f32.partialorder %v7883, 0.0
      %vm7898 = vcmp.ge.f32.partialorder %v7885, 0.0
      %v7899 = vadd.f32 %v7894, 1.0
      %v7900 = vadd.f32 %v7896, 1.0
      %v7901 = vrcp.pop %v7899
      %v7902 = vmul.f32 1.0, %v7901
      %v7903 = vrcp.pop %v7900
      %v7904 = vmul.f32 1.0, %v7903
      %v7905 = vmul.f32 %v7894, %v7901
      %v7906 = vmul.f32 %v7896, %v7903
      %v7907 = vsel %vm7897, %v7902, %v7905
      %v7908 = vsel %vm7898, %v7904, %v7906
      %v7911 = vcombine.low %v7907, %v7908
      %v7913 = vunpack.c.l.s4 1966171168
      %v7914 = vunpack.c.0.s8 %v7913
      %v7915 = vlaneseq
      %v7916 = vshrl.u32 %v7915, 7
      %v7917 = vsub.s32 %v7914, %v7916
      %v7918 = vrot.slane %v7911, %v7917
      %v7920 = vunpack.c.l.s4 1966171168
      %v7921 = vunpack.c.0.s8 %v7920
      %v7922 = vlaneseq
      %v7923 = vshrl.u32 %v7922, 7
      %v7924 = vsub.s32 %v7921, %v7923
      %v7925 = vrot.slane %v7918, %v7924
      %v7927 = vlaneseq
      %vm7928 = vcmp.ge.s32.totalorder %v7927, 0
      %vm7929 = vcmp.lt.s32.totalorder %v7927, 256
      %vm7930 = vmand %vm7928, %vm7929
      %7931 = vst.msk [vmem:[%s685] sm:$0x3] %vm7930, %v7925
      %p7932 = scmp.lt.s32.totalorder %s37, 1
      %s7933 = scalar_select %p7932, %s37, 1
      %s7934 = smul.addr %s7933, 2
      %s7935 = scalar_lea.vmem %s22, %s7934
      // Predicated region
      $region109: #{weight_predictor_forward.1} parent=107 // pred_check
        %p7936 = pneg %p522
      $region110: #{weight_predictor_forward.1} parent=107 // pred_check_branch
        %7938 = sbr.rel (%p7936) target = $region112
      $region111: #{weight_predictor_forward.1} parent=107 // pred_region
        _
      $region112: #{weight_predictor_forward.1} parent=107 // pred_fallthru
        _
    $region108: #{weight_predictor_forward.1} parent=5 // pred_fallthru
      _
    %p7939 = scmp.le.s32.totalorder 2, %s32
    // Predicated region
    $region113: #{weight_predictor_forward.1} parent=5 // pred_check
      %p7940 = pneg %p7939
    $region114: #{weight_predictor_forward.1} parent=5 // pred_check_branch
      %7942 = sbr.rel (%p7940) target = $region116
    $region115: #{weight_predictor_forward.1} parent=5 // pred_region
      %s7943 = ssub.s32 %s32, 2
      // Predicated region
      $region117: #{weight_predictor_forward.1} parent=115 // pred_check
        %p7944 = pneg %p528
      $region118: #{weight_predictor_forward.1} parent=115 // pred_check_branch
        %7946 = sbr.rel (%p7944) target = $region120
      $region119: #{weight_predictor_forward.1} parent=115 // pred_region
        %p7947 = scmp.lt.s32.totalorder %s38, 1
        %s7948 = scalar_select %p7947, %s38, 1
        %s7949 = smul.addr %s7948, 2
        %s7950 = scalar_lea.vmem %s22, %s7949
      $region120: #{weight_predictor_forward.1} parent=115 // pred_fallthru
        _
    $region116: #{weight_predictor_forward.1} parent=5 // pred_fallthru
      _
  $region6: #{weight_predictor_forward.1} parent=0 // loop_footer
    %s36 = sadd.s32 1, %s32
  $region7: #{weight_predictor_forward.1} parent=0 // loop_footer_branch
    %31 = sbr.rel target = $region3
  $region8: #{weight_predictor_forward.1} parent=0 // loop_exit
    _

</llo_original>
